<compile_context>
chip_gen: v7x
topology: tpu7x:2x2x1
jax: 0.10.0
libtpu: 0.0.40
codegen_flags: <defaults>
</compile_context>

<pallas_src>
import numpy as np
import jax
import jax.numpy as jnp
from jax import lax
from jax.experimental import pallas as pl
from jax.experimental.pallas import tpu as pltpu


# ----------------------------------------------------------------------------
# Mesh construction (deterministic synthetic mesh = regular grid on [-1, 1]^2)
# ----------------------------------------------------------------------------
def build_grid_mesh(G=5):
    xs = np.linspace(-1.0, 1.0, G, dtype=np.float32)
    verts = np.zeros((G * G, 2), np.float32)

    def vid(i, j):
        return j * G + i

    for j in range(G):
        for i in range(G):
            verts[vid(i, j)] = (xs[i], xs[j])

    faces = []
    for j in range(G - 1):
        for i in range(G - 1):
            v00, v10 = vid(i, j), vid(i + 1, j)
            v01, v11 = vid(i, j + 1), vid(i + 1, j + 1)
            faces.append((v00, v10, v11))   # CCW
            faces.append((v00, v11, v01))   # CCW
    faces = np.array(faces, np.int32)

    eset = set()
    for (a, b, c) in faces:
        for (u, v) in ((a, b), (b, c), (c, a)):
            eset.add((min(int(u), int(v)), max(int(u), int(v))))
    und = sorted(eset)
    edges = np.array([[u for u, v in und] + [v for u, v in und],
                      [v for u, v in und] + [u for u, v in und]], np.int32)

    bound = []
    for i in range(G):
        bound.append(vid(i, 0))
    for j in range(1, G):
        bound.append(vid(G - 1, j))
    for i in range(G - 2, -1, -1):
        bound.append(vid(i, G - 1))
    for j in range(G - 2, 0, -1):
        bound.append(vid(0, j))
    bound = np.array(bound, np.int32)
    bset = set(bound.tolist())
    interior = np.array([v for v in range(G * G) if v not in bset], np.int32)
    return verts, faces, edges, bound, interior


def _round_up(x, m):
    return ((x + m - 1) // m) * m


def _choose_tile(n_pad):
    # Lane-dense (multiple-of-128) tiles, capped at 2048 lanes.  Prefer >= 2 grid steps
    # so dimension_semantics=("parallel",) can shard across v7x's 2 TensorCores.
    best = min(n_pad, 128)
    for tn in range(128, min(n_pad, 2048) + 1, 128):
        if n_pad % tn == 0 and (n_pad // tn) >= 2:
            best = tn
    return best


# ----------------------------------------------------------------------------
# Fused Pallas kernel: 3x (MXU simplex search + MXU gather + Tutte interp + 2x2 Jacobian)
#                      + triplane 3x3 composition.  Lane-major layout [C, N].
# ----------------------------------------------------------------------------
# Packed output row layout (32 rows x TN lanes):
#   0-1   pred1 (x, y)        6-9   dist1 (m00,m01,m10,m11)   18-26 total 3x3 (row-major)
#   2-3   pred2 (x, y)        10-13 dist2                     27-31 zero padding
#   4-5   pred3 (x, y)        14-17 dist3
def tutte_triplane_kernel(pts_ref, dcoef_ref, tbl_ref, out_ref):
    F3, K = dcoef_ref.shape                           # [3F, 8]
    F = F3 // 3
    TN = pts_ref.shape[1]

    dcoef = dcoef_ref[...]                            # [3F, 8] half-plane coefficients
    tbl = tbl_ref[...]                                # [48, F] = 3 layers x 16 rows
    iota_f = lax.broadcasted_iota(jnp.int32, (F, TN), 0)
    one_row = jnp.ones((1, TN), jnp.float32)
    pad_rows = jnp.zeros((K - 3, TN), jnp.float32)
    eps = jnp.float32(-1e-6)
    hiprec = lax.Precision.HIGHEST                    # keep f32 accuracy on the MXU

    def run_layer(px, py, layer):
        # px, py: [1, TN] query coordinates.
        # --- brute-force find_simplex: 3 affine half-plane tests per face as 1 matmul ---
        q = jnp.concatenate([px, py, one_row, pad_rows], axis=0)            # [8, TN]
        qd = jnp.dot(dcoef, q, preferred_element_type=jnp.float32,
                     precision=hiprec)                                       # [3F, TN]
        inside = ((qd[0:F] >= eps) & (qd[F:2 * F] >= eps)
                  & (qd[2 * F:3 * F] >= eps))                                # [F, TN]
        fid = jnp.max(jnp.where(inside, iota_f, -1), axis=0, keepdims=True)  # [1, TN]
        fid = jnp.where(fid < 0, F - 1, fid)          # scipy returns -1 -> faces[-1]
        onehot = (iota_f == fid).astype(jnp.float32)                         # [F, TN]

        # --- in-kernel corner gather via MXU: [16, F] @ [F, TN] -> [16, TN] ---
        # rows 0-5: source corners, rows 6-11: deformed corners, 12-15: zero pad.
        g = jnp.dot(tbl[16 * layer:16 * (layer + 1), :], onehot,
                    preferred_element_type=jnp.float32, precision=hiprec)
        a0x, a0y = g[0:1, :], g[1:2, :]
        b0x, b0y = g[2:3, :], g[3:4, :]
        c0x, c0y = g[4:5, :], g[5:6, :]
        a1x, a1y = g[6:7, :], g[7:8, :]
        b1x, b1y = g[8:9, :], g[9:10, :]
        c1x, c1y = g[10:11, :], g[11:12, :]

        # --- barycentric sub-areas (get_areas) + Tutte interpolation ---
        area_a = jnp.abs((px - b0x) * (py - c0y) - (py - b0y) * (px - c0x)) * 0.5
        area_b = jnp.abs((px - a0x) * (py - c0y) - (py - a0y) * (px - c0x)) * 0.5
        area_c = jnp.abs((px - a0x) * (py - b0y) - (py - a0y) * (px - b0x)) * 0.5
        inv_total = pl.reciprocal(area_a + area_b + area_c, approx=False)
        pred_x = (a1x * area_a + b1x * area_b + c1x * area_c) * inv_total
        pred_y = (a1y * area_a + b1y * area_b + c1y * area_c) * inv_total

        # --- affine Jacobian M = E1 @ inv(E0)  (closed-form of the 6x6 solve) ---
        e00x, e00y = b0x - a0x, b0y - a0y
        e01x, e01y = c0x - a0x, c0y - a0y
        e10x, e10y = b1x - a1x, b1y - a1y
        e11x, e11y = c1x - a1x, c1y - a1y
        inv_det = pl.reciprocal(e00x * e01y - e01x * e00y, approx=False)
        i00 = e01y * inv_det
        i01 = -e01x * inv_det
        i10 = -e00y * inv_det
        i11 = e00x * inv_det
        m00 = e10x * i00 + e11x * i10
        m01 = e10x * i01 + e11x * i11
        m10 = e10y * i00 + e11y * i10
        m11 = e10y * i01 + e11y * i11
        return pred_x, pred_y, (m00, m01, m10, m11)

    pts = pts_ref[...]                                 # [3, TN]
    px, py, pz = pts[0:1, :], pts[1:2, :], pts[2:3, :]

    # layer 1 on (x, y); layer 2 on (pred1_x, z); layer 3 on (pred1_y, pred2_y)
    p1x, p1y, (a00, a01, a10, a11) = run_layer(px, py, 0)
    p2x, p2y, (b00, b01, b10, b11) = run_layer(p1x, pz, 1)
    p3x, p3y, (c00, c01, c10, c11) = run_layer(p1y, p2y, 2)

    # triplane 3x3 distortion composition (row-major)
    t00 = b00 * a00
    t01 = b00 * a01
    t02 = b01
    t10 = c00 * a10 + c01 * b10 * a00
    t11 = c00 * a11 + c01 * b10 * a01
    t12 = c01 * b11
    t20 = c10 * a10 + c11 * b10 * a00
    t21 = c10 * a11 + c11 * b10 * a01
    t22 = c11 * b11

    pad = jnp.zeros((5, TN), jnp.float32)
    out_ref[...] = jnp.concatenate(
        [p1x, p1y, p2x, p2y, p3x, p3y,
         a00, a01, a10, a11, b00, b01, b10, b11, c00, c01, c10, c11,
         t00, t01, t02, t10, t11, t12, t20, t21, t22, pad], axis=0)   # one [32, TN] store


# ----------------------------------------------------------------------------
# Tutte embedding (JAX glue: boundary mapping + interior Laplacian solve)
# ----------------------------------------------------------------------------
def tutte_embedding(W_var, angle_var, edges, n_vert, bound_verts, interior_verts):
    # TODO(synk): the sparse torch_geometric Laplacian assembly + sparse solve has no
    # clean Pallas equivalent; replicated here as an equivalent dense jnp.linalg.solve.
    w = jax.nn.sigmoid(W_var)[0] * (1.0 - 0.4) + 0.2              # [n_edges]
    ang = jax.nn.sigmoid(angle_var)[0] * (1.0 - 0.4) + 0.2        # [n_bound]
    ang = ang / jnp.sum(ang)
    angle_init = jnp.cumsum(ang) * 2.0 * jnp.pi

    pi = jnp.pi
    t = jnp.tan(angle_init)
    m1 = (angle_init > 7 * pi / 4) | (angle_init <= pi / 4)
    m2 = (angle_init > pi / 4) & (angle_init <= 3 * pi / 4)
    m3 = (angle_init > 3 * pi / 4) & (angle_init <= 5 * pi / 4)
    m4 = (angle_init > 5 * pi / 4) & (angle_init <= 7 * pi / 4)
    bx = (jnp.where(m1, 1.0, 0.0) + jnp.where(m2, 1.0 / t, 0.0)
          + jnp.where(m3, -1.0, 0.0) + jnp.where(m4, -1.0 / t, 0.0))
    by = (jnp.where(m1, t, 0.0) + jnp.where(m2, 1.0, 0.0)
          + jnp.where(m3, -t, 0.0) + jnp.where(m4, -1.0, 0.0))
    bound_pos = jnp.stack([bx, by], axis=1).astype(jnp.float32)   # [n_bound, 2]

    src, dst = edges[0], edges[1]
    Wm = jnp.zeros((n_vert, n_vert), jnp.float32).at[src, dst].add(w)
    deg = jnp.zeros((n_vert,), jnp.float32).at[src].add(w)
    L = jnp.diag(deg) - Wm                                        # graph Laplacian
    A = L[interior_verts][:, interior_verts]
    b = -(L[:, bound_verts] @ bound_pos)
    b = b[interior_verts]
    x = jnp.linalg.solve(A, b)
    out = jnp.zeros((n_vert, 2), jnp.float32)
    out = out.at[bound_verts].set(bound_pos).at[interior_verts].set(x)
    return out


# ----------------------------------------------------------------------------
# TutteTriplane forward (single fused pallas_call for all per-point work)
# ----------------------------------------------------------------------------
def tutte_triplane(input_points, params, consts, prefix=""):
    verts, faces, edges, bound, interior, dcoef, src_6F = consts
    B, N, _ = input_points.shape                    # batch_size fixed to 1 (as in the module)
    n_vert = verts.shape[0]
    F = faces.shape[0]

    # Per-layer deformed vertices (JAX glue) + per-layer [16, F] corner tables:
    # rows 0-5 source corners, rows 6-11 deformed corners, 12-15 zero pad (sublane alignment).
    nvs, tbls = [], []
    for (Wv, Av) in params:
        nv = tutte_embedding(Wv, Av, edges, n_vert, bound, interior)        # [V, 2]
        nvs.append(nv)
        def_6F = nv[faces].reshape(F, 6).T                                   # [6, F] per-face glue
        tbls.append(jnp.concatenate([src_6F, def_6F,
                                     jnp.zeros((4, F), jnp.float32)], axis=0))
    tbl48 = jnp.concatenate(tbls, axis=0)                                    # [48, F]

    # Lane-major packing of query points, N padded to a lane-friendly multiple of 128.
    pts = input_points.reshape(B * N, 3).T                                   # [3, N]
    n_pad = _round_up(max(N, 1), 128)
    if n_pad > 256:
        n_pad = _round_up(n_pad, 512)       # keeps tiles big without much extra padding
    TN = _choose_tile(n_pad)
    pts = jnp.pad(pts, ((0, 0), (0, n_pad - N)))                             # pad lanes w/ (0,0,0)

    # Scoped-VMEM: double-buffered IO tiles + resident tables + [3F,TN]/[F,TN] temporaries,
    # with 2x headroom; clamp to [16 MiB, 32 MiB] so it is safe on v5e/v6e/v7x alike.
    est_bytes = 4 * (2 * (3 + 32) * TN
                     + 2 * (3 * F * 8 + 48 * F)
                     + (8 * F + 96) * TN)
    vmem_limit = int(min(max(2 * est_bytes, 16 * 1024 * 1024), 32 * 1024 * 1024))

    out = pl.pallas_call(
        tutte_triplane_kernel,
        grid=(n_pad // TN,),
        in_specs=[pl.BlockSpec((3, TN), lambda i: (0, i)),
                  pl.BlockSpec((3 * F, 8), lambda i: (0, 0)),   # half-plane coeffs, resident
                  pl.BlockSpec((48, F), lambda i: (0, 0))],     # packed corner tables, resident
        out_specs=pl.BlockSpec((32, TN), lambda i: (0, i)),
        out_shape=jax.ShapeDtypeStruct((32, n_pad), jnp.float32),
        compiler_params=pltpu.CompilerParams(
            dimension_semantics=("parallel",),
            vmem_limit_bytes=vmem_limit),
    )(pts, dcoef, tbl48)

    out = out[:, :N]
    pred1 = out[0:2].T[None]                          # [1, N, 2]
    pred2 = out[2:4].T[None]
    pred3 = out[4:6].T[None]
    d1 = out[6:10].T.reshape(N, 2, 2)
    d2 = out[10:14].T.reshape(N, 2, 2)
    d3 = out[14:18].T.reshape(N, 2, 2)
    total_distortion = out[18:27].T.reshape(N, 3, 3)

    z = input_points[:, :, 2:3]
    new_points1 = jnp.concatenate([pred1, z], axis=2)
    new_points2 = jnp.concatenate([pred2[:, :, 0:1], pred1[:, :, 1:2], pred2[:, :, 1:2]], axis=2)
    new_points3 = jnp.concatenate([new_points2[:, :, 0:1], pred3], axis=2)

    return_dict = {
        prefix + "pred_points1": new_points1,
        prefix + "new_01_vertices1": nvs[0][None],
        prefix + "pred_01_points1": pred1,
        prefix + "distortion1": d1,
        prefix + "pred_points2": new_points2,
        prefix + "new_02_vertices2": nvs[1][None],
        prefix + "pred_02_points2": pred2,
        prefix + "distortion2": d2,
        prefix + "pred_points3": new_points3,
        prefix + "new_12_vertices2": nvs[2][None],
        prefix + "pred_12_points2": pred3,
        prefix + "distortion3": d3,
        prefix + "distortion": total_distortion,
    }
    return new_points3, return_dict


# ----------------------------------------------------------------------------
# Demo
# ----------------------------------------------------------------------------
if __name__ == "__main__":
    G = 5
    verts_np, faces_np, edges_np, bound_np, interior_np = build_grid_mesh(G)
    Fn = faces_np.shape[0]
    verts = jnp.asarray(verts_np)
    faces = jnp.asarray(faces_np)
    edges = jnp.asarray(edges_np)
    bound = jnp.asarray(bound_np)
    interior = jnp.asarray(interior_np)

    corner_np = verts_np[faces_np].reshape(Fn, 6).astype(np.float32)   # (Ax,Ay,Bx,By,Cx,Cy)
    src_6F = jnp.asarray(corner_np.T)          # [6, F] coord-major table for the MXU gather

    # Precompute the per-face affine half-plane coefficients for the MXU inside-test:
    # d = (Qx-Px)*(py-Py) - (Qy-Py)*(px-Px) = cpx*px + cpy*py + c1, for edges AB, BC, CA.
    A_c, B_c, C_c = corner_np[:, 0:2], corner_np[:, 2:4], corner_np[:, 4:6]

    def _edge_coeffs(P, Q):
        return np.stack([-(Q[:, 1] - P[:, 1]), Q[:, 0] - P[:, 0],
                         P[:, 0] * Q[:, 1] - P[:, 1] * Q[:, 0]], axis=1)

    dcoef_np = np.concatenate([_edge_coeffs(A_c, B_c), _edge_coeffs(B_c, C_c),
                               _edge_coeffs(C_c, A_c)], axis=0)        # [3F, 3]
    dcoef_np = np.pad(dcoef_np, ((0, 0), (0, 5))).astype(np.float32)   # [3F, 8]
    dcoef = jnp.asarray(dcoef_np)

    consts = (verts, faces, edges, bound, interior, dcoef, src_6F)

    key = jax.random.PRNGKey(0)
    keys = jax.random.split(key, 7)
    n_edges = edges_np.shape[1]                # directed edge count (matches W_var layout)
    n_bound = bound_np.shape[0]
    params = []
    for li in range(3):                        # three TutteLayers, uniform(0,1) init like torch
        Wv = jax.random.uniform(keys[2 * li], (1, n_edges), jnp.float32)
        Av = jax.random.uniform(keys[2 * li + 1], (1, n_bound), jnp.float32)
        params.append((Wv, Av))

    B, N = 1, 16
    input_points = jax.random.uniform(
        keys[6], (B, N, 3), jnp.float32, minval=-0.85, maxval=0.85)

    fwd = jax.jit(lambda x: tutte_triplane(x, params, consts))
    new_points3, ret = fwd(input_points)
    jax.block_until_ready((new_points3, ret))

    assert new_points3.shape == (B, N, 3)
    assert ret["distortion"].shape == (N, 3, 3)
    assert ret["distortion1"].shape == (N, 2, 2)
    assert ret["pred_01_points1"].shape == (B, N, 2)
    assert ret["new_01_vertices1"].shape == (1, G * G, 2)
    assert bool(jnp.all(jnp.isfinite(new_points3)))
    assert bool(jnp.all(jnp.isfinite(ret["distortion"])))
    print("KERNEL_OK")
</pallas_src>

<mosaic_0001>
module attributes {stable_mosaic.version = 11 : i64} {
  func.func @tutte_triplane_kernel(%arg0: i32, %arg1: memref<3x128xf32, #tpu.memory_space<vmem>>, %arg2: memref<96x8xf32, #tpu.memory_space<vmem>>, %arg3: memref<48x32xf32, #tpu.memory_space<vmem>>, %arg4: memref<32x128xf32, #tpu.memory_space<vmem>>) attributes {dimension_semantics = [#tpu.dimension_semantics<parallel>], iteration_bounds = array<i64: 1>, scalar_prefetch = 0 : i64, scratch_operands = 0 : i64, tpu.core_type = #tpu.core_type<tc>, window_params = [{transform_indices = @transform_0, window_bounds = array<i64: 3, 128>}, {pipeline_mode = #tpu.pipeline_mode<synchronous>, transform_indices = @transform_1, window_bounds = array<i64: 96, 8>}, {pipeline_mode = #tpu.pipeline_mode<synchronous>, transform_indices = @transform_2, window_bounds = array<i64: 48, 32>}, {transform_indices = @transform_3, window_bounds = array<i64: 32, 128>}]} {
    %c0 = arith.constant 0 : index
    %c0_0 = arith.constant 0 : index
    %0 = vector.load %arg2[%c0, %c0_0] : memref<96x8xf32, #tpu.memory_space<vmem>>, vector<96x8xf32>
    %c0_1 = arith.constant 0 : index
    %c0_2 = arith.constant 0 : index
    %1 = vector.load %arg3[%c0_1, %c0_2] : memref<48x32xf32, #tpu.memory_space<vmem>>, vector<48x32xf32>
    %2 = tpu.iota {dimensions = array<i32: 0>} : vector<32x128xi32>
    %cst = arith.constant 1.000000e+00 : f32
    %3 = vector.broadcast %cst : f32 to vector<1x128xf32>
    %cst_3 = arith.constant 0.000000e+00 : f32
    %4 = vector.broadcast %cst_3 : f32 to vector<5x128xf32>
    %c0_4 = arith.constant 0 : index
    %c0_5 = arith.constant 0 : index
    %5 = vector.load %arg1[%c0_4, %c0_5] : memref<3x128xf32, #tpu.memory_space<vmem>>, vector<3x128xf32>
    %6 = vector.extract_strided_slice %5 {offsets = [0, 0], sizes = [1, 128], strides = [1, 1]} : vector<3x128xf32> to vector<1x128xf32>
    %7 = vector.extract_strided_slice %5 {offsets = [1, 0], sizes = [1, 128], strides = [1, 1]} : vector<3x128xf32> to vector<1x128xf32>
    %8 = vector.extract_strided_slice %5 {offsets = [2, 0], sizes = [1, 128], strides = [1, 1]} : vector<3x128xf32> to vector<1x128xf32>
    %9 = tpu.concatenate %6, %7, %3, %4 in 0 : vector<1x128xf32>, vector<1x128xf32>, vector<1x128xf32>, vector<5x128xf32> -> vector<8x128xf32>
    %cst_6 = arith.constant dense<0.000000e+00> : vector<96x128xf32>
    %10 = tpu.matmul %0, %9, %cst_6 {dimension_numbers = #tpu.dot_dimension_numbers<[1], [0], [0], [1], [0, 0, 1, 1], [], []>, precision = #tpu.contract_precision<fp32>} : vector<96x8xf32>, vector<8x128xf32>, vector<96x128xf32> -> vector<96x128xf32>
    %11 = vector.extract_strided_slice %10 {offsets = [0, 0], sizes = [32, 128], strides = [1, 1]} : vector<96x128xf32> to vector<32x128xf32>
    %cst_7 = arith.constant -9.99999997E-7 : f32
    %12 = vector.broadcast %cst_7 : f32 to vector<32x128xf32>
    %13 = arith.cmpf oge, %11, %12 : vector<32x128xf32>
    %14 = vector.extract_strided_slice %10 {offsets = [32, 0], sizes = [32, 128], strides = [1, 1]} : vector<96x128xf32> to vector<32x128xf32>
    %cst_8 = arith.constant -9.99999997E-7 : f32
    %15 = vector.broadcast %cst_8 : f32 to vector<32x128xf32>
    %16 = arith.cmpf oge, %14, %15 : vector<32x128xf32>
    %17 = arith.andi %13, %16 : vector<32x128xi1>
    %18 = vector.extract_strided_slice %10 {offsets = [64, 0], sizes = [32, 128], strides = [1, 1]} : vector<96x128xf32> to vector<32x128xf32>
    %cst_9 = arith.constant -9.99999997E-7 : f32
    %19 = vector.broadcast %cst_9 : f32 to vector<32x128xf32>
    %20 = arith.cmpf oge, %18, %19 : vector<32x128xf32>
    %21 = arith.andi %17, %20 : vector<32x128xi1>
    %c-1_i32 = arith.constant -1 : i32
    %22 = vector.broadcast %c-1_i32 : i32 to vector<32x128xi32>
    %23 = arith.select %21, %2, %22 : vector<32x128xi1>, vector<32x128xi32>
    %cst_10 = arith.constant dense<-2147483648> : vector<128xi32>
    %24 = vector.multi_reduction <maxsi>, %23, %cst_10 [0] : vector<32x128xi32> to vector<128xi32>
    %25 = vector.shape_cast %24 : vector<128xi32> to vector<1x128xi32>
    %c0_i32 = arith.constant 0 : i32
    %26 = vector.broadcast %c0_i32 : i32 to vector<1x128xi32>
    %27 = arith.cmpi slt, %25, %26 : vector<1x128xi32>
    %c31_i32 = arith.constant 31 : i32
    %28 = vector.broadcast %c31_i32 : i32 to vector<1x128xi32>
    %29 = arith.select %27, %28, %25 : vector<1x128xi1>, vector<1x128xi32>
    %30 = vector.broadcast %29 : vector<1x128xi32> to vector<32x128xi32>
    %31 = arith.cmpi eq, %2, %30 : vector<32x128xi32>
    %32 = arith.extui %31 : vector<32x128xi1> to vector<32x128xi32>
    %33 = arith.sitofp %32 : vector<32x128xi32> to vector<32x128xf32>
    %34 = vector.extract_strided_slice %1 {offsets = [0, 0], sizes = [16, 32], strides = [1, 1]} : vector<48x32xf32> to vector<16x32xf32>
    %cst_11 = arith.constant dense<0.000000e+00> : vector<16x128xf32>
    %35 = tpu.matmul %34, %33, %cst_11 {dimension_numbers = #tpu.dot_dimension_numbers<[1], [0], [0], [1], [0, 0, 1, 1], [], []>, precision = #tpu.contract_precision<fp32>} : vector<16x32xf32>, vector<32x128xf32>, vector<16x128xf32> -> vector<16x128xf32>
    %36 = vector.extract_strided_slice %35 {offsets = [0, 0], sizes = [1, 128], strides = [1, 1]} : vector<16x128xf32> to vector<1x128xf32>
    %37 = vector.extract_strided_slice %35 {offsets = [1, 0], sizes = [1, 128], strides = [1, 1]} : vector<16x128xf32> to vector<1x128xf32>
    %38 = vector.extract_strided_slice %35 {offsets = [2, 0], sizes = [1, 128], strides = [1, 1]} : vector<16x128xf32> to vector<1x128xf32>
    %39 = vector.extract_strided_slice %35 {offsets = [3, 0], sizes = [1, 128], strides = [1, 1]} : vector<16x128xf32> to vector<1x128xf32>
    %40 = vector.extract_strided_slice %35 {offsets = [4, 0], sizes = [1, 128], strides = [1, 1]} : vector<16x128xf32> to vector<1x128xf32>
    %41 = vector.extract_strided_slice %35 {offsets = [5, 0], sizes = [1, 128], strides = [1, 1]} : vector<16x128xf32> to vector<1x128xf32>
    %42 = vector.extract_strided_slice %35 {offsets = [6, 0], sizes = [1, 128], strides = [1, 1]} : vector<16x128xf32> to vector<1x128xf32>
    %43 = vector.extract_strided_slice %35 {offsets = [7, 0], sizes = [1, 128], strides = [1, 1]} : vector<16x128xf32> to vector<1x128xf32>
    %44 = vector.extract_strided_slice %35 {offsets = [8, 0], sizes = [1, 128], strides = [1, 1]} : vector<16x128xf32> to vector<1x128xf32>
    %45 = vector.extract_strided_slice %35 {offsets = [9, 0], sizes = [1, 128], strides = [1, 1]} : vector<16x128xf32> to vector<1x128xf32>
    %46 = vector.extract_strided_slice %35 {offsets = [10, 0], sizes = [1, 128], strides = [1, 1]} : vector<16x128xf32> to vector<1x128xf32>
    %47 = vector.extract_strided_slice %35 {offsets = [11, 0], sizes = [1, 128], strides = [1, 1]} : vector<16x128xf32> to vector<1x128xf32>
    %48 = arith.subf %6, %38 : vector<1x128xf32>
    %49 = arith.subf %7, %41 : vector<1x128xf32>
    %50 = arith.mulf %48, %49 : vector<1x128xf32>
    %51 = arith.subf %7, %39 : vector<1x128xf32>
    %52 = arith.subf %6, %40 : vector<1x128xf32>
    %53 = arith.mulf %51, %52 : vector<1x128xf32>
    %54 = arith.subf %50, %53 : vector<1x128xf32>
    %55 = math.absf %54 : vector<1x128xf32>
    %cst_12 = arith.constant 5.000000e-01 : f32
    %56 = vector.broadcast %cst_12 : f32 to vector<1x128xf32>
    %57 = arith.mulf %55, %56 : vector<1x128xf32>
    %58 = arith.subf %6, %36 : vector<1x128xf32>
    %59 = arith.subf %7, %41 : vector<1x128xf32>
    %60 = arith.mulf %58, %59 : vector<1x128xf32>
    %61 = arith.subf %7, %37 : vector<1x128xf32>
    %62 = arith.subf %6, %40 : vector<1x128xf32>
    %63 = arith.mulf %61, %62 : vector<1x128xf32>
    %64 = arith.subf %60, %63 : vector<1x128xf32>
    %65 = math.absf %64 : vector<1x128xf32>
    %cst_13 = arith.constant 5.000000e-01 : f32
    %66 = vector.broadcast %cst_13 : f32 to vector<1x128xf32>
    %67 = arith.mulf %65, %66 : vector<1x128xf32>
    %68 = arith.subf %6, %36 : vector<1x128xf32>
    %69 = arith.subf %7, %39 : vector<1x128xf32>
    %70 = arith.mulf %68, %69 : vector<1x128xf32>
    %71 = arith.subf %7, %37 : vector<1x128xf32>
    %72 = arith.subf %6, %38 : vector<1x128xf32>
    %73 = arith.mulf %71, %72 : vector<1x128xf32>
    %74 = arith.subf %70, %73 : vector<1x128xf32>
    %75 = math.absf %74 : vector<1x128xf32>
    %cst_14 = arith.constant 5.000000e-01 : f32
    %76 = vector.broadcast %cst_14 : f32 to vector<1x128xf32>
    %77 = arith.mulf %75, %76 : vector<1x128xf32>
    %78 = arith.addf %57, %67 : vector<1x128xf32>
    %79 = arith.addf %78, %77 : vector<1x128xf32>
    %80 = tpu.reciprocal %79 : vector<1x128xf32> -> vector<1x128xf32>
    %81 = arith.mulf %42, %57 : vector<1x128xf32>
    %82 = arith.mulf %44, %67 : vector<1x128xf32>
    %83 = arith.addf %81, %82 : vector<1x128xf32>
    %84 = arith.mulf %46, %77 : vector<1x128xf32>
    %85 = arith.addf %83, %84 : vector<1x128xf32>
    %86 = arith.mulf %85, %80 : vector<1x128xf32>
    %87 = arith.mulf %43, %57 : vector<1x128xf32>
    %88 = arith.mulf %45, %67 : vector<1x128xf32>
    %89 = arith.addf %87, %88 : vector<1x128xf32>
    %90 = arith.mulf %47, %77 : vector<1x128xf32>
    %91 = arith.addf %89, %90 : vector<1x128xf32>
    %92 = arith.mulf %91, %80 : vector<1x128xf32>
    %93 = arith.subf %38, %36 : vector<1x128xf32>
    %94 = arith.subf %39, %37 : vector<1x128xf32>
    %95 = arith.subf %40, %36 : vector<1x128xf32>
    %96 = arith.subf %41, %37 : vector<1x128xf32>
    %97 = arith.subf %44, %42 : vector<1x128xf32>
    %98 = arith.subf %45, %43 : vector<1x128xf32>
    %99 = arith.subf %46, %42 : vector<1x128xf32>
    %100 = arith.subf %47, %43 : vector<1x128xf32>
    %101 = arith.mulf %93, %96 : vector<1x128xf32>
    %102 = arith.mulf %95, %94 : vector<1x128xf32>
    %103 = arith.subf %101, %102 : vector<1x128xf32>
    %104 = tpu.reciprocal %103 : vector<1x128xf32> -> vector<1x128xf32>
    %105 = arith.mulf %96, %104 : vector<1x128xf32>
    %cst_15 = arith.constant 0.000000e+00 : f32
    %106 = vector.broadcast %cst_15 : f32 to vector<1x128xf32>
    %107 = arith.subf %106, %95 : vector<1x128xf32>
    %108 = arith.mulf %107, %104 : vector<1x128xf32>
    %cst_16 = arith.constant 0.000000e+00 : f32
    %109 = vector.broadcast %cst_16 : f32 to vector<1x128xf32>
    %110 = arith.subf %109, %94 : vector<1x128xf32>
    %111 = arith.mulf %110, %104 : vector<1x128xf32>
    %112 = arith.mulf %93, %104 : vector<1x128xf32>
    %113 = arith.mulf %97, %105 : vector<1x128xf32>
    %114 = arith.mulf %99, %111 : vector<1x128xf32>
    %115 = arith.addf %113, %114 : vector<1x128xf32>
    %116 = arith.mulf %97, %108 : vector<1x128xf32>
    %117 = arith.mulf %99, %112 : vector<1x128xf32>
    %118 = arith.addf %116, %117 : vector<1x128xf32>
    %119 = arith.mulf %98, %105 : vector<1x128xf32>
    %120 = arith.mulf %100, %111 : vector<1x128xf32>
    %121 = arith.addf %119, %120 : vector<1x128xf32>
    %122 = arith.mulf %98, %108 : vector<1x128xf32>
    %123 = arith.mulf %100, %112 : vector<1x128xf32>
    %124 = arith.addf %122, %123 : vector<1x128xf32>
    %125 = tpu.concatenate %86, %8, %3, %4 in 0 : vector<1x128xf32>, vector<1x128xf32>, vector<1x128xf32>, vector<5x128xf32> -> vector<8x128xf32>
    %cst_17 = arith.constant dense<0.000000e+00> : vector<96x128xf32>
    %126 = tpu.matmul %0, %125, %cst_17 {dimension_numbers = #tpu.dot_dimension_numbers<[1], [0], [0], [1], [0, 0, 1, 1], [], []>, precision = #tpu.contract_precision<fp32>} : vector<96x8xf32>, vector<8x128xf32>, vector<96x128xf32> -> vector<96x128xf32>
    %127 = vector.extract_strided_slice %126 {offsets = [0, 0], sizes = [32, 128], strides = [1, 1]} : vector<96x128xf32> to vector<32x128xf32>
    %cst_18 = arith.constant -9.99999997E-7 : f32
    %128 = vector.broadcast %cst_18 : f32 to vector<32x128xf32>
    %129 = arith.cmpf oge, %127, %128 : vector<32x128xf32>
    %130 = vector.extract_strided_slice %126 {offsets = [32, 0], sizes = [32, 128], strides = [1, 1]} : vector<96x128xf32> to vector<32x128xf32>
    %cst_19 = arith.constant -9.99999997E-7 : f32
    %131 = vector.broadcast %cst_19 : f32 to vector<32x128xf32>
    %132 = arith.cmpf oge, %130, %131 : vector<32x128xf32>
    %133 = arith.andi %129, %132 : vector<32x128xi1>
    %134 = vector.extract_strided_slice %126 {offsets = [64, 0], sizes = [32, 128], strides = [1, 1]} : vector<96x128xf32> to vector<32x128xf32>
    %cst_20 = arith.constant -9.99999997E-7 : f32
    %135 = vector.broadcast %cst_20 : f32 to vector<32x128xf32>
    %136 = arith.cmpf oge, %134, %135 : vector<32x128xf32>
    %137 = arith.andi %133, %136 : vector<32x128xi1>
    %c-1_i32_21 = arith.constant -1 : i32
    %138 = vector.broadcast %c-1_i32_21 : i32 to vector<32x128xi32>
    %139 = arith.select %137, %2, %138 : vector<32x128xi1>, vector<32x128xi32>
    %cst_22 = arith.constant dense<-2147483648> : vector<128xi32>
    %140 = vector.multi_reduction <maxsi>, %139, %cst_22 [0] : vector<32x128xi32> to vector<128xi32>
    %141 = vector.shape_cast %140 : vector<128xi32> to vector<1x128xi32>
    %c0_i32_23 = arith.constant 0 : i32
    %142 = vector.broadcast %c0_i32_23 : i32 to vector<1x128xi32>
    %143 = arith.cmpi slt, %141, %142 : vector<1x128xi32>
    %c31_i32_24 = arith.constant 31 : i32
    %144 = vector.broadcast %c31_i32_24 : i32 to vector<1x128xi32>
    %145 = arith.select %143, %144, %141 : vector<1x128xi1>, vector<1x128xi32>
    %146 = vector.broadcast %145 : vector<1x128xi32> to vector<32x128xi32>
    %147 = arith.cmpi eq, %2, %146 : vector<32x128xi32>
    %148 = arith.extui %147 : vector<32x128xi1> to vector<32x128xi32>
    %149 = arith.sitofp %148 : vector<32x128xi32> to vector<32x128xf32>
    %150 = vector.extract_strided_slice %1 {offsets = [16, 0], sizes = [16, 32], strides = [1, 1]} : vector<48x32xf32> to vector<16x32xf32>
    %cst_25 = arith.constant dense<0.000000e+00> : vector<16x128xf32>
    %151 = tpu.matmul %150, %149, %cst_25 {dimension_numbers = #tpu.dot_dimension_numbers<[1], [0], [0], [1], [0, 0, 1, 1], [], []>, precision = #tpu.contract_precision<fp32>} : vector<16x32xf32>, vector<32x128xf32>, vector<16x128xf32> -> vector<16x128xf32>
    %152 = vector.extract_strided_slice %151 {offsets = [0, 0], sizes = [1, 128], strides = [1, 1]} : vector<16x128xf32> to vector<1x128xf32>
    %153 = vector.extract_strided_slice %151 {offsets = [1, 0], sizes = [1, 128], strides = [1, 1]} : vector<16x128xf32> to vector<1x128xf32>
    %154 = vector.extract_strided_slice %151 {offsets = [2, 0], sizes = [1, 128], strides = [1, 1]} : vector<16x128xf32> to vector<1x128xf32>
    %155 = vector.extract_strided_slice %151 {offsets = [3, 0], sizes = [1, 128], strides = [1, 1]} : vector<16x128xf32> to vector<1x128xf32>
    %156 = vector.extract_strided_slice %151 {offsets = [4, 0], sizes = [1, 128], strides = [1, 1]} : vector<16x128xf32> to vector<1x128xf32>
    %157 = vector.extract_strided_slice %151 {offsets = [5, 0], sizes = [1, 128], strides = [1, 1]} : vector<16x128xf32> to vector<1x128xf32>
    %158 = vector.extract_strided_slice %151 {offsets = [6, 0], sizes = [1, 128], strides = [1, 1]} : vector<16x128xf32> to vector<1x128xf32>
    %159 = vector.extract_strided_slice %151 {offsets = [7, 0], sizes = [1, 128], strides = [1, 1]} : vector<16x128xf32> to vector<1x128xf32>
    %160 = vector.extract_strided_slice %151 {offsets = [8, 0], sizes = [1, 128], strides = [1, 1]} : vector<16x128xf32> to vector<1x128xf32>
    %161 = vector.extract_strided_slice %151 {offsets = [9, 0], sizes = [1, 128], strides = [1, 1]} : vector<16x128xf32> to vector<1x128xf32>
    %162 = vector.extract_strided_slice %151 {offsets = [10, 0], sizes = [1, 128], strides = [1, 1]} : vector<16x128xf32> to vector<1x128xf32>
    %163 = vector.extract_strided_slice %151 {offsets = [11, 0], sizes = [1, 128], strides = [1, 1]} : vector<16x128xf32> to vector<1x128xf32>
    %164 = arith.subf %86, %154 : vector<1x128xf32>
    %165 = arith.subf %8, %157 : vector<1x128xf32>
    %166 = arith.mulf %164, %165 : vector<1x128xf32>
    %167 = arith.subf %8, %155 : vector<1x128xf32>
    %168 = arith.subf %86, %156 : vector<1x128xf32>
    %169 = arith.mulf %167, %168 : vector<1x128xf32>
    %170 = arith.subf %166, %169 : vector<1x128xf32>
    %171 = math.absf %170 : vector<1x128xf32>
    %cst_26 = arith.constant 5.000000e-01 : f32
    %172 = vector.broadcast %cst_26 : f32 to vector<1x128xf32>
    %173 = arith.mulf %171, %172 : vector<1x128xf32>
    %174 = arith.subf %86, %152 : vector<1x128xf32>
    %175 = arith.subf %8, %157 : vector<1x128xf32>
    %176 = arith.mulf %174, %175 : vector<1x128xf32>
    %177 = arith.subf %8, %153 : vector<1x128xf32>
    %178 = arith.subf %86, %156 : vector<1x128xf32>
    %179 = arith.mulf %177, %178 : vector<1x128xf32>
    %180 = arith.subf %176, %179 : vector<1x128xf32>
    %181 = math.absf %180 : vector<1x128xf32>
    %cst_27 = arith.constant 5.000000e-01 : f32
    %182 = vector.broadcast %cst_27 : f32 to vector<1x128xf32>
    %183 = arith.mulf %181, %182 : vector<1x128xf32>
    %184 = arith.subf %86, %152 : vector<1x128xf32>
    %185 = arith.subf %8, %155 : vector<1x128xf32>
    %186 = arith.mulf %184, %185 : vector<1x128xf32>
    %187 = arith.subf %8, %153 : vector<1x128xf32>
    %188 = arith.subf %86, %154 : vector<1x128xf32>
    %189 = arith.mulf %187, %188 : vector<1x128xf32>
    %190 = arith.subf %186, %189 : vector<1x128xf32>
    %191 = math.absf %190 : vector<1x128xf32>
    %cst_28 = arith.constant 5.000000e-01 : f32
    %192 = vector.broadcast %cst_28 : f32 to vector<1x128xf32>
    %193 = arith.mulf %191, %192 : vector<1x128xf32>
    %194 = arith.addf %173, %183 : vector<1x128xf32>
    %195 = arith.addf %194, %193 : vector<1x128xf32>
    %196 = tpu.reciprocal %195 : vector<1x128xf32> -> vector<1x128xf32>
    %197 = arith.mulf %158, %173 : vector<1x128xf32>
    %198 = arith.mulf %160, %183 : vector<1x128xf32>
    %199 = arith.addf %197, %198 : vector<1x128xf32>
    %200 = arith.mulf %162, %193 : vector<1x128xf32>
    %201 = arith.addf %199, %200 : vector<1x128xf32>
    %202 = arith.mulf %201, %196 : vector<1x128xf32>
    %203 = arith.mulf %159, %173 : vector<1x128xf32>
    %204 = arith.mulf %161, %183 : vector<1x128xf32>
    %205 = arith.addf %203, %204 : vector<1x128xf32>
    %206 = arith.mulf %163, %193 : vector<1x128xf32>
    %207 = arith.addf %205, %206 : vector<1x128xf32>
    %208 = arith.mulf %207, %196 : vector<1x128xf32>
    %209 = arith.subf %154, %152 : vector<1x128xf32>
    %210 = arith.subf %155, %153 : vector<1x128xf32>
    %211 = arith.subf %156, %152 : vector<1x128xf32>
    %212 = arith.subf %157, %153 : vector<1x128xf32>
    %213 = arith.subf %160, %158 : vector<1x128xf32>
    %214 = arith.subf %161, %159 : vector<1x128xf32>
    %215 = arith.subf %162, %158 : vector<1x128xf32>
    %216 = arith.subf %163, %159 : vector<1x128xf32>
    %217 = arith.mulf %209, %212 : vector<1x128xf32>
    %218 = arith.mulf %211, %210 : vector<1x128xf32>
    %219 = arith.subf %217, %218 : vector<1x128xf32>
    %220 = tpu.reciprocal %219 : vector<1x128xf32> -> vector<1x128xf32>
    %221 = arith.mulf %212, %220 : vector<1x128xf32>
    %cst_29 = arith.constant 0.000000e+00 : f32
    %222 = vector.broadcast %cst_29 : f32 to vector<1x128xf32>
    %223 = arith.subf %222, %211 : vector<1x128xf32>
    %224 = arith.mulf %223, %220 : vector<1x128xf32>
    %cst_30 = arith.constant 0.000000e+00 : f32
    %225 = vector.broadcast %cst_30 : f32 to vector<1x128xf32>
    %226 = arith.subf %225, %210 : vector<1x128xf32>
    %227 = arith.mulf %226, %220 : vector<1x128xf32>
    %228 = arith.mulf %209, %220 : vector<1x128xf32>
    %229 = arith.mulf %213, %221 : vector<1x128xf32>
    %230 = arith.mulf %215, %227 : vector<1x128xf32>
    %231 = arith.addf %229, %230 : vector<1x128xf32>
    %232 = arith.mulf %213, %224 : vector<1x128xf32>
    %233 = arith.mulf %215, %228 : vector<1x128xf32>
    %234 = arith.addf %232, %233 : vector<1x128xf32>
    %235 = arith.mulf %214, %221 : vector<1x128xf32>
    %236 = arith.mulf %216, %227 : vector<1x128xf32>
    %237 = arith.addf %235, %236 : vector<1x128xf32>
    %238 = arith.mulf %214, %224 : vector<1x128xf32>
    %239 = arith.mulf %216, %228 : vector<1x128xf32>
    %240 = arith.addf %238, %239 : vector<1x128xf32>
    %241 = tpu.concatenate %92, %208, %3, %4 in 0 : vector<1x128xf32>, vector<1x128xf32>, vector<1x128xf32>, vector<5x128xf32> -> vector<8x128xf32>
    %cst_31 = arith.constant dense<0.000000e+00> : vector<96x128xf32>
    %242 = tpu.matmul %0, %241, %cst_31 {dimension_numbers = #tpu.dot_dimension_numbers<[1], [0], [0], [1], [0, 0, 1, 1], [], []>, precision = #tpu.contract_precision<fp32>} : vector<96x8xf32>, vector<8x128xf32>, vector<96x128xf32> -> vector<96x128xf32>
    %243 = vector.extract_strided_slice %242 {offsets = [0, 0], sizes = [32, 128], strides = [1, 1]} : vector<96x128xf32> to vector<32x128xf32>
    %cst_32 = arith.constant -9.99999997E-7 : f32
    %244 = vector.broadcast %cst_32 : f32 to vector<32x128xf32>
    %245 = arith.cmpf oge, %243, %244 : vector<32x128xf32>
    %246 = vector.extract_strided_slice %242 {offsets = [32, 0], sizes = [32, 128], strides = [1, 1]} : vector<96x128xf32> to vector<32x128xf32>
    %cst_33 = arith.constant -9.99999997E-7 : f32
    %247 = vector.broadcast %cst_33 : f32 to vector<32x128xf32>
    %248 = arith.cmpf oge, %246, %247 : vector<32x128xf32>
    %249 = arith.andi %245, %248 : vector<32x128xi1>
    %250 = vector.extract_strided_slice %242 {offsets = [64, 0], sizes = [32, 128], strides = [1, 1]} : vector<96x128xf32> to vector<32x128xf32>
    %cst_34 = arith.constant -9.99999997E-7 : f32
    %251 = vector.broadcast %cst_34 : f32 to vector<32x128xf32>
    %252 = arith.cmpf oge, %250, %251 : vector<32x128xf32>
    %253 = arith.andi %249, %252 : vector<32x128xi1>
    %c-1_i32_35 = arith.constant -1 : i32
    %254 = vector.broadcast %c-1_i32_35 : i32 to vector<32x128xi32>
    %255 = arith.select %253, %2, %254 : vector<32x128xi1>, vector<32x128xi32>
    %cst_36 = arith.constant dense<-2147483648> : vector<128xi32>
    %256 = vector.multi_reduction <maxsi>, %255, %cst_36 [0] : vector<32x128xi32> to vector<128xi32>
    %257 = vector.shape_cast %256 : vector<128xi32> to vector<1x128xi32>
    %c0_i32_37 = arith.constant 0 : i32
    %258 = vector.broadcast %c0_i32_37 : i32 to vector<1x128xi32>
    %259 = arith.cmpi slt, %257, %258 : vector<1x128xi32>
    %c31_i32_38 = arith.constant 31 : i32
    %260 = vector.broadcast %c31_i32_38 : i32 to vector<1x128xi32>
    %261 = arith.select %259, %260, %257 : vector<1x128xi1>, vector<1x128xi32>
    %262 = vector.broadcast %261 : vector<1x128xi32> to vector<32x128xi32>
    %263 = arith.cmpi eq, %2, %262 : vector<32x128xi32>
    %264 = arith.extui %263 : vector<32x128xi1> to vector<32x128xi32>
    %265 = arith.sitofp %264 : vector<32x128xi32> to vector<32x128xf32>
    %266 = vector.extract_strided_slice %1 {offsets = [32, 0], sizes = [16, 32], strides = [1, 1]} : vector<48x32xf32> to vector<16x32xf32>
    %cst_39 = arith.constant dense<0.000000e+00> : vector<16x128xf32>
    %267 = tpu.matmul %266, %265, %cst_39 {dimension_numbers = #tpu.dot_dimension_numbers<[1], [0], [0], [1], [0, 0, 1, 1], [], []>, precision = #tpu.contract_precision<fp32>} : vector<16x32xf32>, vector<32x128xf32>, vector<16x128xf32> -> vector<16x128xf32>
    %268 = vector.extract_strided_slice %267 {offsets = [0, 0], sizes = [1, 128], strides = [1, 1]} : vector<16x128xf32> to vector<1x128xf32>
    %269 = vector.extract_strided_slice %267 {offsets = [1, 0], sizes = [1, 128], strides = [1, 1]} : vector<16x128xf32> to vector<1x128xf32>
    %270 = vector.extract_strided_slice %267 {offsets = [2, 0], sizes = [1, 128], strides = [1, 1]} : vector<16x128xf32> to vector<1x128xf32>
    %271 = vector.extract_strided_slice %267 {offsets = [3, 0], sizes = [1, 128], strides = [1, 1]} : vector<16x128xf32> to vector<1x128xf32>
    %272 = vector.extract_strided_slice %267 {offsets = [4, 0], sizes = [1, 128], strides = [1, 1]} : vector<16x128xf32> to vector<1x128xf32>
    %273 = vector.extract_strided_slice %267 {offsets = [5, 0], sizes = [1, 128], strides = [1, 1]} : vector<16x128xf32> to vector<1x128xf32>
    %274 = vector.extract_strided_slice %267 {offsets = [6, 0], sizes = [1, 128], strides = [1, 1]} : vector<16x128xf32> to vector<1x128xf32>
    %275 = vector.extract_strided_slice %267 {offsets = [7, 0], sizes = [1, 128], strides = [1, 1]} : vector<16x128xf32> to vector<1x128xf32>
    %276 = vector.extract_strided_slice %267 {offsets = [8, 0], sizes = [1, 128], strides = [1, 1]} : vector<16x128xf32> to vector<1x128xf32>
    %277 = vector.extract_strided_slice %267 {offsets = [9, 0], sizes = [1, 128], strides = [1, 1]} : vector<16x128xf32> to vector<1x128xf32>
    %278 = vector.extract_strided_slice %267 {offsets = [10, 0], sizes = [1, 128], strides = [1, 1]} : vector<16x128xf32> to vector<1x128xf32>
    %279 = vector.extract_strided_slice %267 {offsets = [11, 0], sizes = [1, 128], strides = [1, 1]} : vector<16x128xf32> to vector<1x128xf32>
    %280 = arith.subf %92, %270 : vector<1x128xf32>
    %281 = arith.subf %208, %273 : vector<1x128xf32>
    %282 = arith.mulf %280, %281 : vector<1x128xf32>
    %283 = arith.subf %208, %271 : vector<1x128xf32>
    %284 = arith.subf %92, %272 : vector<1x128xf32>
    %285 = arith.mulf %283, %284 : vector<1x128xf32>
    %286 = arith.subf %282, %285 : vector<1x128xf32>
    %287 = math.absf %286 : vector<1x128xf32>
    %cst_40 = arith.constant 5.000000e-01 : f32
    %288 = vector.broadcast %cst_40 : f32 to vector<1x128xf32>
    %289 = arith.mulf %287, %288 : vector<1x128xf32>
    %290 = arith.subf %92, %268 : vector<1x128xf32>
    %291 = arith.subf %208, %273 : vector<1x128xf32>
    %292 = arith.mulf %290, %291 : vector<1x128xf32>
    %293 = arith.subf %208, %269 : vector<1x128xf32>
    %294 = arith.subf %92, %272 : vector<1x128xf32>
    %295 = arith.mulf %293, %294 : vector<1x128xf32>
    %296 = arith.subf %292, %295 : vector<1x128xf32>
    %297 = math.absf %296 : vector<1x128xf32>
    %cst_41 = arith.constant 5.000000e-01 : f32
    %298 = vector.broadcast %cst_41 : f32 to vector<1x128xf32>
    %299 = arith.mulf %297, %298 : vector<1x128xf32>
    %300 = arith.subf %92, %268 : vector<1x128xf32>
    %301 = arith.subf %208, %271 : vector<1x128xf32>
    %302 = arith.mulf %300, %301 : vector<1x128xf32>
    %303 = arith.subf %208, %269 : vector<1x128xf32>
    %304 = arith.subf %92, %270 : vector<1x128xf32>
    %305 = arith.mulf %303, %304 : vector<1x128xf32>
    %306 = arith.subf %302, %305 : vector<1x128xf32>
    %307 = math.absf %306 : vector<1x128xf32>
    %cst_42 = arith.constant 5.000000e-01 : f32
    %308 = vector.broadcast %cst_42 : f32 to vector<1x128xf32>
    %309 = arith.mulf %307, %308 : vector<1x128xf32>
    %310 = arith.addf %289, %299 : vector<1x128xf32>
    %311 = arith.addf %310, %309 : vector<1x128xf32>
    %312 = tpu.reciprocal %311 : vector<1x128xf32> -> vector<1x128xf32>
    %313 = arith.mulf %274, %289 : vector<1x128xf32>
    %314 = arith.mulf %276, %299 : vector<1x128xf32>
    %315 = arith.addf %313, %314 : vector<1x128xf32>
    %316 = arith.mulf %278, %309 : vector<1x128xf32>
    %317 = arith.addf %315, %316 : vector<1x128xf32>
    %318 = arith.mulf %317, %312 : vector<1x128xf32>
    %319 = arith.mulf %275, %289 : vector<1x128xf32>
    %320 = arith.mulf %277, %299 : vector<1x128xf32>
    %321 = arith.addf %319, %320 : vector<1x128xf32>
    %322 = arith.mulf %279, %309 : vector<1x128xf32>
    %323 = arith.addf %321, %322 : vector<1x128xf32>
    %324 = arith.mulf %323, %312 : vector<1x128xf32>
    %325 = arith.subf %270, %268 : vector<1x128xf32>
    %326 = arith.subf %271, %269 : vector<1x128xf32>
    %327 = arith.subf %272, %268 : vector<1x128xf32>
    %328 = arith.subf %273, %269 : vector<1x128xf32>
    %329 = arith.subf %276, %274 : vector<1x128xf32>
    %330 = arith.subf %277, %275 : vector<1x128xf32>
    %331 = arith.subf %278, %274 : vector<1x128xf32>
    %332 = arith.subf %279, %275 : vector<1x128xf32>
    %333 = arith.mulf %325, %328 : vector<1x128xf32>
    %334 = arith.mulf %327, %326 : vector<1x128xf32>
    %335 = arith.subf %333, %334 : vector<1x128xf32>
    %336 = tpu.reciprocal %335 : vector<1x128xf32> -> vector<1x128xf32>
    %337 = arith.mulf %328, %336 : vector<1x128xf32>
    %cst_43 = arith.constant 0.000000e+00 : f32
    %338 = vector.broadcast %cst_43 : f32 to vector<1x128xf32>
    %339 = arith.subf %338, %327 : vector<1x128xf32>
    %340 = arith.mulf %339, %336 : vector<1x128xf32>
    %cst_44 = arith.constant 0.000000e+00 : f32
    %341 = vector.broadcast %cst_44 : f32 to vector<1x128xf32>
    %342 = arith.subf %341, %326 : vector<1x128xf32>
    %343 = arith.mulf %342, %336 : vector<1x128xf32>
    %344 = arith.mulf %325, %336 : vector<1x128xf32>
    %345 = arith.mulf %329, %337 : vector<1x128xf32>
    %346 = arith.mulf %331, %343 : vector<1x128xf32>
    %347 = arith.addf %345, %346 : vector<1x128xf32>
    %348 = arith.mulf %329, %340 : vector<1x128xf32>
    %349 = arith.mulf %331, %344 : vector<1x128xf32>
    %350 = arith.addf %348, %349 : vector<1x128xf32>
    %351 = arith.mulf %330, %337 : vector<1x128xf32>
    %352 = arith.mulf %332, %343 : vector<1x128xf32>
    %353 = arith.addf %351, %352 : vector<1x128xf32>
    %354 = arith.mulf %330, %340 : vector<1x128xf32>
    %355 = arith.mulf %332, %344 : vector<1x128xf32>
    %356 = arith.addf %354, %355 : vector<1x128xf32>
    %357 = arith.mulf %231, %115 : vector<1x128xf32>
    %358 = arith.mulf %231, %118 : vector<1x128xf32>
    %359 = arith.mulf %347, %121 : vector<1x128xf32>
    %360 = arith.mulf %350, %237 : vector<1x128xf32>
    %361 = arith.mulf %360, %115 : vector<1x128xf32>
    %362 = arith.addf %359, %361 : vector<1x128xf32>
    %363 = arith.mulf %347, %124 : vector<1x128xf32>
    %364 = arith.mulf %350, %237 : vector<1x128xf32>
    %365 = arith.mulf %364, %118 : vector<1x128xf32>
    %366 = arith.addf %363, %365 : vector<1x128xf32>
    %367 = arith.mulf %350, %240 : vector<1x128xf32>
    %368 = arith.mulf %353, %121 : vector<1x128xf32>
    %369 = arith.mulf %356, %237 : vector<1x128xf32>
    %370 = arith.mulf %369, %115 : vector<1x128xf32>
    %371 = arith.addf %368, %370 : vector<1x128xf32>
    %372 = arith.mulf %353, %124 : vector<1x128xf32>
    %373 = arith.mulf %356, %237 : vector<1x128xf32>
    %374 = arith.mulf %373, %118 : vector<1x128xf32>
    %375 = arith.addf %372, %374 : vector<1x128xf32>
    %376 = arith.mulf %356, %240 : vector<1x128xf32>
    %cst_45 = arith.constant 0.000000e+00 : f32
    %377 = vector.broadcast %cst_45 : f32 to vector<5x128xf32>
    %378 = tpu.concatenate %86, %92, %202, %208, %318, %324, %115, %118, %121, %124, %231, %234, %237, %240, %347, %350 in 0 : vector<1x128xf32>, vector<1x128xf32>, vector<1x128xf32>, vector<1x128xf32>, vector<1x128xf32>, vector<1x128xf32>, vector<1x128xf32>, vector<1x128xf32>, vector<1x128xf32>, vector<1x128xf32>, vector<1x128xf32>, vector<1x128xf32>, vector<1x128xf32>, vector<1x128xf32>, vector<1x128xf32>, vector<1x128xf32> -> vector<16x128xf32>
    %379 = tpu.concatenate %353, %356, %357, %358, %234, %362, %366, %367, %371, %375, %376, %377 in 0 : vector<1x128xf32>, vector<1x128xf32>, vector<1x128xf32>, vector<1x128xf32>, vector<1x128xf32>, vector<1x128xf32>, vector<1x128xf32>, vector<1x128xf32>, vector<1x128xf32>, vector<1x128xf32>, vector<1x128xf32>, vector<5x128xf32> -> vector<16x128xf32>
    %380 = tpu.concatenate %378, %379 in 0 : vector<16x128xf32>, vector<16x128xf32> -> vector<32x128xf32>
    %c0_46 = arith.constant 0 : index
    %c0_47 = arith.constant 0 : index
    %381 = vector.load %arg4[%c0_46, %c0_47] : memref<32x128xf32, #tpu.memory_space<vmem>>, vector<32x128xf32>
    tpu.vector_store %arg4[%c0_46, %c0_47], %380 {strides = array<i32>} : memref<32x128xf32, #tpu.memory_space<vmem>>, vector<32x128xf32>,
    return
  }
  func.func @transform_0(%arg0: i32) -> (i32, i32) {
    %c0_i32 = arith.constant 0 : i32
    %c0_i32_0 = arith.constant 0 : i32
    return %c0_i32, %arg0 : i32, i32
  }
  func.func @transform_1(%arg0: i32) -> (i32, i32) {
    %c0_i32 = arith.constant 0 : i32
    %c0_i32_0 = arith.constant 0 : i32
    %c0_i32_1 = arith.constant 0 : i32
    return %c0_i32, %c0_i32_0 : i32, i32
  }
  func.func @transform_2(%arg0: i32) -> (i32, i32) {
    %c0_i32 = arith.constant 0 : i32
    %c0_i32_0 = arith.constant 0 : i32
    %c0_i32_1 = arith.constant 0 : i32
    return %c0_i32, %c0_i32_0 : i32, i32
  }
  func.func @transform_3(%arg0: i32) -> (i32, i32) {
    %c0_i32 = arith.constant 0 : i32
    %c0_i32_0 = arith.constant 0 : i32
    return %c0_i32, %arg0 : i32, i32
  }
}

</mosaic_0001>

<llo_original>
// kernel: custom-call.14
$region0: #{custom-call.14}
  %s0 = inlined_call_operand.vmem [shape: f32[9,9], index: 0, kind: input, shape index: {}]
  %s1 = inlined_call_operand.vmem [shape: f32[9,9], index: 1, kind: output, shape index: {0}]
  %s2 = inlined_call_operand.hbm [shape: s32[9], index: 2, kind: output, shape index: {1}]
  %s3 = inlined_call_operand.vmem [shape: s32[9], index: 3, kind: output, shape index: {2}]
  %4 = xla_tuple %s1, %s2, %s3
  $region1: #{custom-call.14} parent=0
    #allocation0 [shape = 'u8[8192]{0}', space=vmem, size = 0x2000, scoped, tag = 'operand span for operand 0']
    #allocation1 [shape = 'u8[8192]{0}', space=vmem, size = 0x2000, scoped, tag = 'operand span for operand 1']
    #allocation2 [shape = 'u8[4096]{0}', space=vmem, size = 0x1000, scoped, tag = 'operand span for operand 2']
    #allocation3 [shape = 'u8[512]{0}', space=vmem, size = 0x400, scoped, tag = 'packed  for operand 2']
    #allocation4 [shape = 's32[1]{0}', space=sflag, size = 0x4, scoped, tag = 'scoped memory for custom-call.14']
    #allocation5 [shape = 'u8[4096]{0}', space=vmem, size = 0x1000, scoped, tag = 'operand span for operand 3']
    #allocation6 [shape = 'u8[512]{0}', space=vmem, size = 0x400, scoped, tag = 'packed  for operand 3']
    #allocation7 [shape = 's32[9,128]{1,0}', space=vmem, size = 0x2000, scoped, tag = 'scratch for permutations']
    %5 = vsyncpa [#allocation4], 0
    %p7 = scmp.gt.s32.totalorder 16, 0
    // Predicated region
    $region2: #{custom-call.14} parent=1 // pred_check
      %p8 = pneg %p7
    $region3: #{custom-call.14} parent=1 // pred_check_branch
      %10 = sbr.rel (%p8) target = $region5
    $region4: #{custom-call.14} parent=1 // pred_region
      %s11 = sshra.s32 16, 3
      %p12 = scmp.gt.s32.totalorder %s11, 0
      // Predicated region
      $region6: #{custom-call.14} parent=4 // pred_check
        %p13 = pneg %p12
      $region7: #{custom-call.14} parent=4 // pred_check_branch
        %15 = sbr.rel (%p13) target = $region9
      $region8: #{custom-call.14} parent=4 // pred_region
        %s16 = ssub.s32 %s11, 1
        %s17 = smul.u32 %s16, 128
        %s18 = sshra.s32 %s17, 4
        %s19 = scalar_lea.vmem %s0, %s18
        %v20 = vld [vmem:[%s0] sm:$0xff]
        // While loop
        $region10: #{custom-call.14} parent=8 // loop_pre_header
          _
        $region11: #{custom-call.14} parent=8 // loop_header
          %s21 = sphi %s0, %s43
          %s22 = sphi [#allocation0], %s44
          %v23 = vphi %v20, %v45
          %s24 = ssub.s32 %s19, 64
          %p25 = scmp.gt.s32.totalorder %s21, %s24
        $region12: #{custom-call.14} parent=8 // loop_header_branch
          %27 = sbr.rel (%p25) target = $region16
        $region13: #{custom-call.14} parent=8 // loop_body
          %28 = vst [vmem:[%s22] sm:$0xff] %v23
          %v29 = vld [vmem:[%s21 + $0x8] sm:$0xff]
          %30 = vst [vmem:[%s22 + $0x8] sm:$0xff] %v29
          %v31 = vld [vmem:[%s21 + $0x10] sm:$0xff]
          %32 = vst [vmem:[%s22 + $0x10] sm:$0xff] %v31
          %v33 = vld [vmem:[%s21 + $0x18] sm:$0xff]
          %34 = vst [vmem:[%s22 + $0x18] sm:$0xff] %v33
          %v35 = vld [vmem:[%s21 + $0x20] sm:$0xff]
          %36 = vst [vmem:[%s22 + $0x20] sm:$0xff] %v35
          %v37 = vld [vmem:[%s21 + $0x28] sm:$0xff]
          %38 = vst [vmem:[%s22 + $0x28] sm:$0xff] %v37
          %v39 = vld [vmem:[%s21 + $0x30] sm:$0xff]
          %40 = vst [vmem:[%s22 + $0x30] sm:$0xff] %v39
          %v41 = vld [vmem:[%s21 + $0x38] sm:$0xff]
          %42 = vst [vmem:[%s22 + $0x38] sm:$0xff] %v41
        $region14: #{custom-call.14} parent=8 // loop_footer
          %s43 = scalar_lea.vmem %s21, 64
          %s44 = scalar_lea.vmem %s22, 64
          %v45 = vld [vmem:[%s21 + $0x40] sm:$0xff]
        $region15: #{custom-call.14} parent=8 // loop_footer_branch
          %46 = sbr.rel target = $region11
        $region16: #{custom-call.14} parent=8 // loop_exit
          _
        // While loop
        $region17: #{custom-call.14} parent=8 // loop_pre_header
          _
        $region18: #{custom-call.14} parent=8 // loop_header
          %s47 = sphi %s21, %s55
          %s48 = sphi %s22, %s56
          %v49 = vphi %v23, %v49
          %p50 = scmp.gt.s32.totalorder %s47, %s19
        $region19: #{custom-call.14} parent=8 // loop_header_branch
          %52 = sbr.rel (%p50) target = $region23
        $region20: #{custom-call.14} parent=8 // loop_body
          %v53 = vld [vmem:[%s47] sm:$0xff]
          %54 = vst [vmem:[%s48] sm:$0xff] %v53
        $region21: #{custom-call.14} parent=8 // loop_footer
          %s55 = scalar_lea.vmem %s47, 8
          %s56 = scalar_lea.vmem %s48, 8
        $region22: #{custom-call.14} parent=8 // loop_footer_branch
          %57 = sbr.rel target = $region18
        $region23: #{custom-call.14} parent=8 // loop_exit
          _
      $region9: #{custom-call.14} parent=4 // pred_fallthru
        _
      %s58 = sand.u32 16, 7
      %s59 = sshllo.u32 0, %s58
      %s60 = smul.u32 %s11, 128
      %s61 = sshra.s32 %s60, 4
      %s62 = scalar_lea.vmem [#allocation0], %s61
      %s63 = smul.u32 %s11, 128
      %s64 = sshra.s32 %s63, 4
      %s65 = scalar_lea.vmem %s0, %s64
      %v66 = vld [vmem:[%s65] sm:%s59]
      %67 = vst [vmem:[%s62] sm:%s59] %v66
    $region5: #{custom-call.14} parent=1 // pred_fallthru
      _
    %v68 = vld [vmem:[#allocation0] sm:$0xff]
    %69 = vst [vmem:[#allocation1] sm:$0xff] %v68
    %s70 = scalar_lea.vmem [#allocation1], 8
    %s71 = scalar_lea.vmem [#allocation0], 8
    %v72 = vld [vmem:[%s71] sm:$0xff]
    %73 = vst [vmem:[%s70] sm:$0xff] %v72
    %74 = vst [vmem:[#allocation2] sm:$0x1] 0
    %v75 = vlaneseq
    %v76 = vshrl.u32 %v75, 7
    %v77 = vmov %v76
    loop: start=0, step=1, limit=2
    $region24: #{custom-call.14} parent=1 // loop_pre_header
      _
    $region25: #{custom-call.14} parent=1 // loop_header
      %s79 = sphi 0, %s83
      %p80 = scmp.ge.s32.totalorder %s79, 2
    $region26: #{custom-call.14} parent=1 // loop_header_branch
      %82 = sbr.rel (%p80) target = $region30
    $region27: #{custom-call.14} parent=1 // loop_body
      %s84 = smul.addr %s79, 8
      %s85 = scalar_lea.vmem [#allocation7], %s84
      %s86 = smul.u32 %s79, 8
      %v87 = vstv %s86
      %v88 = vadd.s32 %v77, %v87
      %89 = vst [vmem:[%s85] sm:$0xff] %v88
    $region28: #{custom-call.14} parent=1 // loop_footer
      %s83 = sadd.s32 1, %s79
    $region29: #{custom-call.14} parent=1 // loop_footer_branch
      %78 = sbr.rel target = $region25
    $region30: #{custom-call.14} parent=1 // loop_exit
      _
    loop: start=0, step=1, limit=9
    $region31: #{custom-call.14} parent=1 // loop_pre_header
      _
    $region32: #{custom-call.14} parent=1 // loop_header
      %s91 = sphi 0, %s95
      %p92 = scmp.ge.s32.totalorder %s91, 9
    $region33: #{custom-call.14} parent=1 // loop_header_branch
      %94 = sbr.rel (%p92) target = $region37
    $region34: #{custom-call.14} parent=1 // loop_body
      %v96 = vstv %s91
      %v97 = vlaneseq
      %v98 = vshrl.u32 %v97, 7
      %v99 = vmov %v98
      %v100 = vld [vmem:[#allocation1] sm:$0xff]
      %v101 = vand.u32 2147483647, %v100
      %v103 = vstv %s91
      %vm104 = vcmp.ge.s32.totalorder %v99, %v103
      %vm105 = vcmp.lt.s32.totalorder %v99, 9
      %vm106 = vmand %vm104, %vm105
      %vm107 = vcmp.lt.f32.partialorder -inf, %v101
      %vm108 = vmand %vm106, %vm107
      %v109 = vsel %vm108, %v99, %v96
      %v110 = vsel %vm108, %v101, -inf
      %s111 = scalar_lea.vmem [#allocation1], 8
      %v112 = vld [vmem:[%s111] sm:$0xff]
      %v113 = vand.u32 2147483647, %v112
      %v114 = vadd.s32 %v99, 8
      %v115 = vstv %s91
      %vm116 = vcmp.ge.s32.totalorder %v114, %v115
      %vm117 = vcmp.lt.s32.totalorder %v114, 9
      %vm118 = vmand %vm116, %vm117
      %vm119 = vcmp.lt.f32.partialorder %v110, %v113
      %vm120 = vmand %vm118, %vm119
      %v121 = vsel %vm120, %v114, %v109
      %v122 = vsel %vm120, %v113, %v110
      %v123 = vrot.slane %v122, 1
      %v124 = vrot.slane %v121, 1
      %vm125 = vcmp.ge.f32.partialorder %v123, %v122
      %v126 = vsel %vm125, %v123, %v122
      %v127 = vsel %vm125, %v124, %v121
      %v128 = vrot.slane %v123, 1
      %v129 = vrot.slane %v124, 1
      %vm130 = vcmp.ge.f32.partialorder %v128, %v126
      %v131 = vsel %vm130, %v128, %v126
      %v132 = vsel %vm130, %v129, %v127
      %v133 = vrot.slane %v128, 1
      %v134 = vrot.slane %v129, 1
      %vm135 = vcmp.ge.f32.partialorder %v133, %v131
      %v136 = vsel %vm135, %v133, %v131
      %v137 = vsel %vm135, %v134, %v132
      %v138 = vrot.slane %v133, 1
      %v139 = vrot.slane %v134, 1
      %vm140 = vcmp.ge.f32.partialorder %v138, %v136
      %v141 = vsel %vm140, %v138, %v136
      %v142 = vsel %vm140, %v139, %v137
      %v143 = vrot.slane %v138, 1
      %v144 = vrot.slane %v139, 1
      %vm145 = vcmp.ge.f32.partialorder %v143, %v141
      %v146 = vsel %vm145, %v143, %v141
      %v147 = vsel %vm145, %v144, %v142
      %v148 = vrot.slane %v143, 1
      %v149 = vrot.slane %v144, 1
      %vm150 = vcmp.ge.f32.partialorder %v148, %v146
      %v151 = vsel %vm150, %v148, %v146
      %v152 = vsel %vm150, %v149, %v147
      %v153 = vrot.slane %v148, 1
      %v154 = vrot.slane %v149, 1
      %vm155 = vcmp.ge.f32.partialorder %v153, %v151
      %v156 = vsel %vm155, %v153, %v151
      %v157 = vsel %vm155, %v154, %v152
      %s158 = ssub.s32 128, %s91
      %159 = vrot.lane.b32.xlu0 %v157, %s158
      %v160 = vpop.permute.xlu0 %159
      %s161 = vtos %v160
      %v162 = vstv %s91
      %v163 = vlaneseq
      %v164 = vand.u32 %v163, 127
      %vm165 = vcmp.eq.s32.totalorder %v164, %v162
      %v166 = vstv %s161
      %v167 = vld [vmem:[#allocation2] ss:$0 sm:$0xff]
      %v168 = vsel %vm165, %v166, %v167
      %169 = vst [vmem:[#allocation2] sm:$0x1] %v168
      %s170 = scalar_lea.vmem [#allocation1], %s91
      %s171 = scalar_lea.vmem [#allocation1], %s161
      %v172 = vld [vmem:[%s170] ss:$0 sm:$0xff]
      %v173 = vld [vmem:[%s171] ss:$0 sm:$0xff]
      %174 = vst [vmem:[%s171] sm:$0x1] %v172
      %175 = vst [vmem:[%s170] sm:$0x1] %v173
      %s176 = scalar_lea.vmem [#allocation7], %s91
      %s177 = scalar_lea.vmem [#allocation7], %s161
      %v178 = vld [vmem:[%s176] ss:$0 sm:$0xff]
      %v179 = vld [vmem:[%s177] ss:$0 sm:$0xff]
      %180 = vst [vmem:[%s177] sm:$0x1] %v178
      %181 = vst [vmem:[%s176] sm:$0x1] %v179
      %vm182 = vcmp.ne.f32.partialorder %v173, 0.0
      %vm183 = vmand %vm165, %vm182
      %v184 = vsel %vm183, %v173, 1.0
      %v185 = vlaneseq
      %v186 = vand.u32 %v185, 127
      %v187 = vstv %s91
      %vm188 = vcmp.gt.s32.totalorder %v186, %v187
      %v189 = vsel %vm188, %v173, 0.0
      %v190 = vlaneseq
      %v191 = vshrl.u32 %v190, 7
      %v192 = vmov %v191
      %v193 = vld [vmem:[#allocation1] sm:$0xff]
      %v195 = vstv %s91
      %vm196 = vcmp.gt.s32.totalorder %v192, %v195
      %v197 = vsel %vm196, %v184, 1.0
      %v198 = vrcp.pop %v197
      %v199 = vmul.f32 %v193, %v198
      %vm200 = vmand %vm196, %vm165
      %v201 = vsel %vm200, %v199, 0.0
      %202 = vadd.xlane.f32.xlu0 %v201
      %v203 = vpop.xlane.xlu0 %202
      %v204 = vmul.f32 %v203, %v189
      %v205 = vsub.f32 %v199, %v204
      %206 = vst [vmem:[#allocation1] sm:$0xff] %v205
      %s207 = scalar_lea.vmem [#allocation1], 8
      %v208 = vld [vmem:[%s207] sm:$0xff]
      %v209 = vadd.s32 %v192, 8
      %v210 = vstv %s91
      %vm211 = vcmp.gt.s32.totalorder %v209, %v210
      %v212 = vsel %vm211, %v184, 1.0
      %v213 = vrcp.pop %v212
      %v214 = vmul.f32 %v208, %v213
      %vm215 = vmand %vm211, %vm165
      %v216 = vsel %vm215, %v214, 0.0
      %217 = vadd.xlane.f32.xlu0 %v216
      %v218 = vpop.xlane.xlu0 %217
      %v219 = vmul.f32 %v218, %v189
      %v220 = vsub.f32 %v214, %v219
      %221 = vst [vmem:[%s207] sm:$0xff] %v220
    $region35: #{custom-call.14} parent=1 // loop_footer
      %s95 = sadd.s32 1, %s91
    $region36: #{custom-call.14} parent=1 // loop_footer_branch
      %90 = sbr.rel target = $region32
    $region37: #{custom-call.14} parent=1 // loop_exit
      _
    %v222 = vld [vmem:[#allocation7] sm:$0xff]
    %s223 = scalar_lea.vmem [#allocation7], 8
    %v224 = vld [vmem:[%s223] sm:$0xff]
    %s225 = scalar_lea.vmem [#allocation7], 16
    %s226 = scalar_lea.vmem [#allocation7], 24
    %s227 = scalar_lea.vmem [#allocation7], 32
    %s228 = scalar_lea.vmem [#allocation7], 40
    %s229 = scalar_lea.vmem [#allocation7], 48
    %s230 = scalar_lea.vmem [#allocation7], 56
    %s231 = scalar_lea.vmem [#allocation7], 64
    %s232 = scalar_lea.vmem [#allocation7], 72
    %s233 = scalar_lea.vmem [#allocation7], 80
    %s234 = scalar_lea.vmem [#allocation7], 88
    %s235 = scalar_lea.vmem [#allocation7], 96
    %s236 = scalar_lea.vmem [#allocation7], 104
    %s237 = scalar_lea.vmem [#allocation7], 112
    %s238 = scalar_lea.vmem [#allocation7], 120
    %239 = vxpose.xlu0.b32.start [1/16] %v222, 128
    %240 = vxpose.xlu0.b32.cont [2/16] %v224, 128
    %241 = vxpose.xlu0.b32.cont [3/16] 0, 128
    %242 = vxpose.xlu0.b32.cont [4/16] 0, 128
    %243 = vxpose.xlu0.b32.cont [5/16] 0, 128
    %244 = vxpose.xlu0.b32.cont [6/16] 0, 128
    %245 = vxpose.xlu0.b32.cont [7/16] 0, 128
    %246 = vxpose.xlu0.b32.cont [8/16] 0, 128
    %247 = vxpose.xlu0.b32.cont [9/16] 0, 128
    %248 = vxpose.xlu0.b32.cont [10/16] 0, 128
    %249 = vxpose.xlu0.b32.cont [11/16] 0, 128
    %250 = vxpose.xlu0.b32.cont [12/16] 0, 128
    %251 = vxpose.xlu0.b32.cont [13/16] 0, 128
    %252 = vxpose.xlu0.b32.cont [14/16] 0, 128
    %253 = vxpose.xlu0.b32.cont [15/16] 0, 128
    %254 = vxpose.xlu0.b32.end [16/16] 0, 128
    %v255 = vpop.trf.xlu0
    %v256 = vpop.trf.xlu0
    %v257 = vpop.trf.xlu0
    %v258 = vpop.trf.xlu0
    %v259 = vpop.trf.xlu0
    %v260 = vpop.trf.xlu0
    %v261 = vpop.trf.xlu0
    %v262 = vpop.trf.xlu0
    %v263 = vpop.trf.xlu0
    %v264 = vpop.trf.xlu0
    %v265 = vpop.trf.xlu0
    %v266 = vpop.trf.xlu0
    %v267 = vpop.trf.xlu0
    %v268 = vpop.trf.xlu0
    %v269 = vpop.trf.xlu0
    %v270 = vpop.trf.xlu0
    %271 = vst [vmem:[#allocation5] sm:$0x1] %v255
    %s273 = sshllo.u32 0, 1
    %v275 = vld [vmem:[#allocation2] sm:%s273]
    %s276 = sshllo.u32 0, 1
    %277 = vst [vmem:[#allocation3] sm:%s276] %v275
    %s279 = sshllo.u32 0, 1
    %v281 = vld [vmem:[#allocation5] sm:%s279]
    %s282 = sshllo.u32 0, 1
    %283 = vst [vmem:[#allocation6] sm:%s282] %v281
    %p285 = scmp.gt.s32.totalorder 16, 0
    // Predicated region
    $region38: #{custom-call.14} parent=1 // pred_check
      %p286 = pneg %p285
    $region39: #{custom-call.14} parent=1 // pred_check_branch
      %288 = sbr.rel (%p286) target = $region41
    $region40: #{custom-call.14} parent=1 // pred_region
      %s289 = sshra.s32 16, 3
      %p290 = scmp.gt.s32.totalorder %s289, 0
      // Predicated region
      $region42: #{custom-call.14} parent=40 // pred_check
        %p291 = pneg %p290
      $region43: #{custom-call.14} parent=40 // pred_check_branch
        %293 = sbr.rel (%p291) target = $region45
      $region44: #{custom-call.14} parent=40 // pred_region
        %s294 = ssub.s32 %s289, 1
        %s295 = smul.u32 %s294, 128
        %s296 = sshra.s32 %s295, 4
        %s297 = scalar_lea.vmem [#allocation1], %s296
        %v298 = vld [vmem:[#allocation1] sm:$0xff]
        // While loop
        $region46: #{custom-call.14} parent=44 // loop_pre_header
          _
        $region47: #{custom-call.14} parent=44 // loop_header
          %s299 = sphi [#allocation1], %s321
          %s300 = sphi %s1, %s322
          %v301 = vphi %v298, %v323
          %s302 = ssub.s32 %s297, 64
          %p303 = scmp.gt.s32.totalorder %s299, %s302
        $region48: #{custom-call.14} parent=44 // loop_header_branch
          %305 = sbr.rel (%p303) target = $region52
        $region49: #{custom-call.14} parent=44 // loop_body
          %306 = vst [vmem:[%s300] sm:$0xff] %v301
          %v307 = vld [vmem:[%s299 + $0x8] sm:$0xff]
          %308 = vst [vmem:[%s300 + $0x8] sm:$0xff] %v307
          %v309 = vld [vmem:[%s299 + $0x10] sm:$0xff]
          %310 = vst [vmem:[%s300 + $0x10] sm:$0xff] %v309
          %v311 = vld [vmem:[%s299 + $0x18] sm:$0xff]
          %312 = vst [vmem:[%s300 + $0x18] sm:$0xff] %v311
          %v313 = vld [vmem:[%s299 + $0x20] sm:$0xff]
          %314 = vst [vmem:[%s300 + $0x20] sm:$0xff] %v313
          %v315 = vld [vmem:[%s299 + $0x28] sm:$0xff]
          %316 = vst [vmem:[%s300 + $0x28] sm:$0xff] %v315
          %v317 = vld [vmem:[%s299 + $0x30] sm:$0xff]
          %318 = vst [vmem:[%s300 + $0x30] sm:$0xff] %v317
          %v319 = vld [vmem:[%s299 + $0x38] sm:$0xff]
          %320 = vst [vmem:[%s300 + $0x38] sm:$0xff] %v319
        $region50: #{custom-call.14} parent=44 // loop_footer
          %s321 = scalar_lea.vmem %s299, 64
          %s322 = scalar_lea.vmem %s300, 64
          %v323 = vld [vmem:[%s299 + $0x40] sm:$0xff]
        $region51: #{custom-call.14} parent=44 // loop_footer_branch
          %324 = sbr.rel target = $region47
        $region52: #{custom-call.14} parent=44 // loop_exit
          _
        // While loop
        $region53: #{custom-call.14} parent=44 // loop_pre_header
          _
        $region54: #{custom-call.14} parent=44 // loop_header
          %s325 = sphi %s299, %s333
          %s326 = sphi %s300, %s334
          %v327 = vphi %v301, %v327
          %p328 = scmp.gt.s32.totalorder %s325, %s297
        $region55: #{custom-call.14} parent=44 // loop_header_branch
          %330 = sbr.rel (%p328) target = $region59
        $region56: #{custom-call.14} parent=44 // loop_body
          %v331 = vld [vmem:[%s325] sm:$0xff]
          %332 = vst [vmem:[%s326] sm:$0xff] %v331
        $region57: #{custom-call.14} parent=44 // loop_footer
          %s333 = scalar_lea.vmem %s325, 8
          %s334 = scalar_lea.vmem %s326, 8
        $region58: #{custom-call.14} parent=44 // loop_footer_branch
          %335 = sbr.rel target = $region54
        $region59: #{custom-call.14} parent=44 // loop_exit
          _
      $region45: #{custom-call.14} parent=40 // pred_fallthru
        _
      %s336 = sand.u32 16, 7
      %s337 = sshllo.u32 0, %s336
      %s338 = smul.u32 %s289, 128
      %s339 = sshra.s32 %s338, 4
      %s340 = scalar_lea.vmem %s1, %s339
      %s341 = smul.u32 %s289, 128
      %s342 = sshra.s32 %s341, 4
      %s343 = scalar_lea.vmem [#allocation1], %s342
      %v344 = vld [vmem:[%s343] sm:%s337]
      %345 = vst [vmem:[%s340] sm:%s337] %v344
    $region41: #{custom-call.14} parent=1 // pred_fallthru
      _
    // Predicated region
    $region60: #{custom-call.14} parent=1 // pred_check
      _
    $region61: #{custom-call.14} parent=1 // pred_check_branch
      %347 = sbr.rel (0) target = $region63
    $region62: #{custom-call.14} parent=1 // pred_region
      %s349 = ssub.s32 16, 16
      %350 = vsyncadd [#allocation4], %s349
      %s351 = sshll.u32 [#allocation3], 4
      %s352 = int_to_ptr.vmem [resolvable:$true] %s351
      %354 = dma.vmem_to_hbm [thread:$0]  %s352, 16, %s2, [#allocation4]
    $region63: #{custom-call.14} parent=1 // pred_fallthru
      _
    // Predicated region
    $region64: #{custom-call.14} parent=1 // pred_check
      _
    $region65: #{custom-call.14} parent=1 // pred_check_branch
      %356 = sbr.rel (0) target = $region67
    $region66: #{custom-call.14} parent=1 // pred_region
      %p358 = scmp.gt.s32.totalorder 1, 0
      // Predicated region
      $region68: #{custom-call.14} parent=66 // pred_check
        %p359 = pneg %p358
      $region69: #{custom-call.14} parent=66 // pred_check_branch
        %361 = sbr.rel (%p359) target = $region71
      $region70: #{custom-call.14} parent=66 // pred_region
        %s362 = sshra.s32 1, 3
        %p363 = scmp.gt.s32.totalorder %s362, 0
        // Predicated region
        $region72: #{custom-call.14} parent=70 // pred_check
          %p364 = pneg %p363
        $region73: #{custom-call.14} parent=70 // pred_check_branch
          %366 = sbr.rel (%p364) target = $region75
        $region74: #{custom-call.14} parent=70 // pred_region
          %s367 = ssub.s32 %s362, 1
          %s368 = smul.u32 %s367, 128
          %s369 = sshra.s32 %s368, 4
          %s370 = scalar_lea.vmem [#allocation6], %s369
          %v371 = vld [vmem:[#allocation6] sm:$0xff]
          // While loop
          $region76: #{custom-call.14} parent=74 // loop_pre_header
            _
          $region77: #{custom-call.14} parent=74 // loop_header
            %s372 = sphi [#allocation6], %s394
            %s373 = sphi %s3, %s395
            %v374 = vphi %v371, %v396
            %s375 = ssub.s32 %s370, 64
            %p376 = scmp.gt.s32.totalorder %s372, %s375
          $region78: #{custom-call.14} parent=74 // loop_header_branch
            %378 = sbr.rel (%p376) target = $region82
          $region79: #{custom-call.14} parent=74 // loop_body
            %379 = vst [vmem:[%s373] sm:$0xff] %v374
            %v380 = vld [vmem:[%s372 + $0x8] sm:$0xff]
            %381 = vst [vmem:[%s373 + $0x8] sm:$0xff] %v380
            %v382 = vld [vmem:[%s372 + $0x10] sm:$0xff]
            %383 = vst [vmem:[%s373 + $0x10] sm:$0xff] %v382
            %v384 = vld [vmem:[%s372 + $0x18] sm:$0xff]
            %385 = vst [vmem:[%s373 + $0x18] sm:$0xff] %v384
            %v386 = vld [vmem:[%s372 + $0x20] sm:$0xff]
            %387 = vst [vmem:[%s373 + $0x20] sm:$0xff] %v386
            %v388 = vld [vmem:[%s372 + $0x28] sm:$0xff]
            %389 = vst [vmem:[%s373 + $0x28] sm:$0xff] %v388
            %v390 = vld [vmem:[%s372 + $0x30] sm:$0xff]
            %391 = vst [vmem:[%s373 + $0x30] sm:$0xff] %v390
            %v392 = vld [vmem:[%s372 + $0x38] sm:$0xff]
            %393 = vst [vmem:[%s373 + $0x38] sm:$0xff] %v392
          $region80: #{custom-call.14} parent=74 // loop_footer
            %s394 = scalar_lea.vmem %s372, 64
            %s395 = scalar_lea.vmem %s373, 64
            %v396 = vld [vmem:[%s372 + $0x40] sm:$0xff]
          $region81: #{custom-call.14} parent=74 // loop_footer_branch
            %397 = sbr.rel target = $region77
          $region82: #{custom-call.14} parent=74 // loop_exit
            _
          // While loop
          $region83: #{custom-call.14} parent=74 // loop_pre_header
            _
          $region84: #{custom-call.14} parent=74 // loop_header
            %s398 = sphi %s372, %s406
            %s399 = sphi %s373, %s407
            %v400 = vphi %v374, %v400
            %p401 = scmp.gt.s32.totalorder %s398, %s370
          $region85: #{custom-call.14} parent=74 // loop_header_branch
            %403 = sbr.rel (%p401) target = $region89
          $region86: #{custom-call.14} parent=74 // loop_body
            %v404 = vld [vmem:[%s398] sm:$0xff]
            %405 = vst [vmem:[%s399] sm:$0xff] %v404
          $region87: #{custom-call.14} parent=74 // loop_footer
            %s406 = scalar_lea.vmem %s398, 8
            %s407 = scalar_lea.vmem %s399, 8
          $region88: #{custom-call.14} parent=74 // loop_footer_branch
            %408 = sbr.rel target = $region84
          $region89: #{custom-call.14} parent=74 // loop_exit
            _
        $region75: #{custom-call.14} parent=70 // pred_fallthru
          _
        %s409 = sand.u32 1, 7
        %s410 = sshllo.u32 0, %s409
        %s411 = smul.u32 %s362, 128
        %s412 = sshra.s32 %s411, 4
        %s413 = scalar_lea.vmem %s3, %s412
        %s414 = smul.u32 %s362, 128
        %s415 = sshra.s32 %s414, 4
        %s416 = scalar_lea.vmem [#allocation6], %s415
        %v417 = vld [vmem:[%s416] sm:%s410]
        %418 = vst [vmem:[%s413] sm:%s410] %v417
      $region71: #{custom-call.14} parent=66 // pred_fallthru
        _
    $region67: #{custom-call.14} parent=1 // pred_fallthru
      _
    // Predicated region
    $region90: #{custom-call.14} parent=1 // pred_check
      _
    $region91: #{custom-call.14} parent=1 // pred_check_branch
      %420 = sbr.rel (0) target = $region93
    $region92: #{custom-call.14} parent=1 // pred_region
      %421 = dma.done [#allocation4], 16
    $region93: #{custom-call.14} parent=1 // pred_fallthru
      _
    // Predicated region
    $region94: #{custom-call.14} parent=1 // pred_check
      _
    $region95: #{custom-call.14} parent=1 // pred_check_branch
      %423 = sbr.rel (0) target = $region97
    $region96: #{custom-call.14} parent=1 // pred_region
      _
    $region97: #{custom-call.14} parent=1 // pred_fallthru
      _
    %424 = vsyncpa [#allocation4], 1

// kernel: custom-call.21
$region0: #{custom-call.21}
  %s0 = inlined_call_operand.vmem [shape: f32[1,9,9], index: 0, kind: input, shape index: {}]
  %s1 = inlined_call_operand.vmem [shape: f32[1,9,9], index: 1, kind: output, shape index: {}]
  $region1: #{custom-call.21} parent=0
    #allocation0 [shape = 'u8[8192]{0}', space=vmem, size = 0x2000, scoped, tag = 'operand span for operand 0']
    #allocation1 [shape = 'u8[8192]{0}', space=vmem, size = 0x2000, scoped, tag = 'operand span for operand 1']
    #allocation2 [shape = 'f32[9,9]{1,0}', space=vmem, size = 0x2000, scoped, tag = 'rescaled input a']
    // Predicated region
    $region2: #{custom-call.21} parent=1 // pred_check
      _
    $region3: #{custom-call.21} parent=1 // pred_check_branch
      %3 = sbr.rel (0) target = $region5
    $region4: #{custom-call.21} parent=1 // pred_region
      // Predicated region
      $region6: #{custom-call.21} parent=4 // pred_check
        _
      $region7: #{custom-call.21} parent=4 // pred_check_branch
        %5 = sbr.rel (0) target = $region9
      $region8: #{custom-call.21} parent=4 // pred_region
        // Predicated region
        $region21: #{custom-call.21} parent=8 // pred_check
          _
        $region22: #{custom-call.21} parent=8 // pred_check_branch
          %22 = sbr.rel (0) target = $region24
        $region23: #{custom-call.21} parent=8 // pred_region
          loop: start=0, step=1, limit=1
          $region25: #{custom-call.21} parent=23 // loop_pre_header
            _
          $region26: #{custom-call.21} parent=23 // loop_header
            %s24 = sphi 0, %s28
            %p25 = scmp.ge.s32.totalorder %s24, 1
            %s29 = sphi %s0, %s0
            %s30 = sphi [#allocation0], [#allocation0]
          $region27: #{custom-call.21} parent=23 // loop_header_branch
            %27 = sbr.rel (%p25) target = $region31
          $region28: #{custom-call.21} parent=23 // loop_body
            %v31 = vld [vmem:[%s29] sm:$0xff]
            %32 = vst [vmem:[%s30] sm:$0xff] %v31
            %v33 = vld [vmem:[%s29 + $0x8] sm:$0xff]
            %34 = vst [vmem:[%s30 + $0x8] sm:$0xff] %v33
          $region29: #{custom-call.21} parent=23 // loop_footer
            %s28 = sadd.s32 1, %s24
          $region30: #{custom-call.21} parent=23 // loop_footer_branch
            %23 = sbr.rel target = $region26
          $region31: #{custom-call.21} parent=23 // loop_exit
            _
        $region24: #{custom-call.21} parent=8 // pred_fallthru
          _
        // Predicated region
        $region32: #{custom-call.21} parent=8 // pred_check
          _
        $region33: #{custom-call.21} parent=8 // pred_check_branch
          %36 = sbr.rel target = $region35
        $region34: #{custom-call.21} parent=8 // pred_region
          _
        $region35: #{custom-call.21} parent=8 // pred_fallthru
          _
      $region9: #{custom-call.21} parent=4 // pred_fallthru
        _
      // Predicated region
      $region10: #{custom-call.21} parent=4 // pred_check
        _
      $region11: #{custom-call.21} parent=4 // pred_check_branch
        %7 = sbr.rel target = $region13
      $region12: #{custom-call.21} parent=4 // pred_region
        loop: start=0, step=1, limit=1
        $region14: #{custom-call.21} parent=12 // loop_pre_header
          _
        $region15: #{custom-call.21} parent=12 // loop_header
          %s10 = sphi 0, %s14
          %p11 = scmp.ge.s32.totalorder %s10, 1
          %s15 = sphi %s0, %s0
          %s16 = sphi [#allocation0], [#allocation0]
        $region16: #{custom-call.21} parent=12 // loop_header_branch
          %13 = sbr.rel (%p11) target = $region20
        $region17: #{custom-call.21} parent=12 // loop_body
          %v17 = vld [vmem:[%s15] sm:$0xff]
          %18 = vst [vmem:[%s16] sm:$0xff] %v17
          %v19 = vld [vmem:[%s15 + $0x8] sm:$0xff]
          %20 = vst [vmem:[%s16 + $0x8] sm:$0xff] %v19
        $region18: #{custom-call.21} parent=12 // loop_footer
          %s14 = sadd.s32 1, %s10
        $region19: #{custom-call.21} parent=12 // loop_footer_branch
          %9 = sbr.rel target = $region15
        $region20: #{custom-call.21} parent=12 // loop_exit
          _
      $region13: #{custom-call.21} parent=4 // pred_fallthru
        _
    $region5: #{custom-call.21} parent=1 // pred_fallthru
      _
    %37 = vnop
    %v38 = vlaneseq
    %v39 = vand.u32 %v38, 127
    %vm40 = vcmp.lt.s32.totalorder %v39, 9
    %v41 = vlaneseq
    %v42 = vshrl.u32 %v41, 7
    %vm44 = vcmp.eq.s32.totalorder %v42, %v39
    %v45 = vld [vmem:[#allocation0] sm:$0xff]
    %v46 = vsel %vm44, %v45, 0.0
    %47 = vadd.xlane.f32.xlu0 %v46
    %v48 = vpop.xlane.xlu0 %47
    %vm49 = vcmp.le.s32.totalorder %v42, %v39
    %vm50 = vmand %vm49, %vm40
    %v51 = vsel %vm50, %v45, 0.0
    %v52 = vrcp.pop %v48
    %v53 = vmul.f32 %v51, %v52
    %54 = vst [vmem:[#allocation2] sm:$0xff] %v53
    %s55 = scalar_lea.vmem [#allocation0], 8
    %s56 = scalar_lea.vmem [#allocation2], 8
    %v57 = vlaneseq
    %v58 = vshrl.u32 %v57, 7
    %v59 = vadd.s32 %v58, 8
    %vm60 = vcmp.eq.s32.totalorder %v59, %v39
    %v61 = vld [vmem:[%s55] sm:$0xff]
    %v62 = vsel %vm60, %v61, 0.0
    %63 = vadd.xlane.f32.xlu0 %v62
    %v64 = vpop.xlane.xlu0 %63
    %vm65 = vcmp.le.s32.totalorder %v59, %v39
    %vm66 = vmand %vm65, %vm40
    %v67 = vsel %vm66, %v61, 0.0
    %v68 = vrcp.pop %v64
    %v69 = vmul.f32 %v67, %v68
    %70 = vst [vmem:[%s56] sm:$0xff] %v69
    %v71 = vlaneseq
    %v72 = vand.u32 %v71, 127
    %v73 = vlaneseq
    %v74 = vshrl.u32 %v73, 7
    %vm76 = vcmp.eq.s32.totalorder %v72, %v74
    %v77 = vsel %vm76, -1.0, 0.0
    %v78 = vlaneseq
    %v79 = vand.u32 %v78, 127
    %v80 = vlaneseq
    %v81 = vshrl.u32 %v80, 7
    %v82 = vadd.s32 %v81, 8
    %vm83 = vcmp.eq.s32.totalorder %v79, %v82
    %v84 = vlaneseq
    %v85 = vand.u32 %v84, 127
    %vm86 = vcmp.eq.s32.totalorder %v85, 8
    %v87 = vsel %vm86, 1.0, -1.0
    %v88 = vsel %vm83, %v87, 0.0
    %s89 = scalar_lea.vmem [#allocation2], 7
    %v90 = vld [vmem:[%s89] ss:$0 sm:$0xff]
    %v91 = vxor.u32 %v90, 2147483648
    %v92 = vlaneseq
    %v93 = vand.u32 %v92, 127
    %vm94 = vcmp.eq.s32.totalorder %v93, 7
    %v95 = vmul.f32 %v91, %v77
    %96 = vadd.xlane.f32.xlu0 %v95
    %v97 = vpop.xlane.xlu0 %96
    %v98 = vsel %vm94, %v97, %v77
    %v99 = vmul.f32 %v91, %v88
    %100 = vadd.xlane.f32.xlu0 %v99
    %v101 = vpop.xlane.xlu0 %100
    %v102 = vsel %vm94, %v101, %v88
    %s103 = scalar_lea.vmem [#allocation2], 6
    %v104 = vld [vmem:[%s103] ss:$0 sm:$0xff]
    %v105 = vxor.u32 %v104, 2147483648
    %v106 = vlaneseq
    %v107 = vand.u32 %v106, 127
    %vm108 = vcmp.eq.s32.totalorder %v107, 6
    %v109 = vmul.f32 %v105, %v98
    %110 = vadd.xlane.f32.xlu0 %v109
    %v111 = vpop.xlane.xlu0 %110
    %v112 = vsel %vm108, %v111, %v98
    %v113 = vmul.f32 %v105, %v102
    %114 = vadd.xlane.f32.xlu0 %v113
    %v115 = vpop.xlane.xlu0 %114
    %v116 = vsel %vm108, %v115, %v102
    %s117 = scalar_lea.vmem [#allocation2], 5
    %v118 = vld [vmem:[%s117] ss:$0 sm:$0xff]
    %v119 = vxor.u32 %v118, 2147483648
    %v120 = vlaneseq
    %v121 = vand.u32 %v120, 127
    %vm122 = vcmp.eq.s32.totalorder %v121, 5
    %v123 = vmul.f32 %v119, %v112
    %124 = vadd.xlane.f32.xlu0 %v123
    %v125 = vpop.xlane.xlu0 %124
    %v126 = vsel %vm122, %v125, %v112
    %v127 = vmul.f32 %v119, %v116
    %128 = vadd.xlane.f32.xlu0 %v127
    %v129 = vpop.xlane.xlu0 %128
    %v130 = vsel %vm122, %v129, %v116
    %s131 = scalar_lea.vmem [#allocation2], 4
    %v132 = vld [vmem:[%s131] ss:$0 sm:$0xff]
    %v133 = vxor.u32 %v132, 2147483648
    %v134 = vlaneseq
    %v135 = vand.u32 %v134, 127
    %vm136 = vcmp.eq.s32.totalorder %v135, 4
    %v137 = vmul.f32 %v133, %v126
    %138 = vadd.xlane.f32.xlu0 %v137
    %v139 = vpop.xlane.xlu0 %138
    %v140 = vsel %vm136, %v139, %v126
    %v141 = vmul.f32 %v133, %v130
    %142 = vadd.xlane.f32.xlu0 %v141
    %v143 = vpop.xlane.xlu0 %142
    %v144 = vsel %vm136, %v143, %v130
    %s145 = scalar_lea.vmem [#allocation2], 3
    %v146 = vld [vmem:[%s145] ss:$0 sm:$0xff]
    %v147 = vxor.u32 %v146, 2147483648
    %v148 = vlaneseq
    %v149 = vand.u32 %v148, 127
    %vm150 = vcmp.eq.s32.totalorder %v149, 3
    %v151 = vmul.f32 %v147, %v140
    %152 = vadd.xlane.f32.xlu0 %v151
    %v153 = vpop.xlane.xlu0 %152
    %v154 = vsel %vm150, %v153, %v140
    %v155 = vmul.f32 %v147, %v144
    %156 = vadd.xlane.f32.xlu0 %v155
    %v157 = vpop.xlane.xlu0 %156
    %v158 = vsel %vm150, %v157, %v144
    %s159 = scalar_lea.vmem [#allocation2], 2
    %v160 = vld [vmem:[%s159] ss:$0 sm:$0xff]
    %v161 = vxor.u32 %v160, 2147483648
    %v162 = vlaneseq
    %v163 = vand.u32 %v162, 127
    %vm164 = vcmp.eq.s32.totalorder %v163, 2
    %v165 = vmul.f32 %v161, %v154
    %166 = vadd.xlane.f32.xlu0 %v165
    %v167 = vpop.xlane.xlu0 %166
    %v168 = vsel %vm164, %v167, %v154
    %v169 = vmul.f32 %v161, %v158
    %170 = vadd.xlane.f32.xlu0 %v169
    %v171 = vpop.xlane.xlu0 %170
    %v172 = vsel %vm164, %v171, %v158
    %s173 = scalar_lea.vmem [#allocation2], 1
    %v174 = vld [vmem:[%s173] ss:$0 sm:$0xff]
    %v175 = vxor.u32 %v174, 2147483648
    %v176 = vlaneseq
    %v177 = vand.u32 %v176, 127
    %vm178 = vcmp.eq.s32.totalorder %v177, 1
    %v179 = vmul.f32 %v175, %v168
    %180 = vadd.xlane.f32.xlu0 %v179
    %v181 = vpop.xlane.xlu0 %180
    %v182 = vsel %vm178, %v181, %v168
    %v183 = vmul.f32 %v175, %v172
    %184 = vadd.xlane.f32.xlu0 %v183
    %v185 = vpop.xlane.xlu0 %184
    %v186 = vsel %vm178, %v185, %v172
    %v187 = vld [vmem:[#allocation2] ss:$0 sm:$0xff]
    %v188 = vxor.u32 %v187, 2147483648
    %v189 = vlaneseq
    %v190 = vand.u32 %v189, 127
    %vm191 = vcmp.eq.s32.totalorder %v190, 0
    %v192 = vmul.f32 %v188, %v182
    %193 = vadd.xlane.f32.xlu0 %v192
    %v194 = vpop.xlane.xlu0 %193
    %v195 = vsel %vm191, %v194, %v182
    %v196 = vmul.f32 %v188, %v186
    %197 = vadd.xlane.f32.xlu0 %v196
    %v198 = vpop.xlane.xlu0 %197
    %v199 = vsel %vm191, %v198, %v186
    %v200 = vrcp.pop %v48
    %v201 = vmul.f32 %v195, %v200
    %vm202 = vweird.f32 %v48
    %v203 = vsel %vm202, %v195, %v201
    %204 = vst [vmem:[#allocation1] sm:$0xff] %v203
    %v205 = vrcp.pop %v64
    %v206 = vmul.f32 %v199, %v205
    %vm207 = vweird.f32 %v64
    %v208 = vsel %vm207, %v199, %v206
    %s209 = scalar_lea.vmem [#allocation1], 8
    %210 = vst [vmem:[%s209] sm:$0xff] %v208
    // Predicated region
    $region36: #{custom-call.21} parent=1 // pred_check
      _
    $region37: #{custom-call.21} parent=1 // pred_check_branch
      %212 = sbr.rel (0) target = $region39
    $region38: #{custom-call.21} parent=1 // pred_region
      // Predicated region
      $region40: #{custom-call.21} parent=38 // pred_check
        _
      $region41: #{custom-call.21} parent=38 // pred_check_branch
        %214 = sbr.rel (0) target = $region43
      $region42: #{custom-call.21} parent=38 // pred_region
        // Predicated region
        $region55: #{custom-call.21} parent=42 // pred_check
          _
        $region56: #{custom-call.21} parent=42 // pred_check_branch
          %231 = sbr.rel (0) target = $region58
        $region57: #{custom-call.21} parent=42 // pred_region
          loop: start=0, step=1, limit=1
          $region59: #{custom-call.21} parent=57 // loop_pre_header
            _
          $region60: #{custom-call.21} parent=57 // loop_header
            %s233 = sphi 0, %s237
            %p234 = scmp.ge.s32.totalorder %s233, 1
            %s238 = sphi [#allocation1], [#allocation1]
            %s239 = sphi %s1, %s1
          $region61: #{custom-call.21} parent=57 // loop_header_branch
            %236 = sbr.rel (%p234) target = $region65
          $region62: #{custom-call.21} parent=57 // loop_body
            %v240 = vld [vmem:[%s238] sm:$0xff]
            %241 = vst [vmem:[%s239] sm:$0xff] %v240
            %v242 = vld [vmem:[%s238 + $0x8] sm:$0xff]
            %243 = vst [vmem:[%s239 + $0x8] sm:$0xff] %v242
          $region63: #{custom-call.21} parent=57 // loop_footer
            %s237 = sadd.s32 1, %s233
          $region64: #{custom-call.21} parent=57 // loop_footer_branch
            %232 = sbr.rel target = $region60
          $region65: #{custom-call.21} parent=57 // loop_exit
            _
        $region58: #{custom-call.21} parent=42 // pred_fallthru
          _
        // Predicated region
        $region66: #{custom-call.21} parent=42 // pred_check
          _
        $region67: #{custom-call.21} parent=42 // pred_check_branch
          %245 = sbr.rel target = $region69
        $region68: #{custom-call.21} parent=42 // pred_region
          _
        $region69: #{custom-call.21} parent=42 // pred_fallthru
          _
      $region43: #{custom-call.21} parent=38 // pred_fallthru
        _
      // Predicated region
      $region44: #{custom-call.21} parent=38 // pred_check
        _
      $region45: #{custom-call.21} parent=38 // pred_check_branch
        %216 = sbr.rel target = $region47
      $region46: #{custom-call.21} parent=38 // pred_region
        loop: start=0, step=1, limit=1
        $region48: #{custom-call.21} parent=46 // loop_pre_header
          _
        $region49: #{custom-call.21} parent=46 // loop_header
          %s219 = sphi 0, %s223
          %p220 = scmp.ge.s32.totalorder %s219, 1
          %s224 = sphi [#allocation1], [#allocation1]
          %s225 = sphi %s1, %s1
        $region50: #{custom-call.21} parent=46 // loop_header_branch
          %222 = sbr.rel (%p220) target = $region54
        $region51: #{custom-call.21} parent=46 // loop_body
          %v226 = vld [vmem:[%s224] sm:$0xff]
          %227 = vst [vmem:[%s225] sm:$0xff] %v226
          %v228 = vld [vmem:[%s224 + $0x8] sm:$0xff]
          %229 = vst [vmem:[%s225 + $0x8] sm:$0xff] %v228
        $region52: #{custom-call.21} parent=46 // loop_footer
          %s223 = sadd.s32 1, %s219
        $region53: #{custom-call.21} parent=46 // loop_footer_branch
          %218 = sbr.rel target = $region49
        $region54: #{custom-call.21} parent=46 // loop_exit
          _
      $region47: #{custom-call.21} parent=38 // pred_fallthru
        _
    $region39: #{custom-call.21} parent=1 // pred_fallthru
      _
    %246 = vnop

// kernel: custom-call.22
$region0: #{custom-call.22}
  %s0 = inlined_call_operand.vmem [shape: f32[1,9,9], index: 0, kind: input, shape index: {}]
  %s1 = inlined_call_operand.vmem [shape: f32[1,9,9], index: 1, kind: output, shape index: {}]
  $region1: #{custom-call.22} parent=0
    #allocation0 [shape = 'u8[8192]{0}', space=vmem, size = 0x2000, scoped, tag = 'operand span for operand 0']
    #allocation1 [shape = 'u8[8192]{0}', space=vmem, size = 0x2000, scoped, tag = 'operand span for operand 1']
    #allocation2 [shape = 'f32[9,9]{1,0}', space=vmem, size = 0x2000, scoped, tag = 'rescaled input a']
    // Predicated region
    $region2: #{custom-call.22} parent=1 // pred_check
      _
    $region3: #{custom-call.22} parent=1 // pred_check_branch
      %3 = sbr.rel (0) target = $region5
    $region4: #{custom-call.22} parent=1 // pred_region
      // Predicated region
      $region6: #{custom-call.22} parent=4 // pred_check
        _
      $region7: #{custom-call.22} parent=4 // pred_check_branch
        %5 = sbr.rel (0) target = $region9
      $region8: #{custom-call.22} parent=4 // pred_region
        // Predicated region
        $region21: #{custom-call.22} parent=8 // pred_check
          _
        $region22: #{custom-call.22} parent=8 // pred_check_branch
          %22 = sbr.rel (0) target = $region24
        $region23: #{custom-call.22} parent=8 // pred_region
          loop: start=0, step=1, limit=1
          $region25: #{custom-call.22} parent=23 // loop_pre_header
            _
          $region26: #{custom-call.22} parent=23 // loop_header
            %s24 = sphi 0, %s28
            %p25 = scmp.ge.s32.totalorder %s24, 1
            %s29 = sphi %s0, %s0
            %s30 = sphi [#allocation0], [#allocation0]
          $region27: #{custom-call.22} parent=23 // loop_header_branch
            %27 = sbr.rel (%p25) target = $region31
          $region28: #{custom-call.22} parent=23 // loop_body
            %v31 = vld [vmem:[%s29] sm:$0xff]
            %32 = vst [vmem:[%s30] sm:$0xff] %v31
            %v33 = vld [vmem:[%s29 + $0x8] sm:$0xff]
            %34 = vst [vmem:[%s30 + $0x8] sm:$0xff] %v33
          $region29: #{custom-call.22} parent=23 // loop_footer
            %s28 = sadd.s32 1, %s24
          $region30: #{custom-call.22} parent=23 // loop_footer_branch
            %23 = sbr.rel target = $region26
          $region31: #{custom-call.22} parent=23 // loop_exit
            _
        $region24: #{custom-call.22} parent=8 // pred_fallthru
          _
        // Predicated region
        $region32: #{custom-call.22} parent=8 // pred_check
          _
        $region33: #{custom-call.22} parent=8 // pred_check_branch
          %36 = sbr.rel target = $region35
        $region34: #{custom-call.22} parent=8 // pred_region
          _
        $region35: #{custom-call.22} parent=8 // pred_fallthru
          _
      $region9: #{custom-call.22} parent=4 // pred_fallthru
        _
      // Predicated region
      $region10: #{custom-call.22} parent=4 // pred_check
        _
      $region11: #{custom-call.22} parent=4 // pred_check_branch
        %7 = sbr.rel target = $region13
      $region12: #{custom-call.22} parent=4 // pred_region
        loop: start=0, step=1, limit=1
        $region14: #{custom-call.22} parent=12 // loop_pre_header
          _
        $region15: #{custom-call.22} parent=12 // loop_header
          %s10 = sphi 0, %s14
          %p11 = scmp.ge.s32.totalorder %s10, 1
          %s15 = sphi %s0, %s0
          %s16 = sphi [#allocation0], [#allocation0]
        $region16: #{custom-call.22} parent=12 // loop_header_branch
          %13 = sbr.rel (%p11) target = $region20
        $region17: #{custom-call.22} parent=12 // loop_body
          %v17 = vld [vmem:[%s15] sm:$0xff]
          %18 = vst [vmem:[%s16] sm:$0xff] %v17
          %v19 = vld [vmem:[%s15 + $0x8] sm:$0xff]
          %20 = vst [vmem:[%s16 + $0x8] sm:$0xff] %v19
        $region18: #{custom-call.22} parent=12 // loop_footer
          %s14 = sadd.s32 1, %s10
        $region19: #{custom-call.22} parent=12 // loop_footer_branch
          %9 = sbr.rel target = $region15
        $region20: #{custom-call.22} parent=12 // loop_exit
          _
      $region13: #{custom-call.22} parent=4 // pred_fallthru
        _
    $region5: #{custom-call.22} parent=1 // pred_fallthru
      _
    %37 = vnop
    %v38 = vlaneseq
    %v39 = vand.u32 %v38, 127
    %vm40 = vcmp.lt.s32.totalorder %v39, 9
    %v41 = vlaneseq
    %v42 = vshrl.u32 %v41, 7
    %vm44 = vcmp.eq.s32.totalorder %v42, %v39
    %v45 = vld [vmem:[#allocation0] sm:$0xff]
    %v46 = vsel %vm44, %v45, 0.0
    %47 = vadd.xlane.f32.xlu0 %v46
    %v48 = vpop.xlane.xlu0 %47
    %vm49 = vcmp.ge.s32.totalorder %v42, %v39
    %vm50 = vmand %vm49, %vm40
    %v51 = vsel %vm50, %v45, 0.0
    %v52 = vrcp.pop %v48
    %v53 = vmul.f32 %v51, %v52
    %54 = vst [vmem:[#allocation2] sm:$0xff] %v53
    %s55 = scalar_lea.vmem [#allocation0], 8
    %s56 = scalar_lea.vmem [#allocation2], 8
    %v57 = vlaneseq
    %v58 = vshrl.u32 %v57, 7
    %v59 = vadd.s32 %v58, 8
    %vm60 = vcmp.eq.s32.totalorder %v59, %v39
    %v61 = vld [vmem:[%s55] sm:$0xff]
    %v62 = vsel %vm60, %v61, 0.0
    %63 = vadd.xlane.f32.xlu0 %v62
    %v64 = vpop.xlane.xlu0 %63
    %vm65 = vcmp.ge.s32.totalorder %v59, %v39
    %vm66 = vmand %vm65, %vm40
    %v67 = vsel %vm66, %v61, 0.0
    %v68 = vrcp.pop %v64
    %v69 = vmul.f32 %v67, %v68
    %70 = vst [vmem:[%s56] sm:$0xff] %v69
    %v71 = vlaneseq
    %v72 = vand.u32 %v71, 127
    %v73 = vlaneseq
    %v74 = vshrl.u32 %v73, 7
    %vm76 = vcmp.eq.s32.totalorder %v72, %v74
    %v77 = vlaneseq
    %v78 = vand.u32 %v77, 127
    %vm79 = vcmp.eq.s32.totalorder %v78, 0
    %v80 = vsel %vm79, 1.0, -1.0
    %v81 = vsel %vm76, %v80, 0.0
    %v82 = vlaneseq
    %v83 = vand.u32 %v82, 127
    %v84 = vlaneseq
    %v85 = vshrl.u32 %v84, 7
    %v86 = vadd.s32 %v85, 8
    %vm87 = vcmp.eq.s32.totalorder %v83, %v86
    %v88 = vsel %vm87, -1.0, 0.0
    %s89 = scalar_lea.vmem [#allocation2], 1
    %v90 = vld [vmem:[%s89] ss:$0 sm:$0xff]
    %v91 = vxor.u32 %v90, 2147483648
    %v92 = vlaneseq
    %v93 = vand.u32 %v92, 127
    %vm94 = vcmp.eq.s32.totalorder %v93, 1
    %v95 = vmul.f32 %v91, %v81
    %96 = vadd.xlane.f32.xlu0 %v95
    %v97 = vpop.xlane.xlu0 %96
    %v98 = vsel %vm94, %v97, %v81
    %s99 = scalar_lea.vmem [#allocation2], 2
    %v100 = vld [vmem:[%s99] ss:$0 sm:$0xff]
    %v101 = vxor.u32 %v100, 2147483648
    %v102 = vlaneseq
    %v103 = vand.u32 %v102, 127
    %vm104 = vcmp.eq.s32.totalorder %v103, 2
    %v105 = vmul.f32 %v101, %v98
    %106 = vadd.xlane.f32.xlu0 %v105
    %v107 = vpop.xlane.xlu0 %106
    %v108 = vsel %vm104, %v107, %v98
    %s109 = scalar_lea.vmem [#allocation2], 3
    %v110 = vld [vmem:[%s109] ss:$0 sm:$0xff]
    %v111 = vxor.u32 %v110, 2147483648
    %v112 = vlaneseq
    %v113 = vand.u32 %v112, 127
    %vm114 = vcmp.eq.s32.totalorder %v113, 3
    %v115 = vmul.f32 %v111, %v108
    %116 = vadd.xlane.f32.xlu0 %v115
    %v117 = vpop.xlane.xlu0 %116
    %v118 = vsel %vm114, %v117, %v108
    %s119 = scalar_lea.vmem [#allocation2], 4
    %v120 = vld [vmem:[%s119] ss:$0 sm:$0xff]
    %v121 = vxor.u32 %v120, 2147483648
    %v122 = vlaneseq
    %v123 = vand.u32 %v122, 127
    %vm124 = vcmp.eq.s32.totalorder %v123, 4
    %v125 = vmul.f32 %v121, %v118
    %126 = vadd.xlane.f32.xlu0 %v125
    %v127 = vpop.xlane.xlu0 %126
    %v128 = vsel %vm124, %v127, %v118
    %s129 = scalar_lea.vmem [#allocation2], 5
    %v130 = vld [vmem:[%s129] ss:$0 sm:$0xff]
    %v131 = vxor.u32 %v130, 2147483648
    %v132 = vlaneseq
    %v133 = vand.u32 %v132, 127
    %vm134 = vcmp.eq.s32.totalorder %v133, 5
    %v135 = vmul.f32 %v131, %v128
    %136 = vadd.xlane.f32.xlu0 %v135
    %v137 = vpop.xlane.xlu0 %136
    %v138 = vsel %vm134, %v137, %v128
    %s139 = scalar_lea.vmem [#allocation2], 6
    %v140 = vld [vmem:[%s139] ss:$0 sm:$0xff]
    %v141 = vxor.u32 %v140, 2147483648
    %v142 = vlaneseq
    %v143 = vand.u32 %v142, 127
    %vm144 = vcmp.eq.s32.totalorder %v143, 6
    %v145 = vmul.f32 %v141, %v138
    %146 = vadd.xlane.f32.xlu0 %v145
    %v147 = vpop.xlane.xlu0 %146
    %v148 = vsel %vm144, %v147, %v138
    %s149 = scalar_lea.vmem [#allocation2], 7
    %v150 = vld [vmem:[%s149] ss:$0 sm:$0xff]
    %v151 = vxor.u32 %v150, 2147483648
    %v152 = vlaneseq
    %v153 = vand.u32 %v152, 127
    %vm154 = vcmp.eq.s32.totalorder %v153, 7
    %v155 = vmul.f32 %v151, %v148
    %156 = vadd.xlane.f32.xlu0 %v155
    %v157 = vpop.xlane.xlu0 %156
    %v158 = vsel %vm154, %v157, %v148
    %s159 = scalar_lea.vmem [#allocation2], 8
    %v160 = vld [vmem:[%s159] ss:$0 sm:$0xff]
    %v161 = vxor.u32 %v160, 2147483648
    %v162 = vlaneseq
    %v163 = vand.u32 %v162, 127
    %vm164 = vcmp.eq.s32.totalorder %v163, 8
    %v165 = vmul.f32 %v161, %v158
    %166 = vadd.xlane.f32.xlu0 %v165
    %v167 = vpop.xlane.xlu0 %166
    %v168 = vsel %vm164, %v167, %v158
    %v169 = vmul.f32 %v161, %v88
    %170 = vadd.xlane.f32.xlu0 %v169
    %v171 = vpop.xlane.xlu0 %170
    %v172 = vsel %vm164, %v171, %v88
    %v173 = vrcp.pop %v48
    %v174 = vmul.f32 %v168, %v173
    %vm175 = vweird.f32 %v48
    %v176 = vsel %vm175, %v168, %v174
    %177 = vst [vmem:[#allocation1] sm:$0xff] %v176
    %v178 = vrcp.pop %v64
    %v179 = vmul.f32 %v172, %v178
    %vm180 = vweird.f32 %v64
    %v181 = vsel %vm180, %v172, %v179
    %s182 = scalar_lea.vmem [#allocation1], 8
    %183 = vst [vmem:[%s182] sm:$0xff] %v181
    // Predicated region
    $region36: #{custom-call.22} parent=1 // pred_check
      _
    $region37: #{custom-call.22} parent=1 // pred_check_branch
      %185 = sbr.rel (0) target = $region39
    $region38: #{custom-call.22} parent=1 // pred_region
      // Predicated region
      $region40: #{custom-call.22} parent=38 // pred_check
        _
      $region41: #{custom-call.22} parent=38 // pred_check_branch
        %187 = sbr.rel (0) target = $region43
      $region42: #{custom-call.22} parent=38 // pred_region
        // Predicated region
        $region55: #{custom-call.22} parent=42 // pred_check
          _
        $region56: #{custom-call.22} parent=42 // pred_check_branch
          %204 = sbr.rel (0) target = $region58
        $region57: #{custom-call.22} parent=42 // pred_region
          loop: start=0, step=1, limit=1
          $region59: #{custom-call.22} parent=57 // loop_pre_header
            _
          $region60: #{custom-call.22} parent=57 // loop_header
            %s206 = sphi 0, %s210
            %p207 = scmp.ge.s32.totalorder %s206, 1
            %s211 = sphi [#allocation1], [#allocation1]
            %s212 = sphi %s1, %s1
          $region61: #{custom-call.22} parent=57 // loop_header_branch
            %209 = sbr.rel (%p207) target = $region65
          $region62: #{custom-call.22} parent=57 // loop_body
            %v213 = vld [vmem:[%s211] sm:$0xff]
            %214 = vst [vmem:[%s212] sm:$0xff] %v213
            %v215 = vld [vmem:[%s211 + $0x8] sm:$0xff]
            %216 = vst [vmem:[%s212 + $0x8] sm:$0xff] %v215
          $region63: #{custom-call.22} parent=57 // loop_footer
            %s210 = sadd.s32 1, %s206
          $region64: #{custom-call.22} parent=57 // loop_footer_branch
            %205 = sbr.rel target = $region60
          $region65: #{custom-call.22} parent=57 // loop_exit
            _
        $region58: #{custom-call.22} parent=42 // pred_fallthru
          _
        // Predicated region
        $region66: #{custom-call.22} parent=42 // pred_check
          _
        $region67: #{custom-call.22} parent=42 // pred_check_branch
          %218 = sbr.rel target = $region69
        $region68: #{custom-call.22} parent=42 // pred_region
          _
        $region69: #{custom-call.22} parent=42 // pred_fallthru
          _
      $region43: #{custom-call.22} parent=38 // pred_fallthru
        _
      // Predicated region
      $region44: #{custom-call.22} parent=38 // pred_check
        _
      $region45: #{custom-call.22} parent=38 // pred_check_branch
        %189 = sbr.rel target = $region47
      $region46: #{custom-call.22} parent=38 // pred_region
        loop: start=0, step=1, limit=1
        $region48: #{custom-call.22} parent=46 // loop_pre_header
          _
        $region49: #{custom-call.22} parent=46 // loop_header
          %s192 = sphi 0, %s196
          %p193 = scmp.ge.s32.totalorder %s192, 1
          %s197 = sphi [#allocation1], [#allocation1]
          %s198 = sphi %s1, %s1
        $region50: #{custom-call.22} parent=46 // loop_header_branch
          %195 = sbr.rel (%p193) target = $region54
        $region51: #{custom-call.22} parent=46 // loop_body
          %v199 = vld [vmem:[%s197] sm:$0xff]
          %200 = vst [vmem:[%s198] sm:$0xff] %v199
          %v201 = vld [vmem:[%s197 + $0x8] sm:$0xff]
          %202 = vst [vmem:[%s198 + $0x8] sm:$0xff] %v201
        $region52: #{custom-call.22} parent=46 // loop_footer
          %s196 = sadd.s32 1, %s192
        $region53: #{custom-call.22} parent=46 // loop_footer_branch
          %191 = sbr.rel target = $region49
        $region54: #{custom-call.22} parent=46 // loop_exit
          _
      $region47: #{custom-call.22} parent=38 // pred_fallthru
        _
    $region39: #{custom-call.22} parent=1 // pred_fallthru
      _
    %219 = vnop

// kernel: _lambda_.1
$region0: #{_lambda_.1}
  #allocation0 [shape = 'u32[]', space=smem, size = 0x4, offset = 0x4, fixed_abs, tag = 'smem constant byte address 0x4 - core index']
  #allocation1 [shape = 'u32[144,128]{1,0:T(1,128)}', space=vmem, size = 0x12000, scoped, tag = 'internal scratch']
  %s0 = inlined_call_operand.vmem [shape: f32[3,128], index: 0, kind: input, shape index: {}]
  %s1 = inlined_call_operand.vmem [shape: f32[96,8], index: 1, kind: input, shape index: {}]
  %s2 = inlined_call_operand.vmem [shape: f32[48,32], index: 2, kind: input, shape index: {}]
  %s3 = inlined_call_operand.vmem [shape: f32[32,128], index: 3, kind: output, shape index: {}]
  %s4 = sld [smem:[#allocation0]]
  $region22: #{_lambda_.1} parent=0
    _
  %s6 = ssub.s32 1, %s4
  %s7 = scalar_select 0, %s6, %s4
  // Predicated region
  $region2: #{_lambda_.1} parent=0 // pred_check
    _
  $region3: #{_lambda_.1} parent=0 // pred_check_branch
    %9 = sbr.rel (0) target = $region5
  $region4: #{_lambda_.1} parent=0 // pred_region
    _
  $region5: #{_lambda_.1} parent=0 // pred_fallthru
    _
  // Predicated region
  $region6: #{_lambda_.1} parent=0 // pred_check
    _
  $region7: #{_lambda_.1} parent=0 // pred_check_branch
    %11 = sbr.rel (0) target = $region9
  $region8: #{_lambda_.1} parent=0 // pred_region
    _
  $region9: #{_lambda_.1} parent=0 // pred_fallthru
    _
  // Predicated region
  $region10: #{_lambda_.1} parent=0 // pred_check
    _
  $region11: #{_lambda_.1} parent=0 // pred_check_branch
    %13 = sbr.rel (0) target = $region13
  $region12: #{_lambda_.1} parent=0 // pred_region
    _
  $region13: #{_lambda_.1} parent=0 // pred_fallthru
    _
  %v14 = vld [vmem:[%s1] sm:$0xff]
  %v15 = vld [vmem:[%s1 + $0x8] sm:$0xff]
  %v16 = vld [vmem:[%s1 + $0x10] sm:$0xff]
  %v17 = vld [vmem:[%s1 + $0x18] sm:$0xff]
  %v18 = vld [vmem:[%s1 + $0x20] sm:$0xff]
  %v19 = vld [vmem:[%s1 + $0x28] sm:$0xff]
  %v20 = vld [vmem:[%s1 + $0x30] sm:$0xff]
  %v21 = vld [vmem:[%s1 + $0x38] sm:$0xff]
  %v22 = vld [vmem:[%s1 + $0x40] sm:$0xff]
  %v23 = vld [vmem:[%s1 + $0x48] sm:$0xff]
  %v24 = vld [vmem:[%s1 + $0x50] sm:$0xff]
  %v25 = vld [vmem:[%s1 + $0x58] sm:$0xff]
  %v26 = vld [vmem:[%s2] sm:$0xff]
  %v27 = vld [vmem:[%s2 + $0x8] sm:$0xff]
  %v28 = vld [vmem:[%s2 + $0x10] sm:$0xff]
  %v29 = vld [vmem:[%s2 + $0x18] sm:$0xff]
  %v30 = vld [vmem:[%s2 + $0x20] sm:$0xff]
  %v31 = vld [vmem:[%s2 + $0x28] sm:$0xff]
  %v32 = vlaneseq
  %v33 = vshrl.u32 %v32, 7
  %v34 = vadd.s32 %v33, 8
  %v35 = vadd.s32 %v33, 16
  %v36 = vadd.s32 %v33, 24
  %v37 = vld [vmem:[%s0] sm:$0x7]
  %vm38 = vcmask 1041408
  %v39 = vsel %vm38, %v37, 1.0
  %vm40 = vcmask 1042432
  %v41 = vsel %vm40, %v39, 0.0
  %vm42 = vcmask 64512
  %v44 = vsel %vm42, %v14, 0
  %v47 = vsel %vm42, %v15, 0
  %v50 = vsel %vm42, %v16, 0
  %v53 = vsel %vm42, %v17, 0
  %v56 = vsel %vm42, %v18, 0
  %v59 = vsel %vm42, %v19, 0
  %v62 = vsel %vm42, %v20, 0
  %v65 = vsel %vm42, %v21, 0
  %v68 = vsel %vm42, %v22, 0
  %v71 = vsel %vm42, %v23, 0
  %v74 = vsel %vm42, %v24, 0
  %v77 = vsel %vm42, %v25, 0
  %79 = vmatprep.subr.mxu0 0.0
  %v80 = vand.u32 %v41, 4294901760
  %81 = vmatpush1.msra.mxu0 %v80
  %82 = vmatprep.subr.mxu0 0.0
  %83 = vmatpush1.msra.mxu0 0.0
  %84 = vmatprep.subr.mxu0 0.0
  %85 = vmatpush1.msra.mxu0 0.0
  %86 = vmatprep.subr.mxu0 0.0
  %87 = vmatpush1.msra.mxu0 0.0
  %88 = vmatprep.subr.mxu0 0.0
  %89 = vmatpush1.msra.mxu0 0.0
  %90 = vmatprep.subr.mxu0 0.0
  %91 = vmatpush1.msra.mxu0 0.0
  %92 = vmatprep.subr.mxu0 0.0
  %93 = vmatpush1.msra.mxu0 0.0
  %94 = vmatprep.subr.mxu0 0.0
  %95 = vmatpush1.msra.mxu0 0.0
  %96 = vmatprep.subr.mxu0 0.0
  %97 = vmatpush1.msra.mxu0 0.0
  %98 = vmatprep.subr.mxu0 0.0
  %99 = vmatpush1.msra.mxu0 0.0
  %100 = vmatprep.subr.mxu0 0.0
  %101 = vmatpush1.msra.mxu0 0.0
  %102 = vmatprep.subr.mxu0 0.0
  %103 = vmatpush1.msra.mxu0 0.0
  %104 = vmatprep.subr.mxu0 0.0
  %105 = vmatpush1.msra.mxu0 0.0
  %106 = vmatprep.subr.mxu0 0.0
  %107 = vmatpush1.msra.mxu0 0.0
  %108 = vmatprep.subr.mxu0 0.0
  %109 = vmatpush1.msra.mxu0 0.0
  %110 = vmatprep.subr.mxu0 0.0
  %111 = vmatpush1.msra.mxu0 0.0
  %112 = vmatprep.subr.mxu0 0.0
  %113 = vmatpush1.msra.mxu0 0.0
  %114 = vmatprep.subr.mxu0 0.0
  %115 = vmatpush1.msra.mxu0 0.0
  %116 = vmatprep.subr.mxu0 0.0
  %117 = vmatpush1.msra.mxu0 0.0
  %118 = vmatprep.subr.mxu0 0.0
  %119 = vmatpush1.msra.mxu0 0.0
  %120 = vmatprep.subr.mxu0 0.0
  %121 = vmatpush1.msra.mxu0 0.0
  %122 = vmatprep.subr.mxu0 0.0
  %123 = vmatpush1.msra.mxu0 0.0
  %124 = vmatprep.subr.mxu0 0.0
  %125 = vmatpush1.msra.mxu0 0.0
  %126 = vmatprep.subr.mxu0 0.0
  %127 = vmatpush1.msra.mxu0 0.0
  %128 = vmatprep.subr.mxu0 0.0
  %129 = vmatpush1.msra.mxu0 0.0
  %130 = vmatprep.subr.mxu0 0.0
  %131 = vmatpush1.msra.mxu0 0.0
  %132 = vmatprep.subr.mxu0 0.0
  %133 = vmatpush1.msra.mxu0 0.0
  %134 = vmatprep.subr.mxu0 0.0
  %135 = vmatpush1.msra.mxu0 0.0
  %136 = vmatprep.subr.mxu0 0.0
  %137 = vmatpush1.msra.mxu0 0.0
  %138 = vmatprep.subr.mxu0 0.0
  %139 = vmatpush1.msra.mxu0 0.0
  %140 = vmatprep.subr.mxu0 0.0
  %141 = vmatpush1.msra.mxu0 0.0
  %142 = vmatprep.subr.mxu0 0.0
  %143 = vmatpush1.msra.mxu0 0.0
  %144 = vmatprep.mubr.f32.mxu0 0.0
  %v145 = vand.u32 %v44, 4294901760
  %v146 = vsub.f32 %v44, %v145
  %v147 = vand.u32 %v146, 4294901760
  %v148 = vsub.f32 %v146, %v147
  %v149 = vand.u32 %v148, 4294901760
  %150 = vmatmul.mubr.f32.gmra.mrb[0].mxu0 %v149
  %v151 = vpop.f32.mrb[0].mxu0
  %v152 = vadd.f32 0.0, %v151
  %v153 = vpop.f32.mrb[0].mxu0
  %154 = vmatprep.mubr.f32.mxu0 0.0
  %v155 = vand.u32 %v47, 4294901760
  %v156 = vsub.f32 %v47, %v155
  %v157 = vand.u32 %v156, 4294901760
  %v158 = vsub.f32 %v156, %v157
  %v159 = vand.u32 %v158, 4294901760
  %160 = vmatmul.mubr.f32.gmra.mrb[0].mxu0 %v159
  %v161 = vpop.f32.mrb[0].mxu0
  %v162 = vadd.f32 0.0, %v161
  %v163 = vpop.f32.mrb[0].mxu0
  %164 = vmatprep.mubr.f32.mxu0 0.0
  %v165 = vand.u32 %v50, 4294901760
  %v166 = vsub.f32 %v50, %v165
  %v167 = vand.u32 %v166, 4294901760
  %v168 = vsub.f32 %v166, %v167
  %v169 = vand.u32 %v168, 4294901760
  %170 = vmatmul.mubr.f32.gmra.mrb[0].mxu0 %v169
  %v171 = vpop.f32.mrb[0].mxu0
  %v172 = vadd.f32 0.0, %v171
  %v173 = vpop.f32.mrb[0].mxu0
  %174 = vmatprep.mubr.f32.mxu0 0.0
  %v175 = vand.u32 %v53, 4294901760
  %v176 = vsub.f32 %v53, %v175
  %v177 = vand.u32 %v176, 4294901760
  %v178 = vsub.f32 %v176, %v177
  %v179 = vand.u32 %v178, 4294901760
  %180 = vmatmul.mubr.f32.gmra.mrb[0].mxu0 %v179
  %v181 = vpop.f32.mrb[0].mxu0
  %v182 = vadd.f32 0.0, %v181
  %v183 = vpop.f32.mrb[0].mxu0
  %184 = vmatprep.mubr.f32.mxu0 0.0
  %v185 = vand.u32 %v56, 4294901760
  %v186 = vsub.f32 %v56, %v185
  %v187 = vand.u32 %v186, 4294901760
  %v188 = vsub.f32 %v186, %v187
  %v189 = vand.u32 %v188, 4294901760
  %190 = vmatmul.mubr.f32.gmra.mrb[0].mxu0 %v189
  %v191 = vpop.f32.mrb[0].mxu0
  %v192 = vadd.f32 0.0, %v191
  %v193 = vpop.f32.mrb[0].mxu0
  %194 = vmatprep.mubr.f32.mxu0 0.0
  %v195 = vand.u32 %v59, 4294901760
  %v196 = vsub.f32 %v59, %v195
  %v197 = vand.u32 %v196, 4294901760
  %v198 = vsub.f32 %v196, %v197
  %v199 = vand.u32 %v198, 4294901760
  %200 = vmatmul.mubr.f32.gmra.mrb[0].mxu0 %v199
  %v201 = vpop.f32.mrb[0].mxu0
  %v202 = vadd.f32 0.0, %v201
  %v203 = vpop.f32.mrb[0].mxu0
  %204 = vmatprep.mubr.f32.mxu0 0.0
  %v205 = vand.u32 %v62, 4294901760
  %v206 = vsub.f32 %v62, %v205
  %v207 = vand.u32 %v206, 4294901760
  %v208 = vsub.f32 %v206, %v207
  %v209 = vand.u32 %v208, 4294901760
  %210 = vmatmul.mubr.f32.gmra.mrb[0].mxu0 %v209
  %v211 = vpop.f32.mrb[0].mxu0
  %v212 = vadd.f32 0.0, %v211
  %v213 = vpop.f32.mrb[0].mxu0
  %214 = vmatprep.mubr.f32.mxu0 0.0
  %v215 = vand.u32 %v65, 4294901760
  %v216 = vsub.f32 %v65, %v215
  %v217 = vand.u32 %v216, 4294901760
  %v218 = vsub.f32 %v216, %v217
  %v219 = vand.u32 %v218, 4294901760
  %220 = vmatmul.mubr.f32.gmra.mrb[0].mxu0 %v219
  %v221 = vpop.f32.mrb[0].mxu0
  %v222 = vadd.f32 0.0, %v221
  %v223 = vpop.f32.mrb[0].mxu0
  %224 = vmatprep.mubr.f32.mxu0 0.0
  %v225 = vand.u32 %v68, 4294901760
  %v226 = vsub.f32 %v68, %v225
  %v227 = vand.u32 %v226, 4294901760
  %v228 = vsub.f32 %v226, %v227
  %v229 = vand.u32 %v228, 4294901760
  %230 = vmatmul.mubr.f32.gmra.mrb[0].mxu0 %v229
  %v231 = vpop.f32.mrb[0].mxu0
  %v232 = vadd.f32 0.0, %v231
  %v233 = vpop.f32.mrb[0].mxu0
  %234 = vmatprep.mubr.f32.mxu0 0.0
  %v235 = vand.u32 %v71, 4294901760
  %v236 = vsub.f32 %v71, %v235
  %v237 = vand.u32 %v236, 4294901760
  %v238 = vsub.f32 %v236, %v237
  %v239 = vand.u32 %v238, 4294901760
  %240 = vmatmul.mubr.f32.gmra.mrb[0].mxu0 %v239
  %v241 = vpop.f32.mrb[0].mxu0
  %v242 = vadd.f32 0.0, %v241
  %v243 = vpop.f32.mrb[0].mxu0
  %244 = vmatprep.mubr.f32.mxu0 0.0
  %v245 = vand.u32 %v74, 4294901760
  %v246 = vsub.f32 %v74, %v245
  %v247 = vand.u32 %v246, 4294901760
  %v248 = vsub.f32 %v246, %v247
  %v249 = vand.u32 %v248, 4294901760
  %250 = vmatmul.mubr.f32.gmra.mrb[0].mxu0 %v249
  %v251 = vpop.f32.mrb[0].mxu0
  %v252 = vadd.f32 0.0, %v251
  %v253 = vpop.f32.mrb[0].mxu0
  %254 = vmatprep.mubr.f32.mxu0 0.0
  %v255 = vand.u32 %v77, 4294901760
  %v256 = vsub.f32 %v77, %v255
  %v257 = vand.u32 %v256, 4294901760
  %v258 = vsub.f32 %v256, %v257
  %v259 = vand.u32 %v258, 4294901760
  %260 = vmatmul.mubr.f32.gmra.mrb[0].mxu0 %v259
  %v261 = vpop.f32.mrb[0].mxu0
  %v262 = vadd.f32 0.0, %v261
  %v263 = vpop.f32.mrb[0].mxu0
  %264 = vdwg.mxu0
  %265 = vmatprep.subr.mxu0 0.0
  %v266 = vand.u32 %v41, 4294901760
  %v267 = vsub.f32 %v41, %v266
  %v268 = vand.u32 %v267, 4294901760
  %v269 = vsub.f32 %v267, %v268
  %v270 = vand.u32 %v269, 4294901760
  %271 = vmatpush1.msra.mxu0 %v270
  %272 = vmatprep.subr.mxu0 0.0
  %273 = vmatpush1.msra.mxu0 0.0
  %274 = vmatprep.subr.mxu0 0.0
  %275 = vmatpush1.msra.mxu0 0.0
  %276 = vmatprep.subr.mxu0 0.0
  %277 = vmatpush1.msra.mxu0 0.0
  %278 = vmatprep.subr.mxu0 0.0
  %279 = vmatpush1.msra.mxu0 0.0
  %280 = vmatprep.subr.mxu0 0.0
  %281 = vmatpush1.msra.mxu0 0.0
  %282 = vmatprep.subr.mxu0 0.0
  %283 = vmatpush1.msra.mxu0 0.0
  %284 = vmatprep.subr.mxu0 0.0
  %285 = vmatpush1.msra.mxu0 0.0
  %286 = vmatprep.subr.mxu0 0.0
  %287 = vmatpush1.msra.mxu0 0.0
  %288 = vmatprep.subr.mxu0 0.0
  %289 = vmatpush1.msra.mxu0 0.0
  %290 = vmatprep.subr.mxu0 0.0
  %291 = vmatpush1.msra.mxu0 0.0
  %292 = vmatprep.subr.mxu0 0.0
  %293 = vmatpush1.msra.mxu0 0.0
  %294 = vmatprep.subr.mxu0 0.0
  %295 = vmatpush1.msra.mxu0 0.0
  %296 = vmatprep.subr.mxu0 0.0
  %297 = vmatpush1.msra.mxu0 0.0
  %298 = vmatprep.subr.mxu0 0.0
  %299 = vmatpush1.msra.mxu0 0.0
  %300 = vmatprep.subr.mxu0 0.0
  %301 = vmatpush1.msra.mxu0 0.0
  %302 = vmatprep.subr.mxu0 0.0
  %303 = vmatpush1.msra.mxu0 0.0
  %304 = vmatprep.subr.mxu0 0.0
  %305 = vmatpush1.msra.mxu0 0.0
  %306 = vmatprep.subr.mxu0 0.0
  %307 = vmatpush1.msra.mxu0 0.0
  %308 = vmatprep.subr.mxu0 0.0
  %309 = vmatpush1.msra.mxu0 0.0
  %310 = vmatprep.subr.mxu0 0.0
  %311 = vmatpush1.msra.mxu0 0.0
  %312 = vmatprep.subr.mxu0 0.0
  %313 = vmatpush1.msra.mxu0 0.0
  %314 = vmatprep.subr.mxu0 0.0
  %315 = vmatpush1.msra.mxu0 0.0
  %316 = vmatprep.subr.mxu0 0.0
  %317 = vmatpush1.msra.mxu0 0.0
  %318 = vmatprep.subr.mxu0 0.0
  %319 = vmatpush1.msra.mxu0 0.0
  %320 = vmatprep.subr.mxu0 0.0
  %321 = vmatpush1.msra.mxu0 0.0
  %322 = vmatprep.subr.mxu0 0.0
  %323 = vmatpush1.msra.mxu0 0.0
  %324 = vmatprep.subr.mxu0 0.0
  %325 = vmatpush1.msra.mxu0 0.0
  %326 = vmatprep.subr.mxu0 0.0
  %327 = vmatpush1.msra.mxu0 0.0
  %328 = vmatprep.subr.mxu0 0.0
  %329 = vmatpush1.msra.mxu0 0.0
  %330 = vmatprep.subr.mxu0 0.0
  %331 = vmatpush1.msra.mxu0 0.0
  %332 = vmatprep.subr.mxu0 0.0
  %333 = vmatpush1.msra.mxu0 0.0
  %334 = vmatprep.mubr.f32.mxu0 0.0
  %v335 = vand.u32 %v44, 4294901760
  %336 = vmatmul.mubr.f32.gmra.mrb[0].mxu0 %v335
  %v337 = vpop.f32.mrb[0].mxu0
  %v338 = vadd.f32 %v152, %v337
  %v339 = vpop.f32.mrb[0].mxu0
  %340 = vmatprep.mubr.f32.mxu0 0.0
  %v341 = vand.u32 %v47, 4294901760
  %342 = vmatmul.mubr.f32.gmra.mrb[0].mxu0 %v341
  %v343 = vpop.f32.mrb[0].mxu0
  %v344 = vadd.f32 %v162, %v343
  %v345 = vpop.f32.mrb[0].mxu0
  %346 = vmatprep.mubr.f32.mxu0 0.0
  %v347 = vand.u32 %v50, 4294901760
  %348 = vmatmul.mubr.f32.gmra.mrb[0].mxu0 %v347
  %v349 = vpop.f32.mrb[0].mxu0
  %v350 = vadd.f32 %v172, %v349
  %v351 = vpop.f32.mrb[0].mxu0
  %352 = vmatprep.mubr.f32.mxu0 0.0
  %v353 = vand.u32 %v53, 4294901760
  %354 = vmatmul.mubr.f32.gmra.mrb[0].mxu0 %v353
  %v355 = vpop.f32.mrb[0].mxu0
  %v356 = vadd.f32 %v182, %v355
  %v357 = vpop.f32.mrb[0].mxu0
  %358 = vmatprep.mubr.f32.mxu0 0.0
  %v359 = vand.u32 %v56, 4294901760
  %360 = vmatmul.mubr.f32.gmra.mrb[0].mxu0 %v359
  %v361 = vpop.f32.mrb[0].mxu0
  %v362 = vadd.f32 %v192, %v361
  %v363 = vpop.f32.mrb[0].mxu0
  %364 = vmatprep.mubr.f32.mxu0 0.0
  %v365 = vand.u32 %v59, 4294901760
  %366 = vmatmul.mubr.f32.gmra.mrb[0].mxu0 %v365
  %v367 = vpop.f32.mrb[0].mxu0
  %v368 = vadd.f32 %v202, %v367
  %v369 = vpop.f32.mrb[0].mxu0
  %370 = vmatprep.mubr.f32.mxu0 0.0
  %v371 = vand.u32 %v62, 4294901760
  %372 = vmatmul.mubr.f32.gmra.mrb[0].mxu0 %v371
  %v373 = vpop.f32.mrb[0].mxu0
  %v374 = vadd.f32 %v212, %v373
  %v375 = vpop.f32.mrb[0].mxu0
  %376 = vmatprep.mubr.f32.mxu0 0.0
  %v377 = vand.u32 %v65, 4294901760
  %378 = vmatmul.mubr.f32.gmra.mrb[0].mxu0 %v377
  %v379 = vpop.f32.mrb[0].mxu0
  %v380 = vadd.f32 %v222, %v379
  %v381 = vpop.f32.mrb[0].mxu0
  %382 = vmatprep.mubr.f32.mxu0 0.0
  %v383 = vand.u32 %v68, 4294901760
  %384 = vmatmul.mubr.f32.gmra.mrb[0].mxu0 %v383
  %v385 = vpop.f32.mrb[0].mxu0
  %v386 = vadd.f32 %v232, %v385
  %v387 = vpop.f32.mrb[0].mxu0
  %388 = vmatprep.mubr.f32.mxu0 0.0
  %v389 = vand.u32 %v71, 4294901760
  %390 = vmatmul.mubr.f32.gmra.mrb[0].mxu0 %v389
  %v391 = vpop.f32.mrb[0].mxu0
  %v392 = vadd.f32 %v242, %v391
  %v393 = vpop.f32.mrb[0].mxu0
  %394 = vmatprep.mubr.f32.mxu0 0.0
  %v395 = vand.u32 %v74, 4294901760
  %396 = vmatmul.mubr.f32.gmra.mrb[0].mxu0 %v395
  %v397 = vpop.f32.mrb[0].mxu0
  %v398 = vadd.f32 %v252, %v397
  %v399 = vpop.f32.mrb[0].mxu0
  %400 = vmatprep.mubr.f32.mxu0 0.0
  %v401 = vand.u32 %v77, 4294901760
  %402 = vmatmul.mubr.f32.gmra.mrb[0].mxu0 %v401
  %v403 = vpop.f32.mrb[0].mxu0
  %v404 = vadd.f32 %v262, %v403
  %v405 = vpop.f32.mrb[0].mxu0
  %406 = vdwg.mxu0
  %407 = vmatprep.subr.mxu0 0.0
  %v408 = vand.u32 %v41, 4294901760
  %v409 = vsub.f32 %v41, %v408
  %410 = vmatpush1.msra.mxu0 %v409
  %411 = vmatprep.subr.mxu0 0.0
  %412 = vmatpush1.msra.mxu0 0.0
  %413 = vmatprep.subr.mxu0 0.0
  %414 = vmatpush1.msra.mxu0 0.0
  %415 = vmatprep.subr.mxu0 0.0
  %416 = vmatpush1.msra.mxu0 0.0
  %417 = vmatprep.subr.mxu0 0.0
  %418 = vmatpush1.msra.mxu0 0.0
  %419 = vmatprep.subr.mxu0 0.0
  %420 = vmatpush1.msra.mxu0 0.0
  %421 = vmatprep.subr.mxu0 0.0
  %422 = vmatpush1.msra.mxu0 0.0
  %423 = vmatprep.subr.mxu0 0.0
  %424 = vmatpush1.msra.mxu0 0.0
  %425 = vmatprep.subr.mxu0 0.0
  %426 = vmatpush1.msra.mxu0 0.0
  %427 = vmatprep.subr.mxu0 0.0
  %428 = vmatpush1.msra.mxu0 0.0
  %429 = vmatprep.subr.mxu0 0.0
  %430 = vmatpush1.msra.mxu0 0.0
  %431 = vmatprep.subr.mxu0 0.0
  %432 = vmatpush1.msra.mxu0 0.0
  %433 = vmatprep.subr.mxu0 0.0
  %434 = vmatpush1.msra.mxu0 0.0
  %435 = vmatprep.subr.mxu0 0.0
  %436 = vmatpush1.msra.mxu0 0.0
  %437 = vmatprep.subr.mxu0 0.0
  %438 = vmatpush1.msra.mxu0 0.0
  %439 = vmatprep.subr.mxu0 0.0
  %440 = vmatpush1.msra.mxu0 0.0
  %441 = vmatprep.subr.mxu0 0.0
  %442 = vmatpush1.msra.mxu0 0.0
  %443 = vmatprep.subr.mxu0 0.0
  %444 = vmatpush1.msra.mxu0 0.0
  %445 = vmatprep.subr.mxu0 0.0
  %446 = vmatpush1.msra.mxu0 0.0
  %447 = vmatprep.subr.mxu0 0.0
  %448 = vmatpush1.msra.mxu0 0.0
  %449 = vmatprep.subr.mxu0 0.0
  %450 = vmatpush1.msra.mxu0 0.0
  %451 = vmatprep.subr.mxu0 0.0
  %452 = vmatpush1.msra.mxu0 0.0
  %453 = vmatprep.subr.mxu0 0.0
  %454 = vmatpush1.msra.mxu0 0.0
  %455 = vmatprep.subr.mxu0 0.0
  %456 = vmatpush1.msra.mxu0 0.0
  %457 = vmatprep.subr.mxu0 0.0
  %458 = vmatpush1.msra.mxu0 0.0
  %459 = vmatprep.subr.mxu0 0.0
  %460 = vmatpush1.msra.mxu0 0.0
  %461 = vmatprep.subr.mxu0 0.0
  %462 = vmatpush1.msra.mxu0 0.0
  %463 = vmatprep.subr.mxu0 0.0
  %464 = vmatpush1.msra.mxu0 0.0
  %465 = vmatprep.subr.mxu0 0.0
  %466 = vmatpush1.msra.mxu0 0.0
  %467 = vmatprep.subr.mxu0 0.0
  %468 = vmatpush1.msra.mxu0 0.0
  %469 = vmatprep.subr.mxu0 0.0
  %470 = vmatpush1.msra.mxu0 0.0
  %471 = vmatprep.subr.mxu0 0.0
  %472 = vmatpush1.msra.mxu0 0.0
  %473 = vmatprep.mubr.f32.mxu0 0.0
  %v474 = vand.u32 %v44, 4294901760
  %v475 = vsub.f32 %v44, %v474
  %476 = vmatmul.mubr.f32.gmra.mrb[0].mxu0 %v475
  %v477 = vpop.f32.mrb[0].mxu0
  %v478 = vadd.f32 %v338, %v477
  %v479 = vpop.f32.mrb[0].mxu0
  %480 = vmatprep.mubr.f32.mxu0 0.0
  %v481 = vand.u32 %v47, 4294901760
  %v482 = vsub.f32 %v47, %v481
  %483 = vmatmul.mubr.f32.gmra.mrb[0].mxu0 %v482
  %v484 = vpop.f32.mrb[0].mxu0
  %v485 = vadd.f32 %v344, %v484
  %v486 = vpop.f32.mrb[0].mxu0
  %487 = vmatprep.mubr.f32.mxu0 0.0
  %v488 = vand.u32 %v50, 4294901760
  %v489 = vsub.f32 %v50, %v488
  %490 = vmatmul.mubr.f32.gmra.mrb[0].mxu0 %v489
  %v491 = vpop.f32.mrb[0].mxu0
  %v492 = vadd.f32 %v350, %v491
  %v493 = vpop.f32.mrb[0].mxu0
  %494 = vmatprep.mubr.f32.mxu0 0.0
  %v495 = vand.u32 %v53, 4294901760
  %v496 = vsub.f32 %v53, %v495
  %497 = vmatmul.mubr.f32.gmra.mrb[0].mxu0 %v496
  %v498 = vpop.f32.mrb[0].mxu0
  %v499 = vadd.f32 %v356, %v498
  %v500 = vpop.f32.mrb[0].mxu0
  %501 = vmatprep.mubr.f32.mxu0 0.0
  %v502 = vand.u32 %v56, 4294901760
  %v503 = vsub.f32 %v56, %v502
  %504 = vmatmul.mubr.f32.gmra.mrb[0].mxu0 %v503
  %v505 = vpop.f32.mrb[0].mxu0
  %v506 = vadd.f32 %v362, %v505
  %v507 = vpop.f32.mrb[0].mxu0
  %508 = vmatprep.mubr.f32.mxu0 0.0
  %v509 = vand.u32 %v59, 4294901760
  %v510 = vsub.f32 %v59, %v509
  %511 = vmatmul.mubr.f32.gmra.mrb[0].mxu0 %v510
  %v512 = vpop.f32.mrb[0].mxu0
  %v513 = vadd.f32 %v368, %v512
  %v514 = vpop.f32.mrb[0].mxu0
  %515 = vmatprep.mubr.f32.mxu0 0.0
  %v516 = vand.u32 %v62, 4294901760
  %v517 = vsub.f32 %v62, %v516
  %518 = vmatmul.mubr.f32.gmra.mrb[0].mxu0 %v517
  %v519 = vpop.f32.mrb[0].mxu0
  %v520 = vadd.f32 %v374, %v519
  %v521 = vpop.f32.mrb[0].mxu0
  %522 = vmatprep.mubr.f32.mxu0 0.0
  %v523 = vand.u32 %v65, 4294901760
  %v524 = vsub.f32 %v65, %v523
  %525 = vmatmul.mubr.f32.gmra.mrb[0].mxu0 %v524
  %v526 = vpop.f32.mrb[0].mxu0
  %v527 = vadd.f32 %v380, %v526
  %v528 = vpop.f32.mrb[0].mxu0
  %529 = vmatprep.mubr.f32.mxu0 0.0
  %v530 = vand.u32 %v68, 4294901760
  %v531 = vsub.f32 %v68, %v530
  %532 = vmatmul.mubr.f32.gmra.mrb[0].mxu0 %v531
  %v533 = vpop.f32.mrb[0].mxu0
  %v534 = vadd.f32 %v386, %v533
  %v535 = vpop.f32.mrb[0].mxu0
  %536 = vmatprep.mubr.f32.mxu0 0.0
  %v537 = vand.u32 %v71, 4294901760
  %v538 = vsub.f32 %v71, %v537
  %539 = vmatmul.mubr.f32.gmra.mrb[0].mxu0 %v538
  %v540 = vpop.f32.mrb[0].mxu0
  %v541 = vadd.f32 %v392, %v540
  %v542 = vpop.f32.mrb[0].mxu0
  %543 = vmatprep.mubr.f32.mxu0 0.0
  %v544 = vand.u32 %v74, 4294901760
  %v545 = vsub.f32 %v74, %v544
  %546 = vmatmul.mubr.f32.gmra.mrb[0].mxu0 %v545
  %v547 = vpop.f32.mrb[0].mxu0
  %v548 = vadd.f32 %v398, %v547
  %v549 = vpop.f32.mrb[0].mxu0
  %550 = vmatprep.mubr.f32.mxu0 0.0
  %v551 = vand.u32 %v77, 4294901760
  %v552 = vsub.f32 %v77, %v551
  %553 = vmatmul.mubr.f32.gmra.mrb[0].mxu0 %v552
  %v554 = vpop.f32.mrb[0].mxu0
  %v555 = vadd.f32 %v404, %v554
  %v556 = vpop.f32.mrb[0].mxu0
  %557 = vdwg.mxu0
  %558 = vmatprep.subr.mxu0 0.0
  %v559 = vand.u32 %v41, 4294901760
  %560 = vmatpush1.msra.mxu0 %v559
  %561 = vmatprep.subr.mxu0 0.0
  %562 = vmatpush1.msra.mxu0 0.0
  %563 = vmatprep.subr.mxu0 0.0
  %564 = vmatpush1.msra.mxu0 0.0
  %565 = vmatprep.subr.mxu0 0.0
  %566 = vmatpush1.msra.mxu0 0.0
  %567 = vmatprep.subr.mxu0 0.0
  %568 = vmatpush1.msra.mxu0 0.0
  %569 = vmatprep.subr.mxu0 0.0
  %570 = vmatpush1.msra.mxu0 0.0
  %571 = vmatprep.subr.mxu0 0.0
  %572 = vmatpush1.msra.mxu0 0.0
  %573 = vmatprep.subr.mxu0 0.0
  %574 = vmatpush1.msra.mxu0 0.0
  %575 = vmatprep.subr.mxu0 0.0
  %576 = vmatpush1.msra.mxu0 0.0
  %577 = vmatprep.subr.mxu0 0.0
  %578 = vmatpush1.msra.mxu0 0.0
  %579 = vmatprep.subr.mxu0 0.0
  %580 = vmatpush1.msra.mxu0 0.0
  %581 = vmatprep.subr.mxu0 0.0
  %582 = vmatpush1.msra.mxu0 0.0
  %583 = vmatprep.subr.mxu0 0.0
  %584 = vmatpush1.msra.mxu0 0.0
  %585 = vmatprep.subr.mxu0 0.0
  %586 = vmatpush1.msra.mxu0 0.0
  %587 = vmatprep.subr.mxu0 0.0
  %588 = vmatpush1.msra.mxu0 0.0
  %589 = vmatprep.subr.mxu0 0.0
  %590 = vmatpush1.msra.mxu0 0.0
  %591 = vmatprep.subr.mxu0 0.0
  %592 = vmatpush1.msra.mxu0 0.0
  %593 = vmatprep.subr.mxu0 0.0
  %594 = vmatpush1.msra.mxu0 0.0
  %595 = vmatprep.subr.mxu0 0.0
  %596 = vmatpush1.msra.mxu0 0.0
  %597 = vmatprep.subr.mxu0 0.0
  %598 = vmatpush1.msra.mxu0 0.0
  %599 = vmatprep.subr.mxu0 0.0
  %600 = vmatpush1.msra.mxu0 0.0
  %601 = vmatprep.subr.mxu0 0.0
  %602 = vmatpush1.msra.mxu0 0.0
  %603 = vmatprep.subr.mxu0 0.0
  %604 = vmatpush1.msra.mxu0 0.0
  %605 = vmatprep.subr.mxu0 0.0
  %606 = vmatpush1.msra.mxu0 0.0
  %607 = vmatprep.subr.mxu0 0.0
  %608 = vmatpush1.msra.mxu0 0.0
  %609 = vmatprep.subr.mxu0 0.0
  %610 = vmatpush1.msra.mxu0 0.0
  %611 = vmatprep.subr.mxu0 0.0
  %612 = vmatpush1.msra.mxu0 0.0
  %613 = vmatprep.subr.mxu0 0.0
  %614 = vmatpush1.msra.mxu0 0.0
  %615 = vmatprep.subr.mxu0 0.0
  %616 = vmatpush1.msra.mxu0 0.0
  %617 = vmatprep.subr.mxu0 0.0
  %618 = vmatpush1.msra.mxu0 0.0
  %619 = vmatprep.subr.mxu0 0.0
  %620 = vmatpush1.msra.mxu0 0.0
  %621 = vmatprep.subr.mxu0 0.0
  %622 = vmatpush1.msra.mxu0 0.0
  %623 = vmatprep.mubr.f32.mxu0 0.0
  %v624 = vand.u32 %v44, 4294901760
  %v625 = vsub.f32 %v44, %v624
  %v626 = vand.u32 %v625, 4294901760
  %627 = vmatmul.mubr.f32.gmra.mrb[0].mxu0 %v626
  %v628 = vpop.f32.mrb[0].mxu0
  %v629 = vadd.f32 %v478, %v628
  %v630 = vpop.f32.mrb[0].mxu0
  %631 = vmatprep.mubr.f32.mxu0 0.0
  %v632 = vand.u32 %v47, 4294901760
  %v633 = vsub.f32 %v47, %v632
  %v634 = vand.u32 %v633, 4294901760
  %635 = vmatmul.mubr.f32.gmra.mrb[0].mxu0 %v634
  %v636 = vpop.f32.mrb[0].mxu0
  %v637 = vadd.f32 %v485, %v636
  %v638 = vpop.f32.mrb[0].mxu0
  %639 = vmatprep.mubr.f32.mxu0 0.0
  %v640 = vand.u32 %v50, 4294901760
  %v641 = vsub.f32 %v50, %v640
  %v642 = vand.u32 %v641, 4294901760
  %643 = vmatmul.mubr.f32.gmra.mrb[0].mxu0 %v642
  %v644 = vpop.f32.mrb[0].mxu0
  %v645 = vadd.f32 %v492, %v644
  %v646 = vpop.f32.mrb[0].mxu0
  %647 = vmatprep.mubr.f32.mxu0 0.0
  %v648 = vand.u32 %v53, 4294901760
  %v649 = vsub.f32 %v53, %v648
  %v650 = vand.u32 %v649, 4294901760
  %651 = vmatmul.mubr.f32.gmra.mrb[0].mxu0 %v650
  %v652 = vpop.f32.mrb[0].mxu0
  %v653 = vadd.f32 %v499, %v652
  %v654 = vpop.f32.mrb[0].mxu0
  %655 = vmatprep.mubr.f32.mxu0 0.0
  %v656 = vand.u32 %v56, 4294901760
  %v657 = vsub.f32 %v56, %v656
  %v658 = vand.u32 %v657, 4294901760
  %659 = vmatmul.mubr.f32.gmra.mrb[0].mxu0 %v658
  %v660 = vpop.f32.mrb[0].mxu0
  %v661 = vadd.f32 %v506, %v660
  %v662 = vpop.f32.mrb[0].mxu0
  %663 = vmatprep.mubr.f32.mxu0 0.0
  %v664 = vand.u32 %v59, 4294901760
  %v665 = vsub.f32 %v59, %v664
  %v666 = vand.u32 %v665, 4294901760
  %667 = vmatmul.mubr.f32.gmra.mrb[0].mxu0 %v666
  %v668 = vpop.f32.mrb[0].mxu0
  %v669 = vadd.f32 %v513, %v668
  %v670 = vpop.f32.mrb[0].mxu0
  %671 = vmatprep.mubr.f32.mxu0 0.0
  %v672 = vand.u32 %v62, 4294901760
  %v673 = vsub.f32 %v62, %v672
  %v674 = vand.u32 %v673, 4294901760
  %675 = vmatmul.mubr.f32.gmra.mrb[0].mxu0 %v674
  %v676 = vpop.f32.mrb[0].mxu0
  %v677 = vadd.f32 %v520, %v676
  %v678 = vpop.f32.mrb[0].mxu0
  %679 = vmatprep.mubr.f32.mxu0 0.0
  %v680 = vand.u32 %v65, 4294901760
  %v681 = vsub.f32 %v65, %v680
  %v682 = vand.u32 %v681, 4294901760
  %683 = vmatmul.mubr.f32.gmra.mrb[0].mxu0 %v682
  %v684 = vpop.f32.mrb[0].mxu0
  %v685 = vadd.f32 %v527, %v684
  %v686 = vpop.f32.mrb[0].mxu0
  %687 = vmatprep.mubr.f32.mxu0 0.0
  %v688 = vand.u32 %v68, 4294901760
  %v689 = vsub.f32 %v68, %v688
  %v690 = vand.u32 %v689, 4294901760
  %691 = vmatmul.mubr.f32.gmra.mrb[0].mxu0 %v690
  %v692 = vpop.f32.mrb[0].mxu0
  %v693 = vadd.f32 %v534, %v692
  %v694 = vpop.f32.mrb[0].mxu0
  %695 = vmatprep.mubr.f32.mxu0 0.0
  %v696 = vand.u32 %v71, 4294901760
  %v697 = vsub.f32 %v71, %v696
  %v698 = vand.u32 %v697, 4294901760
  %699 = vmatmul.mubr.f32.gmra.mrb[0].mxu0 %v698
  %v700 = vpop.f32.mrb[0].mxu0
  %v701 = vadd.f32 %v541, %v700
  %v702 = vpop.f32.mrb[0].mxu0
  %703 = vmatprep.mubr.f32.mxu0 0.0
  %v704 = vand.u32 %v74, 4294901760
  %v705 = vsub.f32 %v74, %v704
  %v706 = vand.u32 %v705, 4294901760
  %707 = vmatmul.mubr.f32.gmra.mrb[0].mxu0 %v706
  %v708 = vpop.f32.mrb[0].mxu0
  %v709 = vadd.f32 %v548, %v708
  %v710 = vpop.f32.mrb[0].mxu0
  %711 = vmatprep.mubr.f32.mxu0 0.0
  %v712 = vand.u32 %v77, 4294901760
  %v713 = vsub.f32 %v77, %v712
  %v714 = vand.u32 %v713, 4294901760
  %715 = vmatmul.mubr.f32.gmra.mrb[0].mxu0 %v714
  %v716 = vpop.f32.mrb[0].mxu0
  %v717 = vadd.f32 %v555, %v716
  %v718 = vpop.f32.mrb[0].mxu0
  %719 = vdwg.mxu0
  %720 = vmatprep.subr.mxu0 0.0
  %v721 = vand.u32 %v41, 4294901760
  %v722 = vsub.f32 %v41, %v721
  %v723 = vand.u32 %v722, 4294901760
  %724 = vmatpush1.msra.mxu0 %v723
  %725 = vmatprep.subr.mxu0 0.0
  %726 = vmatpush1.msra.mxu0 0.0
  %727 = vmatprep.subr.mxu0 0.0
  %728 = vmatpush1.msra.mxu0 0.0
  %729 = vmatprep.subr.mxu0 0.0
  %730 = vmatpush1.msra.mxu0 0.0
  %731 = vmatprep.subr.mxu0 0.0
  %732 = vmatpush1.msra.mxu0 0.0
  %733 = vmatprep.subr.mxu0 0.0
  %734 = vmatpush1.msra.mxu0 0.0
  %735 = vmatprep.subr.mxu0 0.0
  %736 = vmatpush1.msra.mxu0 0.0
  %737 = vmatprep.subr.mxu0 0.0
  %738 = vmatpush1.msra.mxu0 0.0
  %739 = vmatprep.subr.mxu0 0.0
  %740 = vmatpush1.msra.mxu0 0.0
  %741 = vmatprep.subr.mxu0 0.0
  %742 = vmatpush1.msra.mxu0 0.0
  %743 = vmatprep.subr.mxu0 0.0
  %744 = vmatpush1.msra.mxu0 0.0
  %745 = vmatprep.subr.mxu0 0.0
  %746 = vmatpush1.msra.mxu0 0.0
  %747 = vmatprep.subr.mxu0 0.0
  %748 = vmatpush1.msra.mxu0 0.0
  %749 = vmatprep.subr.mxu0 0.0
  %750 = vmatpush1.msra.mxu0 0.0
  %751 = vmatprep.subr.mxu0 0.0
  %752 = vmatpush1.msra.mxu0 0.0
  %753 = vmatprep.subr.mxu0 0.0
  %754 = vmatpush1.msra.mxu0 0.0
  %755 = vmatprep.subr.mxu0 0.0
  %756 = vmatpush1.msra.mxu0 0.0
  %757 = vmatprep.subr.mxu0 0.0
  %758 = vmatpush1.msra.mxu0 0.0
  %759 = vmatprep.subr.mxu0 0.0
  %760 = vmatpush1.msra.mxu0 0.0
  %761 = vmatprep.subr.mxu0 0.0
  %762 = vmatpush1.msra.mxu0 0.0
  %763 = vmatprep.subr.mxu0 0.0
  %764 = vmatpush1.msra.mxu0 0.0
  %765 = vmatprep.subr.mxu0 0.0
  %766 = vmatpush1.msra.mxu0 0.0
  %767 = vmatprep.subr.mxu0 0.0
  %768 = vmatpush1.msra.mxu0 0.0
  %769 = vmatprep.subr.mxu0 0.0
  %770 = vmatpush1.msra.mxu0 0.0
  %771 = vmatprep.subr.mxu0 0.0
  %772 = vmatpush1.msra.mxu0 0.0
  %773 = vmatprep.subr.mxu0 0.0
  %774 = vmatpush1.msra.mxu0 0.0
  %775 = vmatprep.subr.mxu0 0.0
  %776 = vmatpush1.msra.mxu0 0.0
  %777 = vmatprep.subr.mxu0 0.0
  %778 = vmatpush1.msra.mxu0 0.0
  %779 = vmatprep.subr.mxu0 0.0
  %780 = vmatpush1.msra.mxu0 0.0
  %781 = vmatprep.subr.mxu0 0.0
  %782 = vmatpush1.msra.mxu0 0.0
  %783 = vmatprep.subr.mxu0 0.0
  %784 = vmatpush1.msra.mxu0 0.0
  %785 = vmatprep.subr.mxu0 0.0
  %786 = vmatpush1.msra.mxu0 0.0
  %787 = vmatprep.mubr.f32.mxu0 0.0
  %v788 = vand.u32 %v44, 4294901760
  %789 = vmatmul.mubr.f32.gmra.mrb[0].mxu0 %v788
  %v790 = vpop.f32.mrb[0].mxu0
  %v791 = vadd.f32 %v629, %v790
  %v792 = vpop.f32.mrb[0].mxu0
  %793 = vmatprep.mubr.f32.mxu0 0.0
  %v794 = vand.u32 %v47, 4294901760
  %795 = vmatmul.mubr.f32.gmra.mrb[0].mxu0 %v794
  %v796 = vpop.f32.mrb[0].mxu0
  %v797 = vadd.f32 %v637, %v796
  %v798 = vpop.f32.mrb[0].mxu0
  %799 = vmatprep.mubr.f32.mxu0 0.0
  %v800 = vand.u32 %v50, 4294901760
  %801 = vmatmul.mubr.f32.gmra.mrb[0].mxu0 %v800
  %v802 = vpop.f32.mrb[0].mxu0
  %v803 = vadd.f32 %v645, %v802
  %v804 = vpop.f32.mrb[0].mxu0
  %805 = vmatprep.mubr.f32.mxu0 0.0
  %v806 = vand.u32 %v53, 4294901760
  %807 = vmatmul.mubr.f32.gmra.mrb[0].mxu0 %v806
  %v808 = vpop.f32.mrb[0].mxu0
  %v809 = vadd.f32 %v653, %v808
  %v810 = vpop.f32.mrb[0].mxu0
  %811 = vmatprep.mubr.f32.mxu0 0.0
  %v812 = vand.u32 %v56, 4294901760
  %813 = vmatmul.mubr.f32.gmra.mrb[0].mxu0 %v812
  %v814 = vpop.f32.mrb[0].mxu0
  %v815 = vadd.f32 %v661, %v814
  %v816 = vpop.f32.mrb[0].mxu0
  %817 = vmatprep.mubr.f32.mxu0 0.0
  %v818 = vand.u32 %v59, 4294901760
  %819 = vmatmul.mubr.f32.gmra.mrb[0].mxu0 %v818
  %v820 = vpop.f32.mrb[0].mxu0
  %v821 = vadd.f32 %v669, %v820
  %v822 = vpop.f32.mrb[0].mxu0
  %823 = vmatprep.mubr.f32.mxu0 0.0
  %v824 = vand.u32 %v62, 4294901760
  %825 = vmatmul.mubr.f32.gmra.mrb[0].mxu0 %v824
  %v826 = vpop.f32.mrb[0].mxu0
  %v827 = vadd.f32 %v677, %v826
  %v828 = vpop.f32.mrb[0].mxu0
  %829 = vmatprep.mubr.f32.mxu0 0.0
  %v830 = vand.u32 %v65, 4294901760
  %831 = vmatmul.mubr.f32.gmra.mrb[0].mxu0 %v830
  %v832 = vpop.f32.mrb[0].mxu0
  %v833 = vadd.f32 %v685, %v832
  %v834 = vpop.f32.mrb[0].mxu0
  %835 = vmatprep.mubr.f32.mxu0 0.0
  %v836 = vand.u32 %v68, 4294901760
  %837 = vmatmul.mubr.f32.gmra.mrb[0].mxu0 %v836
  %v838 = vpop.f32.mrb[0].mxu0
  %v839 = vadd.f32 %v693, %v838
  %v840 = vpop.f32.mrb[0].mxu0
  %841 = vmatprep.mubr.f32.mxu0 0.0
  %v842 = vand.u32 %v71, 4294901760
  %843 = vmatmul.mubr.f32.gmra.mrb[0].mxu0 %v842
  %v844 = vpop.f32.mrb[0].mxu0
  %v845 = vadd.f32 %v701, %v844
  %v846 = vpop.f32.mrb[0].mxu0
  %847 = vmatprep.mubr.f32.mxu0 0.0
  %v848 = vand.u32 %v74, 4294901760
  %849 = vmatmul.mubr.f32.gmra.mrb[0].mxu0 %v848
  %v850 = vpop.f32.mrb[0].mxu0
  %v851 = vadd.f32 %v709, %v850
  %v852 = vpop.f32.mrb[0].mxu0
  %853 = vmatprep.mubr.f32.mxu0 0.0
  %v854 = vand.u32 %v77, 4294901760
  %855 = vmatmul.mubr.f32.gmra.mrb[0].mxu0 %v854
  %v856 = vpop.f32.mrb[0].mxu0
  %v857 = vadd.f32 %v717, %v856
  %v858 = vpop.f32.mrb[0].mxu0
  %859 = vdwg.mxu0
  %860 = vmatprep.subr.mxu0 0.0
  %v861 = vand.u32 %v41, 4294901760
  %862 = vmatpush1.msra.mxu0 %v861
  %863 = vmatprep.subr.mxu0 0.0
  %864 = vmatpush1.msra.mxu0 0.0
  %865 = vmatprep.subr.mxu0 0.0
  %866 = vmatpush1.msra.mxu0 0.0
  %867 = vmatprep.subr.mxu0 0.0
  %868 = vmatpush1.msra.mxu0 0.0
  %869 = vmatprep.subr.mxu0 0.0
  %870 = vmatpush1.msra.mxu0 0.0
  %871 = vmatprep.subr.mxu0 0.0
  %872 = vmatpush1.msra.mxu0 0.0
  %873 = vmatprep.subr.mxu0 0.0
  %874 = vmatpush1.msra.mxu0 0.0
  %875 = vmatprep.subr.mxu0 0.0
  %876 = vmatpush1.msra.mxu0 0.0
  %877 = vmatprep.subr.mxu0 0.0
  %878 = vmatpush1.msra.mxu0 0.0
  %879 = vmatprep.subr.mxu0 0.0
  %880 = vmatpush1.msra.mxu0 0.0
  %881 = vmatprep.subr.mxu0 0.0
  %882 = vmatpush1.msra.mxu0 0.0
  %883 = vmatprep.subr.mxu0 0.0
  %884 = vmatpush1.msra.mxu0 0.0
  %885 = vmatprep.subr.mxu0 0.0
  %886 = vmatpush1.msra.mxu0 0.0
  %887 = vmatprep.subr.mxu0 0.0
  %888 = vmatpush1.msra.mxu0 0.0
  %889 = vmatprep.subr.mxu0 0.0
  %890 = vmatpush1.msra.mxu0 0.0
  %891 = vmatprep.subr.mxu0 0.0
  %892 = vmatpush1.msra.mxu0 0.0
  %893 = vmatprep.subr.mxu0 0.0
  %894 = vmatpush1.msra.mxu0 0.0
  %895 = vmatprep.subr.mxu0 0.0
  %896 = vmatpush1.msra.mxu0 0.0
  %897 = vmatprep.subr.mxu0 0.0
  %898 = vmatpush1.msra.mxu0 0.0
  %899 = vmatprep.subr.mxu0 0.0
  %900 = vmatpush1.msra.mxu0 0.0
  %901 = vmatprep.subr.mxu0 0.0
  %902 = vmatpush1.msra.mxu0 0.0
  %903 = vmatprep.subr.mxu0 0.0
  %904 = vmatpush1.msra.mxu0 0.0
  %905 = vmatprep.subr.mxu0 0.0
  %906 = vmatpush1.msra.mxu0 0.0
  %907 = vmatprep.subr.mxu0 0.0
  %908 = vmatpush1.msra.mxu0 0.0
  %909 = vmatprep.subr.mxu0 0.0
  %910 = vmatpush1.msra.mxu0 0.0
  %911 = vmatprep.subr.mxu0 0.0
  %912 = vmatpush1.msra.mxu0 0.0
  %913 = vmatprep.subr.mxu0 0.0
  %914 = vmatpush1.msra.mxu0 0.0
  %915 = vmatprep.subr.mxu0 0.0
  %916 = vmatpush1.msra.mxu0 0.0
  %917 = vmatprep.subr.mxu0 0.0
  %918 = vmatpush1.msra.mxu0 0.0
  %919 = vmatprep.subr.mxu0 0.0
  %920 = vmatpush1.msra.mxu0 0.0
  %921 = vmatprep.subr.mxu0 0.0
  %922 = vmatpush1.msra.mxu0 0.0
  %923 = vmatprep.subr.mxu0 0.0
  %924 = vmatpush1.msra.mxu0 0.0
  %925 = vmatprep.mubr.f32.mxu0 0.0
  %v926 = vand.u32 %v44, 4294901760
  %927 = vmatmul.mubr.f32.gmra.mrb[0].mxu0 %v926
  %v928 = vpop.f32.mrb[0].mxu0
  %v929 = vadd.f32 %v791, %v928
  %v930 = vpop.f32.mrb[0].mxu0
  %931 = vmatprep.mubr.f32.mxu0 0.0
  %v932 = vand.u32 %v47, 4294901760
  %933 = vmatmul.mubr.f32.gmra.mrb[0].mxu0 %v932
  %v934 = vpop.f32.mrb[0].mxu0
  %v935 = vadd.f32 %v797, %v934
  %v936 = vpop.f32.mrb[0].mxu0
  %937 = vmatprep.mubr.f32.mxu0 0.0
  %v938 = vand.u32 %v50, 4294901760
  %939 = vmatmul.mubr.f32.gmra.mrb[0].mxu0 %v938
  %v940 = vpop.f32.mrb[0].mxu0
  %v941 = vadd.f32 %v803, %v940
  %v942 = vpop.f32.mrb[0].mxu0
  %943 = vmatprep.mubr.f32.mxu0 0.0
  %v944 = vand.u32 %v53, 4294901760
  %945 = vmatmul.mubr.f32.gmra.mrb[0].mxu0 %v944
  %v946 = vpop.f32.mrb[0].mxu0
  %v947 = vadd.f32 %v809, %v946
  %v948 = vpop.f32.mrb[0].mxu0
  %949 = vmatprep.mubr.f32.mxu0 0.0
  %v950 = vand.u32 %v56, 4294901760
  %951 = vmatmul.mubr.f32.gmra.mrb[0].mxu0 %v950
  %v952 = vpop.f32.mrb[0].mxu0
  %v953 = vadd.f32 %v815, %v952
  %v954 = vpop.f32.mrb[0].mxu0
  %955 = vmatprep.mubr.f32.mxu0 0.0
  %v956 = vand.u32 %v59, 4294901760
  %957 = vmatmul.mubr.f32.gmra.mrb[0].mxu0 %v956
  %v958 = vpop.f32.mrb[0].mxu0
  %v959 = vadd.f32 %v821, %v958
  %v960 = vpop.f32.mrb[0].mxu0
  %961 = vmatprep.mubr.f32.mxu0 0.0
  %v962 = vand.u32 %v62, 4294901760
  %963 = vmatmul.mubr.f32.gmra.mrb[0].mxu0 %v962
  %v964 = vpop.f32.mrb[0].mxu0
  %v965 = vadd.f32 %v827, %v964
  %v966 = vpop.f32.mrb[0].mxu0
  %967 = vmatprep.mubr.f32.mxu0 0.0
  %v968 = vand.u32 %v65, 4294901760
  %969 = vmatmul.mubr.f32.gmra.mrb[0].mxu0 %v968
  %v970 = vpop.f32.mrb[0].mxu0
  %v971 = vadd.f32 %v833, %v970
  %v972 = vpop.f32.mrb[0].mxu0
  %973 = vmatprep.mubr.f32.mxu0 0.0
  %v974 = vand.u32 %v68, 4294901760
  %975 = vmatmul.mubr.f32.gmra.mrb[0].mxu0 %v974
  %v976 = vpop.f32.mrb[0].mxu0
  %v977 = vadd.f32 %v839, %v976
  %v978 = vpop.f32.mrb[0].mxu0
  %979 = vmatprep.mubr.f32.mxu0 0.0
  %v980 = vand.u32 %v71, 4294901760
  %981 = vmatmul.mubr.f32.gmra.mrb[0].mxu0 %v980
  %v982 = vpop.f32.mrb[0].mxu0
  %v983 = vadd.f32 %v845, %v982
  %v984 = vpop.f32.mrb[0].mxu0
  %985 = vmatprep.mubr.f32.mxu0 0.0
  %v986 = vand.u32 %v74, 4294901760
  %987 = vmatmul.mubr.f32.gmra.mrb[0].mxu0 %v986
  %v988 = vpop.f32.mrb[0].mxu0
  %v989 = vadd.f32 %v851, %v988
  %v990 = vpop.f32.mrb[0].mxu0
  %991 = vmatprep.mubr.f32.mxu0 0.0
  %v992 = vand.u32 %v77, 4294901760
  %993 = vmatmul.mubr.f32.gmra.mrb[0].mxu0 %v992
  %v994 = vpop.f32.mrb[0].mxu0
  %v995 = vadd.f32 %v857, %v994
  %v996 = vpop.f32.mrb[0].mxu0
  %997 = vdwg.mxu0
  %vm998 = vcmp.ge.f32.partialorder %v929, -1e-06
  %vm999 = vcmp.ge.f32.partialorder %v935, -1e-06
  %vm1000 = vcmp.ge.f32.partialorder %v941, -1e-06
  %vm1001 = vcmp.ge.f32.partialorder %v947, -1e-06
  %vm1002 = vcmp.ge.f32.partialorder %v953, -1e-06
  %vm1003 = vcmp.ge.f32.partialorder %v959, -1e-06
  %vm1004 = vcmp.ge.f32.partialorder %v965, -1e-06
  %vm1005 = vcmp.ge.f32.partialorder %v971, -1e-06
  %vm1006 = vmand %vm998, %vm1002
  %vm1007 = vmand %vm999, %vm1003
  %vm1008 = vmand %vm1000, %vm1004
  %vm1009 = vmand %vm1001, %vm1005
  %vm1010 = vcmp.ge.f32.partialorder %v977, -1e-06
  %vm1011 = vcmp.ge.f32.partialorder %v983, -1e-06
  %vm1012 = vcmp.ge.f32.partialorder %v989, -1e-06
  %vm1013 = vcmp.ge.f32.partialorder %v995, -1e-06
  %vm1014 = vmand %vm1006, %vm1010
  %vm1015 = vmand %vm1007, %vm1011
  %vm1016 = vmand %vm1008, %vm1012
  %vm1017 = vmand %vm1009, %vm1013
  %v1018 = vsel %vm1014, %v33, 4294967295
  %v1019 = vsel %vm1015, %v34, 4294967295
  %v1020 = vsel %vm1016, %v35, 4294967295
  %v1021 = vsel %vm1017, %v36, 4294967295
  %vm1022 = vcmp.gt.s32.totalorder %v1018, %v1019
  %v1023 = vsel %vm1022, %v1018, %v1019
  %vm1024 = vcmp.gt.s32.totalorder %v1020, %v1021
  %v1025 = vsel %vm1024, %v1020, %v1021
  %vm1026 = vcmp.gt.s32.totalorder %v1023, %v1025
  %v1027 = vsel %vm1026, %v1023, %v1025
  %v1028 = vrot.slane %v1027, 4
  %vm1029 = vcmp.gt.s32.totalorder %v1027, %v1028
  %v1030 = vsel %vm1029, %v1027, %v1028
  %v1031 = vrot.slane %v1030, 2
  %vm1032 = vcmp.gt.s32.totalorder %v1030, %v1031
  %v1033 = vsel %vm1032, %v1030, %v1031
  %v1034 = vrot.slane %v1033, 1
  %vm1035 = vcmp.gt.s32.totalorder %v1033, %v1034
  %v1036 = vsel %vm1035, %v1033, %v1034
  %vm1037 = vcmp.lt.s32.totalorder %v1036, 0
  %v1038 = vsel %vm1037, 31, %v1036
  %vm1039 = vcmp.eq.s32.totalorder %v33, %v1038
  %vm1040 = vcmp.eq.s32.totalorder %v34, %v1038
  %vm1041 = vcmp.eq.s32.totalorder %v35, %v1038
  %vm1042 = vcmp.eq.s32.totalorder %v36, %v1038
  %v1043 = vsel %vm1039, 1, 0
  %v1044 = vsel %vm1040, 1, 0
  %v1045 = vsel %vm1041, 1, 0
  %v1046 = vsel %vm1042, 1, 0
  %v1047 = vcvt.s32.f32 %v1043
  %v1048 = vcvt.s32.f32 %v1044
  %v1049 = vcvt.s32.f32 %v1045
  %v1050 = vcvt.s32.f32 %v1046
  %vm1051 = vcmask 261120
  %v1053 = vsel %vm1051, %v26, 0
  %v1056 = vsel %vm1051, %v27, 0
  %1058 = vmatprep.subr.mxu0 0.0
  %v1059 = vand.u32 %v1047, 4294901760
  %1060 = vmatpush1.msra.mxu0 %v1059
  %1061 = vmatprep.subr.mxu0 0.0
  %v1062 = vand.u32 %v1048, 4294901760
  %1063 = vmatpush1.msra.mxu0 %v1062
  %1064 = vmatprep.subr.mxu0 0.0
  %v1065 = vand.u32 %v1049, 4294901760
  %1066 = vmatpush1.msra.mxu0 %v1065
  %1067 = vmatprep.subr.mxu0 0.0
  %v1068 = vand.u32 %v1050, 4294901760
  %1069 = vmatpush1.msra.mxu0 %v1068
  %1070 = vmatprep.subr.mxu0 0.0
  %1071 = vmatpush1.msra.mxu0 0.0
  %1072 = vmatprep.subr.mxu0 0.0
  %1073 = vmatpush1.msra.mxu0 0.0
  %1074 = vmatprep.subr.mxu0 0.0
  %1075 = vmatpush1.msra.mxu0 0.0
  %1076 = vmatprep.subr.mxu0 0.0
  %1077 = vmatpush1.msra.mxu0 0.0
  %1078 = vmatprep.subr.mxu0 0.0
  %1079 = vmatpush1.msra.mxu0 0.0
  %1080 = vmatprep.subr.mxu0 0.0
  %1081 = vmatpush1.msra.mxu0 0.0
  %1082 = vmatprep.subr.mxu0 0.0
  %1083 = vmatpush1.msra.mxu0 0.0
  %1084 = vmatprep.subr.mxu0 0.0
  %1085 = vmatpush1.msra.mxu0 0.0
  %1086 = vmatprep.subr.mxu0 0.0
  %1087 = vmatpush1.msra.mxu0 0.0
  %1088 = vmatprep.subr.mxu0 0.0
  %1089 = vmatpush1.msra.mxu0 0.0
  %1090 = vmatprep.subr.mxu0 0.0
  %1091 = vmatpush1.msra.mxu0 0.0
  %1092 = vmatprep.subr.mxu0 0.0
  %1093 = vmatpush1.msra.mxu0 0.0
  %1094 = vmatprep.subr.mxu0 0.0
  %1095 = vmatpush1.msra.mxu0 0.0
  %1096 = vmatprep.subr.mxu0 0.0
  %1097 = vmatpush1.msra.mxu0 0.0
  %1098 = vmatprep.subr.mxu0 0.0
  %1099 = vmatpush1.msra.mxu0 0.0
  %1100 = vmatprep.subr.mxu0 0.0
  %1101 = vmatpush1.msra.mxu0 0.0
  %1102 = vmatprep.subr.mxu0 0.0
  %1103 = vmatpush1.msra.mxu0 0.0
  %1104 = vmatprep.subr.mxu0 0.0
  %1105 = vmatpush1.msra.mxu0 0.0
  %1106 = vmatprep.subr.mxu0 0.0
  %1107 = vmatpush1.msra.mxu0 0.0
  %1108 = vmatprep.subr.mxu0 0.0
  %1109 = vmatpush1.msra.mxu0 0.0
  %1110 = vmatprep.subr.mxu0 0.0
  %1111 = vmatpush1.msra.mxu0 0.0
  %1112 = vmatprep.subr.mxu0 0.0
  %1113 = vmatpush1.msra.mxu0 0.0
  %1114 = vmatprep.subr.mxu0 0.0
  %1115 = vmatpush1.msra.mxu0 0.0
  %1116 = vmatprep.subr.mxu0 0.0
  %1117 = vmatpush1.msra.mxu0 0.0
  %1118 = vmatprep.subr.mxu0 0.0
  %1119 = vmatpush1.msra.mxu0 0.0
  %1120 = vmatprep.subr.mxu0 0.0
  %1121 = vmatpush1.msra.mxu0 0.0
  %1122 = vmatprep.subr.mxu0 0.0
  %1123 = vmatpush1.msra.mxu0 0.0
  %1124 = vmatprep.subr.mxu0 0.0
  %1125 = vmatpush1.msra.mxu0 0.0
  %1126 = vmatprep.mubr.f32.mxu0 0.0
  %v1127 = vand.u32 %v1053, 4294901760
  %v1128 = vsub.f32 %v1053, %v1127
  %v1129 = vand.u32 %v1128, 4294901760
  %v1130 = vsub.f32 %v1128, %v1129
  %v1131 = vand.u32 %v1130, 4294901760
  %1132 = vmatmul.mubr.f32.gmra.mrb[0].mxu0 %v1131
  %v1133 = vpop.f32.mrb[0].mxu0
  %v1134 = vadd.f32 0.0, %v1133
  %v1135 = vpop.f32.mrb[0].mxu0
  %1136 = vmatprep.mubr.f32.mxu0 0.0
  %v1137 = vand.u32 %v1056, 4294901760
  %v1138 = vsub.f32 %v1056, %v1137
  %v1139 = vand.u32 %v1138, 4294901760
  %v1140 = vsub.f32 %v1138, %v1139
  %v1141 = vand.u32 %v1140, 4294901760
  %1142 = vmatmul.mubr.f32.gmra.mrb[0].mxu0 %v1141
  %v1143 = vpop.f32.mrb[0].mxu0
  %v1144 = vadd.f32 0.0, %v1143
  %v1145 = vpop.f32.mrb[0].mxu0
  %1146 = vdwg.mxu0
  %1147 = vmatprep.subr.mxu0 0.0
  %v1148 = vand.u32 %v1047, 4294901760
  %v1149 = vsub.f32 %v1047, %v1148
  %v1150 = vand.u32 %v1149, 4294901760
  %v1151 = vsub.f32 %v1149, %v1150
  %v1152 = vand.u32 %v1151, 4294901760
  %1153 = vmatpush1.msra.mxu0 %v1152
  %1154 = vmatprep.subr.mxu0 0.0
  %v1155 = vand.u32 %v1048, 4294901760
  %v1156 = vsub.f32 %v1048, %v1155
  %v1157 = vand.u32 %v1156, 4294901760
  %v1158 = vsub.f32 %v1156, %v1157
  %v1159 = vand.u32 %v1158, 4294901760
  %1160 = vmatpush1.msra.mxu0 %v1159
  %1161 = vmatprep.subr.mxu0 0.0
  %v1162 = vand.u32 %v1049, 4294901760
  %v1163 = vsub.f32 %v1049, %v1162
  %v1164 = vand.u32 %v1163, 4294901760
  %v1165 = vsub.f32 %v1163, %v1164
  %v1166 = vand.u32 %v1165, 4294901760
  %1167 = vmatpush1.msra.mxu0 %v1166
  %1168 = vmatprep.subr.mxu0 0.0
  %v1169 = vand.u32 %v1050, 4294901760
  %v1170 = vsub.f32 %v1050, %v1169
  %v1171 = vand.u32 %v1170, 4294901760
  %v1172 = vsub.f32 %v1170, %v1171
  %v1173 = vand.u32 %v1172, 4294901760
  %1174 = vmatpush1.msra.mxu0 %v1173
  %1175 = vmatprep.subr.mxu0 0.0
  %1176 = vmatpush1.msra.mxu0 0.0
  %1177 = vmatprep.subr.mxu0 0.0
  %1178 = vmatpush1.msra.mxu0 0.0
  %1179 = vmatprep.subr.mxu0 0.0
  %1180 = vmatpush1.msra.mxu0 0.0
  %1181 = vmatprep.subr.mxu0 0.0
  %1182 = vmatpush1.msra.mxu0 0.0
  %1183 = vmatprep.subr.mxu0 0.0
  %1184 = vmatpush1.msra.mxu0 0.0
  %1185 = vmatprep.subr.mxu0 0.0
  %1186 = vmatpush1.msra.mxu0 0.0
  %1187 = vmatprep.subr.mxu0 0.0
  %1188 = vmatpush1.msra.mxu0 0.0
  %1189 = vmatprep.subr.mxu0 0.0
  %1190 = vmatpush1.msra.mxu0 0.0
  %1191 = vmatprep.subr.mxu0 0.0
  %1192 = vmatpush1.msra.mxu0 0.0
  %1193 = vmatprep.subr.mxu0 0.0
  %1194 = vmatpush1.msra.mxu0 0.0
  %1195 = vmatprep.subr.mxu0 0.0
  %1196 = vmatpush1.msra.mxu0 0.0
  %1197 = vmatprep.subr.mxu0 0.0
  %1198 = vmatpush1.msra.mxu0 0.0
  %1199 = vmatprep.subr.mxu0 0.0
  %1200 = vmatpush1.msra.mxu0 0.0
  %1201 = vmatprep.subr.mxu0 0.0
  %1202 = vmatpush1.msra.mxu0 0.0
  %1203 = vmatprep.subr.mxu0 0.0
  %1204 = vmatpush1.msra.mxu0 0.0
  %1205 = vmatprep.subr.mxu0 0.0
  %1206 = vmatpush1.msra.mxu0 0.0
  %1207 = vmatprep.subr.mxu0 0.0
  %1208 = vmatpush1.msra.mxu0 0.0
  %1209 = vmatprep.subr.mxu0 0.0
  %1210 = vmatpush1.msra.mxu0 0.0
  %1211 = vmatprep.subr.mxu0 0.0
  %1212 = vmatpush1.msra.mxu0 0.0
  %1213 = vmatprep.subr.mxu0 0.0
  %1214 = vmatpush1.msra.mxu0 0.0
  %1215 = vmatprep.subr.mxu0 0.0
  %1216 = vmatpush1.msra.mxu0 0.0
  %1217 = vmatprep.subr.mxu0 0.0
  %1218 = vmatpush1.msra.mxu0 0.0
  %1219 = vmatprep.subr.mxu0 0.0
  %1220 = vmatpush1.msra.mxu0 0.0
  %1221 = vmatprep.subr.mxu0 0.0
  %1222 = vmatpush1.msra.mxu0 0.0
  %1223 = vmatprep.subr.mxu0 0.0
  %1224 = vmatpush1.msra.mxu0 0.0
  %1225 = vmatprep.subr.mxu0 0.0
  %1226 = vmatpush1.msra.mxu0 0.0
  %1227 = vmatprep.subr.mxu0 0.0
  %1228 = vmatpush1.msra.mxu0 0.0
  %1229 = vmatprep.subr.mxu0 0.0
  %1230 = vmatpush1.msra.mxu0 0.0
  %1231 = vmatprep.mubr.f32.mxu0 0.0
  %v1232 = vand.u32 %v1053, 4294901760
  %1233 = vmatmul.mubr.f32.gmra.mrb[0].mxu0 %v1232
  %v1234 = vpop.f32.mrb[0].mxu0
  %v1235 = vadd.f32 %v1134, %v1234
  %v1236 = vpop.f32.mrb[0].mxu0
  %1237 = vmatprep.mubr.f32.mxu0 0.0
  %v1238 = vand.u32 %v1056, 4294901760
  %1239 = vmatmul.mubr.f32.gmra.mrb[0].mxu0 %v1238
  %v1240 = vpop.f32.mrb[0].mxu0
  %v1241 = vadd.f32 %v1144, %v1240
  %v1242 = vpop.f32.mrb[0].mxu0
  %1243 = vdwg.mxu0
  %1244 = vmatprep.subr.mxu0 0.0
  %v1245 = vand.u32 %v1047, 4294901760
  %v1246 = vsub.f32 %v1047, %v1245
  %1247 = vmatpush1.msra.mxu0 %v1246
  %1248 = vmatprep.subr.mxu0 0.0
  %v1249 = vand.u32 %v1048, 4294901760
  %v1250 = vsub.f32 %v1048, %v1249
  %1251 = vmatpush1.msra.mxu0 %v1250
  %1252 = vmatprep.subr.mxu0 0.0
  %v1253 = vand.u32 %v1049, 4294901760
  %v1254 = vsub.f32 %v1049, %v1253
  %1255 = vmatpush1.msra.mxu0 %v1254
  %1256 = vmatprep.subr.mxu0 0.0
  %v1257 = vand.u32 %v1050, 4294901760
  %v1258 = vsub.f32 %v1050, %v1257
  %1259 = vmatpush1.msra.mxu0 %v1258
  %1260 = vmatprep.subr.mxu0 0.0
  %1261 = vmatpush1.msra.mxu0 0.0
  %1262 = vmatprep.subr.mxu0 0.0
  %1263 = vmatpush1.msra.mxu0 0.0
  %1264 = vmatprep.subr.mxu0 0.0
  %1265 = vmatpush1.msra.mxu0 0.0
  %1266 = vmatprep.subr.mxu0 0.0
  %1267 = vmatpush1.msra.mxu0 0.0
  %1268 = vmatprep.subr.mxu0 0.0
  %1269 = vmatpush1.msra.mxu0 0.0
  %1270 = vmatprep.subr.mxu0 0.0
  %1271 = vmatpush1.msra.mxu0 0.0
  %1272 = vmatprep.subr.mxu0 0.0
  %1273 = vmatpush1.msra.mxu0 0.0
  %1274 = vmatprep.subr.mxu0 0.0
  %1275 = vmatpush1.msra.mxu0 0.0
  %1276 = vmatprep.subr.mxu0 0.0
  %1277 = vmatpush1.msra.mxu0 0.0
  %1278 = vmatprep.subr.mxu0 0.0
  %1279 = vmatpush1.msra.mxu0 0.0
  %1280 = vmatprep.subr.mxu0 0.0
  %1281 = vmatpush1.msra.mxu0 0.0
  %1282 = vmatprep.subr.mxu0 0.0
  %1283 = vmatpush1.msra.mxu0 0.0
  %1284 = vmatprep.subr.mxu0 0.0
  %1285 = vmatpush1.msra.mxu0 0.0
  %1286 = vmatprep.subr.mxu0 0.0
  %1287 = vmatpush1.msra.mxu0 0.0
  %1288 = vmatprep.subr.mxu0 0.0
  %1289 = vmatpush1.msra.mxu0 0.0
  %1290 = vmatprep.subr.mxu0 0.0
  %1291 = vmatpush1.msra.mxu0 0.0
  %1292 = vmatprep.subr.mxu0 0.0
  %1293 = vmatpush1.msra.mxu0 0.0
  %1294 = vmatprep.subr.mxu0 0.0
  %1295 = vmatpush1.msra.mxu0 0.0
  %1296 = vmatprep.subr.mxu0 0.0
  %1297 = vmatpush1.msra.mxu0 0.0
  %1298 = vmatprep.subr.mxu0 0.0
  %1299 = vmatpush1.msra.mxu0 0.0
  %1300 = vmatprep.subr.mxu0 0.0
  %1301 = vmatpush1.msra.mxu0 0.0
  %1302 = vmatprep.subr.mxu0 0.0
  %1303 = vmatpush1.msra.mxu0 0.0
  %1304 = vmatprep.subr.mxu0 0.0
  %1305 = vmatpush1.msra.mxu0 0.0
  %1306 = vmatprep.subr.mxu0 0.0
  %1307 = vmatpush1.msra.mxu0 0.0
  %1308 = vmatprep.subr.mxu0 0.0
  %1309 = vmatpush1.msra.mxu0 0.0
  %1310 = vmatprep.subr.mxu0 0.0
  %1311 = vmatpush1.msra.mxu0 0.0
  %1312 = vmatprep.subr.mxu0 0.0
  %1313 = vmatpush1.msra.mxu0 0.0
  %1314 = vmatprep.subr.mxu0 0.0
  %1315 = vmatpush1.msra.mxu0 0.0
  %1316 = vmatprep.mubr.f32.mxu0 0.0
  %v1317 = vand.u32 %v1053, 4294901760
  %v1318 = vsub.f32 %v1053, %v1317
  %1319 = vmatmul.mubr.f32.gmra.mrb[0].mxu0 %v1318
  %v1320 = vpop.f32.mrb[0].mxu0
  %v1321 = vadd.f32 %v1235, %v1320
  %v1322 = vpop.f32.mrb[0].mxu0
  %1323 = vmatprep.mubr.f32.mxu0 0.0
  %v1324 = vand.u32 %v1056, 4294901760
  %v1325 = vsub.f32 %v1056, %v1324
  %1326 = vmatmul.mubr.f32.gmra.mrb[0].mxu0 %v1325
  %v1327 = vpop.f32.mrb[0].mxu0
  %v1328 = vadd.f32 %v1241, %v1327
  %v1329 = vpop.f32.mrb[0].mxu0
  %1330 = vdwg.mxu0
  %1331 = vmatprep.subr.mxu0 0.0
  %v1332 = vand.u32 %v1047, 4294901760
  %1333 = vmatpush1.msra.mxu0 %v1332
  %1334 = vmatprep.subr.mxu0 0.0
  %v1335 = vand.u32 %v1048, 4294901760
  %1336 = vmatpush1.msra.mxu0 %v1335
  %1337 = vmatprep.subr.mxu0 0.0
  %v1338 = vand.u32 %v1049, 4294901760
  %1339 = vmatpush1.msra.mxu0 %v1338
  %1340 = vmatprep.subr.mxu0 0.0
  %v1341 = vand.u32 %v1050, 4294901760
  %1342 = vmatpush1.msra.mxu0 %v1341
  %1343 = vmatprep.subr.mxu0 0.0
  %1344 = vmatpush1.msra.mxu0 0.0
  %1345 = vmatprep.subr.mxu0 0.0
  %1346 = vmatpush1.msra.mxu0 0.0
  %1347 = vmatprep.subr.mxu0 0.0
  %1348 = vmatpush1.msra.mxu0 0.0
  %1349 = vmatprep.subr.mxu0 0.0
  %1350 = vmatpush1.msra.mxu0 0.0
  %1351 = vmatprep.subr.mxu0 0.0
  %1352 = vmatpush1.msra.mxu0 0.0
  %1353 = vmatprep.subr.mxu0 0.0
  %1354 = vmatpush1.msra.mxu0 0.0
  %1355 = vmatprep.subr.mxu0 0.0
  %1356 = vmatpush1.msra.mxu0 0.0
  %1357 = vmatprep.subr.mxu0 0.0
  %1358 = vmatpush1.msra.mxu0 0.0
  %1359 = vmatprep.subr.mxu0 0.0
  %1360 = vmatpush1.msra.mxu0 0.0
  %1361 = vmatprep.subr.mxu0 0.0
  %1362 = vmatpush1.msra.mxu0 0.0
  %1363 = vmatprep.subr.mxu0 0.0
  %1364 = vmatpush1.msra.mxu0 0.0
  %1365 = vmatprep.subr.mxu0 0.0
  %1366 = vmatpush1.msra.mxu0 0.0
  %1367 = vmatprep.subr.mxu0 0.0
  %1368 = vmatpush1.msra.mxu0 0.0
  %1369 = vmatprep.subr.mxu0 0.0
  %1370 = vmatpush1.msra.mxu0 0.0
  %1371 = vmatprep.subr.mxu0 0.0
  %1372 = vmatpush1.msra.mxu0 0.0
  %1373 = vmatprep.subr.mxu0 0.0
  %1374 = vmatpush1.msra.mxu0 0.0
  %1375 = vmatprep.subr.mxu0 0.0
  %1376 = vmatpush1.msra.mxu0 0.0
  %1377 = vmatprep.subr.mxu0 0.0
  %1378 = vmatpush1.msra.mxu0 0.0
  %1379 = vmatprep.subr.mxu0 0.0
  %1380 = vmatpush1.msra.mxu0 0.0
  %1381 = vmatprep.subr.mxu0 0.0
  %1382 = vmatpush1.msra.mxu0 0.0
  %1383 = vmatprep.subr.mxu0 0.0
  %1384 = vmatpush1.msra.mxu0 0.0
  %1385 = vmatprep.subr.mxu0 0.0
  %1386 = vmatpush1.msra.mxu0 0.0
  %1387 = vmatprep.subr.mxu0 0.0
  %1388 = vmatpush1.msra.mxu0 0.0
  %1389 = vmatprep.subr.mxu0 0.0
  %1390 = vmatpush1.msra.mxu0 0.0
  %1391 = vmatprep.subr.mxu0 0.0
  %1392 = vmatpush1.msra.mxu0 0.0
  %1393 = vmatprep.subr.mxu0 0.0
  %1394 = vmatpush1.msra.mxu0 0.0
  %1395 = vmatprep.subr.mxu0 0.0
  %1396 = vmatpush1.msra.mxu0 0.0
  %1397 = vmatprep.subr.mxu0 0.0
  %1398 = vmatpush1.msra.mxu0 0.0
  %1399 = vmatprep.mubr.f32.mxu0 0.0
  %v1400 = vand.u32 %v1053, 4294901760
  %v1401 = vsub.f32 %v1053, %v1400
  %v1402 = vand.u32 %v1401, 4294901760
  %1403 = vmatmul.mubr.f32.gmra.mrb[0].mxu0 %v1402
  %v1404 = vpop.f32.mrb[0].mxu0
  %v1405 = vadd.f32 %v1321, %v1404
  %v1406 = vpop.f32.mrb[0].mxu0
  %1407 = vmatprep.mubr.f32.mxu0 0.0
  %v1408 = vand.u32 %v1056, 4294901760
  %v1409 = vsub.f32 %v1056, %v1408
  %v1410 = vand.u32 %v1409, 4294901760
  %1411 = vmatmul.mubr.f32.gmra.mrb[0].mxu0 %v1410
  %v1412 = vpop.f32.mrb[0].mxu0
  %v1413 = vadd.f32 %v1328, %v1412
  %v1414 = vpop.f32.mrb[0].mxu0
  %1415 = vdwg.mxu0
  %1416 = vmatprep.subr.mxu0 0.0
  %v1417 = vand.u32 %v1047, 4294901760
  %v1418 = vsub.f32 %v1047, %v1417
  %v1419 = vand.u32 %v1418, 4294901760
  %1420 = vmatpush1.msra.mxu0 %v1419
  %1421 = vmatprep.subr.mxu0 0.0
  %v1422 = vand.u32 %v1048, 4294901760
  %v1423 = vsub.f32 %v1048, %v1422
  %v1424 = vand.u32 %v1423, 4294901760
  %1425 = vmatpush1.msra.mxu0 %v1424
  %1426 = vmatprep.subr.mxu0 0.0
  %v1427 = vand.u32 %v1049, 4294901760
  %v1428 = vsub.f32 %v1049, %v1427
  %v1429 = vand.u32 %v1428, 4294901760
  %1430 = vmatpush1.msra.mxu0 %v1429
  %1431 = vmatprep.subr.mxu0 0.0
  %v1432 = vand.u32 %v1050, 4294901760
  %v1433 = vsub.f32 %v1050, %v1432
  %v1434 = vand.u32 %v1433, 4294901760
  %1435 = vmatpush1.msra.mxu0 %v1434
  %1436 = vmatprep.subr.mxu0 0.0
  %1437 = vmatpush1.msra.mxu0 0.0
  %1438 = vmatprep.subr.mxu0 0.0
  %1439 = vmatpush1.msra.mxu0 0.0
  %1440 = vmatprep.subr.mxu0 0.0
  %1441 = vmatpush1.msra.mxu0 0.0
  %1442 = vmatprep.subr.mxu0 0.0
  %1443 = vmatpush1.msra.mxu0 0.0
  %1444 = vmatprep.subr.mxu0 0.0
  %1445 = vmatpush1.msra.mxu0 0.0
  %1446 = vmatprep.subr.mxu0 0.0
  %1447 = vmatpush1.msra.mxu0 0.0
  %1448 = vmatprep.subr.mxu0 0.0
  %1449 = vmatpush1.msra.mxu0 0.0
  %1450 = vmatprep.subr.mxu0 0.0
  %1451 = vmatpush1.msra.mxu0 0.0
  %1452 = vmatprep.subr.mxu0 0.0
  %1453 = vmatpush1.msra.mxu0 0.0
  %1454 = vmatprep.subr.mxu0 0.0
  %1455 = vmatpush1.msra.mxu0 0.0
  %1456 = vmatprep.subr.mxu0 0.0
  %1457 = vmatpush1.msra.mxu0 0.0
  %1458 = vmatprep.subr.mxu0 0.0
  %1459 = vmatpush1.msra.mxu0 0.0
  %1460 = vmatprep.subr.mxu0 0.0
  %1461 = vmatpush1.msra.mxu0 0.0
  %1462 = vmatprep.subr.mxu0 0.0
  %1463 = vmatpush1.msra.mxu0 0.0
  %1464 = vmatprep.subr.mxu0 0.0
  %1465 = vmatpush1.msra.mxu0 0.0
  %1466 = vmatprep.subr.mxu0 0.0
  %1467 = vmatpush1.msra.mxu0 0.0
  %1468 = vmatprep.subr.mxu0 0.0
  %1469 = vmatpush1.msra.mxu0 0.0
  %1470 = vmatprep.subr.mxu0 0.0
  %1471 = vmatpush1.msra.mxu0 0.0
  %1472 = vmatprep.subr.mxu0 0.0
  %1473 = vmatpush1.msra.mxu0 0.0
  %1474 = vmatprep.subr.mxu0 0.0
  %1475 = vmatpush1.msra.mxu0 0.0
  %1476 = vmatprep.subr.mxu0 0.0
  %1477 = vmatpush1.msra.mxu0 0.0
  %1478 = vmatprep.subr.mxu0 0.0
  %1479 = vmatpush1.msra.mxu0 0.0
  %1480 = vmatprep.subr.mxu0 0.0
  %1481 = vmatpush1.msra.mxu0 0.0
  %1482 = vmatprep.subr.mxu0 0.0
  %1483 = vmatpush1.msra.mxu0 0.0
  %1484 = vmatprep.subr.mxu0 0.0
  %1485 = vmatpush1.msra.mxu0 0.0
  %1486 = vmatprep.subr.mxu0 0.0
  %1487 = vmatpush1.msra.mxu0 0.0
  %1488 = vmatprep.subr.mxu0 0.0
  %1489 = vmatpush1.msra.mxu0 0.0
  %1490 = vmatprep.subr.mxu0 0.0
  %1491 = vmatpush1.msra.mxu0 0.0
  %1492 = vmatprep.mubr.f32.mxu0 0.0
  %v1493 = vand.u32 %v1053, 4294901760
  %1494 = vmatmul.mubr.f32.gmra.mrb[0].mxu0 %v1493
  %v1495 = vpop.f32.mrb[0].mxu0
  %v1496 = vadd.f32 %v1405, %v1495
  %v1497 = vpop.f32.mrb[0].mxu0
  %1498 = vmatprep.mubr.f32.mxu0 0.0
  %v1499 = vand.u32 %v1056, 4294901760
  %1500 = vmatmul.mubr.f32.gmra.mrb[0].mxu0 %v1499
  %v1501 = vpop.f32.mrb[0].mxu0
  %v1502 = vadd.f32 %v1413, %v1501
  %v1503 = vpop.f32.mrb[0].mxu0
  %1504 = vdwg.mxu0
  %1505 = vmatprep.subr.mxu0 0.0
  %v1506 = vand.u32 %v1047, 4294901760
  %1507 = vmatpush1.msra.mxu0 %v1506
  %1508 = vmatprep.subr.mxu0 0.0
  %v1509 = vand.u32 %v1048, 4294901760
  %1510 = vmatpush1.msra.mxu0 %v1509
  %1511 = vmatprep.subr.mxu0 0.0
  %v1512 = vand.u32 %v1049, 4294901760
  %1513 = vmatpush1.msra.mxu0 %v1512
  %1514 = vmatprep.subr.mxu0 0.0
  %v1515 = vand.u32 %v1050, 4294901760
  %1516 = vmatpush1.msra.mxu0 %v1515
  %1517 = vmatprep.subr.mxu0 0.0
  %1518 = vmatpush1.msra.mxu0 0.0
  %1519 = vmatprep.subr.mxu0 0.0
  %1520 = vmatpush1.msra.mxu0 0.0
  %1521 = vmatprep.subr.mxu0 0.0
  %1522 = vmatpush1.msra.mxu0 0.0
  %1523 = vmatprep.subr.mxu0 0.0
  %1524 = vmatpush1.msra.mxu0 0.0
  %1525 = vmatprep.subr.mxu0 0.0
  %1526 = vmatpush1.msra.mxu0 0.0
  %1527 = vmatprep.subr.mxu0 0.0
  %1528 = vmatpush1.msra.mxu0 0.0
  %1529 = vmatprep.subr.mxu0 0.0
  %1530 = vmatpush1.msra.mxu0 0.0
  %1531 = vmatprep.subr.mxu0 0.0
  %1532 = vmatpush1.msra.mxu0 0.0
  %1533 = vmatprep.subr.mxu0 0.0
  %1534 = vmatpush1.msra.mxu0 0.0
  %1535 = vmatprep.subr.mxu0 0.0
  %1536 = vmatpush1.msra.mxu0 0.0
  %1537 = vmatprep.subr.mxu0 0.0
  %1538 = vmatpush1.msra.mxu0 0.0
  %1539 = vmatprep.subr.mxu0 0.0
  %1540 = vmatpush1.msra.mxu0 0.0
  %1541 = vmatprep.subr.mxu0 0.0
  %1542 = vmatpush1.msra.mxu0 0.0
  %1543 = vmatprep.subr.mxu0 0.0
  %1544 = vmatpush1.msra.mxu0 0.0
  %1545 = vmatprep.subr.mxu0 0.0
  %1546 = vmatpush1.msra.mxu0 0.0
  %1547 = vmatprep.subr.mxu0 0.0
  %1548 = vmatpush1.msra.mxu0 0.0
  %1549 = vmatprep.subr.mxu0 0.0
  %1550 = vmatpush1.msra.mxu0 0.0
  %1551 = vmatprep.subr.mxu0 0.0
  %1552 = vmatpush1.msra.mxu0 0.0
  %1553 = vmatprep.subr.mxu0 0.0
  %1554 = vmatpush1.msra.mxu0 0.0
  %1555 = vmatprep.subr.mxu0 0.0
  %1556 = vmatpush1.msra.mxu0 0.0
  %1557 = vmatprep.subr.mxu0 0.0
  %1558 = vmatpush1.msra.mxu0 0.0
  %1559 = vmatprep.subr.mxu0 0.0
  %1560 = vmatpush1.msra.mxu0 0.0
  %1561 = vmatprep.subr.mxu0 0.0
  %1562 = vmatpush1.msra.mxu0 0.0
  %1563 = vmatprep.subr.mxu0 0.0
  %1564 = vmatpush1.msra.mxu0 0.0
  %1565 = vmatprep.subr.mxu0 0.0
  %1566 = vmatpush1.msra.mxu0 0.0
  %1567 = vmatprep.subr.mxu0 0.0
  %1568 = vmatpush1.msra.mxu0 0.0
  %1569 = vmatprep.subr.mxu0 0.0
  %1570 = vmatpush1.msra.mxu0 0.0
  %1571 = vmatprep.subr.mxu0 0.0
  %1572 = vmatpush1.msra.mxu0 0.0
  %1573 = vmatprep.mubr.f32.mxu0 0.0
  %v1574 = vand.u32 %v1053, 4294901760
  %1575 = vmatmul.mubr.f32.gmra.mrb[0].mxu0 %v1574
  %v1576 = vpop.f32.mrb[0].mxu0
  %v1577 = vadd.f32 %v1496, %v1576
  %v1578 = vpop.f32.mrb[0].mxu0
  %1579 = vmatprep.mubr.f32.mxu0 0.0
  %v1580 = vand.u32 %v1056, 4294901760
  %1581 = vmatmul.mubr.f32.gmra.mrb[0].mxu0 %v1580
  %v1582 = vpop.f32.mrb[0].mxu0
  %v1583 = vadd.f32 %v1502, %v1582
  %v1584 = vpop.f32.mrb[0].mxu0
  %1585 = vdwg.mxu0
  %v1587 = vrot.slane %v1577, 2
  %v1589 = vsub.f32 %v37, %v1587
  %v1590 = vrot.slane %v1577, 4
  %v1592 = vsub.f32 %v37, %v1590
  %v1594 = vrot.slane %v1592, 1
  %v1596 = vmul.f32 %v1589, %v1594
  %v1597 = vrot.slane %v1592, 7
  %v1599 = vmul.f32 %v1589, %v1597
  %v1601 = vrot.slane %v1599, 1
  %v1603 = vsub.f32 %v1596, %v1601
  %v1604 = vand.u32 2147483647, %v1603
  %v1605 = vmul.f32 %v1604, 0.5
  %v1606 = vsub.f32 %v37, %v1577
  %v1607 = vmul.f32 %v1606, %v1594
  %v1608 = vmul.f32 %v1606, %v1597
  %v1610 = vrot.slane %v1608, 1
  %v1612 = vsub.f32 %v1607, %v1610
  %v1613 = vand.u32 2147483647, %v1612
  %v1614 = vmul.f32 %v1613, 0.5
  %v1616 = vrot.slane %v1589, 1
  %v1618 = vmul.f32 %v1606, %v1616
  %v1619 = vrot.slane %v1589, 7
  %v1621 = vmul.f32 %v1606, %v1619
  %v1623 = vrot.slane %v1621, 1
  %v1625 = vsub.f32 %v1618, %v1623
  %v1626 = vand.u32 2147483647, %v1625
  %v1627 = vmul.f32 %v1626, 0.5
  %v1628 = vadd.f32 %v1605, %v1614
  %v1629 = vadd.f32 %v1628, %v1627
  %v1630 = vrcp.pop %v1629
  %v1632 = vrot.slane %v1605, 2
  %v1634 = vmul.f32 %v1577, %v1632
  %v1635 = vmul.f32 %v1583, %v1614
  %v1637 = vrot.slane %v1635, 2
  %v1639 = vadd.f32 %v1634, %v1637
  %v1641 = vrot.slane %v1627, 6
  %v1643 = vmul.f32 %v1583, %v1641
  %v1645 = vrot.slane %v1643, 4
  %v1647 = vadd.f32 %v1639, %v1645
  %v1649 = vrot.slane %v1630, 2
  %v1651 = vmul.f32 %v1647, %v1649
  %v1652 = vrot.slane %v1605, 1
  %v1654 = vmul.f32 %v1577, %v1652
  %v1656 = vrot.slane %v1614, 7
  %v1658 = vmul.f32 %v1583, %v1656
  %v1660 = vrot.slane %v1658, 2
  %v1662 = vadd.f32 %v1654, %v1660
  %v1663 = vrot.slane %v1627, 5
  %v1665 = vmul.f32 %v1583, %v1663
  %v1667 = vrot.slane %v1665, 4
  %v1669 = vadd.f32 %v1662, %v1667
  %v1670 = vrot.slane %v1630, 1
  %v1672 = vmul.f32 %v1669, %v1670
  %v1673 = vrot.slane %v1577, 6
  %v1675 = vsub.f32 %v1577, %v1673
  %v1676 = vsub.f32 %v1577, %v1590
  %v1677 = vsub.f32 %v1583, %v1673
  %v1678 = vsub.f32 %v1583, %v1590
  %v1680 = vrot.slane %v1676, 3
  %v1682 = vmul.f32 %v1675, %v1680
  %v1684 = vrot.slane %v1675, 7
  %v1686 = vmul.f32 %v1676, %v1684
  %v1688 = vrot.slane %v1686, 2
  %v1690 = vsub.f32 %v1682, %v1688
  %v1691 = vrcp.pop %v1690
  %v1693 = vrot.slane %v1691, 5
  %v1695 = vmul.f32 %v1676, %v1693
  %v1696 = vsub.f32 0.0, %v1676
  %v1697 = vrot.slane %v1691, 6
  %v1699 = vmul.f32 %v1696, %v1697
  %v1700 = vsub.f32 0.0, %v1675
  %v1701 = vrot.slane %v1691, 7
  %v1703 = vmul.f32 %v1700, %v1701
  %v1704 = vmul.f32 %v1675, %v1691
  %v1706 = vrot.slane %v1695, 5
  %v1708 = vmul.f32 %v1677, %v1706
  %v1710 = vrot.slane %v1703, 1
  %v1712 = vmul.f32 %v1678, %v1710
  %v1714 = vrot.slane %v1712, 2
  %v1716 = vadd.f32 %v1708, %v1714
  %v1718 = vrot.slane %v1699, 4
  %v1720 = vmul.f32 %v1677, %v1718
  %v1721 = vmul.f32 %v1678, %v1704
  %v1723 = vrot.slane %v1721, 2
  %v1725 = vadd.f32 %v1720, %v1723
  %v1726 = vrot.slane %v1695, 4
  %v1728 = vmul.f32 %v1677, %v1726
  %v1729 = vmul.f32 %v1678, %v1703
  %v1731 = vrot.slane %v1729, 2
  %v1733 = vadd.f32 %v1728, %v1731
  %v1734 = vrot.slane %v1699, 3
  %v1736 = vmul.f32 %v1677, %v1734
  %v1738 = vrot.slane %v1704, 7
  %v1740 = vmul.f32 %v1678, %v1738
  %v1742 = vrot.slane %v1740, 2
  %v1744 = vadd.f32 %v1736, %v1742
  %v1746 = vrot.slane %v1651, 6
  %v1749 = vrot.slane %v37, 1
  %vm1751 = vcmask 1040384
  %v1752 = vsel %vm1751, %v1746, %v1749
  %v1753 = vsel %vm38, %v1752, 1.0
  %v1754 = vsel %vm40, %v1753, 0.0
  %1755 = vmatprep.subr.mxu0 0.0
  %v1756 = vand.u32 %v1754, 4294901760
  %1757 = vmatpush1.msra.mxu0 %v1756
  %1758 = vmatprep.subr.mxu0 0.0
  %1759 = vmatpush1.msra.mxu0 0.0
  %1760 = vmatprep.subr.mxu0 0.0
  %1761 = vmatpush1.msra.mxu0 0.0
  %1762 = vmatprep.subr.mxu0 0.0
  %1763 = vmatpush1.msra.mxu0 0.0
  %1764 = vmatprep.subr.mxu0 0.0
  %1765 = vmatpush1.msra.mxu0 0.0
  %1766 = vmatprep.subr.mxu0 0.0
  %1767 = vmatpush1.msra.mxu0 0.0
  %1768 = vmatprep.subr.mxu0 0.0
  %1769 = vmatpush1.msra.mxu0 0.0
  %1770 = vmatprep.subr.mxu0 0.0
  %1771 = vmatpush1.msra.mxu0 0.0
  %1772 = vmatprep.subr.mxu0 0.0
  %1773 = vmatpush1.msra.mxu0 0.0
  %1774 = vmatprep.subr.mxu0 0.0
  %1775 = vmatpush1.msra.mxu0 0.0
  %1776 = vmatprep.subr.mxu0 0.0
  %1777 = vmatpush1.msra.mxu0 0.0
  %1778 = vmatprep.subr.mxu0 0.0
  %1779 = vmatpush1.msra.mxu0 0.0
  %1780 = vmatprep.subr.mxu0 0.0
  %1781 = vmatpush1.msra.mxu0 0.0
  %1782 = vmatprep.subr.mxu0 0.0
  %1783 = vmatpush1.msra.mxu0 0.0
  %1784 = vmatprep.subr.mxu0 0.0
  %1785 = vmatpush1.msra.mxu0 0.0
  %1786 = vmatprep.subr.mxu0 0.0
  %1787 = vmatpush1.msra.mxu0 0.0
  %1788 = vmatprep.subr.mxu0 0.0
  %1789 = vmatpush1.msra.mxu0 0.0
  %1790 = vmatprep.subr.mxu0 0.0
  %1791 = vmatpush1.msra.mxu0 0.0
  %1792 = vmatprep.subr.mxu0 0.0
  %1793 = vmatpush1.msra.mxu0 0.0
  %1794 = vmatprep.subr.mxu0 0.0
  %1795 = vmatpush1.msra.mxu0 0.0
  %1796 = vmatprep.subr.mxu0 0.0
  %1797 = vmatpush1.msra.mxu0 0.0
  %1798 = vmatprep.subr.mxu0 0.0
  %1799 = vmatpush1.msra.mxu0 0.0
  %1800 = vmatprep.subr.mxu0 0.0
  %1801 = vmatpush1.msra.mxu0 0.0
  %1802 = vmatprep.subr.mxu0 0.0
  %1803 = vmatpush1.msra.mxu0 0.0
  %1804 = vmatprep.subr.mxu0 0.0
  %1805 = vmatpush1.msra.mxu0 0.0
  %1806 = vmatprep.subr.mxu0 0.0
  %1807 = vmatpush1.msra.mxu0 0.0
  %1808 = vmatprep.subr.mxu0 0.0
  %1809 = vmatpush1.msra.mxu0 0.0
  %1810 = vmatprep.subr.mxu0 0.0
  %1811 = vmatpush1.msra.mxu0 0.0
  %1812 = vmatprep.subr.mxu0 0.0
  %1813 = vmatpush1.msra.mxu0 0.0
  %1814 = vmatprep.subr.mxu0 0.0
  %1815 = vmatpush1.msra.mxu0 0.0
  %1816 = vmatprep.subr.mxu0 0.0
  %1817 = vmatpush1.msra.mxu0 0.0
  %1818 = vmatprep.subr.mxu0 0.0
  %1819 = vmatpush1.msra.mxu0 0.0
  %1820 = vmatprep.mubr.f32.mxu0 0.0
  %v1821 = vand.u32 %v44, 4294901760
  %v1822 = vsub.f32 %v44, %v1821
  %v1823 = vand.u32 %v1822, 4294901760
  %v1824 = vsub.f32 %v1822, %v1823
  %v1825 = vand.u32 %v1824, 4294901760
  %1826 = vmatmul.mubr.f32.gmra.mrb[0].mxu0 %v1825
  %v1827 = vpop.f32.mrb[0].mxu0
  %v1828 = vadd.f32 0.0, %v1827
  %v1829 = vpop.f32.mrb[0].mxu0
  %1830 = vmatprep.mubr.f32.mxu0 0.0
  %v1831 = vand.u32 %v47, 4294901760
  %v1832 = vsub.f32 %v47, %v1831
  %v1833 = vand.u32 %v1832, 4294901760
  %v1834 = vsub.f32 %v1832, %v1833
  %v1835 = vand.u32 %v1834, 4294901760
  %1836 = vmatmul.mubr.f32.gmra.mrb[0].mxu0 %v1835
  %v1837 = vpop.f32.mrb[0].mxu0
  %v1838 = vadd.f32 0.0, %v1837
  %v1839 = vpop.f32.mrb[0].mxu0
  %1840 = vmatprep.mubr.f32.mxu0 0.0
  %v1841 = vand.u32 %v50, 4294901760
  %v1842 = vsub.f32 %v50, %v1841
  %v1843 = vand.u32 %v1842, 4294901760
  %v1844 = vsub.f32 %v1842, %v1843
  %v1845 = vand.u32 %v1844, 4294901760
  %1846 = vmatmul.mubr.f32.gmra.mrb[0].mxu0 %v1845
  %v1847 = vpop.f32.mrb[0].mxu0
  %v1848 = vadd.f32 0.0, %v1847
  %v1849 = vpop.f32.mrb[0].mxu0
  %1850 = vmatprep.mubr.f32.mxu0 0.0
  %v1851 = vand.u32 %v53, 4294901760
  %v1852 = vsub.f32 %v53, %v1851
  %v1853 = vand.u32 %v1852, 4294901760
  %v1854 = vsub.f32 %v1852, %v1853
  %v1855 = vand.u32 %v1854, 4294901760
  %1856 = vmatmul.mubr.f32.gmra.mrb[0].mxu0 %v1855
  %v1857 = vpop.f32.mrb[0].mxu0
  %v1858 = vadd.f32 0.0, %v1857
  %v1859 = vpop.f32.mrb[0].mxu0
  %1860 = vmatprep.mubr.f32.mxu0 0.0
  %v1861 = vand.u32 %v56, 4294901760
  %v1862 = vsub.f32 %v56, %v1861
  %v1863 = vand.u32 %v1862, 4294901760
  %v1864 = vsub.f32 %v1862, %v1863
  %v1865 = vand.u32 %v1864, 4294901760
  %1866 = vmatmul.mubr.f32.gmra.mrb[0].mxu0 %v1865
  %v1867 = vpop.f32.mrb[0].mxu0
  %v1868 = vadd.f32 0.0, %v1867
  %v1869 = vpop.f32.mrb[0].mxu0
  %1870 = vmatprep.mubr.f32.mxu0 0.0
  %v1871 = vand.u32 %v59, 4294901760
  %v1872 = vsub.f32 %v59, %v1871
  %v1873 = vand.u32 %v1872, 4294901760
  %v1874 = vsub.f32 %v1872, %v1873
  %v1875 = vand.u32 %v1874, 4294901760
  %1876 = vmatmul.mubr.f32.gmra.mrb[0].mxu0 %v1875
  %v1877 = vpop.f32.mrb[0].mxu0
  %v1878 = vadd.f32 0.0, %v1877
  %v1879 = vpop.f32.mrb[0].mxu0
  %1880 = vmatprep.mubr.f32.mxu0 0.0
  %v1881 = vand.u32 %v62, 4294901760
  %v1882 = vsub.f32 %v62, %v1881
  %v1883 = vand.u32 %v1882, 4294901760
  %v1884 = vsub.f32 %v1882, %v1883
  %v1885 = vand.u32 %v1884, 4294901760
  %1886 = vmatmul.mubr.f32.gmra.mrb[0].mxu0 %v1885
  %v1887 = vpop.f32.mrb[0].mxu0
  %v1888 = vadd.f32 0.0, %v1887
  %v1889 = vpop.f32.mrb[0].mxu0
  %1890 = vmatprep.mubr.f32.mxu0 0.0
  %v1891 = vand.u32 %v65, 4294901760
  %v1892 = vsub.f32 %v65, %v1891
  %v1893 = vand.u32 %v1892, 4294901760
  %v1894 = vsub.f32 %v1892, %v1893
  %v1895 = vand.u32 %v1894, 4294901760
  %1896 = vmatmul.mubr.f32.gmra.mrb[0].mxu0 %v1895
  %v1897 = vpop.f32.mrb[0].mxu0
  %v1898 = vadd.f32 0.0, %v1897
  %v1899 = vpop.f32.mrb[0].mxu0
  %1900 = vmatprep.mubr.f32.mxu0 0.0
  %v1901 = vand.u32 %v68, 4294901760
  %v1902 = vsub.f32 %v68, %v1901
  %v1903 = vand.u32 %v1902, 4294901760
  %v1904 = vsub.f32 %v1902, %v1903
  %v1905 = vand.u32 %v1904, 4294901760
  %1906 = vmatmul.mubr.f32.gmra.mrb[0].mxu0 %v1905
  %v1907 = vpop.f32.mrb[0].mxu0
  %v1908 = vadd.f32 0.0, %v1907
  %v1909 = vpop.f32.mrb[0].mxu0
  %1910 = vmatprep.mubr.f32.mxu0 0.0
  %v1911 = vand.u32 %v71, 4294901760
  %v1912 = vsub.f32 %v71, %v1911
  %v1913 = vand.u32 %v1912, 4294901760
  %v1914 = vsub.f32 %v1912, %v1913
  %v1915 = vand.u32 %v1914, 4294901760
  %1916 = vmatmul.mubr.f32.gmra.mrb[0].mxu0 %v1915
  %v1917 = vpop.f32.mrb[0].mxu0
  %v1918 = vadd.f32 0.0, %v1917
  %v1919 = vpop.f32.mrb[0].mxu0
  %1920 = vmatprep.mubr.f32.mxu0 0.0
  %v1921 = vand.u32 %v74, 4294901760
  %v1922 = vsub.f32 %v74, %v1921
  %v1923 = vand.u32 %v1922, 4294901760
  %v1924 = vsub.f32 %v1922, %v1923
  %v1925 = vand.u32 %v1924, 4294901760
  %1926 = vmatmul.mubr.f32.gmra.mrb[0].mxu0 %v1925
  %v1927 = vpop.f32.mrb[0].mxu0
  %v1928 = vadd.f32 0.0, %v1927
  %v1929 = vpop.f32.mrb[0].mxu0
  %1930 = vmatprep.mubr.f32.mxu0 0.0
  %v1931 = vand.u32 %v77, 4294901760
  %v1932 = vsub.f32 %v77, %v1931
  %v1933 = vand.u32 %v1932, 4294901760
  %v1934 = vsub.f32 %v1932, %v1933
  %v1935 = vand.u32 %v1934, 4294901760
  %1936 = vmatmul.mubr.f32.gmra.mrb[0].mxu0 %v1935
  %v1937 = vpop.f32.mrb[0].mxu0
  %v1938 = vadd.f32 0.0, %v1937
  %v1939 = vpop.f32.mrb[0].mxu0
  %1940 = vdwg.mxu0
  %1941 = vmatprep.subr.mxu0 0.0
  %v1942 = vand.u32 %v1754, 4294901760
  %v1943 = vsub.f32 %v1754, %v1942
  %v1944 = vand.u32 %v1943, 4294901760
  %v1945 = vsub.f32 %v1943, %v1944
  %v1946 = vand.u32 %v1945, 4294901760
  %1947 = vmatpush1.msra.mxu0 %v1946
  %1948 = vmatprep.subr.mxu0 0.0
  %1949 = vmatpush1.msra.mxu0 0.0
  %1950 = vmatprep.subr.mxu0 0.0
  %1951 = vmatpush1.msra.mxu0 0.0
  %1952 = vmatprep.subr.mxu0 0.0
  %1953 = vmatpush1.msra.mxu0 0.0
  %1954 = vmatprep.subr.mxu0 0.0
  %1955 = vmatpush1.msra.mxu0 0.0
  %1956 = vmatprep.subr.mxu0 0.0
  %1957 = vmatpush1.msra.mxu0 0.0
  %1958 = vmatprep.subr.mxu0 0.0
  %1959 = vmatpush1.msra.mxu0 0.0
  %1960 = vmatprep.subr.mxu0 0.0
  %1961 = vmatpush1.msra.mxu0 0.0
  %1962 = vmatprep.subr.mxu0 0.0
  %1963 = vmatpush1.msra.mxu0 0.0
  %1964 = vmatprep.subr.mxu0 0.0
  %1965 = vmatpush1.msra.mxu0 0.0
  %1966 = vmatprep.subr.mxu0 0.0
  %1967 = vmatpush1.msra.mxu0 0.0
  %1968 = vmatprep.subr.mxu0 0.0
  %1969 = vmatpush1.msra.mxu0 0.0
  %1970 = vmatprep.subr.mxu0 0.0
  %1971 = vmatpush1.msra.mxu0 0.0
  %1972 = vmatprep.subr.mxu0 0.0
  %1973 = vmatpush1.msra.mxu0 0.0
  %1974 = vmatprep.subr.mxu0 0.0
  %1975 = vmatpush1.msra.mxu0 0.0
  %1976 = vmatprep.subr.mxu0 0.0
  %1977 = vmatpush1.msra.mxu0 0.0
  %1978 = vmatprep.subr.mxu0 0.0
  %1979 = vmatpush1.msra.mxu0 0.0
  %1980 = vmatprep.subr.mxu0 0.0
  %1981 = vmatpush1.msra.mxu0 0.0
  %1982 = vmatprep.subr.mxu0 0.0
  %1983 = vmatpush1.msra.mxu0 0.0
  %1984 = vmatprep.subr.mxu0 0.0
  %1985 = vmatpush1.msra.mxu0 0.0
  %1986 = vmatprep.subr.mxu0 0.0
  %1987 = vmatpush1.msra.mxu0 0.0
  %1988 = vmatprep.subr.mxu0 0.0
  %1989 = vmatpush1.msra.mxu0 0.0
  %1990 = vmatprep.subr.mxu0 0.0
  %1991 = vmatpush1.msra.mxu0 0.0
  %1992 = vmatprep.subr.mxu0 0.0
  %1993 = vmatpush1.msra.mxu0 0.0
  %1994 = vmatprep.subr.mxu0 0.0
  %1995 = vmatpush1.msra.mxu0 0.0
  %1996 = vmatprep.subr.mxu0 0.0
  %1997 = vmatpush1.msra.mxu0 0.0
  %1998 = vmatprep.subr.mxu0 0.0
  %1999 = vmatpush1.msra.mxu0 0.0
  %2000 = vmatprep.subr.mxu0 0.0
  %2001 = vmatpush1.msra.mxu0 0.0
  %2002 = vmatprep.subr.mxu0 0.0
  %2003 = vmatpush1.msra.mxu0 0.0
  %2004 = vmatprep.subr.mxu0 0.0
  %2005 = vmatpush1.msra.mxu0 0.0
  %2006 = vmatprep.subr.mxu0 0.0
  %2007 = vmatpush1.msra.mxu0 0.0
  %2008 = vmatprep.subr.mxu0 0.0
  %2009 = vmatpush1.msra.mxu0 0.0
  %2010 = vmatprep.mubr.f32.mxu0 0.0
  %v2011 = vand.u32 %v44, 4294901760
  %2012 = vmatmul.mubr.f32.gmra.mrb[0].mxu0 %v2011
  %v2013 = vpop.f32.mrb[0].mxu0
  %v2014 = vadd.f32 %v1828, %v2013
  %v2015 = vpop.f32.mrb[0].mxu0
  %2016 = vmatprep.mubr.f32.mxu0 0.0
  %v2017 = vand.u32 %v47, 4294901760
  %2018 = vmatmul.mubr.f32.gmra.mrb[0].mxu0 %v2017
  %v2019 = vpop.f32.mrb[0].mxu0
  %v2020 = vadd.f32 %v1838, %v2019
  %v2021 = vpop.f32.mrb[0].mxu0
  %2022 = vmatprep.mubr.f32.mxu0 0.0
  %v2023 = vand.u32 %v50, 4294901760
  %2024 = vmatmul.mubr.f32.gmra.mrb[0].mxu0 %v2023
  %v2025 = vpop.f32.mrb[0].mxu0
  %v2026 = vadd.f32 %v1848, %v2025
  %v2027 = vpop.f32.mrb[0].mxu0
  %2028 = vmatprep.mubr.f32.mxu0 0.0
  %v2029 = vand.u32 %v53, 4294901760
  %2030 = vmatmul.mubr.f32.gmra.mrb[0].mxu0 %v2029
  %v2031 = vpop.f32.mrb[0].mxu0
  %v2032 = vadd.f32 %v1858, %v2031
  %v2033 = vpop.f32.mrb[0].mxu0
  %2034 = vmatprep.mubr.f32.mxu0 0.0
  %v2035 = vand.u32 %v56, 4294901760
  %2036 = vmatmul.mubr.f32.gmra.mrb[0].mxu0 %v2035
  %v2037 = vpop.f32.mrb[0].mxu0
  %v2038 = vadd.f32 %v1868, %v2037
  %v2039 = vpop.f32.mrb[0].mxu0
  %2040 = vmatprep.mubr.f32.mxu0 0.0
  %v2041 = vand.u32 %v59, 4294901760
  %2042 = vmatmul.mubr.f32.gmra.mrb[0].mxu0 %v2041
  %v2043 = vpop.f32.mrb[0].mxu0
  %v2044 = vadd.f32 %v1878, %v2043
  %v2045 = vpop.f32.mrb[0].mxu0
  %2046 = vmatprep.mubr.f32.mxu0 0.0
  %v2047 = vand.u32 %v62, 4294901760
  %2048 = vmatmul.mubr.f32.gmra.mrb[0].mxu0 %v2047
  %v2049 = vpop.f32.mrb[0].mxu0
  %v2050 = vadd.f32 %v1888, %v2049
  %v2051 = vpop.f32.mrb[0].mxu0
  %2052 = vmatprep.mubr.f32.mxu0 0.0
  %v2053 = vand.u32 %v65, 4294901760
  %2054 = vmatmul.mubr.f32.gmra.mrb[0].mxu0 %v2053
  %v2055 = vpop.f32.mrb[0].mxu0
  %v2056 = vadd.f32 %v1898, %v2055
  %v2057 = vpop.f32.mrb[0].mxu0
  %2058 = vmatprep.mubr.f32.mxu0 0.0
  %v2059 = vand.u32 %v68, 4294901760
  %2060 = vmatmul.mubr.f32.gmra.mrb[0].mxu0 %v2059
  %v2061 = vpop.f32.mrb[0].mxu0
  %v2062 = vadd.f32 %v1908, %v2061
  %v2063 = vpop.f32.mrb[0].mxu0
  %2064 = vmatprep.mubr.f32.mxu0 0.0
  %v2065 = vand.u32 %v71, 4294901760
  %2066 = vmatmul.mubr.f32.gmra.mrb[0].mxu0 %v2065
  %v2067 = vpop.f32.mrb[0].mxu0
  %v2068 = vadd.f32 %v1918, %v2067
  %v2069 = vpop.f32.mrb[0].mxu0
  %2070 = vmatprep.mubr.f32.mxu0 0.0
  %v2071 = vand.u32 %v74, 4294901760
  %2072 = vmatmul.mubr.f32.gmra.mrb[0].mxu0 %v2071
  %v2073 = vpop.f32.mrb[0].mxu0
  %v2074 = vadd.f32 %v1928, %v2073
  %v2075 = vpop.f32.mrb[0].mxu0
  %2076 = vmatprep.mubr.f32.mxu0 0.0
  %v2077 = vand.u32 %v77, 4294901760
  %2078 = vmatmul.mubr.f32.gmra.mrb[0].mxu0 %v2077
  %v2079 = vpop.f32.mrb[0].mxu0
  %v2080 = vadd.f32 %v1938, %v2079
  %v2081 = vpop.f32.mrb[0].mxu0
  %2082 = vdwg.mxu0
  %2083 = vmatprep.subr.mxu0 0.0
  %v2084 = vand.u32 %v1754, 4294901760
  %v2085 = vsub.f32 %v1754, %v2084
  %2086 = vmatpush1.msra.mxu0 %v2085
  %2087 = vmatprep.subr.mxu0 0.0
  %2088 = vmatpush1.msra.mxu0 0.0
  %2089 = vmatprep.subr.mxu0 0.0
  %2090 = vmatpush1.msra.mxu0 0.0
  %2091 = vmatprep.subr.mxu0 0.0
  %2092 = vmatpush1.msra.mxu0 0.0
  %2093 = vmatprep.subr.mxu0 0.0
  %2094 = vmatpush1.msra.mxu0 0.0
  %2095 = vmatprep.subr.mxu0 0.0
  %2096 = vmatpush1.msra.mxu0 0.0
  %2097 = vmatprep.subr.mxu0 0.0
  %2098 = vmatpush1.msra.mxu0 0.0
  %2099 = vmatprep.subr.mxu0 0.0
  %2100 = vmatpush1.msra.mxu0 0.0
  %2101 = vmatprep.subr.mxu0 0.0
  %2102 = vmatpush1.msra.mxu0 0.0
  %2103 = vmatprep.subr.mxu0 0.0
  %2104 = vmatpush1.msra.mxu0 0.0
  %2105 = vmatprep.subr.mxu0 0.0
  %2106 = vmatpush1.msra.mxu0 0.0
  %2107 = vmatprep.subr.mxu0 0.0
  %2108 = vmatpush1.msra.mxu0 0.0
  %2109 = vmatprep.subr.mxu0 0.0
  %2110 = vmatpush1.msra.mxu0 0.0
  %2111 = vmatprep.subr.mxu0 0.0
  %2112 = vmatpush1.msra.mxu0 0.0
  %2113 = vmatprep.subr.mxu0 0.0
  %2114 = vmatpush1.msra.mxu0 0.0
  %2115 = vmatprep.subr.mxu0 0.0
  %2116 = vmatpush1.msra.mxu0 0.0
  %2117 = vmatprep.subr.mxu0 0.0
  %2118 = vmatpush1.msra.mxu0 0.0
  %2119 = vmatprep.subr.mxu0 0.0
  %2120 = vmatpush1.msra.mxu0 0.0
  %2121 = vmatprep.subr.mxu0 0.0
  %2122 = vmatpush1.msra.mxu0 0.0
  %2123 = vmatprep.subr.mxu0 0.0
  %2124 = vmatpush1.msra.mxu0 0.0
  %2125 = vmatprep.subr.mxu0 0.0
  %2126 = vmatpush1.msra.mxu0 0.0
  %2127 = vmatprep.subr.mxu0 0.0
  %2128 = vmatpush1.msra.mxu0 0.0
  %2129 = vmatprep.subr.mxu0 0.0
  %2130 = vmatpush1.msra.mxu0 0.0
  %2131 = vmatprep.subr.mxu0 0.0
  %2132 = vmatpush1.msra.mxu0 0.0
  %2133 = vmatprep.subr.mxu0 0.0
  %2134 = vmatpush1.msra.mxu0 0.0
  %2135 = vmatprep.subr.mxu0 0.0
  %2136 = vmatpush1.msra.mxu0 0.0
  %2137 = vmatprep.subr.mxu0 0.0
  %2138 = vmatpush1.msra.mxu0 0.0
  %2139 = vmatprep.subr.mxu0 0.0
  %2140 = vmatpush1.msra.mxu0 0.0
  %2141 = vmatprep.subr.mxu0 0.0
  %2142 = vmatpush1.msra.mxu0 0.0
  %2143 = vmatprep.subr.mxu0 0.0
  %2144 = vmatpush1.msra.mxu0 0.0
  %2145 = vmatprep.subr.mxu0 0.0
  %2146 = vmatpush1.msra.mxu0 0.0
  %2147 = vmatprep.subr.mxu0 0.0
  %2148 = vmatpush1.msra.mxu0 0.0
  %2149 = vmatprep.mubr.f32.mxu0 0.0
  %v2150 = vand.u32 %v44, 4294901760
  %v2151 = vsub.f32 %v44, %v2150
  %2152 = vmatmul.mubr.f32.gmra.mrb[0].mxu0 %v2151
  %v2153 = vpop.f32.mrb[0].mxu0
  %v2154 = vadd.f32 %v2014, %v2153
  %v2155 = vpop.f32.mrb[0].mxu0
  %2156 = vmatprep.mubr.f32.mxu0 0.0
  %v2157 = vand.u32 %v47, 4294901760
  %v2158 = vsub.f32 %v47, %v2157
  %2159 = vmatmul.mubr.f32.gmra.mrb[0].mxu0 %v2158
  %v2160 = vpop.f32.mrb[0].mxu0
  %v2161 = vadd.f32 %v2020, %v2160
  %v2162 = vpop.f32.mrb[0].mxu0
  %2163 = vmatprep.mubr.f32.mxu0 0.0
  %v2164 = vand.u32 %v50, 4294901760
  %v2165 = vsub.f32 %v50, %v2164
  %2166 = vmatmul.mubr.f32.gmra.mrb[0].mxu0 %v2165
  %v2167 = vpop.f32.mrb[0].mxu0
  %v2168 = vadd.f32 %v2026, %v2167
  %v2169 = vpop.f32.mrb[0].mxu0
  %2170 = vmatprep.mubr.f32.mxu0 0.0
  %v2171 = vand.u32 %v53, 4294901760
  %v2172 = vsub.f32 %v53, %v2171
  %2173 = vmatmul.mubr.f32.gmra.mrb[0].mxu0 %v2172
  %v2174 = vpop.f32.mrb[0].mxu0
  %v2175 = vadd.f32 %v2032, %v2174
  %v2176 = vpop.f32.mrb[0].mxu0
  %2177 = vmatprep.mubr.f32.mxu0 0.0
  %v2178 = vand.u32 %v56, 4294901760
  %v2179 = vsub.f32 %v56, %v2178
  %2180 = vmatmul.mubr.f32.gmra.mrb[0].mxu0 %v2179
  %v2181 = vpop.f32.mrb[0].mxu0
  %v2182 = vadd.f32 %v2038, %v2181
  %v2183 = vpop.f32.mrb[0].mxu0
  %2184 = vmatprep.mubr.f32.mxu0 0.0
  %v2185 = vand.u32 %v59, 4294901760
  %v2186 = vsub.f32 %v59, %v2185
  %2187 = vmatmul.mubr.f32.gmra.mrb[0].mxu0 %v2186
  %v2188 = vpop.f32.mrb[0].mxu0
  %v2189 = vadd.f32 %v2044, %v2188
  %v2190 = vpop.f32.mrb[0].mxu0
  %2191 = vmatprep.mubr.f32.mxu0 0.0
  %v2192 = vand.u32 %v62, 4294901760
  %v2193 = vsub.f32 %v62, %v2192
  %2194 = vmatmul.mubr.f32.gmra.mrb[0].mxu0 %v2193
  %v2195 = vpop.f32.mrb[0].mxu0
  %v2196 = vadd.f32 %v2050, %v2195
  %v2197 = vpop.f32.mrb[0].mxu0
  %2198 = vmatprep.mubr.f32.mxu0 0.0
  %v2199 = vand.u32 %v65, 4294901760
  %v2200 = vsub.f32 %v65, %v2199
  %2201 = vmatmul.mubr.f32.gmra.mrb[0].mxu0 %v2200
  %v2202 = vpop.f32.mrb[0].mxu0
  %v2203 = vadd.f32 %v2056, %v2202
  %v2204 = vpop.f32.mrb[0].mxu0
  %2205 = vmatprep.mubr.f32.mxu0 0.0
  %v2206 = vand.u32 %v68, 4294901760
  %v2207 = vsub.f32 %v68, %v2206
  %2208 = vmatmul.mubr.f32.gmra.mrb[0].mxu0 %v2207
  %v2209 = vpop.f32.mrb[0].mxu0
  %v2210 = vadd.f32 %v2062, %v2209
  %v2211 = vpop.f32.mrb[0].mxu0
  %2212 = vmatprep.mubr.f32.mxu0 0.0
  %v2213 = vand.u32 %v71, 4294901760
  %v2214 = vsub.f32 %v71, %v2213
  %2215 = vmatmul.mubr.f32.gmra.mrb[0].mxu0 %v2214
  %v2216 = vpop.f32.mrb[0].mxu0
  %v2217 = vadd.f32 %v2068, %v2216
  %v2218 = vpop.f32.mrb[0].mxu0
  %2219 = vmatprep.mubr.f32.mxu0 0.0
  %v2220 = vand.u32 %v74, 4294901760
  %v2221 = vsub.f32 %v74, %v2220
  %2222 = vmatmul.mubr.f32.gmra.mrb[0].mxu0 %v2221
  %v2223 = vpop.f32.mrb[0].mxu0
  %v2224 = vadd.f32 %v2074, %v2223
  %v2225 = vpop.f32.mrb[0].mxu0
  %2226 = vmatprep.mubr.f32.mxu0 0.0
  %v2227 = vand.u32 %v77, 4294901760
  %v2228 = vsub.f32 %v77, %v2227
  %2229 = vmatmul.mubr.f32.gmra.mrb[0].mxu0 %v2228
  %v2230 = vpop.f32.mrb[0].mxu0
  %v2231 = vadd.f32 %v2080, %v2230
  %v2232 = vpop.f32.mrb[0].mxu0
  %2233 = vdwg.mxu0
  %2234 = vmatprep.subr.mxu0 0.0
  %v2235 = vand.u32 %v1754, 4294901760
  %2236 = vmatpush1.msra.mxu0 %v2235
  %2237 = vmatprep.subr.mxu0 0.0
  %2238 = vmatpush1.msra.mxu0 0.0
  %2239 = vmatprep.subr.mxu0 0.0
  %2240 = vmatpush1.msra.mxu0 0.0
  %2241 = vmatprep.subr.mxu0 0.0
  %2242 = vmatpush1.msra.mxu0 0.0
  %2243 = vmatprep.subr.mxu0 0.0
  %2244 = vmatpush1.msra.mxu0 0.0
  %2245 = vmatprep.subr.mxu0 0.0
  %2246 = vmatpush1.msra.mxu0 0.0
  %2247 = vmatprep.subr.mxu0 0.0
  %2248 = vmatpush1.msra.mxu0 0.0
  %2249 = vmatprep.subr.mxu0 0.0
  %2250 = vmatpush1.msra.mxu0 0.0
  %2251 = vmatprep.subr.mxu0 0.0
  %2252 = vmatpush1.msra.mxu0 0.0
  %2253 = vmatprep.subr.mxu0 0.0
  %2254 = vmatpush1.msra.mxu0 0.0
  %2255 = vmatprep.subr.mxu0 0.0
  %2256 = vmatpush1.msra.mxu0 0.0
  %2257 = vmatprep.subr.mxu0 0.0
  %2258 = vmatpush1.msra.mxu0 0.0
  %2259 = vmatprep.subr.mxu0 0.0
  %2260 = vmatpush1.msra.mxu0 0.0
  %2261 = vmatprep.subr.mxu0 0.0
  %2262 = vmatpush1.msra.mxu0 0.0
  %2263 = vmatprep.subr.mxu0 0.0
  %2264 = vmatpush1.msra.mxu0 0.0
  %2265 = vmatprep.subr.mxu0 0.0
  %2266 = vmatpush1.msra.mxu0 0.0
  %2267 = vmatprep.subr.mxu0 0.0
  %2268 = vmatpush1.msra.mxu0 0.0
  %2269 = vmatprep.subr.mxu0 0.0
  %2270 = vmatpush1.msra.mxu0 0.0
  %2271 = vmatprep.subr.mxu0 0.0
  %2272 = vmatpush1.msra.mxu0 0.0
  %2273 = vmatprep.subr.mxu0 0.0
  %2274 = vmatpush1.msra.mxu0 0.0
  %2275 = vmatprep.subr.mxu0 0.0
  %2276 = vmatpush1.msra.mxu0 0.0
  %2277 = vmatprep.subr.mxu0 0.0
  %2278 = vmatpush1.msra.mxu0 0.0
  %2279 = vmatprep.subr.mxu0 0.0
  %2280 = vmatpush1.msra.mxu0 0.0
  %2281 = vmatprep.subr.mxu0 0.0
  %2282 = vmatpush1.msra.mxu0 0.0
  %2283 = vmatprep.subr.mxu0 0.0
  %2284 = vmatpush1.msra.mxu0 0.0
  %2285 = vmatprep.subr.mxu0 0.0
  %2286 = vmatpush1.msra.mxu0 0.0
  %2287 = vmatprep.subr.mxu0 0.0
  %2288 = vmatpush1.msra.mxu0 0.0
  %2289 = vmatprep.subr.mxu0 0.0
  %2290 = vmatpush1.msra.mxu0 0.0
  %2291 = vmatprep.subr.mxu0 0.0
  %2292 = vmatpush1.msra.mxu0 0.0
  %2293 = vmatprep.subr.mxu0 0.0
  %2294 = vmatpush1.msra.mxu0 0.0
  %2295 = vmatprep.subr.mxu0 0.0
  %2296 = vmatpush1.msra.mxu0 0.0
  %2297 = vmatprep.subr.mxu0 0.0
  %2298 = vmatpush1.msra.mxu0 0.0
  %2299 = vmatprep.mubr.f32.mxu0 0.0
  %v2300 = vand.u32 %v44, 4294901760
  %v2301 = vsub.f32 %v44, %v2300
  %v2302 = vand.u32 %v2301, 4294901760
  %2303 = vmatmul.mubr.f32.gmra.mrb[0].mxu0 %v2302
  %v2304 = vpop.f32.mrb[0].mxu0
  %v2305 = vadd.f32 %v2154, %v2304
  %v2306 = vpop.f32.mrb[0].mxu0
  %2307 = vmatprep.mubr.f32.mxu0 0.0
  %v2308 = vand.u32 %v47, 4294901760
  %v2309 = vsub.f32 %v47, %v2308
  %v2310 = vand.u32 %v2309, 4294901760
  %2311 = vmatmul.mubr.f32.gmra.mrb[0].mxu0 %v2310
  %v2312 = vpop.f32.mrb[0].mxu0
  %v2313 = vadd.f32 %v2161, %v2312
  %v2314 = vpop.f32.mrb[0].mxu0
  %2315 = vmatprep.mubr.f32.mxu0 0.0
  %v2316 = vand.u32 %v50, 4294901760
  %v2317 = vsub.f32 %v50, %v2316
  %v2318 = vand.u32 %v2317, 4294901760
  %2319 = vmatmul.mubr.f32.gmra.mrb[0].mxu0 %v2318
  %v2320 = vpop.f32.mrb[0].mxu0
  %v2321 = vadd.f32 %v2168, %v2320
  %v2322 = vpop.f32.mrb[0].mxu0
  %2323 = vmatprep.mubr.f32.mxu0 0.0
  %v2324 = vand.u32 %v53, 4294901760
  %v2325 = vsub.f32 %v53, %v2324
  %v2326 = vand.u32 %v2325, 4294901760
  %2327 = vmatmul.mubr.f32.gmra.mrb[0].mxu0 %v2326
  %v2328 = vpop.f32.mrb[0].mxu0
  %v2329 = vadd.f32 %v2175, %v2328
  %v2330 = vpop.f32.mrb[0].mxu0
  %2331 = vmatprep.mubr.f32.mxu0 0.0
  %v2332 = vand.u32 %v56, 4294901760
  %v2333 = vsub.f32 %v56, %v2332
  %v2334 = vand.u32 %v2333, 4294901760
  %2335 = vmatmul.mubr.f32.gmra.mrb[0].mxu0 %v2334
  %v2336 = vpop.f32.mrb[0].mxu0
  %v2337 = vadd.f32 %v2182, %v2336
  %v2338 = vpop.f32.mrb[0].mxu0
  %2339 = vmatprep.mubr.f32.mxu0 0.0
  %v2340 = vand.u32 %v59, 4294901760
  %v2341 = vsub.f32 %v59, %v2340
  %v2342 = vand.u32 %v2341, 4294901760
  %2343 = vmatmul.mubr.f32.gmra.mrb[0].mxu0 %v2342
  %v2344 = vpop.f32.mrb[0].mxu0
  %v2345 = vadd.f32 %v2189, %v2344
  %v2346 = vpop.f32.mrb[0].mxu0
  %2347 = vmatprep.mubr.f32.mxu0 0.0
  %v2348 = vand.u32 %v62, 4294901760
  %v2349 = vsub.f32 %v62, %v2348
  %v2350 = vand.u32 %v2349, 4294901760
  %2351 = vmatmul.mubr.f32.gmra.mrb[0].mxu0 %v2350
  %v2352 = vpop.f32.mrb[0].mxu0
  %v2353 = vadd.f32 %v2196, %v2352
  %v2354 = vpop.f32.mrb[0].mxu0
  %2355 = vmatprep.mubr.f32.mxu0 0.0
  %v2356 = vand.u32 %v65, 4294901760
  %v2357 = vsub.f32 %v65, %v2356
  %v2358 = vand.u32 %v2357, 4294901760
  %2359 = vmatmul.mubr.f32.gmra.mrb[0].mxu0 %v2358
  %v2360 = vpop.f32.mrb[0].mxu0
  %v2361 = vadd.f32 %v2203, %v2360
  %v2362 = vpop.f32.mrb[0].mxu0
  %2363 = vmatprep.mubr.f32.mxu0 0.0
  %v2364 = vand.u32 %v68, 4294901760
  %v2365 = vsub.f32 %v68, %v2364
  %v2366 = vand.u32 %v2365, 4294901760
  %2367 = vmatmul.mubr.f32.gmra.mrb[0].mxu0 %v2366
  %v2368 = vpop.f32.mrb[0].mxu0
  %v2369 = vadd.f32 %v2210, %v2368
  %v2370 = vpop.f32.mrb[0].mxu0
  %2371 = vmatprep.mubr.f32.mxu0 0.0
  %v2372 = vand.u32 %v71, 4294901760
  %v2373 = vsub.f32 %v71, %v2372
  %v2374 = vand.u32 %v2373, 4294901760
  %2375 = vmatmul.mubr.f32.gmra.mrb[0].mxu0 %v2374
  %v2376 = vpop.f32.mrb[0].mxu0
  %v2377 = vadd.f32 %v2217, %v2376
  %v2378 = vpop.f32.mrb[0].mxu0
  %2379 = vmatprep.mubr.f32.mxu0 0.0
  %v2380 = vand.u32 %v74, 4294901760
  %v2381 = vsub.f32 %v74, %v2380
  %v2382 = vand.u32 %v2381, 4294901760
  %2383 = vmatmul.mubr.f32.gmra.mrb[0].mxu0 %v2382
  %v2384 = vpop.f32.mrb[0].mxu0
  %v2385 = vadd.f32 %v2224, %v2384
  %v2386 = vpop.f32.mrb[0].mxu0
  %2387 = vmatprep.mubr.f32.mxu0 0.0
  %v2388 = vand.u32 %v77, 4294901760
  %v2389 = vsub.f32 %v77, %v2388
  %v2390 = vand.u32 %v2389, 4294901760
  %2391 = vmatmul.mubr.f32.gmra.mrb[0].mxu0 %v2390
  %v2392 = vpop.f32.mrb[0].mxu0
  %v2393 = vadd.f32 %v2231, %v2392
  %v2394 = vpop.f32.mrb[0].mxu0
  %2395 = vdwg.mxu0
  %2396 = vmatprep.subr.mxu0 0.0
  %v2397 = vand.u32 %v1754, 4294901760
  %v2398 = vsub.f32 %v1754, %v2397
  %v2399 = vand.u32 %v2398, 4294901760
  %2400 = vmatpush1.msra.mxu0 %v2399
  %2401 = vmatprep.subr.mxu0 0.0
  %2402 = vmatpush1.msra.mxu0 0.0
  %2403 = vmatprep.subr.mxu0 0.0
  %2404 = vmatpush1.msra.mxu0 0.0
  %2405 = vmatprep.subr.mxu0 0.0
  %2406 = vmatpush1.msra.mxu0 0.0
  %2407 = vmatprep.subr.mxu0 0.0
  %2408 = vmatpush1.msra.mxu0 0.0
  %2409 = vmatprep.subr.mxu0 0.0
  %2410 = vmatpush1.msra.mxu0 0.0
  %2411 = vmatprep.subr.mxu0 0.0
  %2412 = vmatpush1.msra.mxu0 0.0
  %2413 = vmatprep.subr.mxu0 0.0
  %2414 = vmatpush1.msra.mxu0 0.0
  %2415 = vmatprep.subr.mxu0 0.0
  %2416 = vmatpush1.msra.mxu0 0.0
  %2417 = vmatprep.subr.mxu0 0.0
  %2418 = vmatpush1.msra.mxu0 0.0
  %2419 = vmatprep.subr.mxu0 0.0
  %2420 = vmatpush1.msra.mxu0 0.0
  %2421 = vmatprep.subr.mxu0 0.0
  %2422 = vmatpush1.msra.mxu0 0.0
  %2423 = vmatprep.subr.mxu0 0.0
  %2424 = vmatpush1.msra.mxu0 0.0
  %2425 = vmatprep.subr.mxu0 0.0
  %2426 = vmatpush1.msra.mxu0 0.0
  %2427 = vmatprep.subr.mxu0 0.0
  %2428 = vmatpush1.msra.mxu0 0.0
  %2429 = vmatprep.subr.mxu0 0.0
  %2430 = vmatpush1.msra.mxu0 0.0
  %2431 = vmatprep.subr.mxu0 0.0
  %2432 = vmatpush1.msra.mxu0 0.0
  %2433 = vmatprep.subr.mxu0 0.0
  %2434 = vmatpush1.msra.mxu0 0.0
  %2435 = vmatprep.subr.mxu0 0.0
  %2436 = vmatpush1.msra.mxu0 0.0
  %2437 = vmatprep.subr.mxu0 0.0
  %2438 = vmatpush1.msra.mxu0 0.0
  %2439 = vmatprep.subr.mxu0 0.0
  %2440 = vmatpush1.msra.mxu0 0.0
  %2441 = vmatprep.subr.mxu0 0.0
  %2442 = vmatpush1.msra.mxu0 0.0
  %2443 = vmatprep.subr.mxu0 0.0
  %2444 = vmatpush1.msra.mxu0 0.0
  %2445 = vmatprep.subr.mxu0 0.0
  %2446 = vmatpush1.msra.mxu0 0.0
  %2447 = vmatprep.subr.mxu0 0.0
  %2448 = vmatpush1.msra.mxu0 0.0
  %2449 = vmatprep.subr.mxu0 0.0
  %2450 = vmatpush1.msra.mxu0 0.0
  %2451 = vmatprep.subr.mxu0 0.0
  %2452 = vmatpush1.msra.mxu0 0.0
  %2453 = vmatprep.subr.mxu0 0.0
  %2454 = vmatpush1.msra.mxu0 0.0
  %2455 = vmatprep.subr.mxu0 0.0
  %2456 = vmatpush1.msra.mxu0 0.0
  %2457 = vmatprep.subr.mxu0 0.0
  %2458 = vmatpush1.msra.mxu0 0.0
  %2459 = vmatprep.subr.mxu0 0.0
  %2460 = vmatpush1.msra.mxu0 0.0
  %2461 = vmatprep.subr.mxu0 0.0
  %2462 = vmatpush1.msra.mxu0 0.0
  %2463 = vmatprep.mubr.f32.mxu0 0.0
  %v2464 = vand.u32 %v44, 4294901760
  %2465 = vmatmul.mubr.f32.gmra.mrb[0].mxu0 %v2464
  %v2466 = vpop.f32.mrb[0].mxu0
  %v2467 = vadd.f32 %v2305, %v2466
  %v2468 = vpop.f32.mrb[0].mxu0
  %2469 = vmatprep.mubr.f32.mxu0 0.0
  %v2470 = vand.u32 %v47, 4294901760
  %2471 = vmatmul.mubr.f32.gmra.mrb[0].mxu0 %v2470
  %v2472 = vpop.f32.mrb[0].mxu0
  %v2473 = vadd.f32 %v2313, %v2472
  %v2474 = vpop.f32.mrb[0].mxu0
  %2475 = vmatprep.mubr.f32.mxu0 0.0
  %v2476 = vand.u32 %v50, 4294901760
  %2477 = vmatmul.mubr.f32.gmra.mrb[0].mxu0 %v2476
  %v2478 = vpop.f32.mrb[0].mxu0
  %v2479 = vadd.f32 %v2321, %v2478
  %v2480 = vpop.f32.mrb[0].mxu0
  %2481 = vmatprep.mubr.f32.mxu0 0.0
  %v2482 = vand.u32 %v53, 4294901760
  %2483 = vmatmul.mubr.f32.gmra.mrb[0].mxu0 %v2482
  %v2484 = vpop.f32.mrb[0].mxu0
  %v2485 = vadd.f32 %v2329, %v2484
  %v2486 = vpop.f32.mrb[0].mxu0
  %2487 = vmatprep.mubr.f32.mxu0 0.0
  %v2488 = vand.u32 %v56, 4294901760
  %2489 = vmatmul.mubr.f32.gmra.mrb[0].mxu0 %v2488
  %v2490 = vpop.f32.mrb[0].mxu0
  %v2491 = vadd.f32 %v2337, %v2490
  %v2492 = vpop.f32.mrb[0].mxu0
  %2493 = vmatprep.mubr.f32.mxu0 0.0
  %v2494 = vand.u32 %v59, 4294901760
  %2495 = vmatmul.mubr.f32.gmra.mrb[0].mxu0 %v2494
  %v2496 = vpop.f32.mrb[0].mxu0
  %v2497 = vadd.f32 %v2345, %v2496
  %v2498 = vpop.f32.mrb[0].mxu0
  %2499 = vmatprep.mubr.f32.mxu0 0.0
  %v2500 = vand.u32 %v62, 4294901760
  %2501 = vmatmul.mubr.f32.gmra.mrb[0].mxu0 %v2500
  %v2502 = vpop.f32.mrb[0].mxu0
  %v2503 = vadd.f32 %v2353, %v2502
  %v2504 = vpop.f32.mrb[0].mxu0
  %2505 = vmatprep.mubr.f32.mxu0 0.0
  %v2506 = vand.u32 %v65, 4294901760
  %2507 = vmatmul.mubr.f32.gmra.mrb[0].mxu0 %v2506
  %v2508 = vpop.f32.mrb[0].mxu0
  %v2509 = vadd.f32 %v2361, %v2508
  %v2510 = vpop.f32.mrb[0].mxu0
  %2511 = vmatprep.mubr.f32.mxu0 0.0
  %v2512 = vand.u32 %v68, 4294901760
  %2513 = vmatmul.mubr.f32.gmra.mrb[0].mxu0 %v2512
  %v2514 = vpop.f32.mrb[0].mxu0
  %v2515 = vadd.f32 %v2369, %v2514
  %v2516 = vpop.f32.mrb[0].mxu0
  %2517 = vmatprep.mubr.f32.mxu0 0.0
  %v2518 = vand.u32 %v71, 4294901760
  %2519 = vmatmul.mubr.f32.gmra.mrb[0].mxu0 %v2518
  %v2520 = vpop.f32.mrb[0].mxu0
  %v2521 = vadd.f32 %v2377, %v2520
  %v2522 = vpop.f32.mrb[0].mxu0
  %2523 = vmatprep.mubr.f32.mxu0 0.0
  %v2524 = vand.u32 %v74, 4294901760
  %2525 = vmatmul.mubr.f32.gmra.mrb[0].mxu0 %v2524
  %v2526 = vpop.f32.mrb[0].mxu0
  %v2527 = vadd.f32 %v2385, %v2526
  %v2528 = vpop.f32.mrb[0].mxu0
  %2529 = vmatprep.mubr.f32.mxu0 0.0
  %v2530 = vand.u32 %v77, 4294901760
  %2531 = vmatmul.mubr.f32.gmra.mrb[0].mxu0 %v2530
  %v2532 = vpop.f32.mrb[0].mxu0
  %v2533 = vadd.f32 %v2393, %v2532
  %v2534 = vpop.f32.mrb[0].mxu0
  %2535 = vdwg.mxu0
  %2536 = vmatprep.subr.mxu0 0.0
  %v2537 = vand.u32 %v1754, 4294901760
  %2538 = vmatpush1.msra.mxu0 %v2537
  %2539 = vmatprep.subr.mxu0 0.0
  %2540 = vmatpush1.msra.mxu0 0.0
  %2541 = vmatprep.subr.mxu0 0.0
  %2542 = vmatpush1.msra.mxu0 0.0
  %2543 = vmatprep.subr.mxu0 0.0
  %2544 = vmatpush1.msra.mxu0 0.0
  %2545 = vmatprep.subr.mxu0 0.0
  %2546 = vmatpush1.msra.mxu0 0.0
  %2547 = vmatprep.subr.mxu0 0.0
  %2548 = vmatpush1.msra.mxu0 0.0
  %2549 = vmatprep.subr.mxu0 0.0
  %2550 = vmatpush1.msra.mxu0 0.0
  %2551 = vmatprep.subr.mxu0 0.0
  %2552 = vmatpush1.msra.mxu0 0.0
  %2553 = vmatprep.subr.mxu0 0.0
  %2554 = vmatpush1.msra.mxu0 0.0
  %2555 = vmatprep.subr.mxu0 0.0
  %2556 = vmatpush1.msra.mxu0 0.0
  %2557 = vmatprep.subr.mxu0 0.0
  %2558 = vmatpush1.msra.mxu0 0.0
  %2559 = vmatprep.subr.mxu0 0.0
  %2560 = vmatpush1.msra.mxu0 0.0
  %2561 = vmatprep.subr.mxu0 0.0
  %2562 = vmatpush1.msra.mxu0 0.0
  %2563 = vmatprep.subr.mxu0 0.0
  %2564 = vmatpush1.msra.mxu0 0.0
  %2565 = vmatprep.subr.mxu0 0.0
  %2566 = vmatpush1.msra.mxu0 0.0
  %2567 = vmatprep.subr.mxu0 0.0
  %2568 = vmatpush1.msra.mxu0 0.0
  %2569 = vmatprep.subr.mxu0 0.0
  %2570 = vmatpush1.msra.mxu0 0.0
  %2571 = vmatprep.subr.mxu0 0.0
  %2572 = vmatpush1.msra.mxu0 0.0
  %2573 = vmatprep.subr.mxu0 0.0
  %2574 = vmatpush1.msra.mxu0 0.0
  %2575 = vmatprep.subr.mxu0 0.0
  %2576 = vmatpush1.msra.mxu0 0.0
  %2577 = vmatprep.subr.mxu0 0.0
  %2578 = vmatpush1.msra.mxu0 0.0
  %2579 = vmatprep.subr.mxu0 0.0
  %2580 = vmatpush1.msra.mxu0 0.0
  %2581 = vmatprep.subr.mxu0 0.0
  %2582 = vmatpush1.msra.mxu0 0.0
  %2583 = vmatprep.subr.mxu0 0.0
  %2584 = vmatpush1.msra.mxu0 0.0
  %2585 = vmatprep.subr.mxu0 0.0
  %2586 = vmatpush1.msra.mxu0 0.0
  %2587 = vmatprep.subr.mxu0 0.0
  %2588 = vmatpush1.msra.mxu0 0.0
  %2589 = vmatprep.subr.mxu0 0.0
  %2590 = vmatpush1.msra.mxu0 0.0
  %2591 = vmatprep.subr.mxu0 0.0
  %2592 = vmatpush1.msra.mxu0 0.0
  %2593 = vmatprep.subr.mxu0 0.0
  %2594 = vmatpush1.msra.mxu0 0.0
  %2595 = vmatprep.subr.mxu0 0.0
  %2596 = vmatpush1.msra.mxu0 0.0
  %2597 = vmatprep.subr.mxu0 0.0
  %2598 = vmatpush1.msra.mxu0 0.0
  %2599 = vmatprep.subr.mxu0 0.0
  %2600 = vmatpush1.msra.mxu0 0.0
  %2601 = vmatprep.mubr.f32.mxu0 0.0
  %v2602 = vand.u32 %v44, 4294901760
  %2603 = vmatmul.mubr.f32.gmra.mrb[0].mxu0 %v2602
  %v2604 = vpop.f32.mrb[0].mxu0
  %v2605 = vadd.f32 %v2467, %v2604
  %v2606 = vpop.f32.mrb[0].mxu0
  %2607 = vmatprep.mubr.f32.mxu0 0.0
  %v2608 = vand.u32 %v47, 4294901760
  %2609 = vmatmul.mubr.f32.gmra.mrb[0].mxu0 %v2608
  %v2610 = vpop.f32.mrb[0].mxu0
  %v2611 = vadd.f32 %v2473, %v2610
  %v2612 = vpop.f32.mrb[0].mxu0
  %2613 = vmatprep.mubr.f32.mxu0 0.0
  %v2614 = vand.u32 %v50, 4294901760
  %2615 = vmatmul.mubr.f32.gmra.mrb[0].mxu0 %v2614
  %v2616 = vpop.f32.mrb[0].mxu0
  %v2617 = vadd.f32 %v2479, %v2616
  %v2618 = vpop.f32.mrb[0].mxu0
  %2619 = vmatprep.mubr.f32.mxu0 0.0
  %v2620 = vand.u32 %v53, 4294901760
  %2621 = vmatmul.mubr.f32.gmra.mrb[0].mxu0 %v2620
  %v2622 = vpop.f32.mrb[0].mxu0
  %v2623 = vadd.f32 %v2485, %v2622
  %v2624 = vpop.f32.mrb[0].mxu0
  %2625 = vmatprep.mubr.f32.mxu0 0.0
  %v2626 = vand.u32 %v56, 4294901760
  %2627 = vmatmul.mubr.f32.gmra.mrb[0].mxu0 %v2626
  %v2628 = vpop.f32.mrb[0].mxu0
  %v2629 = vadd.f32 %v2491, %v2628
  %v2630 = vpop.f32.mrb[0].mxu0
  %2631 = vmatprep.mubr.f32.mxu0 0.0
  %v2632 = vand.u32 %v59, 4294901760
  %2633 = vmatmul.mubr.f32.gmra.mrb[0].mxu0 %v2632
  %v2634 = vpop.f32.mrb[0].mxu0
  %v2635 = vadd.f32 %v2497, %v2634
  %v2636 = vpop.f32.mrb[0].mxu0
  %2637 = vmatprep.mubr.f32.mxu0 0.0
  %v2638 = vand.u32 %v62, 4294901760
  %2639 = vmatmul.mubr.f32.gmra.mrb[0].mxu0 %v2638
  %v2640 = vpop.f32.mrb[0].mxu0
  %v2641 = vadd.f32 %v2503, %v2640
  %v2642 = vpop.f32.mrb[0].mxu0
  %2643 = vmatprep.mubr.f32.mxu0 0.0
  %v2644 = vand.u32 %v65, 4294901760
  %2645 = vmatmul.mubr.f32.gmra.mrb[0].mxu0 %v2644
  %v2646 = vpop.f32.mrb[0].mxu0
  %v2647 = vadd.f32 %v2509, %v2646
  %v2648 = vpop.f32.mrb[0].mxu0
  %2649 = vmatprep.mubr.f32.mxu0 0.0
  %v2650 = vand.u32 %v68, 4294901760
  %2651 = vmatmul.mubr.f32.gmra.mrb[0].mxu0 %v2650
  %v2652 = vpop.f32.mrb[0].mxu0
  %v2653 = vadd.f32 %v2515, %v2652
  %v2654 = vpop.f32.mrb[0].mxu0
  %2655 = vmatprep.mubr.f32.mxu0 0.0
  %v2656 = vand.u32 %v71, 4294901760
  %2657 = vmatmul.mubr.f32.gmra.mrb[0].mxu0 %v2656
  %v2658 = vpop.f32.mrb[0].mxu0
  %v2659 = vadd.f32 %v2521, %v2658
  %v2660 = vpop.f32.mrb[0].mxu0
  %2661 = vmatprep.mubr.f32.mxu0 0.0
  %v2662 = vand.u32 %v74, 4294901760
  %2663 = vmatmul.mubr.f32.gmra.mrb[0].mxu0 %v2662
  %v2664 = vpop.f32.mrb[0].mxu0
  %v2665 = vadd.f32 %v2527, %v2664
  %v2666 = vpop.f32.mrb[0].mxu0
  %2667 = vmatprep.mubr.f32.mxu0 0.0
  %v2668 = vand.u32 %v77, 4294901760
  %2669 = vmatmul.mubr.f32.gmra.mrb[0].mxu0 %v2668
  %v2670 = vpop.f32.mrb[0].mxu0
  %v2671 = vadd.f32 %v2533, %v2670
  %v2672 = vpop.f32.mrb[0].mxu0
  %2673 = vdwg.mxu0
  %vm2674 = vcmp.ge.f32.partialorder %v2605, -1e-06
  %vm2675 = vcmp.ge.f32.partialorder %v2611, -1e-06
  %vm2676 = vcmp.ge.f32.partialorder %v2617, -1e-06
  %vm2677 = vcmp.ge.f32.partialorder %v2623, -1e-06
  %vm2678 = vcmp.ge.f32.partialorder %v2629, -1e-06
  %vm2679 = vcmp.ge.f32.partialorder %v2635, -1e-06
  %vm2680 = vcmp.ge.f32.partialorder %v2641, -1e-06
  %vm2681 = vcmp.ge.f32.partialorder %v2647, -1e-06
  %vm2682 = vmand %vm2674, %vm2678
  %vm2683 = vmand %vm2675, %vm2679
  %vm2684 = vmand %vm2676, %vm2680
  %vm2685 = vmand %vm2677, %vm2681
  %vm2686 = vcmp.ge.f32.partialorder %v2653, -1e-06
  %vm2687 = vcmp.ge.f32.partialorder %v2659, -1e-06
  %vm2688 = vcmp.ge.f32.partialorder %v2665, -1e-06
  %vm2689 = vcmp.ge.f32.partialorder %v2671, -1e-06
  %vm2690 = vmand %vm2682, %vm2686
  %vm2691 = vmand %vm2683, %vm2687
  %vm2692 = vmand %vm2684, %vm2688
  %vm2693 = vmand %vm2685, %vm2689
  %v2694 = vsel %vm2690, %v33, 4294967295
  %v2695 = vsel %vm2691, %v34, 4294967295
  %v2696 = vsel %vm2692, %v35, 4294967295
  %v2697 = vsel %vm2693, %v36, 4294967295
  %vm2698 = vcmp.gt.s32.totalorder %v2694, %v2695
  %v2699 = vsel %vm2698, %v2694, %v2695
  %vm2700 = vcmp.gt.s32.totalorder %v2696, %v2697
  %v2701 = vsel %vm2700, %v2696, %v2697
  %vm2702 = vcmp.gt.s32.totalorder %v2699, %v2701
  %v2703 = vsel %vm2702, %v2699, %v2701
  %v2704 = vrot.slane %v2703, 4
  %vm2705 = vcmp.gt.s32.totalorder %v2703, %v2704
  %v2706 = vsel %vm2705, %v2703, %v2704
  %v2707 = vrot.slane %v2706, 2
  %vm2708 = vcmp.gt.s32.totalorder %v2706, %v2707
  %v2709 = vsel %vm2708, %v2706, %v2707
  %v2710 = vrot.slane %v2709, 1
  %vm2711 = vcmp.gt.s32.totalorder %v2709, %v2710
  %v2712 = vsel %vm2711, %v2709, %v2710
  %vm2713 = vcmp.lt.s32.totalorder %v2712, 0
  %v2714 = vsel %vm2713, 31, %v2712
  %vm2715 = vcmp.eq.s32.totalorder %v33, %v2714
  %vm2716 = vcmp.eq.s32.totalorder %v34, %v2714
  %vm2717 = vcmp.eq.s32.totalorder %v35, %v2714
  %vm2718 = vcmp.eq.s32.totalorder %v36, %v2714
  %v2719 = vsel %vm2715, 1, 0
  %v2720 = vsel %vm2716, 1, 0
  %v2721 = vsel %vm2717, 1, 0
  %v2722 = vsel %vm2718, 1, 0
  %v2723 = vcvt.s32.f32 %v2719
  %v2724 = vcvt.s32.f32 %v2720
  %v2725 = vcvt.s32.f32 %v2721
  %v2726 = vcvt.s32.f32 %v2722
  %v2728 = vsel %vm1051, %v28, 0
  %v2731 = vsel %vm1051, %v29, 0
  %2733 = vmatprep.subr.mxu0 0.0
  %v2734 = vand.u32 %v2723, 4294901760
  %2735 = vmatpush1.msra.mxu0 %v2734
  %2736 = vmatprep.subr.mxu0 0.0
  %v2737 = vand.u32 %v2724, 4294901760
  %2738 = vmatpush1.msra.mxu0 %v2737
  %2739 = vmatprep.subr.mxu0 0.0
  %v2740 = vand.u32 %v2725, 4294901760
  %2741 = vmatpush1.msra.mxu0 %v2740
  %2742 = vmatprep.subr.mxu0 0.0
  %v2743 = vand.u32 %v2726, 4294901760
  %2744 = vmatpush1.msra.mxu0 %v2743
  %2745 = vmatprep.subr.mxu0 0.0
  %2746 = vmatpush1.msra.mxu0 0.0
  %2747 = vmatprep.subr.mxu0 0.0
  %2748 = vmatpush1.msra.mxu0 0.0
  %2749 = vmatprep.subr.mxu0 0.0
  %2750 = vmatpush1.msra.mxu0 0.0
  %2751 = vmatprep.subr.mxu0 0.0
  %2752 = vmatpush1.msra.mxu0 0.0
  %2753 = vmatprep.subr.mxu0 0.0
  %2754 = vmatpush1.msra.mxu0 0.0
  %2755 = vmatprep.subr.mxu0 0.0
  %2756 = vmatpush1.msra.mxu0 0.0
  %2757 = vmatprep.subr.mxu0 0.0
  %2758 = vmatpush1.msra.mxu0 0.0
  %2759 = vmatprep.subr.mxu0 0.0
  %2760 = vmatpush1.msra.mxu0 0.0
  %2761 = vmatprep.subr.mxu0 0.0
  %2762 = vmatpush1.msra.mxu0 0.0
  %2763 = vmatprep.subr.mxu0 0.0
  %2764 = vmatpush1.msra.mxu0 0.0
  %2765 = vmatprep.subr.mxu0 0.0
  %2766 = vmatpush1.msra.mxu0 0.0
  %2767 = vmatprep.subr.mxu0 0.0
  %2768 = vmatpush1.msra.mxu0 0.0
  %2769 = vmatprep.subr.mxu0 0.0
  %2770 = vmatpush1.msra.mxu0 0.0
  %2771 = vmatprep.subr.mxu0 0.0
  %2772 = vmatpush1.msra.mxu0 0.0
  %2773 = vmatprep.subr.mxu0 0.0
  %2774 = vmatpush1.msra.mxu0 0.0
  %2775 = vmatprep.subr.mxu0 0.0
  %2776 = vmatpush1.msra.mxu0 0.0
  %2777 = vmatprep.subr.mxu0 0.0
  %2778 = vmatpush1.msra.mxu0 0.0
  %2779 = vmatprep.subr.mxu0 0.0
  %2780 = vmatpush1.msra.mxu0 0.0
  %2781 = vmatprep.subr.mxu0 0.0
  %2782 = vmatpush1.msra.mxu0 0.0
  %2783 = vmatprep.subr.mxu0 0.0
  %2784 = vmatpush1.msra.mxu0 0.0
  %2785 = vmatprep.subr.mxu0 0.0
  %2786 = vmatpush1.msra.mxu0 0.0
  %2787 = vmatprep.subr.mxu0 0.0
  %2788 = vmatpush1.msra.mxu0 0.0
  %2789 = vmatprep.subr.mxu0 0.0
  %2790 = vmatpush1.msra.mxu0 0.0
  %2791 = vmatprep.subr.mxu0 0.0
  %2792 = vmatpush1.msra.mxu0 0.0
  %2793 = vmatprep.subr.mxu0 0.0
  %2794 = vmatpush1.msra.mxu0 0.0
  %2795 = vmatprep.subr.mxu0 0.0
  %2796 = vmatpush1.msra.mxu0 0.0
  %2797 = vmatprep.subr.mxu0 0.0
  %2798 = vmatpush1.msra.mxu0 0.0
  %2799 = vmatprep.subr.mxu0 0.0
  %2800 = vmatpush1.msra.mxu0 0.0
  %2801 = vmatprep.mubr.f32.mxu0 0.0
  %v2802 = vand.u32 %v2728, 4294901760
  %v2803 = vsub.f32 %v2728, %v2802
  %v2804 = vand.u32 %v2803, 4294901760
  %v2805 = vsub.f32 %v2803, %v2804
  %v2806 = vand.u32 %v2805, 4294901760
  %2807 = vmatmul.mubr.f32.gmra.mrb[0].mxu0 %v2806
  %v2808 = vpop.f32.mrb[0].mxu0
  %v2809 = vadd.f32 0.0, %v2808
  %v2810 = vpop.f32.mrb[0].mxu0
  %2811 = vmatprep.mubr.f32.mxu0 0.0
  %v2812 = vand.u32 %v2731, 4294901760
  %v2813 = vsub.f32 %v2731, %v2812
  %v2814 = vand.u32 %v2813, 4294901760
  %v2815 = vsub.f32 %v2813, %v2814
  %v2816 = vand.u32 %v2815, 4294901760
  %2817 = vmatmul.mubr.f32.gmra.mrb[0].mxu0 %v2816
  %v2818 = vpop.f32.mrb[0].mxu0
  %v2819 = vadd.f32 0.0, %v2818
  %v2820 = vpop.f32.mrb[0].mxu0
  %2821 = vdwg.mxu0
  %2822 = vmatprep.subr.mxu0 0.0
  %v2823 = vand.u32 %v2723, 4294901760
  %v2824 = vsub.f32 %v2723, %v2823
  %v2825 = vand.u32 %v2824, 4294901760
  %v2826 = vsub.f32 %v2824, %v2825
  %v2827 = vand.u32 %v2826, 4294901760
  %2828 = vmatpush1.msra.mxu0 %v2827
  %2829 = vmatprep.subr.mxu0 0.0
  %v2830 = vand.u32 %v2724, 4294901760
  %v2831 = vsub.f32 %v2724, %v2830
  %v2832 = vand.u32 %v2831, 4294901760
  %v2833 = vsub.f32 %v2831, %v2832
  %v2834 = vand.u32 %v2833, 4294901760
  %2835 = vmatpush1.msra.mxu0 %v2834
  %2836 = vmatprep.subr.mxu0 0.0
  %v2837 = vand.u32 %v2725, 4294901760
  %v2838 = vsub.f32 %v2725, %v2837
  %v2839 = vand.u32 %v2838, 4294901760
  %v2840 = vsub.f32 %v2838, %v2839
  %v2841 = vand.u32 %v2840, 4294901760
  %2842 = vmatpush1.msra.mxu0 %v2841
  %2843 = vmatprep.subr.mxu0 0.0
  %v2844 = vand.u32 %v2726, 4294901760
  %v2845 = vsub.f32 %v2726, %v2844
  %v2846 = vand.u32 %v2845, 4294901760
  %v2847 = vsub.f32 %v2845, %v2846
  %v2848 = vand.u32 %v2847, 4294901760
  %2849 = vmatpush1.msra.mxu0 %v2848
  %2850 = vmatprep.subr.mxu0 0.0
  %2851 = vmatpush1.msra.mxu0 0.0
  %2852 = vmatprep.subr.mxu0 0.0
  %2853 = vmatpush1.msra.mxu0 0.0
  %2854 = vmatprep.subr.mxu0 0.0
  %2855 = vmatpush1.msra.mxu0 0.0
  %2856 = vmatprep.subr.mxu0 0.0
  %2857 = vmatpush1.msra.mxu0 0.0
  %2858 = vmatprep.subr.mxu0 0.0
  %2859 = vmatpush1.msra.mxu0 0.0
  %2860 = vmatprep.subr.mxu0 0.0
  %2861 = vmatpush1.msra.mxu0 0.0
  %2862 = vmatprep.subr.mxu0 0.0
  %2863 = vmatpush1.msra.mxu0 0.0
  %2864 = vmatprep.subr.mxu0 0.0
  %2865 = vmatpush1.msra.mxu0 0.0
  %2866 = vmatprep.subr.mxu0 0.0
  %2867 = vmatpush1.msra.mxu0 0.0
  %2868 = vmatprep.subr.mxu0 0.0
  %2869 = vmatpush1.msra.mxu0 0.0
  %2870 = vmatprep.subr.mxu0 0.0
  %2871 = vmatpush1.msra.mxu0 0.0
  %2872 = vmatprep.subr.mxu0 0.0
  %2873 = vmatpush1.msra.mxu0 0.0
  %2874 = vmatprep.subr.mxu0 0.0
  %2875 = vmatpush1.msra.mxu0 0.0
  %2876 = vmatprep.subr.mxu0 0.0
  %2877 = vmatpush1.msra.mxu0 0.0
  %2878 = vmatprep.subr.mxu0 0.0
  %2879 = vmatpush1.msra.mxu0 0.0
  %2880 = vmatprep.subr.mxu0 0.0
  %2881 = vmatpush1.msra.mxu0 0.0
  %2882 = vmatprep.subr.mxu0 0.0
  %2883 = vmatpush1.msra.mxu0 0.0
  %2884 = vmatprep.subr.mxu0 0.0
  %2885 = vmatpush1.msra.mxu0 0.0
  %2886 = vmatprep.subr.mxu0 0.0
  %2887 = vmatpush1.msra.mxu0 0.0
  %2888 = vmatprep.subr.mxu0 0.0
  %2889 = vmatpush1.msra.mxu0 0.0
  %2890 = vmatprep.subr.mxu0 0.0
  %2891 = vmatpush1.msra.mxu0 0.0
  %2892 = vmatprep.subr.mxu0 0.0
  %2893 = vmatpush1.msra.mxu0 0.0
  %2894 = vmatprep.subr.mxu0 0.0
  %2895 = vmatpush1.msra.mxu0 0.0
  %2896 = vmatprep.subr.mxu0 0.0
  %2897 = vmatpush1.msra.mxu0 0.0
  %2898 = vmatprep.subr.mxu0 0.0
  %2899 = vmatpush1.msra.mxu0 0.0
  %2900 = vmatprep.subr.mxu0 0.0
  %2901 = vmatpush1.msra.mxu0 0.0
  %2902 = vmatprep.subr.mxu0 0.0
  %2903 = vmatpush1.msra.mxu0 0.0
  %2904 = vmatprep.subr.mxu0 0.0
  %2905 = vmatpush1.msra.mxu0 0.0
  %2906 = vmatprep.mubr.f32.mxu0 0.0
  %v2907 = vand.u32 %v2728, 4294901760
  %2908 = vmatmul.mubr.f32.gmra.mrb[0].mxu0 %v2907
  %v2909 = vpop.f32.mrb[0].mxu0
  %v2910 = vadd.f32 %v2809, %v2909
  %v2911 = vpop.f32.mrb[0].mxu0
  %2912 = vmatprep.mubr.f32.mxu0 0.0
  %v2913 = vand.u32 %v2731, 4294901760
  %2914 = vmatmul.mubr.f32.gmra.mrb[0].mxu0 %v2913
  %v2915 = vpop.f32.mrb[0].mxu0
  %v2916 = vadd.f32 %v2819, %v2915
  %v2917 = vpop.f32.mrb[0].mxu0
  %2918 = vdwg.mxu0
  %2919 = vmatprep.subr.mxu0 0.0
  %v2920 = vand.u32 %v2723, 4294901760
  %v2921 = vsub.f32 %v2723, %v2920
  %2922 = vmatpush1.msra.mxu0 %v2921
  %2923 = vmatprep.subr.mxu0 0.0
  %v2924 = vand.u32 %v2724, 4294901760
  %v2925 = vsub.f32 %v2724, %v2924
  %2926 = vmatpush1.msra.mxu0 %v2925
  %2927 = vmatprep.subr.mxu0 0.0
  %v2928 = vand.u32 %v2725, 4294901760
  %v2929 = vsub.f32 %v2725, %v2928
  %2930 = vmatpush1.msra.mxu0 %v2929
  %2931 = vmatprep.subr.mxu0 0.0
  %v2932 = vand.u32 %v2726, 4294901760
  %v2933 = vsub.f32 %v2726, %v2932
  %2934 = vmatpush1.msra.mxu0 %v2933
  %2935 = vmatprep.subr.mxu0 0.0
  %2936 = vmatpush1.msra.mxu0 0.0
  %2937 = vmatprep.subr.mxu0 0.0
  %2938 = vmatpush1.msra.mxu0 0.0
  %2939 = vmatprep.subr.mxu0 0.0
  %2940 = vmatpush1.msra.mxu0 0.0
  %2941 = vmatprep.subr.mxu0 0.0
  %2942 = vmatpush1.msra.mxu0 0.0
  %2943 = vmatprep.subr.mxu0 0.0
  %2944 = vmatpush1.msra.mxu0 0.0
  %2945 = vmatprep.subr.mxu0 0.0
  %2946 = vmatpush1.msra.mxu0 0.0
  %2947 = vmatprep.subr.mxu0 0.0
  %2948 = vmatpush1.msra.mxu0 0.0
  %2949 = vmatprep.subr.mxu0 0.0
  %2950 = vmatpush1.msra.mxu0 0.0
  %2951 = vmatprep.subr.mxu0 0.0
  %2952 = vmatpush1.msra.mxu0 0.0
  %2953 = vmatprep.subr.mxu0 0.0
  %2954 = vmatpush1.msra.mxu0 0.0
  %2955 = vmatprep.subr.mxu0 0.0
  %2956 = vmatpush1.msra.mxu0 0.0
  %2957 = vmatprep.subr.mxu0 0.0
  %2958 = vmatpush1.msra.mxu0 0.0
  %2959 = vmatprep.subr.mxu0 0.0
  %2960 = vmatpush1.msra.mxu0 0.0
  %2961 = vmatprep.subr.mxu0 0.0
  %2962 = vmatpush1.msra.mxu0 0.0
  %2963 = vmatprep.subr.mxu0 0.0
  %2964 = vmatpush1.msra.mxu0 0.0
  %2965 = vmatprep.subr.mxu0 0.0
  %2966 = vmatpush1.msra.mxu0 0.0
  %2967 = vmatprep.subr.mxu0 0.0
  %2968 = vmatpush1.msra.mxu0 0.0
  %2969 = vmatprep.subr.mxu0 0.0
  %2970 = vmatpush1.msra.mxu0 0.0
  %2971 = vmatprep.subr.mxu0 0.0
  %2972 = vmatpush1.msra.mxu0 0.0
  %2973 = vmatprep.subr.mxu0 0.0
  %2974 = vmatpush1.msra.mxu0 0.0
  %2975 = vmatprep.subr.mxu0 0.0
  %2976 = vmatpush1.msra.mxu0 0.0
  %2977 = vmatprep.subr.mxu0 0.0
  %2978 = vmatpush1.msra.mxu0 0.0
  %2979 = vmatprep.subr.mxu0 0.0
  %2980 = vmatpush1.msra.mxu0 0.0
  %2981 = vmatprep.subr.mxu0 0.0
  %2982 = vmatpush1.msra.mxu0 0.0
  %2983 = vmatprep.subr.mxu0 0.0
  %2984 = vmatpush1.msra.mxu0 0.0
  %2985 = vmatprep.subr.mxu0 0.0
  %2986 = vmatpush1.msra.mxu0 0.0
  %2987 = vmatprep.subr.mxu0 0.0
  %2988 = vmatpush1.msra.mxu0 0.0
  %2989 = vmatprep.subr.mxu0 0.0
  %2990 = vmatpush1.msra.mxu0 0.0
  %2991 = vmatprep.mubr.f32.mxu0 0.0
  %v2992 = vand.u32 %v2728, 4294901760
  %v2993 = vsub.f32 %v2728, %v2992
  %2994 = vmatmul.mubr.f32.gmra.mrb[0].mxu0 %v2993
  %v2995 = vpop.f32.mrb[0].mxu0
  %v2996 = vadd.f32 %v2910, %v2995
  %v2997 = vpop.f32.mrb[0].mxu0
  %2998 = vmatprep.mubr.f32.mxu0 0.0
  %v2999 = vand.u32 %v2731, 4294901760
  %v3000 = vsub.f32 %v2731, %v2999
  %3001 = vmatmul.mubr.f32.gmra.mrb[0].mxu0 %v3000
  %v3002 = vpop.f32.mrb[0].mxu0
  %v3003 = vadd.f32 %v2916, %v3002
  %v3004 = vpop.f32.mrb[0].mxu0
  %3005 = vdwg.mxu0
  %3006 = vmatprep.subr.mxu0 0.0
  %v3007 = vand.u32 %v2723, 4294901760
  %3008 = vmatpush1.msra.mxu0 %v3007
  %3009 = vmatprep.subr.mxu0 0.0
  %v3010 = vand.u32 %v2724, 4294901760
  %3011 = vmatpush1.msra.mxu0 %v3010
  %3012 = vmatprep.subr.mxu0 0.0
  %v3013 = vand.u32 %v2725, 4294901760
  %3014 = vmatpush1.msra.mxu0 %v3013
  %3015 = vmatprep.subr.mxu0 0.0
  %v3016 = vand.u32 %v2726, 4294901760
  %3017 = vmatpush1.msra.mxu0 %v3016
  %3018 = vmatprep.subr.mxu0 0.0
  %3019 = vmatpush1.msra.mxu0 0.0
  %3020 = vmatprep.subr.mxu0 0.0
  %3021 = vmatpush1.msra.mxu0 0.0
  %3022 = vmatprep.subr.mxu0 0.0
  %3023 = vmatpush1.msra.mxu0 0.0
  %3024 = vmatprep.subr.mxu0 0.0
  %3025 = vmatpush1.msra.mxu0 0.0
  %3026 = vmatprep.subr.mxu0 0.0
  %3027 = vmatpush1.msra.mxu0 0.0
  %3028 = vmatprep.subr.mxu0 0.0
  %3029 = vmatpush1.msra.mxu0 0.0
  %3030 = vmatprep.subr.mxu0 0.0
  %3031 = vmatpush1.msra.mxu0 0.0
  %3032 = vmatprep.subr.mxu0 0.0
  %3033 = vmatpush1.msra.mxu0 0.0
  %3034 = vmatprep.subr.mxu0 0.0
  %3035 = vmatpush1.msra.mxu0 0.0
  %3036 = vmatprep.subr.mxu0 0.0
  %3037 = vmatpush1.msra.mxu0 0.0
  %3038 = vmatprep.subr.mxu0 0.0
  %3039 = vmatpush1.msra.mxu0 0.0
  %3040 = vmatprep.subr.mxu0 0.0
  %3041 = vmatpush1.msra.mxu0 0.0
  %3042 = vmatprep.subr.mxu0 0.0
  %3043 = vmatpush1.msra.mxu0 0.0
  %3044 = vmatprep.subr.mxu0 0.0
  %3045 = vmatpush1.msra.mxu0 0.0
  %3046 = vmatprep.subr.mxu0 0.0
  %3047 = vmatpush1.msra.mxu0 0.0
  %3048 = vmatprep.subr.mxu0 0.0
  %3049 = vmatpush1.msra.mxu0 0.0
  %3050 = vmatprep.subr.mxu0 0.0
  %3051 = vmatpush1.msra.mxu0 0.0
  %3052 = vmatprep.subr.mxu0 0.0
  %3053 = vmatpush1.msra.mxu0 0.0
  %3054 = vmatprep.subr.mxu0 0.0
  %3055 = vmatpush1.msra.mxu0 0.0
  %3056 = vmatprep.subr.mxu0 0.0
  %3057 = vmatpush1.msra.mxu0 0.0
  %3058 = vmatprep.subr.mxu0 0.0
  %3059 = vmatpush1.msra.mxu0 0.0
  %3060 = vmatprep.subr.mxu0 0.0
  %3061 = vmatpush1.msra.mxu0 0.0
  %3062 = vmatprep.subr.mxu0 0.0
  %3063 = vmatpush1.msra.mxu0 0.0
  %3064 = vmatprep.subr.mxu0 0.0
  %3065 = vmatpush1.msra.mxu0 0.0
  %3066 = vmatprep.subr.mxu0 0.0
  %3067 = vmatpush1.msra.mxu0 0.0
  %3068 = vmatprep.subr.mxu0 0.0
  %3069 = vmatpush1.msra.mxu0 0.0
  %3070 = vmatprep.subr.mxu0 0.0
  %3071 = vmatpush1.msra.mxu0 0.0
  %3072 = vmatprep.subr.mxu0 0.0
  %3073 = vmatpush1.msra.mxu0 0.0
  %3074 = vmatprep.mubr.f32.mxu0 0.0
  %v3075 = vand.u32 %v2728, 4294901760
  %v3076 = vsub.f32 %v2728, %v3075
  %v3077 = vand.u32 %v3076, 4294901760
  %3078 = vmatmul.mubr.f32.gmra.mrb[0].mxu0 %v3077
  %v3079 = vpop.f32.mrb[0].mxu0
  %v3080 = vadd.f32 %v2996, %v3079
  %v3081 = vpop.f32.mrb[0].mxu0
  %3082 = vmatprep.mubr.f32.mxu0 0.0
  %v3083 = vand.u32 %v2731, 4294901760
  %v3084 = vsub.f32 %v2731, %v3083
  %v3085 = vand.u32 %v3084, 4294901760
  %3086 = vmatmul.mubr.f32.gmra.mrb[0].mxu0 %v3085
  %v3087 = vpop.f32.mrb[0].mxu0
  %v3088 = vadd.f32 %v3003, %v3087
  %v3089 = vpop.f32.mrb[0].mxu0
  %3090 = vdwg.mxu0
  %3091 = vmatprep.subr.mxu0 0.0
  %v3092 = vand.u32 %v2723, 4294901760
  %v3093 = vsub.f32 %v2723, %v3092
  %v3094 = vand.u32 %v3093, 4294901760
  %3095 = vmatpush1.msra.mxu0 %v3094
  %3096 = vmatprep.subr.mxu0 0.0
  %v3097 = vand.u32 %v2724, 4294901760
  %v3098 = vsub.f32 %v2724, %v3097
  %v3099 = vand.u32 %v3098, 4294901760
  %3100 = vmatpush1.msra.mxu0 %v3099
  %3101 = vmatprep.subr.mxu0 0.0
  %v3102 = vand.u32 %v2725, 4294901760
  %v3103 = vsub.f32 %v2725, %v3102
  %v3104 = vand.u32 %v3103, 4294901760
  %3105 = vmatpush1.msra.mxu0 %v3104
  %3106 = vmatprep.subr.mxu0 0.0
  %v3107 = vand.u32 %v2726, 4294901760
  %v3108 = vsub.f32 %v2726, %v3107
  %v3109 = vand.u32 %v3108, 4294901760
  %3110 = vmatpush1.msra.mxu0 %v3109
  %3111 = vmatprep.subr.mxu0 0.0
  %3112 = vmatpush1.msra.mxu0 0.0
  %3113 = vmatprep.subr.mxu0 0.0
  %3114 = vmatpush1.msra.mxu0 0.0
  %3115 = vmatprep.subr.mxu0 0.0
  %3116 = vmatpush1.msra.mxu0 0.0
  %3117 = vmatprep.subr.mxu0 0.0
  %3118 = vmatpush1.msra.mxu0 0.0
  %3119 = vmatprep.subr.mxu0 0.0
  %3120 = vmatpush1.msra.mxu0 0.0
  %3121 = vmatprep.subr.mxu0 0.0
  %3122 = vmatpush1.msra.mxu0 0.0
  %3123 = vmatprep.subr.mxu0 0.0
  %3124 = vmatpush1.msra.mxu0 0.0
  %3125 = vmatprep.subr.mxu0 0.0
  %3126 = vmatpush1.msra.mxu0 0.0
  %3127 = vmatprep.subr.mxu0 0.0
  %3128 = vmatpush1.msra.mxu0 0.0
  %3129 = vmatprep.subr.mxu0 0.0
  %3130 = vmatpush1.msra.mxu0 0.0
  %3131 = vmatprep.subr.mxu0 0.0
  %3132 = vmatpush1.msra.mxu0 0.0
  %3133 = vmatprep.subr.mxu0 0.0
  %3134 = vmatpush1.msra.mxu0 0.0
  %3135 = vmatprep.subr.mxu0 0.0
  %3136 = vmatpush1.msra.mxu0 0.0
  %3137 = vmatprep.subr.mxu0 0.0
  %3138 = vmatpush1.msra.mxu0 0.0
  %3139 = vmatprep.subr.mxu0 0.0
  %3140 = vmatpush1.msra.mxu0 0.0
  %3141 = vmatprep.subr.mxu0 0.0
  %3142 = vmatpush1.msra.mxu0 0.0
  %3143 = vmatprep.subr.mxu0 0.0
  %3144 = vmatpush1.msra.mxu0 0.0
  %3145 = vmatprep.subr.mxu0 0.0
  %3146 = vmatpush1.msra.mxu0 0.0
  %3147 = vmatprep.subr.mxu0 0.0
  %3148 = vmatpush1.msra.mxu0 0.0
  %3149 = vmatprep.subr.mxu0 0.0
  %3150 = vmatpush1.msra.mxu0 0.0
  %3151 = vmatprep.subr.mxu0 0.0
  %3152 = vmatpush1.msra.mxu0 0.0
  %3153 = vmatprep.subr.mxu0 0.0
  %3154 = vmatpush1.msra.mxu0 0.0
  %3155 = vmatprep.subr.mxu0 0.0
  %3156 = vmatpush1.msra.mxu0 0.0
  %3157 = vmatprep.subr.mxu0 0.0
  %3158 = vmatpush1.msra.mxu0 0.0
  %3159 = vmatprep.subr.mxu0 0.0
  %3160 = vmatpush1.msra.mxu0 0.0
  %3161 = vmatprep.subr.mxu0 0.0
  %3162 = vmatpush1.msra.mxu0 0.0
  %3163 = vmatprep.subr.mxu0 0.0
  %3164 = vmatpush1.msra.mxu0 0.0
  %3165 = vmatprep.subr.mxu0 0.0
  %3166 = vmatpush1.msra.mxu0 0.0
  %3167 = vmatprep.mubr.f32.mxu0 0.0
  %v3168 = vand.u32 %v2728, 4294901760
  %3169 = vmatmul.mubr.f32.gmra.mrb[0].mxu0 %v3168
  %v3170 = vpop.f32.mrb[0].mxu0
  %v3171 = vadd.f32 %v3080, %v3170
  %v3172 = vpop.f32.mrb[0].mxu0
  %3173 = vmatprep.mubr.f32.mxu0 0.0
  %v3174 = vand.u32 %v2731, 4294901760
  %3175 = vmatmul.mubr.f32.gmra.mrb[0].mxu0 %v3174
  %v3176 = vpop.f32.mrb[0].mxu0
  %v3177 = vadd.f32 %v3088, %v3176
  %v3178 = vpop.f32.mrb[0].mxu0
  %3179 = vdwg.mxu0
  %3180 = vmatprep.subr.mxu0 0.0
  %v3181 = vand.u32 %v2723, 4294901760
  %3182 = vmatpush1.msra.mxu0 %v3181
  %3183 = vmatprep.subr.mxu0 0.0
  %v3184 = vand.u32 %v2724, 4294901760
  %3185 = vmatpush1.msra.mxu0 %v3184
  %3186 = vmatprep.subr.mxu0 0.0
  %v3187 = vand.u32 %v2725, 4294901760
  %3188 = vmatpush1.msra.mxu0 %v3187
  %3189 = vmatprep.subr.mxu0 0.0
  %v3190 = vand.u32 %v2726, 4294901760
  %3191 = vmatpush1.msra.mxu0 %v3190
  %3192 = vmatprep.subr.mxu0 0.0
  %3193 = vmatpush1.msra.mxu0 0.0
  %3194 = vmatprep.subr.mxu0 0.0
  %3195 = vmatpush1.msra.mxu0 0.0
  %3196 = vmatprep.subr.mxu0 0.0
  %3197 = vmatpush1.msra.mxu0 0.0
  %3198 = vmatprep.subr.mxu0 0.0
  %3199 = vmatpush1.msra.mxu0 0.0
  %3200 = vmatprep.subr.mxu0 0.0
  %3201 = vmatpush1.msra.mxu0 0.0
  %3202 = vmatprep.subr.mxu0 0.0
  %3203 = vmatpush1.msra.mxu0 0.0
  %3204 = vmatprep.subr.mxu0 0.0
  %3205 = vmatpush1.msra.mxu0 0.0
  %3206 = vmatprep.subr.mxu0 0.0
  %3207 = vmatpush1.msra.mxu0 0.0
  %3208 = vmatprep.subr.mxu0 0.0
  %3209 = vmatpush1.msra.mxu0 0.0
  %3210 = vmatprep.subr.mxu0 0.0
  %3211 = vmatpush1.msra.mxu0 0.0
  %3212 = vmatprep.subr.mxu0 0.0
  %3213 = vmatpush1.msra.mxu0 0.0
  %3214 = vmatprep.subr.mxu0 0.0
  %3215 = vmatpush1.msra.mxu0 0.0
  %3216 = vmatprep.subr.mxu0 0.0
  %3217 = vmatpush1.msra.mxu0 0.0
  %3218 = vmatprep.subr.mxu0 0.0
  %3219 = vmatpush1.msra.mxu0 0.0
  %3220 = vmatprep.subr.mxu0 0.0
  %3221 = vmatpush1.msra.mxu0 0.0
  %3222 = vmatprep.subr.mxu0 0.0
  %3223 = vmatpush1.msra.mxu0 0.0
  %3224 = vmatprep.subr.mxu0 0.0
  %3225 = vmatpush1.msra.mxu0 0.0
  %3226 = vmatprep.subr.mxu0 0.0
  %3227 = vmatpush1.msra.mxu0 0.0
  %3228 = vmatprep.subr.mxu0 0.0
  %3229 = vmatpush1.msra.mxu0 0.0
  %3230 = vmatprep.subr.mxu0 0.0
  %3231 = vmatpush1.msra.mxu0 0.0
  %3232 = vmatprep.subr.mxu0 0.0
  %3233 = vmatpush1.msra.mxu0 0.0
  %3234 = vmatprep.subr.mxu0 0.0
  %3235 = vmatpush1.msra.mxu0 0.0
  %3236 = vmatprep.subr.mxu0 0.0
  %3237 = vmatpush1.msra.mxu0 0.0
  %3238 = vmatprep.subr.mxu0 0.0
  %3239 = vmatpush1.msra.mxu0 0.0
  %3240 = vmatprep.subr.mxu0 0.0
  %3241 = vmatpush1.msra.mxu0 0.0
  %3242 = vmatprep.subr.mxu0 0.0
  %3243 = vmatpush1.msra.mxu0 0.0
  %3244 = vmatprep.subr.mxu0 0.0
  %3245 = vmatpush1.msra.mxu0 0.0
  %3246 = vmatprep.subr.mxu0 0.0
  %3247 = vmatpush1.msra.mxu0 0.0
  %3248 = vmatprep.mubr.f32.mxu0 0.0
  %v3249 = vand.u32 %v2728, 4294901760
  %3250 = vmatmul.mubr.f32.gmra.mrb[0].mxu0 %v3249
  %v3251 = vpop.f32.mrb[0].mxu0
  %v3252 = vadd.f32 %v3171, %v3251
  %v3253 = vpop.f32.mrb[0].mxu0
  %3254 = vmatprep.mubr.f32.mxu0 0.0
  %v3255 = vand.u32 %v2731, 4294901760
  %3256 = vmatmul.mubr.f32.gmra.mrb[0].mxu0 %v3255
  %v3257 = vpop.f32.mrb[0].mxu0
  %v3258 = vadd.f32 %v3177, %v3257
  %v3259 = vpop.f32.mrb[0].mxu0
  %3260 = vdwg.mxu0
  %v3262 = vrot.slane %v3252, 4
  %v3264 = vsub.f32 %v1651, %v3262
  %v3265 = vrot.slane %v3252, 3
  %v3267 = vsub.f32 %v37, %v3265
  %v3269 = vrot.slane %v3267, 4
  %v3271 = vmul.f32 %v3264, %v3269
  %v3272 = vrot.slane %v3252, 1
  %v3274 = vsub.f32 %v37, %v3272
  %v3275 = vrot.slane %v3252, 6
  %v3277 = vsub.f32 %v1651, %v3275
  %v3279 = vrot.slane %v3277, 4
  %v3281 = vmul.f32 %v3274, %v3279
  %v3283 = vrot.slane %v3281, 4
  %v3285 = vsub.f32 %v3271, %v3283
  %v3286 = vand.u32 2147483647, %v3285
  %v3287 = vmul.f32 %v3286, 0.5
  %v3288 = vrot.slane %v3252, 2
  %v3290 = vsub.f32 %v1651, %v3288
  %v3291 = vmul.f32 %v3290, %v3269
  %v3292 = vrot.slane %v3252, 7
  %v3294 = vsub.f32 %v37, %v3292
  %v3295 = vmul.f32 %v3294, %v3279
  %v3297 = vrot.slane %v3295, 4
  %v3299 = vsub.f32 %v3291, %v3297
  %v3300 = vand.u32 2147483647, %v3299
  %v3301 = vmul.f32 %v3300, 0.5
  %v3303 = vrot.slane %v3274, 4
  %v3305 = vmul.f32 %v3290, %v3303
  %v3307 = vrot.slane %v3264, 4
  %v3309 = vmul.f32 %v3294, %v3307
  %v3311 = vrot.slane %v3309, 4
  %v3313 = vsub.f32 %v3305, %v3311
  %v3314 = vand.u32 2147483647, %v3313
  %v3315 = vmul.f32 %v3314, 0.5
  %v3316 = vadd.f32 %v3287, %v3301
  %v3317 = vadd.f32 %v3316, %v3315
  %v3318 = vrcp.pop %v3317
  %v3319 = vmul.f32 %v3252, %v3287
  %v3321 = vrot.slane %v3301, 6
  %v3323 = vmul.f32 %v3258, %v3321
  %v3325 = vrot.slane %v3323, 2
  %v3327 = vadd.f32 %v3319, %v3325
  %v3329 = vrot.slane %v3315, 4
  %v3331 = vmul.f32 %v3258, %v3329
  %v3333 = vrot.slane %v3331, 4
  %v3335 = vadd.f32 %v3327, %v3333
  %v3336 = vmul.f32 %v3335, %v3318
  %v3338 = vrot.slane %v3287, 7
  %v3340 = vmul.f32 %v3252, %v3338
  %v3341 = vrot.slane %v3301, 5
  %v3343 = vmul.f32 %v3258, %v3341
  %v3345 = vrot.slane %v3343, 2
  %v3347 = vadd.f32 %v3340, %v3345
  %v3348 = vrot.slane %v3315, 3
  %v3350 = vmul.f32 %v3258, %v3348
  %v3352 = vrot.slane %v3350, 4
  %v3354 = vadd.f32 %v3347, %v3352
  %v3356 = vrot.slane %v3318, 7
  %v3358 = vmul.f32 %v3354, %v3356
  %v3359 = vsub.f32 %v3252, %v3275
  %v3360 = vsub.f32 %v3252, %v3262
  %v3361 = vsub.f32 %v3258, %v3275
  %v3362 = vsub.f32 %v3258, %v3262
  %v3364 = vrot.slane %v3360, 3
  %v3366 = vmul.f32 %v3359, %v3364
  %v3368 = vrot.slane %v3359, 7
  %v3370 = vmul.f32 %v3360, %v3368
  %v3372 = vrot.slane %v3370, 2
  %v3374 = vsub.f32 %v3366, %v3372
  %v3375 = vrcp.pop %v3374
  %v3377 = vrot.slane %v3375, 5
  %v3379 = vmul.f32 %v3360, %v3377
  %v3380 = vsub.f32 0.0, %v3360
  %v3381 = vrot.slane %v3375, 6
  %v3383 = vmul.f32 %v3380, %v3381
  %v3384 = vsub.f32 0.0, %v3359
  %v3385 = vrot.slane %v3375, 7
  %v3387 = vmul.f32 %v3384, %v3385
  %v3388 = vmul.f32 %v3359, %v3375
  %v3390 = vrot.slane %v3379, 5
  %v3392 = vmul.f32 %v3361, %v3390
  %v3394 = vrot.slane %v3387, 1
  %v3396 = vmul.f32 %v3362, %v3394
  %v3398 = vrot.slane %v3396, 2
  %v3400 = vadd.f32 %v3392, %v3398
  %v3402 = vrot.slane %v3383, 4
  %v3404 = vmul.f32 %v3361, %v3402
  %v3405 = vmul.f32 %v3362, %v3388
  %v3407 = vrot.slane %v3405, 2
  %v3409 = vadd.f32 %v3404, %v3407
  %v3410 = vrot.slane %v3379, 4
  %v3412 = vmul.f32 %v3361, %v3410
  %v3413 = vmul.f32 %v3362, %v3387
  %v3415 = vrot.slane %v3413, 2
  %v3417 = vadd.f32 %v3412, %v3415
  %v3418 = vrot.slane %v3383, 3
  %v3420 = vmul.f32 %v3361, %v3418
  %v3422 = vrot.slane %v3388, 7
  %v3424 = vmul.f32 %v3362, %v3422
  %v3426 = vrot.slane %v3424, 2
  %v3428 = vadd.f32 %v3420, %v3426
  %v3430 = vrot.slane %v1672, 7
  %v3433 = vrot.slane %v3358, 6
  %v3435 = vsel %vm1751, %v3430, %v3433
  %v3436 = vsel %vm38, %v3435, 1.0
  %v3437 = vsel %vm40, %v3436, 0.0
  %3438 = vmatprep.subr.mxu0 0.0
  %v3439 = vand.u32 %v3437, 4294901760
  %3440 = vmatpush1.msra.mxu0 %v3439
  %3441 = vmatprep.subr.mxu0 0.0
  %3442 = vmatpush1.msra.mxu0 0.0
  %3443 = vmatprep.subr.mxu0 0.0
  %3444 = vmatpush1.msra.mxu0 0.0
  %3445 = vmatprep.subr.mxu0 0.0
  %3446 = vmatpush1.msra.mxu0 0.0
  %3447 = vmatprep.subr.mxu0 0.0
  %3448 = vmatpush1.msra.mxu0 0.0
  %3449 = vmatprep.subr.mxu0 0.0
  %3450 = vmatpush1.msra.mxu0 0.0
  %3451 = vmatprep.subr.mxu0 0.0
  %3452 = vmatpush1.msra.mxu0 0.0
  %3453 = vmatprep.subr.mxu0 0.0
  %3454 = vmatpush1.msra.mxu0 0.0
  %3455 = vmatprep.subr.mxu0 0.0
  %3456 = vmatpush1.msra.mxu0 0.0
  %3457 = vmatprep.subr.mxu0 0.0
  %3458 = vmatpush1.msra.mxu0 0.0
  %3459 = vmatprep.subr.mxu0 0.0
  %3460 = vmatpush1.msra.mxu0 0.0
  %3461 = vmatprep.subr.mxu0 0.0
  %3462 = vmatpush1.msra.mxu0 0.0
  %3463 = vmatprep.subr.mxu0 0.0
  %3464 = vmatpush1.msra.mxu0 0.0
  %3465 = vmatprep.subr.mxu0 0.0
  %3466 = vmatpush1.msra.mxu0 0.0
  %3467 = vmatprep.subr.mxu0 0.0
  %3468 = vmatpush1.msra.mxu0 0.0
  %3469 = vmatprep.subr.mxu0 0.0
  %3470 = vmatpush1.msra.mxu0 0.0
  %3471 = vmatprep.subr.mxu0 0.0
  %3472 = vmatpush1.msra.mxu0 0.0
  %3473 = vmatprep.subr.mxu0 0.0
  %3474 = vmatpush1.msra.mxu0 0.0
  %3475 = vmatprep.subr.mxu0 0.0
  %3476 = vmatpush1.msra.mxu0 0.0
  %3477 = vmatprep.subr.mxu0 0.0
  %3478 = vmatpush1.msra.mxu0 0.0
  %3479 = vmatprep.subr.mxu0 0.0
  %3480 = vmatpush1.msra.mxu0 0.0
  %3481 = vmatprep.subr.mxu0 0.0
  %3482 = vmatpush1.msra.mxu0 0.0
  %3483 = vmatprep.subr.mxu0 0.0
  %3484 = vmatpush1.msra.mxu0 0.0
  %3485 = vmatprep.subr.mxu0 0.0
  %3486 = vmatpush1.msra.mxu0 0.0
  %3487 = vmatprep.subr.mxu0 0.0
  %3488 = vmatpush1.msra.mxu0 0.0
  %3489 = vmatprep.subr.mxu0 0.0
  %3490 = vmatpush1.msra.mxu0 0.0
  %3491 = vmatprep.subr.mxu0 0.0
  %3492 = vmatpush1.msra.mxu0 0.0
  %3493 = vmatprep.subr.mxu0 0.0
  %3494 = vmatpush1.msra.mxu0 0.0
  %3495 = vmatprep.subr.mxu0 0.0
  %3496 = vmatpush1.msra.mxu0 0.0
  %3497 = vmatprep.subr.mxu0 0.0
  %3498 = vmatpush1.msra.mxu0 0.0
  %3499 = vmatprep.subr.mxu0 0.0
  %3500 = vmatpush1.msra.mxu0 0.0
  %3501 = vmatprep.subr.mxu0 0.0
  %3502 = vmatpush1.msra.mxu0 0.0
  %3503 = vmatprep.mubr.f32.mxu0 0.0
  %v3504 = vand.u32 %v44, 4294901760
  %v3505 = vsub.f32 %v44, %v3504
  %v3506 = vand.u32 %v3505, 4294901760
  %v3507 = vsub.f32 %v3505, %v3506
  %v3508 = vand.u32 %v3507, 4294901760
  %3509 = vmatmul.mubr.f32.gmra.mrb[0].mxu0 %v3508
  %v3510 = vpop.f32.mrb[0].mxu0
  %v3511 = vadd.f32 0.0, %v3510
  %v3512 = vpop.f32.mrb[0].mxu0
  %3513 = vmatprep.mubr.f32.mxu0 0.0
  %v3514 = vand.u32 %v47, 4294901760
  %v3515 = vsub.f32 %v47, %v3514
  %v3516 = vand.u32 %v3515, 4294901760
  %v3517 = vsub.f32 %v3515, %v3516
  %v3518 = vand.u32 %v3517, 4294901760
  %3519 = vmatmul.mubr.f32.gmra.mrb[0].mxu0 %v3518
  %v3520 = vpop.f32.mrb[0].mxu0
  %v3521 = vadd.f32 0.0, %v3520
  %v3522 = vpop.f32.mrb[0].mxu0
  %3523 = vmatprep.mubr.f32.mxu0 0.0
  %v3524 = vand.u32 %v50, 4294901760
  %v3525 = vsub.f32 %v50, %v3524
  %v3526 = vand.u32 %v3525, 4294901760
  %v3527 = vsub.f32 %v3525, %v3526
  %v3528 = vand.u32 %v3527, 4294901760
  %3529 = vmatmul.mubr.f32.gmra.mrb[0].mxu0 %v3528
  %v3530 = vpop.f32.mrb[0].mxu0
  %v3531 = vadd.f32 0.0, %v3530
  %v3532 = vpop.f32.mrb[0].mxu0
  %3533 = vmatprep.mubr.f32.mxu0 0.0
  %v3534 = vand.u32 %v53, 4294901760
  %v3535 = vsub.f32 %v53, %v3534
  %v3536 = vand.u32 %v3535, 4294901760
  %v3537 = vsub.f32 %v3535, %v3536
  %v3538 = vand.u32 %v3537, 4294901760
  %3539 = vmatmul.mubr.f32.gmra.mrb[0].mxu0 %v3538
  %v3540 = vpop.f32.mrb[0].mxu0
  %v3541 = vadd.f32 0.0, %v3540
  %v3542 = vpop.f32.mrb[0].mxu0
  %3543 = vmatprep.mubr.f32.mxu0 0.0
  %v3544 = vand.u32 %v56, 4294901760
  %v3545 = vsub.f32 %v56, %v3544
  %v3546 = vand.u32 %v3545, 4294901760
  %v3547 = vsub.f32 %v3545, %v3546
  %v3548 = vand.u32 %v3547, 4294901760
  %3549 = vmatmul.mubr.f32.gmra.mrb[0].mxu0 %v3548
  %v3550 = vpop.f32.mrb[0].mxu0
  %v3551 = vadd.f32 0.0, %v3550
  %v3552 = vpop.f32.mrb[0].mxu0
  %3553 = vmatprep.mubr.f32.mxu0 0.0
  %v3554 = vand.u32 %v59, 4294901760
  %v3555 = vsub.f32 %v59, %v3554
  %v3556 = vand.u32 %v3555, 4294901760
  %v3557 = vsub.f32 %v3555, %v3556
  %v3558 = vand.u32 %v3557, 4294901760
  %3559 = vmatmul.mubr.f32.gmra.mrb[0].mxu0 %v3558
  %v3560 = vpop.f32.mrb[0].mxu0
  %v3561 = vadd.f32 0.0, %v3560
  %v3562 = vpop.f32.mrb[0].mxu0
  %3563 = vmatprep.mubr.f32.mxu0 0.0
  %v3564 = vand.u32 %v62, 4294901760
  %v3565 = vsub.f32 %v62, %v3564
  %v3566 = vand.u32 %v3565, 4294901760
  %v3567 = vsub.f32 %v3565, %v3566
  %v3568 = vand.u32 %v3567, 4294901760
  %3569 = vmatmul.mubr.f32.gmra.mrb[0].mxu0 %v3568
  %v3570 = vpop.f32.mrb[0].mxu0
  %v3571 = vadd.f32 0.0, %v3570
  %v3572 = vpop.f32.mrb[0].mxu0
  %3573 = vmatprep.mubr.f32.mxu0 0.0
  %v3574 = vand.u32 %v65, 4294901760
  %v3575 = vsub.f32 %v65, %v3574
  %v3576 = vand.u32 %v3575, 4294901760
  %v3577 = vsub.f32 %v3575, %v3576
  %v3578 = vand.u32 %v3577, 4294901760
  %3579 = vmatmul.mubr.f32.gmra.mrb[0].mxu0 %v3578
  %v3580 = vpop.f32.mrb[0].mxu0
  %v3581 = vadd.f32 0.0, %v3580
  %v3582 = vpop.f32.mrb[0].mxu0
  %3583 = vmatprep.mubr.f32.mxu0 0.0
  %v3584 = vand.u32 %v68, 4294901760
  %v3585 = vsub.f32 %v68, %v3584
  %v3586 = vand.u32 %v3585, 4294901760
  %v3587 = vsub.f32 %v3585, %v3586
  %v3588 = vand.u32 %v3587, 4294901760
  %3589 = vmatmul.mubr.f32.gmra.mrb[0].mxu0 %v3588
  %v3590 = vpop.f32.mrb[0].mxu0
  %v3591 = vadd.f32 0.0, %v3590
  %v3592 = vpop.f32.mrb[0].mxu0
  %3593 = vmatprep.mubr.f32.mxu0 0.0
  %v3594 = vand.u32 %v71, 4294901760
  %v3595 = vsub.f32 %v71, %v3594
  %v3596 = vand.u32 %v3595, 4294901760
  %v3597 = vsub.f32 %v3595, %v3596
  %v3598 = vand.u32 %v3597, 4294901760
  %3599 = vmatmul.mubr.f32.gmra.mrb[0].mxu0 %v3598
  %v3600 = vpop.f32.mrb[0].mxu0
  %v3601 = vadd.f32 0.0, %v3600
  %v3602 = vpop.f32.mrb[0].mxu0
  %3603 = vmatprep.mubr.f32.mxu0 0.0
  %v3604 = vand.u32 %v74, 4294901760
  %v3605 = vsub.f32 %v74, %v3604
  %v3606 = vand.u32 %v3605, 4294901760
  %v3607 = vsub.f32 %v3605, %v3606
  %v3608 = vand.u32 %v3607, 4294901760
  %3609 = vmatmul.mubr.f32.gmra.mrb[0].mxu0 %v3608
  %v3610 = vpop.f32.mrb[0].mxu0
  %v3611 = vadd.f32 0.0, %v3610
  %v3612 = vpop.f32.mrb[0].mxu0
  %3613 = vmatprep.mubr.f32.mxu0 0.0
  %v3614 = vand.u32 %v77, 4294901760
  %v3615 = vsub.f32 %v77, %v3614
  %v3616 = vand.u32 %v3615, 4294901760
  %v3617 = vsub.f32 %v3615, %v3616
  %v3618 = vand.u32 %v3617, 4294901760
  %3619 = vmatmul.mubr.f32.gmra.mrb[0].mxu0 %v3618
  %v3620 = vpop.f32.mrb[0].mxu0
  %v3621 = vadd.f32 0.0, %v3620
  %v3622 = vpop.f32.mrb[0].mxu0
  %3623 = vdwg.mxu0
  %3624 = vmatprep.subr.mxu0 0.0
  %v3625 = vand.u32 %v3437, 4294901760
  %v3626 = vsub.f32 %v3437, %v3625
  %v3627 = vand.u32 %v3626, 4294901760
  %v3628 = vsub.f32 %v3626, %v3627
  %v3629 = vand.u32 %v3628, 4294901760
  %3630 = vmatpush1.msra.mxu0 %v3629
  %3631 = vmatprep.subr.mxu0 0.0
  %3632 = vmatpush1.msra.mxu0 0.0
  %3633 = vmatprep.subr.mxu0 0.0
  %3634 = vmatpush1.msra.mxu0 0.0
  %3635 = vmatprep.subr.mxu0 0.0
  %3636 = vmatpush1.msra.mxu0 0.0
  %3637 = vmatprep.subr.mxu0 0.0
  %3638 = vmatpush1.msra.mxu0 0.0
  %3639 = vmatprep.subr.mxu0 0.0
  %3640 = vmatpush1.msra.mxu0 0.0
  %3641 = vmatprep.subr.mxu0 0.0
  %3642 = vmatpush1.msra.mxu0 0.0
  %3643 = vmatprep.subr.mxu0 0.0
  %3644 = vmatpush1.msra.mxu0 0.0
  %3645 = vmatprep.subr.mxu0 0.0
  %3646 = vmatpush1.msra.mxu0 0.0
  %3647 = vmatprep.subr.mxu0 0.0
  %3648 = vmatpush1.msra.mxu0 0.0
  %3649 = vmatprep.subr.mxu0 0.0
  %3650 = vmatpush1.msra.mxu0 0.0
  %3651 = vmatprep.subr.mxu0 0.0
  %3652 = vmatpush1.msra.mxu0 0.0
  %3653 = vmatprep.subr.mxu0 0.0
  %3654 = vmatpush1.msra.mxu0 0.0
  %3655 = vmatprep.subr.mxu0 0.0
  %3656 = vmatpush1.msra.mxu0 0.0
  %3657 = vmatprep.subr.mxu0 0.0
  %3658 = vmatpush1.msra.mxu0 0.0
  %3659 = vmatprep.subr.mxu0 0.0
  %3660 = vmatpush1.msra.mxu0 0.0
  %3661 = vmatprep.subr.mxu0 0.0
  %3662 = vmatpush1.msra.mxu0 0.0
  %3663 = vmatprep.subr.mxu0 0.0
  %3664 = vmatpush1.msra.mxu0 0.0
  %3665 = vmatprep.subr.mxu0 0.0
  %3666 = vmatpush1.msra.mxu0 0.0
  %3667 = vmatprep.subr.mxu0 0.0
  %3668 = vmatpush1.msra.mxu0 0.0
  %3669 = vmatprep.subr.mxu0 0.0
  %3670 = vmatpush1.msra.mxu0 0.0
  %3671 = vmatprep.subr.mxu0 0.0
  %3672 = vmatpush1.msra.mxu0 0.0
  %3673 = vmatprep.subr.mxu0 0.0
  %3674 = vmatpush1.msra.mxu0 0.0
  %3675 = vmatprep.subr.mxu0 0.0
  %3676 = vmatpush1.msra.mxu0 0.0
  %3677 = vmatprep.subr.mxu0 0.0
  %3678 = vmatpush1.msra.mxu0 0.0
  %3679 = vmatprep.subr.mxu0 0.0
  %3680 = vmatpush1.msra.mxu0 0.0
  %3681 = vmatprep.subr.mxu0 0.0
  %3682 = vmatpush1.msra.mxu0 0.0
  %3683 = vmatprep.subr.mxu0 0.0
  %3684 = vmatpush1.msra.mxu0 0.0
  %3685 = vmatprep.subr.mxu0 0.0
  %3686 = vmatpush1.msra.mxu0 0.0
  %3687 = vmatprep.subr.mxu0 0.0
  %3688 = vmatpush1.msra.mxu0 0.0
  %3689 = vmatprep.subr.mxu0 0.0
  %3690 = vmatpush1.msra.mxu0 0.0
  %3691 = vmatprep.subr.mxu0 0.0
  %3692 = vmatpush1.msra.mxu0 0.0
  %3693 = vmatprep.mubr.f32.mxu0 0.0
  %v3694 = vand.u32 %v44, 4294901760
  %3695 = vmatmul.mubr.f32.gmra.mrb[0].mxu0 %v3694
  %v3696 = vpop.f32.mrb[0].mxu0
  %v3697 = vadd.f32 %v3511, %v3696
  %v3698 = vpop.f32.mrb[0].mxu0
  %3699 = vmatprep.mubr.f32.mxu0 0.0
  %v3700 = vand.u32 %v47, 4294901760
  %3701 = vmatmul.mubr.f32.gmra.mrb[0].mxu0 %v3700
  %v3702 = vpop.f32.mrb[0].mxu0
  %v3703 = vadd.f32 %v3521, %v3702
  %v3704 = vpop.f32.mrb[0].mxu0
  %3705 = vmatprep.mubr.f32.mxu0 0.0
  %v3706 = vand.u32 %v50, 4294901760
  %3707 = vmatmul.mubr.f32.gmra.mrb[0].mxu0 %v3706
  %v3708 = vpop.f32.mrb[0].mxu0
  %v3709 = vadd.f32 %v3531, %v3708
  %v3710 = vpop.f32.mrb[0].mxu0
  %3711 = vmatprep.mubr.f32.mxu0 0.0
  %v3712 = vand.u32 %v53, 4294901760
  %3713 = vmatmul.mubr.f32.gmra.mrb[0].mxu0 %v3712
  %v3714 = vpop.f32.mrb[0].mxu0
  %v3715 = vadd.f32 %v3541, %v3714
  %v3716 = vpop.f32.mrb[0].mxu0
  %3717 = vmatprep.mubr.f32.mxu0 0.0
  %v3718 = vand.u32 %v56, 4294901760
  %3719 = vmatmul.mubr.f32.gmra.mrb[0].mxu0 %v3718
  %v3720 = vpop.f32.mrb[0].mxu0
  %v3721 = vadd.f32 %v3551, %v3720
  %v3722 = vpop.f32.mrb[0].mxu0
  %3723 = vmatprep.mubr.f32.mxu0 0.0
  %v3724 = vand.u32 %v59, 4294901760
  %3725 = vmatmul.mubr.f32.gmra.mrb[0].mxu0 %v3724
  %v3726 = vpop.f32.mrb[0].mxu0
  %v3727 = vadd.f32 %v3561, %v3726
  %v3728 = vpop.f32.mrb[0].mxu0
  %3729 = vmatprep.mubr.f32.mxu0 0.0
  %v3730 = vand.u32 %v62, 4294901760
  %3731 = vmatmul.mubr.f32.gmra.mrb[0].mxu0 %v3730
  %v3732 = vpop.f32.mrb[0].mxu0
  %v3733 = vadd.f32 %v3571, %v3732
  %v3734 = vpop.f32.mrb[0].mxu0
  %3735 = vmatprep.mubr.f32.mxu0 0.0
  %v3736 = vand.u32 %v65, 4294901760
  %3737 = vmatmul.mubr.f32.gmra.mrb[0].mxu0 %v3736
  %v3738 = vpop.f32.mrb[0].mxu0
  %v3739 = vadd.f32 %v3581, %v3738
  %v3740 = vpop.f32.mrb[0].mxu0
  %3741 = vmatprep.mubr.f32.mxu0 0.0
  %v3742 = vand.u32 %v68, 4294901760
  %3743 = vmatmul.mubr.f32.gmra.mrb[0].mxu0 %v3742
  %v3744 = vpop.f32.mrb[0].mxu0
  %v3745 = vadd.f32 %v3591, %v3744
  %v3746 = vpop.f32.mrb[0].mxu0
  %3747 = vmatprep.mubr.f32.mxu0 0.0
  %v3748 = vand.u32 %v71, 4294901760
  %3749 = vmatmul.mubr.f32.gmra.mrb[0].mxu0 %v3748
  %v3750 = vpop.f32.mrb[0].mxu0
  %v3751 = vadd.f32 %v3601, %v3750
  %v3752 = vpop.f32.mrb[0].mxu0
  %3753 = vmatprep.mubr.f32.mxu0 0.0
  %v3754 = vand.u32 %v74, 4294901760
  %3755 = vmatmul.mubr.f32.gmra.mrb[0].mxu0 %v3754
  %v3756 = vpop.f32.mrb[0].mxu0
  %v3757 = vadd.f32 %v3611, %v3756
  %v3758 = vpop.f32.mrb[0].mxu0
  %3759 = vmatprep.mubr.f32.mxu0 0.0
  %v3760 = vand.u32 %v77, 4294901760
  %3761 = vmatmul.mubr.f32.gmra.mrb[0].mxu0 %v3760
  %v3762 = vpop.f32.mrb[0].mxu0
  %v3763 = vadd.f32 %v3621, %v3762
  %v3764 = vpop.f32.mrb[0].mxu0
  %3765 = vdwg.mxu0
  %3766 = vmatprep.subr.mxu0 0.0
  %v3767 = vand.u32 %v3437, 4294901760
  %v3768 = vsub.f32 %v3437, %v3767
  %3769 = vmatpush1.msra.mxu0 %v3768
  %3770 = vmatprep.subr.mxu0 0.0
  %3771 = vmatpush1.msra.mxu0 0.0
  %3772 = vmatprep.subr.mxu0 0.0
  %3773 = vmatpush1.msra.mxu0 0.0
  %3774 = vmatprep.subr.mxu0 0.0
  %3775 = vmatpush1.msra.mxu0 0.0
  %3776 = vmatprep.subr.mxu0 0.0
  %3777 = vmatpush1.msra.mxu0 0.0
  %3778 = vmatprep.subr.mxu0 0.0
  %3779 = vmatpush1.msra.mxu0 0.0
  %3780 = vmatprep.subr.mxu0 0.0
  %3781 = vmatpush1.msra.mxu0 0.0
  %3782 = vmatprep.subr.mxu0 0.0
  %3783 = vmatpush1.msra.mxu0 0.0
  %3784 = vmatprep.subr.mxu0 0.0
  %3785 = vmatpush1.msra.mxu0 0.0
  %3786 = vmatprep.subr.mxu0 0.0
  %3787 = vmatpush1.msra.mxu0 0.0
  %3788 = vmatprep.subr.mxu0 0.0
  %3789 = vmatpush1.msra.mxu0 0.0
  %3790 = vmatprep.subr.mxu0 0.0
  %3791 = vmatpush1.msra.mxu0 0.0
  %3792 = vmatprep.subr.mxu0 0.0
  %3793 = vmatpush1.msra.mxu0 0.0
  %3794 = vmatprep.subr.mxu0 0.0
  %3795 = vmatpush1.msra.mxu0 0.0
  %3796 = vmatprep.subr.mxu0 0.0
  %3797 = vmatpush1.msra.mxu0 0.0
  %3798 = vmatprep.subr.mxu0 0.0
  %3799 = vmatpush1.msra.mxu0 0.0
  %3800 = vmatprep.subr.mxu0 0.0
  %3801 = vmatpush1.msra.mxu0 0.0
  %3802 = vmatprep.subr.mxu0 0.0
  %3803 = vmatpush1.msra.mxu0 0.0
  %3804 = vmatprep.subr.mxu0 0.0
  %3805 = vmatpush1.msra.mxu0 0.0
  %3806 = vmatprep.subr.mxu0 0.0
  %3807 = vmatpush1.msra.mxu0 0.0
  %3808 = vmatprep.subr.mxu0 0.0
  %3809 = vmatpush1.msra.mxu0 0.0
  %3810 = vmatprep.subr.mxu0 0.0
  %3811 = vmatpush1.msra.mxu0 0.0
  %3812 = vmatprep.subr.mxu0 0.0
  %3813 = vmatpush1.msra.mxu0 0.0
  %3814 = vmatprep.subr.mxu0 0.0
  %3815 = vmatpush1.msra.mxu0 0.0
  %3816 = vmatprep.subr.mxu0 0.0
  %3817 = vmatpush1.msra.mxu0 0.0
  %3818 = vmatprep.subr.mxu0 0.0
  %3819 = vmatpush1.msra.mxu0 0.0
  %3820 = vmatprep.subr.mxu0 0.0
  %3821 = vmatpush1.msra.mxu0 0.0
  %3822 = vmatprep.subr.mxu0 0.0
  %3823 = vmatpush1.msra.mxu0 0.0
  %3824 = vmatprep.subr.mxu0 0.0
  %3825 = vmatpush1.msra.mxu0 0.0
  %3826 = vmatprep.subr.mxu0 0.0
  %3827 = vmatpush1.msra.mxu0 0.0
  %3828 = vmatprep.subr.mxu0 0.0
  %3829 = vmatpush1.msra.mxu0 0.0
  %3830 = vmatprep.subr.mxu0 0.0
  %3831 = vmatpush1.msra.mxu0 0.0
  %3832 = vmatprep.mubr.f32.mxu0 0.0
  %v3833 = vand.u32 %v44, 4294901760
  %v3834 = vsub.f32 %v44, %v3833
  %3835 = vmatmul.mubr.f32.gmra.mrb[0].mxu0 %v3834
  %v3836 = vpop.f32.mrb[0].mxu0
  %v3837 = vadd.f32 %v3697, %v3836
  %v3838 = vpop.f32.mrb[0].mxu0
  %3839 = vmatprep.mubr.f32.mxu0 0.0
  %v3840 = vand.u32 %v47, 4294901760
  %v3841 = vsub.f32 %v47, %v3840
  %3842 = vmatmul.mubr.f32.gmra.mrb[0].mxu0 %v3841
  %v3843 = vpop.f32.mrb[0].mxu0
  %v3844 = vadd.f32 %v3703, %v3843
  %v3845 = vpop.f32.mrb[0].mxu0
  %3846 = vmatprep.mubr.f32.mxu0 0.0
  %v3847 = vand.u32 %v50, 4294901760
  %v3848 = vsub.f32 %v50, %v3847
  %3849 = vmatmul.mubr.f32.gmra.mrb[0].mxu0 %v3848
  %v3850 = vpop.f32.mrb[0].mxu0
  %v3851 = vadd.f32 %v3709, %v3850
  %v3852 = vpop.f32.mrb[0].mxu0
  %3853 = vmatprep.mubr.f32.mxu0 0.0
  %v3854 = vand.u32 %v53, 4294901760
  %v3855 = vsub.f32 %v53, %v3854
  %3856 = vmatmul.mubr.f32.gmra.mrb[0].mxu0 %v3855
  %v3857 = vpop.f32.mrb[0].mxu0
  %v3858 = vadd.f32 %v3715, %v3857
  %v3859 = vpop.f32.mrb[0].mxu0
  %3860 = vmatprep.mubr.f32.mxu0 0.0
  %v3861 = vand.u32 %v56, 4294901760
  %v3862 = vsub.f32 %v56, %v3861
  %3863 = vmatmul.mubr.f32.gmra.mrb[0].mxu0 %v3862
  %v3864 = vpop.f32.mrb[0].mxu0
  %v3865 = vadd.f32 %v3721, %v3864
  %v3866 = vpop.f32.mrb[0].mxu0
  %3867 = vmatprep.mubr.f32.mxu0 0.0
  %v3868 = vand.u32 %v59, 4294901760
  %v3869 = vsub.f32 %v59, %v3868
  %3870 = vmatmul.mubr.f32.gmra.mrb[0].mxu0 %v3869
  %v3871 = vpop.f32.mrb[0].mxu0
  %v3872 = vadd.f32 %v3727, %v3871
  %v3873 = vpop.f32.mrb[0].mxu0
  %3874 = vmatprep.mubr.f32.mxu0 0.0
  %v3875 = vand.u32 %v62, 4294901760
  %v3876 = vsub.f32 %v62, %v3875
  %3877 = vmatmul.mubr.f32.gmra.mrb[0].mxu0 %v3876
  %v3878 = vpop.f32.mrb[0].mxu0
  %v3879 = vadd.f32 %v3733, %v3878
  %v3880 = vpop.f32.mrb[0].mxu0
  %3881 = vmatprep.mubr.f32.mxu0 0.0
  %v3882 = vand.u32 %v65, 4294901760
  %v3883 = vsub.f32 %v65, %v3882
  %3884 = vmatmul.mubr.f32.gmra.mrb[0].mxu0 %v3883
  %v3885 = vpop.f32.mrb[0].mxu0
  %v3886 = vadd.f32 %v3739, %v3885
  %v3887 = vpop.f32.mrb[0].mxu0
  %3888 = vmatprep.mubr.f32.mxu0 0.0
  %v3889 = vand.u32 %v68, 4294901760
  %v3890 = vsub.f32 %v68, %v3889
  %3891 = vmatmul.mubr.f32.gmra.mrb[0].mxu0 %v3890
  %v3892 = vpop.f32.mrb[0].mxu0
  %v3893 = vadd.f32 %v3745, %v3892
  %v3894 = vpop.f32.mrb[0].mxu0
  %3895 = vmatprep.mubr.f32.mxu0 0.0
  %v3896 = vand.u32 %v71, 4294901760
  %v3897 = vsub.f32 %v71, %v3896
  %3898 = vmatmul.mubr.f32.gmra.mrb[0].mxu0 %v3897
  %v3899 = vpop.f32.mrb[0].mxu0
  %v3900 = vadd.f32 %v3751, %v3899
  %v3901 = vpop.f32.mrb[0].mxu0
  %3902 = vmatprep.mubr.f32.mxu0 0.0
  %v3903 = vand.u32 %v74, 4294901760
  %v3904 = vsub.f32 %v74, %v3903
  %3905 = vmatmul.mubr.f32.gmra.mrb[0].mxu0 %v3904
  %v3906 = vpop.f32.mrb[0].mxu0
  %v3907 = vadd.f32 %v3757, %v3906
  %v3908 = vpop.f32.mrb[0].mxu0
  %3909 = vmatprep.mubr.f32.mxu0 0.0
  %v3910 = vand.u32 %v77, 4294901760
  %v3911 = vsub.f32 %v77, %v3910
  %3912 = vmatmul.mubr.f32.gmra.mrb[0].mxu0 %v3911
  %v3913 = vpop.f32.mrb[0].mxu0
  %v3914 = vadd.f32 %v3763, %v3913
  %v3915 = vpop.f32.mrb[0].mxu0
  %3916 = vdwg.mxu0
  %3917 = vmatprep.subr.mxu0 0.0
  %v3918 = vand.u32 %v3437, 4294901760
  %3919 = vmatpush1.msra.mxu0 %v3918
  %3920 = vmatprep.subr.mxu0 0.0
  %3921 = vmatpush1.msra.mxu0 0.0
  %3922 = vmatprep.subr.mxu0 0.0
  %3923 = vmatpush1.msra.mxu0 0.0
  %3924 = vmatprep.subr.mxu0 0.0
  %3925 = vmatpush1.msra.mxu0 0.0
  %3926 = vmatprep.subr.mxu0 0.0
  %3927 = vmatpush1.msra.mxu0 0.0
  %3928 = vmatprep.subr.mxu0 0.0
  %3929 = vmatpush1.msra.mxu0 0.0
  %3930 = vmatprep.subr.mxu0 0.0
  %3931 = vmatpush1.msra.mxu0 0.0
  %3932 = vmatprep.subr.mxu0 0.0
  %3933 = vmatpush1.msra.mxu0 0.0
  %3934 = vmatprep.subr.mxu0 0.0
  %3935 = vmatpush1.msra.mxu0 0.0
  %3936 = vmatprep.subr.mxu0 0.0
  %3937 = vmatpush1.msra.mxu0 0.0
  %3938 = vmatprep.subr.mxu0 0.0
  %3939 = vmatpush1.msra.mxu0 0.0
  %3940 = vmatprep.subr.mxu0 0.0
  %3941 = vmatpush1.msra.mxu0 0.0
  %3942 = vmatprep.subr.mxu0 0.0
  %3943 = vmatpush1.msra.mxu0 0.0
  %3944 = vmatprep.subr.mxu0 0.0
  %3945 = vmatpush1.msra.mxu0 0.0
  %3946 = vmatprep.subr.mxu0 0.0
  %3947 = vmatpush1.msra.mxu0 0.0
  %3948 = vmatprep.subr.mxu0 0.0
  %3949 = vmatpush1.msra.mxu0 0.0
  %3950 = vmatprep.subr.mxu0 0.0
  %3951 = vmatpush1.msra.mxu0 0.0
  %3952 = vmatprep.subr.mxu0 0.0
  %3953 = vmatpush1.msra.mxu0 0.0
  %3954 = vmatprep.subr.mxu0 0.0
  %3955 = vmatpush1.msra.mxu0 0.0
  %3956 = vmatprep.subr.mxu0 0.0
  %3957 = vmatpush1.msra.mxu0 0.0
  %3958 = vmatprep.subr.mxu0 0.0
  %3959 = vmatpush1.msra.mxu0 0.0
  %3960 = vmatprep.subr.mxu0 0.0
  %3961 = vmatpush1.msra.mxu0 0.0
  %3962 = vmatprep.subr.mxu0 0.0
  %3963 = vmatpush1.msra.mxu0 0.0
  %3964 = vmatprep.subr.mxu0 0.0
  %3965 = vmatpush1.msra.mxu0 0.0
  %3966 = vmatprep.subr.mxu0 0.0
  %3967 = vmatpush1.msra.mxu0 0.0
  %3968 = vmatprep.subr.mxu0 0.0
  %3969 = vmatpush1.msra.mxu0 0.0
  %3970 = vmatprep.subr.mxu0 0.0
  %3971 = vmatpush1.msra.mxu0 0.0
  %3972 = vmatprep.subr.mxu0 0.0
  %3973 = vmatpush1.msra.mxu0 0.0
  %3974 = vmatprep.subr.mxu0 0.0
  %3975 = vmatpush1.msra.mxu0 0.0
  %3976 = vmatprep.subr.mxu0 0.0
  %3977 = vmatpush1.msra.mxu0 0.0
  %3978 = vmatprep.subr.mxu0 0.0
  %3979 = vmatpush1.msra.mxu0 0.0
  %3980 = vmatprep.subr.mxu0 0.0
  %3981 = vmatpush1.msra.mxu0 0.0
  %3982 = vmatprep.mubr.f32.mxu0 0.0
  %v3983 = vand.u32 %v44, 4294901760
  %v3984 = vsub.f32 %v44, %v3983
  %v3985 = vand.u32 %v3984, 4294901760
  %3986 = vmatmul.mubr.f32.gmra.mrb[0].mxu0 %v3985
  %v3987 = vpop.f32.mrb[0].mxu0
  %v3988 = vadd.f32 %v3837, %v3987
  %v3989 = vpop.f32.mrb[0].mxu0
  %3990 = vmatprep.mubr.f32.mxu0 0.0
  %v3991 = vand.u32 %v47, 4294901760
  %v3992 = vsub.f32 %v47, %v3991
  %v3993 = vand.u32 %v3992, 4294901760
  %3994 = vmatmul.mubr.f32.gmra.mrb[0].mxu0 %v3993
  %v3995 = vpop.f32.mrb[0].mxu0
  %v3996 = vadd.f32 %v3844, %v3995
  %v3997 = vpop.f32.mrb[0].mxu0
  %3998 = vmatprep.mubr.f32.mxu0 0.0
  %v3999 = vand.u32 %v50, 4294901760
  %v4000 = vsub.f32 %v50, %v3999
  %v4001 = vand.u32 %v4000, 4294901760
  %4002 = vmatmul.mubr.f32.gmra.mrb[0].mxu0 %v4001
  %v4003 = vpop.f32.mrb[0].mxu0
  %v4004 = vadd.f32 %v3851, %v4003
  %v4005 = vpop.f32.mrb[0].mxu0
  %4006 = vmatprep.mubr.f32.mxu0 0.0
  %v4007 = vand.u32 %v53, 4294901760
  %v4008 = vsub.f32 %v53, %v4007
  %v4009 = vand.u32 %v4008, 4294901760
  %4010 = vmatmul.mubr.f32.gmra.mrb[0].mxu0 %v4009
  %v4011 = vpop.f32.mrb[0].mxu0
  %v4012 = vadd.f32 %v3858, %v4011
  %v4013 = vpop.f32.mrb[0].mxu0
  %4014 = vmatprep.mubr.f32.mxu0 0.0
  %v4015 = vand.u32 %v56, 4294901760
  %v4016 = vsub.f32 %v56, %v4015
  %v4017 = vand.u32 %v4016, 4294901760
  %4018 = vmatmul.mubr.f32.gmra.mrb[0].mxu0 %v4017
  %v4019 = vpop.f32.mrb[0].mxu0
  %v4020 = vadd.f32 %v3865, %v4019
  %v4021 = vpop.f32.mrb[0].mxu0
  %4022 = vmatprep.mubr.f32.mxu0 0.0
  %v4023 = vand.u32 %v59, 4294901760
  %v4024 = vsub.f32 %v59, %v4023
  %v4025 = vand.u32 %v4024, 4294901760
  %4026 = vmatmul.mubr.f32.gmra.mrb[0].mxu0 %v4025
  %v4027 = vpop.f32.mrb[0].mxu0
  %v4028 = vadd.f32 %v3872, %v4027
  %v4029 = vpop.f32.mrb[0].mxu0
  %4030 = vmatprep.mubr.f32.mxu0 0.0
  %v4031 = vand.u32 %v62, 4294901760
  %v4032 = vsub.f32 %v62, %v4031
  %v4033 = vand.u32 %v4032, 4294901760
  %4034 = vmatmul.mubr.f32.gmra.mrb[0].mxu0 %v4033
  %v4035 = vpop.f32.mrb[0].mxu0
  %v4036 = vadd.f32 %v3879, %v4035
  %v4037 = vpop.f32.mrb[0].mxu0
  %4038 = vmatprep.mubr.f32.mxu0 0.0
  %v4039 = vand.u32 %v65, 4294901760
  %v4040 = vsub.f32 %v65, %v4039
  %v4041 = vand.u32 %v4040, 4294901760
  %4042 = vmatmul.mubr.f32.gmra.mrb[0].mxu0 %v4041
  %v4043 = vpop.f32.mrb[0].mxu0
  %v4044 = vadd.f32 %v3886, %v4043
  %v4045 = vpop.f32.mrb[0].mxu0
  %4046 = vmatprep.mubr.f32.mxu0 0.0
  %v4047 = vand.u32 %v68, 4294901760
  %v4048 = vsub.f32 %v68, %v4047
  %v4049 = vand.u32 %v4048, 4294901760
  %4050 = vmatmul.mubr.f32.gmra.mrb[0].mxu0 %v4049
  %v4051 = vpop.f32.mrb[0].mxu0
  %v4052 = vadd.f32 %v3893, %v4051
  %v4053 = vpop.f32.mrb[0].mxu0
  %4054 = vmatprep.mubr.f32.mxu0 0.0
  %v4055 = vand.u32 %v71, 4294901760
  %v4056 = vsub.f32 %v71, %v4055
  %v4057 = vand.u32 %v4056, 4294901760
  %4058 = vmatmul.mubr.f32.gmra.mrb[0].mxu0 %v4057
  %v4059 = vpop.f32.mrb[0].mxu0
  %v4060 = vadd.f32 %v3900, %v4059
  %v4061 = vpop.f32.mrb[0].mxu0
  %4062 = vmatprep.mubr.f32.mxu0 0.0
  %v4063 = vand.u32 %v74, 4294901760
  %v4064 = vsub.f32 %v74, %v4063
  %v4065 = vand.u32 %v4064, 4294901760
  %4066 = vmatmul.mubr.f32.gmra.mrb[0].mxu0 %v4065
  %v4067 = vpop.f32.mrb[0].mxu0
  %v4068 = vadd.f32 %v3907, %v4067
  %v4069 = vpop.f32.mrb[0].mxu0
  %4070 = vmatprep.mubr.f32.mxu0 0.0
  %v4071 = vand.u32 %v77, 4294901760
  %v4072 = vsub.f32 %v77, %v4071
  %v4073 = vand.u32 %v4072, 4294901760
  %4074 = vmatmul.mubr.f32.gmra.mrb[0].mxu0 %v4073
  %v4075 = vpop.f32.mrb[0].mxu0
  %v4076 = vadd.f32 %v3914, %v4075
  %v4077 = vpop.f32.mrb[0].mxu0
  %4078 = vdwg.mxu0
  %4079 = vmatprep.subr.mxu0 0.0
  %v4080 = vand.u32 %v3437, 4294901760
  %v4081 = vsub.f32 %v3437, %v4080
  %v4082 = vand.u32 %v4081, 4294901760
  %4083 = vmatpush1.msra.mxu0 %v4082
  %4084 = vmatprep.subr.mxu0 0.0
  %4085 = vmatpush1.msra.mxu0 0.0
  %4086 = vmatprep.subr.mxu0 0.0
  %4087 = vmatpush1.msra.mxu0 0.0
  %4088 = vmatprep.subr.mxu0 0.0
  %4089 = vmatpush1.msra.mxu0 0.0
  %4090 = vmatprep.subr.mxu0 0.0
  %4091 = vmatpush1.msra.mxu0 0.0
  %4092 = vmatprep.subr.mxu0 0.0
  %4093 = vmatpush1.msra.mxu0 0.0
  %4094 = vmatprep.subr.mxu0 0.0
  %4095 = vmatpush1.msra.mxu0 0.0
  %4096 = vmatprep.subr.mxu0 0.0
  %4097 = vmatpush1.msra.mxu0 0.0
  %4098 = vmatprep.subr.mxu0 0.0
  %4099 = vmatpush1.msra.mxu0 0.0
  %4100 = vmatprep.subr.mxu0 0.0
  %4101 = vmatpush1.msra.mxu0 0.0
  %4102 = vmatprep.subr.mxu0 0.0
  %4103 = vmatpush1.msra.mxu0 0.0
  %4104 = vmatprep.subr.mxu0 0.0
  %4105 = vmatpush1.msra.mxu0 0.0
  %4106 = vmatprep.subr.mxu0 0.0
  %4107 = vmatpush1.msra.mxu0 0.0
  %4108 = vmatprep.subr.mxu0 0.0
  %4109 = vmatpush1.msra.mxu0 0.0
  %4110 = vmatprep.subr.mxu0 0.0
  %4111 = vmatpush1.msra.mxu0 0.0
  %4112 = vmatprep.subr.mxu0 0.0
  %4113 = vmatpush1.msra.mxu0 0.0
  %4114 = vmatprep.subr.mxu0 0.0
  %4115 = vmatpush1.msra.mxu0 0.0
  %4116 = vmatprep.subr.mxu0 0.0
  %4117 = vmatpush1.msra.mxu0 0.0
  %4118 = vmatprep.subr.mxu0 0.0
  %4119 = vmatpush1.msra.mxu0 0.0
  %4120 = vmatprep.subr.mxu0 0.0
  %4121 = vmatpush1.msra.mxu0 0.0
  %4122 = vmatprep.subr.mxu0 0.0
  %4123 = vmatpush1.msra.mxu0 0.0
  %4124 = vmatprep.subr.mxu0 0.0
  %4125 = vmatpush1.msra.mxu0 0.0
  %4126 = vmatprep.subr.mxu0 0.0
  %4127 = vmatpush1.msra.mxu0 0.0
  %4128 = vmatprep.subr.mxu0 0.0
  %4129 = vmatpush1.msra.mxu0 0.0
  %4130 = vmatprep.subr.mxu0 0.0
  %4131 = vmatpush1.msra.mxu0 0.0
  %4132 = vmatprep.subr.mxu0 0.0
  %4133 = vmatpush1.msra.mxu0 0.0
  %4134 = vmatprep.subr.mxu0 0.0
  %4135 = vmatpush1.msra.mxu0 0.0
  %4136 = vmatprep.subr.mxu0 0.0
  %4137 = vmatpush1.msra.mxu0 0.0
  %4138 = vmatprep.subr.mxu0 0.0
  %4139 = vmatpush1.msra.mxu0 0.0
  %4140 = vmatprep.subr.mxu0 0.0
  %4141 = vmatpush1.msra.mxu0 0.0
  %4142 = vmatprep.subr.mxu0 0.0
  %4143 = vmatpush1.msra.mxu0 0.0
  %4144 = vmatprep.subr.mxu0 0.0
  %4145 = vmatpush1.msra.mxu0 0.0
  %4146 = vmatprep.mubr.f32.mxu0 0.0
  %v4147 = vand.u32 %v44, 4294901760
  %4148 = vmatmul.mubr.f32.gmra.mrb[0].mxu0 %v4147
  %v4149 = vpop.f32.mrb[0].mxu0
  %v4150 = vadd.f32 %v3988, %v4149
  %v4151 = vpop.f32.mrb[0].mxu0
  %4152 = vmatprep.mubr.f32.mxu0 0.0
  %v4153 = vand.u32 %v47, 4294901760
  %4154 = vmatmul.mubr.f32.gmra.mrb[0].mxu0 %v4153
  %v4155 = vpop.f32.mrb[0].mxu0
  %v4156 = vadd.f32 %v3996, %v4155
  %v4157 = vpop.f32.mrb[0].mxu0
  %4158 = vmatprep.mubr.f32.mxu0 0.0
  %v4159 = vand.u32 %v50, 4294901760
  %4160 = vmatmul.mubr.f32.gmra.mrb[0].mxu0 %v4159
  %v4161 = vpop.f32.mrb[0].mxu0
  %v4162 = vadd.f32 %v4004, %v4161
  %v4163 = vpop.f32.mrb[0].mxu0
  %4164 = vmatprep.mubr.f32.mxu0 0.0
  %v4165 = vand.u32 %v53, 4294901760
  %4166 = vmatmul.mubr.f32.gmra.mrb[0].mxu0 %v4165
  %v4167 = vpop.f32.mrb[0].mxu0
  %v4168 = vadd.f32 %v4012, %v4167
  %v4169 = vpop.f32.mrb[0].mxu0
  %4170 = vmatprep.mubr.f32.mxu0 0.0
  %v4171 = vand.u32 %v56, 4294901760
  %4172 = vmatmul.mubr.f32.gmra.mrb[0].mxu0 %v4171
  %v4173 = vpop.f32.mrb[0].mxu0
  %v4174 = vadd.f32 %v4020, %v4173
  %v4175 = vpop.f32.mrb[0].mxu0
  %4176 = vmatprep.mubr.f32.mxu0 0.0
  %v4177 = vand.u32 %v59, 4294901760
  %4178 = vmatmul.mubr.f32.gmra.mrb[0].mxu0 %v4177
  %v4179 = vpop.f32.mrb[0].mxu0
  %v4180 = vadd.f32 %v4028, %v4179
  %v4181 = vpop.f32.mrb[0].mxu0
  %4182 = vmatprep.mubr.f32.mxu0 0.0
  %v4183 = vand.u32 %v62, 4294901760
  %4184 = vmatmul.mubr.f32.gmra.mrb[0].mxu0 %v4183
  %v4185 = vpop.f32.mrb[0].mxu0
  %v4186 = vadd.f32 %v4036, %v4185
  %v4187 = vpop.f32.mrb[0].mxu0
  %4188 = vmatprep.mubr.f32.mxu0 0.0
  %v4189 = vand.u32 %v65, 4294901760
  %4190 = vmatmul.mubr.f32.gmra.mrb[0].mxu0 %v4189
  %v4191 = vpop.f32.mrb[0].mxu0
  %v4192 = vadd.f32 %v4044, %v4191
  %v4193 = vpop.f32.mrb[0].mxu0
  %4194 = vmatprep.mubr.f32.mxu0 0.0
  %v4195 = vand.u32 %v68, 4294901760
  %4196 = vmatmul.mubr.f32.gmra.mrb[0].mxu0 %v4195
  %v4197 = vpop.f32.mrb[0].mxu0
  %v4198 = vadd.f32 %v4052, %v4197
  %v4199 = vpop.f32.mrb[0].mxu0
  %4200 = vmatprep.mubr.f32.mxu0 0.0
  %v4201 = vand.u32 %v71, 4294901760
  %4202 = vmatmul.mubr.f32.gmra.mrb[0].mxu0 %v4201
  %v4203 = vpop.f32.mrb[0].mxu0
  %v4204 = vadd.f32 %v4060, %v4203
  %v4205 = vpop.f32.mrb[0].mxu0
  %4206 = vmatprep.mubr.f32.mxu0 0.0
  %v4207 = vand.u32 %v74, 4294901760
  %4208 = vmatmul.mubr.f32.gmra.mrb[0].mxu0 %v4207
  %v4209 = vpop.f32.mrb[0].mxu0
  %v4210 = vadd.f32 %v4068, %v4209
  %v4211 = vpop.f32.mrb[0].mxu0
  %4212 = vmatprep.mubr.f32.mxu0 0.0
  %v4213 = vand.u32 %v77, 4294901760
  %4214 = vmatmul.mubr.f32.gmra.mrb[0].mxu0 %v4213
  %v4215 = vpop.f32.mrb[0].mxu0
  %v4216 = vadd.f32 %v4076, %v4215
  %v4217 = vpop.f32.mrb[0].mxu0
  %4218 = vdwg.mxu0
  %4219 = vmatprep.subr.mxu0 0.0
  %v4220 = vand.u32 %v3437, 4294901760
  %4221 = vmatpush1.msra.mxu0 %v4220
  %4222 = vmatprep.subr.mxu0 0.0
  %4223 = vmatpush1.msra.mxu0 0.0
  %4224 = vmatprep.subr.mxu0 0.0
  %4225 = vmatpush1.msra.mxu0 0.0
  %4226 = vmatprep.subr.mxu0 0.0
  %4227 = vmatpush1.msra.mxu0 0.0
  %4228 = vmatprep.subr.mxu0 0.0
  %4229 = vmatpush1.msra.mxu0 0.0
  %4230 = vmatprep.subr.mxu0 0.0
  %4231 = vmatpush1.msra.mxu0 0.0
  %4232 = vmatprep.subr.mxu0 0.0
  %4233 = vmatpush1.msra.mxu0 0.0
  %4234 = vmatprep.subr.mxu0 0.0
  %4235 = vmatpush1.msra.mxu0 0.0
  %4236 = vmatprep.subr.mxu0 0.0
  %4237 = vmatpush1.msra.mxu0 0.0
  %4238 = vmatprep.subr.mxu0 0.0
  %4239 = vmatpush1.msra.mxu0 0.0
  %4240 = vmatprep.subr.mxu0 0.0
  %4241 = vmatpush1.msra.mxu0 0.0
  %4242 = vmatprep.subr.mxu0 0.0
  %4243 = vmatpush1.msra.mxu0 0.0
  %4244 = vmatprep.subr.mxu0 0.0
  %4245 = vmatpush1.msra.mxu0 0.0
  %4246 = vmatprep.subr.mxu0 0.0
  %4247 = vmatpush1.msra.mxu0 0.0
  %4248 = vmatprep.subr.mxu0 0.0
  %4249 = vmatpush1.msra.mxu0 0.0
  %4250 = vmatprep.subr.mxu0 0.0
  %4251 = vmatpush1.msra.mxu0 0.0
  %4252 = vmatprep.subr.mxu0 0.0
  %4253 = vmatpush1.msra.mxu0 0.0
  %4254 = vmatprep.subr.mxu0 0.0
  %4255 = vmatpush1.msra.mxu0 0.0
  %4256 = vmatprep.subr.mxu0 0.0
  %4257 = vmatpush1.msra.mxu0 0.0
  %4258 = vmatprep.subr.mxu0 0.0
  %4259 = vmatpush1.msra.mxu0 0.0
  %4260 = vmatprep.subr.mxu0 0.0
  %4261 = vmatpush1.msra.mxu0 0.0
  %4262 = vmatprep.subr.mxu0 0.0
  %4263 = vmatpush1.msra.mxu0 0.0
  %4264 = vmatprep.subr.mxu0 0.0
  %4265 = vmatpush1.msra.mxu0 0.0
  %4266 = vmatprep.subr.mxu0 0.0
  %4267 = vmatpush1.msra.mxu0 0.0
  %4268 = vmatprep.subr.mxu0 0.0
  %4269 = vmatpush1.msra.mxu0 0.0
  %4270 = vmatprep.subr.mxu0 0.0
  %4271 = vmatpush1.msra.mxu0 0.0
  %4272 = vmatprep.subr.mxu0 0.0
  %4273 = vmatpush1.msra.mxu0 0.0
  %4274 = vmatprep.subr.mxu0 0.0
  %4275 = vmatpush1.msra.mxu0 0.0
  %4276 = vmatprep.subr.mxu0 0.0
  %4277 = vmatpush1.msra.mxu0 0.0
  %4278 = vmatprep.subr.mxu0 0.0
  %4279 = vmatpush1.msra.mxu0 0.0
  %4280 = vmatprep.subr.mxu0 0.0
  %4281 = vmatpush1.msra.mxu0 0.0
  %4282 = vmatprep.subr.mxu0 0.0
  %4283 = vmatpush1.msra.mxu0 0.0
  %4284 = vmatprep.mubr.f32.mxu0 0.0
  %v4285 = vand.u32 %v44, 4294901760
  %4286 = vmatmul.mubr.f32.gmra.mrb[0].mxu0 %v4285
  %v4287 = vpop.f32.mrb[0].mxu0
  %v4288 = vadd.f32 %v4150, %v4287
  %v4289 = vpop.f32.mrb[0].mxu0
  %4290 = vmatprep.mubr.f32.mxu0 0.0
  %v4291 = vand.u32 %v47, 4294901760
  %4292 = vmatmul.mubr.f32.gmra.mrb[0].mxu0 %v4291
  %v4293 = vpop.f32.mrb[0].mxu0
  %v4294 = vadd.f32 %v4156, %v4293
  %v4295 = vpop.f32.mrb[0].mxu0
  %4296 = vmatprep.mubr.f32.mxu0 0.0
  %v4297 = vand.u32 %v50, 4294901760
  %4298 = vmatmul.mubr.f32.gmra.mrb[0].mxu0 %v4297
  %v4299 = vpop.f32.mrb[0].mxu0
  %v4300 = vadd.f32 %v4162, %v4299
  %v4301 = vpop.f32.mrb[0].mxu0
  %4302 = vmatprep.mubr.f32.mxu0 0.0
  %v4303 = vand.u32 %v53, 4294901760
  %4304 = vmatmul.mubr.f32.gmra.mrb[0].mxu0 %v4303
  %v4305 = vpop.f32.mrb[0].mxu0
  %v4306 = vadd.f32 %v4168, %v4305
  %v4307 = vpop.f32.mrb[0].mxu0
  %4308 = vmatprep.mubr.f32.mxu0 0.0
  %v4309 = vand.u32 %v56, 4294901760
  %4310 = vmatmul.mubr.f32.gmra.mrb[0].mxu0 %v4309
  %v4311 = vpop.f32.mrb[0].mxu0
  %v4312 = vadd.f32 %v4174, %v4311
  %v4313 = vpop.f32.mrb[0].mxu0
  %4314 = vmatprep.mubr.f32.mxu0 0.0
  %v4315 = vand.u32 %v59, 4294901760
  %4316 = vmatmul.mubr.f32.gmra.mrb[0].mxu0 %v4315
  %v4317 = vpop.f32.mrb[0].mxu0
  %v4318 = vadd.f32 %v4180, %v4317
  %v4319 = vpop.f32.mrb[0].mxu0
  %4320 = vmatprep.mubr.f32.mxu0 0.0
  %v4321 = vand.u32 %v62, 4294901760
  %4322 = vmatmul.mubr.f32.gmra.mrb[0].mxu0 %v4321
  %v4323 = vpop.f32.mrb[0].mxu0
  %v4324 = vadd.f32 %v4186, %v4323
  %v4325 = vpop.f32.mrb[0].mxu0
  %4326 = vmatprep.mubr.f32.mxu0 0.0
  %v4327 = vand.u32 %v65, 4294901760
  %4328 = vmatmul.mubr.f32.gmra.mrb[0].mxu0 %v4327
  %v4329 = vpop.f32.mrb[0].mxu0
  %v4330 = vadd.f32 %v4192, %v4329
  %v4331 = vpop.f32.mrb[0].mxu0
  %4332 = vmatprep.mubr.f32.mxu0 0.0
  %v4333 = vand.u32 %v68, 4294901760
  %4334 = vmatmul.mubr.f32.gmra.mrb[0].mxu0 %v4333
  %v4335 = vpop.f32.mrb[0].mxu0
  %v4336 = vadd.f32 %v4198, %v4335
  %v4337 = vpop.f32.mrb[0].mxu0
  %4338 = vmatprep.mubr.f32.mxu0 0.0
  %v4339 = vand.u32 %v71, 4294901760
  %4340 = vmatmul.mubr.f32.gmra.mrb[0].mxu0 %v4339
  %v4341 = vpop.f32.mrb[0].mxu0
  %v4342 = vadd.f32 %v4204, %v4341
  %v4343 = vpop.f32.mrb[0].mxu0
  %4344 = vmatprep.mubr.f32.mxu0 0.0
  %v4345 = vand.u32 %v74, 4294901760
  %4346 = vmatmul.mubr.f32.gmra.mrb[0].mxu0 %v4345
  %v4347 = vpop.f32.mrb[0].mxu0
  %v4348 = vadd.f32 %v4210, %v4347
  %v4349 = vpop.f32.mrb[0].mxu0
  %4350 = vmatprep.mubr.f32.mxu0 0.0
  %v4351 = vand.u32 %v77, 4294901760
  %4352 = vmatmul.mubr.f32.gmra.mrb[0].mxu0 %v4351
  %v4353 = vpop.f32.mrb[0].mxu0
  %v4354 = vadd.f32 %v4216, %v4353
  %v4355 = vpop.f32.mrb[0].mxu0
  %4356 = vdwg.mxu0
  %vm4357 = vcmp.ge.f32.partialorder %v4288, -1e-06
  %vm4358 = vcmp.ge.f32.partialorder %v4294, -1e-06
  %vm4359 = vcmp.ge.f32.partialorder %v4300, -1e-06
  %vm4360 = vcmp.ge.f32.partialorder %v4306, -1e-06
  %vm4361 = vcmp.ge.f32.partialorder %v4312, -1e-06
  %vm4362 = vcmp.ge.f32.partialorder %v4318, -1e-06
  %vm4363 = vcmp.ge.f32.partialorder %v4324, -1e-06
  %vm4364 = vcmp.ge.f32.partialorder %v4330, -1e-06
  %vm4365 = vmand %vm4357, %vm4361
  %vm4366 = vmand %vm4358, %vm4362
  %vm4367 = vmand %vm4359, %vm4363
  %vm4368 = vmand %vm4360, %vm4364
  %vm4369 = vcmp.ge.f32.partialorder %v4336, -1e-06
  %vm4370 = vcmp.ge.f32.partialorder %v4342, -1e-06
  %vm4371 = vcmp.ge.f32.partialorder %v4348, -1e-06
  %vm4372 = vcmp.ge.f32.partialorder %v4354, -1e-06
  %vm4373 = vmand %vm4365, %vm4369
  %vm4374 = vmand %vm4366, %vm4370
  %vm4375 = vmand %vm4367, %vm4371
  %vm4376 = vmand %vm4368, %vm4372
  %v4377 = vsel %vm4373, %v33, 4294967295
  %v4378 = vsel %vm4374, %v34, 4294967295
  %v4379 = vsel %vm4375, %v35, 4294967295
  %v4380 = vsel %vm4376, %v36, 4294967295
  %vm4381 = vcmp.gt.s32.totalorder %v4377, %v4378
  %v4382 = vsel %vm4381, %v4377, %v4378
  %vm4383 = vcmp.gt.s32.totalorder %v4379, %v4380
  %v4384 = vsel %vm4383, %v4379, %v4380
  %vm4385 = vcmp.gt.s32.totalorder %v4382, %v4384
  %v4386 = vsel %vm4385, %v4382, %v4384
  %v4387 = vrot.slane %v4386, 4
  %vm4388 = vcmp.gt.s32.totalorder %v4386, %v4387
  %v4389 = vsel %vm4388, %v4386, %v4387
  %v4390 = vrot.slane %v4389, 2
  %vm4391 = vcmp.gt.s32.totalorder %v4389, %v4390
  %v4392 = vsel %vm4391, %v4389, %v4390
  %v4393 = vrot.slane %v4392, 1
  %vm4394 = vcmp.gt.s32.totalorder %v4392, %v4393
  %v4395 = vsel %vm4394, %v4392, %v4393
  %vm4396 = vcmp.lt.s32.totalorder %v4395, 0
  %v4397 = vsel %vm4396, 31, %v4395
  %vm4398 = vcmp.eq.s32.totalorder %v33, %v4397
  %vm4399 = vcmp.eq.s32.totalorder %v34, %v4397
  %vm4400 = vcmp.eq.s32.totalorder %v35, %v4397
  %vm4401 = vcmp.eq.s32.totalorder %v36, %v4397
  %v4402 = vsel %vm4398, 1, 0
  %v4403 = vsel %vm4399, 1, 0
  %v4404 = vsel %vm4400, 1, 0
  %v4405 = vsel %vm4401, 1, 0
  %v4406 = vcvt.s32.f32 %v4402
  %v4407 = vcvt.s32.f32 %v4403
  %v4408 = vcvt.s32.f32 %v4404
  %v4409 = vcvt.s32.f32 %v4405
  %v4411 = vsel %vm1051, %v30, 0
  %v4414 = vsel %vm1051, %v31, 0
  %4416 = vmatprep.subr.mxu0 0.0
  %v4417 = vand.u32 %v4406, 4294901760
  %4418 = vmatpush1.msra.mxu0 %v4417
  %4419 = vmatprep.subr.mxu0 0.0
  %v4420 = vand.u32 %v4407, 4294901760
  %4421 = vmatpush1.msra.mxu0 %v4420
  %4422 = vmatprep.subr.mxu0 0.0
  %v4423 = vand.u32 %v4408, 4294901760
  %4424 = vmatpush1.msra.mxu0 %v4423
  %4425 = vmatprep.subr.mxu0 0.0
  %v4426 = vand.u32 %v4409, 4294901760
  %4427 = vmatpush1.msra.mxu0 %v4426
  %4428 = vmatprep.subr.mxu0 0.0
  %4429 = vmatpush1.msra.mxu0 0.0
  %4430 = vmatprep.subr.mxu0 0.0
  %4431 = vmatpush1.msra.mxu0 0.0
  %4432 = vmatprep.subr.mxu0 0.0
  %4433 = vmatpush1.msra.mxu0 0.0
  %4434 = vmatprep.subr.mxu0 0.0
  %4435 = vmatpush1.msra.mxu0 0.0
  %4436 = vmatprep.subr.mxu0 0.0
  %4437 = vmatpush1.msra.mxu0 0.0
  %4438 = vmatprep.subr.mxu0 0.0
  %4439 = vmatpush1.msra.mxu0 0.0
  %4440 = vmatprep.subr.mxu0 0.0
  %4441 = vmatpush1.msra.mxu0 0.0
  %4442 = vmatprep.subr.mxu0 0.0
  %4443 = vmatpush1.msra.mxu0 0.0
  %4444 = vmatprep.subr.mxu0 0.0
  %4445 = vmatpush1.msra.mxu0 0.0
  %4446 = vmatprep.subr.mxu0 0.0
  %4447 = vmatpush1.msra.mxu0 0.0
  %4448 = vmatprep.subr.mxu0 0.0
  %4449 = vmatpush1.msra.mxu0 0.0
  %4450 = vmatprep.subr.mxu0 0.0
  %4451 = vmatpush1.msra.mxu0 0.0
  %4452 = vmatprep.subr.mxu0 0.0
  %4453 = vmatpush1.msra.mxu0 0.0
  %4454 = vmatprep.subr.mxu0 0.0
  %4455 = vmatpush1.msra.mxu0 0.0
  %4456 = vmatprep.subr.mxu0 0.0
  %4457 = vmatpush1.msra.mxu0 0.0
  %4458 = vmatprep.subr.mxu0 0.0
  %4459 = vmatpush1.msra.mxu0 0.0
  %4460 = vmatprep.subr.mxu0 0.0
  %4461 = vmatpush1.msra.mxu0 0.0
  %4462 = vmatprep.subr.mxu0 0.0
  %4463 = vmatpush1.msra.mxu0 0.0
  %4464 = vmatprep.subr.mxu0 0.0
  %4465 = vmatpush1.msra.mxu0 0.0
  %4466 = vmatprep.subr.mxu0 0.0
  %4467 = vmatpush1.msra.mxu0 0.0
  %4468 = vmatprep.subr.mxu0 0.0
  %4469 = vmatpush1.msra.mxu0 0.0
  %4470 = vmatprep.subr.mxu0 0.0
  %4471 = vmatpush1.msra.mxu0 0.0
  %4472 = vmatprep.subr.mxu0 0.0
  %4473 = vmatpush1.msra.mxu0 0.0
  %4474 = vmatprep.subr.mxu0 0.0
  %4475 = vmatpush1.msra.mxu0 0.0
  %4476 = vmatprep.subr.mxu0 0.0
  %4477 = vmatpush1.msra.mxu0 0.0
  %4478 = vmatprep.subr.mxu0 0.0
  %4479 = vmatpush1.msra.mxu0 0.0
  %4480 = vmatprep.subr.mxu0 0.0
  %4481 = vmatpush1.msra.mxu0 0.0
  %4482 = vmatprep.subr.mxu0 0.0
  %4483 = vmatpush1.msra.mxu0 0.0
  %4484 = vmatprep.mubr.f32.mxu0 0.0
  %v4485 = vand.u32 %v4411, 4294901760
  %v4486 = vsub.f32 %v4411, %v4485
  %v4487 = vand.u32 %v4486, 4294901760
  %v4488 = vsub.f32 %v4486, %v4487
  %v4489 = vand.u32 %v4488, 4294901760
  %4490 = vmatmul.mubr.f32.gmra.mrb[0].mxu0 %v4489
  %v4491 = vpop.f32.mrb[0].mxu0
  %v4492 = vadd.f32 0.0, %v4491
  %v4493 = vpop.f32.mrb[0].mxu0
  %4494 = vmatprep.mubr.f32.mxu0 0.0
  %v4495 = vand.u32 %v4414, 4294901760
  %v4496 = vsub.f32 %v4414, %v4495
  %v4497 = vand.u32 %v4496, 4294901760
  %v4498 = vsub.f32 %v4496, %v4497
  %v4499 = vand.u32 %v4498, 4294901760
  %4500 = vmatmul.mubr.f32.gmra.mrb[0].mxu0 %v4499
  %v4501 = vpop.f32.mrb[0].mxu0
  %v4502 = vadd.f32 0.0, %v4501
  %v4503 = vpop.f32.mrb[0].mxu0
  %4504 = vdwg.mxu0
  %4505 = vmatprep.subr.mxu0 0.0
  %v4506 = vand.u32 %v4406, 4294901760
  %v4507 = vsub.f32 %v4406, %v4506
  %v4508 = vand.u32 %v4507, 4294901760
  %v4509 = vsub.f32 %v4507, %v4508
  %v4510 = vand.u32 %v4509, 4294901760
  %4511 = vmatpush1.msra.mxu0 %v4510
  %4512 = vmatprep.subr.mxu0 0.0
  %v4513 = vand.u32 %v4407, 4294901760
  %v4514 = vsub.f32 %v4407, %v4513
  %v4515 = vand.u32 %v4514, 4294901760
  %v4516 = vsub.f32 %v4514, %v4515
  %v4517 = vand.u32 %v4516, 4294901760
  %4518 = vmatpush1.msra.mxu0 %v4517
  %4519 = vmatprep.subr.mxu0 0.0
  %v4520 = vand.u32 %v4408, 4294901760
  %v4521 = vsub.f32 %v4408, %v4520
  %v4522 = vand.u32 %v4521, 4294901760
  %v4523 = vsub.f32 %v4521, %v4522
  %v4524 = vand.u32 %v4523, 4294901760
  %4525 = vmatpush1.msra.mxu0 %v4524
  %4526 = vmatprep.subr.mxu0 0.0
  %v4527 = vand.u32 %v4409, 4294901760
  %v4528 = vsub.f32 %v4409, %v4527
  %v4529 = vand.u32 %v4528, 4294901760
  %v4530 = vsub.f32 %v4528, %v4529
  %v4531 = vand.u32 %v4530, 4294901760
  %4532 = vmatpush1.msra.mxu0 %v4531
  %4533 = vmatprep.subr.mxu0 0.0
  %4534 = vmatpush1.msra.mxu0 0.0
  %4535 = vmatprep.subr.mxu0 0.0
  %4536 = vmatpush1.msra.mxu0 0.0
  %4537 = vmatprep.subr.mxu0 0.0
  %4538 = vmatpush1.msra.mxu0 0.0
  %4539 = vmatprep.subr.mxu0 0.0
  %4540 = vmatpush1.msra.mxu0 0.0
  %4541 = vmatprep.subr.mxu0 0.0
  %4542 = vmatpush1.msra.mxu0 0.0
  %4543 = vmatprep.subr.mxu0 0.0
  %4544 = vmatpush1.msra.mxu0 0.0
  %4545 = vmatprep.subr.mxu0 0.0
  %4546 = vmatpush1.msra.mxu0 0.0
  %4547 = vmatprep.subr.mxu0 0.0
  %4548 = vmatpush1.msra.mxu0 0.0
  %4549 = vmatprep.subr.mxu0 0.0
  %4550 = vmatpush1.msra.mxu0 0.0
  %4551 = vmatprep.subr.mxu0 0.0
  %4552 = vmatpush1.msra.mxu0 0.0
  %4553 = vmatprep.subr.mxu0 0.0
  %4554 = vmatpush1.msra.mxu0 0.0
  %4555 = vmatprep.subr.mxu0 0.0
  %4556 = vmatpush1.msra.mxu0 0.0
  %4557 = vmatprep.subr.mxu0 0.0
  %4558 = vmatpush1.msra.mxu0 0.0
  %4559 = vmatprep.subr.mxu0 0.0
  %4560 = vmatpush1.msra.mxu0 0.0
  %4561 = vmatprep.subr.mxu0 0.0
  %4562 = vmatpush1.msra.mxu0 0.0
  %4563 = vmatprep.subr.mxu0 0.0
  %4564 = vmatpush1.msra.mxu0 0.0
  %4565 = vmatprep.subr.mxu0 0.0
  %4566 = vmatpush1.msra.mxu0 0.0
  %4567 = vmatprep.subr.mxu0 0.0
  %4568 = vmatpush1.msra.mxu0 0.0
  %4569 = vmatprep.subr.mxu0 0.0
  %4570 = vmatpush1.msra.mxu0 0.0
  %4571 = vmatprep.subr.mxu0 0.0
  %4572 = vmatpush1.msra.mxu0 0.0
  %4573 = vmatprep.subr.mxu0 0.0
  %4574 = vmatpush1.msra.mxu0 0.0
  %4575 = vmatprep.subr.mxu0 0.0
  %4576 = vmatpush1.msra.mxu0 0.0
  %4577 = vmatprep.subr.mxu0 0.0
  %4578 = vmatpush1.msra.mxu0 0.0
  %4579 = vmatprep.subr.mxu0 0.0
  %4580 = vmatpush1.msra.mxu0 0.0
  %4581 = vmatprep.subr.mxu0 0.0
  %4582 = vmatpush1.msra.mxu0 0.0
  %4583 = vmatprep.subr.mxu0 0.0
  %4584 = vmatpush1.msra.mxu0 0.0
  %4585 = vmatprep.subr.mxu0 0.0
  %4586 = vmatpush1.msra.mxu0 0.0
  %4587 = vmatprep.subr.mxu0 0.0
  %4588 = vmatpush1.msra.mxu0 0.0
  %4589 = vmatprep.mubr.f32.mxu0 0.0
  %v4590 = vand.u32 %v4411, 4294901760
  %4591 = vmatmul.mubr.f32.gmra.mrb[0].mxu0 %v4590
  %v4592 = vpop.f32.mrb[0].mxu0
  %v4593 = vadd.f32 %v4492, %v4592
  %v4594 = vpop.f32.mrb[0].mxu0
  %4595 = vmatprep.mubr.f32.mxu0 0.0
  %v4596 = vand.u32 %v4414, 4294901760
  %4597 = vmatmul.mubr.f32.gmra.mrb[0].mxu0 %v4596
  %v4598 = vpop.f32.mrb[0].mxu0
  %v4599 = vadd.f32 %v4502, %v4598
  %v4600 = vpop.f32.mrb[0].mxu0
  %4601 = vdwg.mxu0
  %4602 = vmatprep.subr.mxu0 0.0
  %v4603 = vand.u32 %v4406, 4294901760
  %v4604 = vsub.f32 %v4406, %v4603
  %4605 = vmatpush1.msra.mxu0 %v4604
  %4606 = vmatprep.subr.mxu0 0.0
  %v4607 = vand.u32 %v4407, 4294901760
  %v4608 = vsub.f32 %v4407, %v4607
  %4609 = vmatpush1.msra.mxu0 %v4608
  %4610 = vmatprep.subr.mxu0 0.0
  %v4611 = vand.u32 %v4408, 4294901760
  %v4612 = vsub.f32 %v4408, %v4611
  %4613 = vmatpush1.msra.mxu0 %v4612
  %4614 = vmatprep.subr.mxu0 0.0
  %v4615 = vand.u32 %v4409, 4294901760
  %v4616 = vsub.f32 %v4409, %v4615
  %4617 = vmatpush1.msra.mxu0 %v4616
  %4618 = vmatprep.subr.mxu0 0.0
  %4619 = vmatpush1.msra.mxu0 0.0
  %4620 = vmatprep.subr.mxu0 0.0
  %4621 = vmatpush1.msra.mxu0 0.0
  %4622 = vmatprep.subr.mxu0 0.0
  %4623 = vmatpush1.msra.mxu0 0.0
  %4624 = vmatprep.subr.mxu0 0.0
  %4625 = vmatpush1.msra.mxu0 0.0
  %4626 = vmatprep.subr.mxu0 0.0
  %4627 = vmatpush1.msra.mxu0 0.0
  %4628 = vmatprep.subr.mxu0 0.0
  %4629 = vmatpush1.msra.mxu0 0.0
  %4630 = vmatprep.subr.mxu0 0.0
  %4631 = vmatpush1.msra.mxu0 0.0
  %4632 = vmatprep.subr.mxu0 0.0
  %4633 = vmatpush1.msra.mxu0 0.0
  %4634 = vmatprep.subr.mxu0 0.0
  %4635 = vmatpush1.msra.mxu0 0.0
  %4636 = vmatprep.subr.mxu0 0.0
  %4637 = vmatpush1.msra.mxu0 0.0
  %4638 = vmatprep.subr.mxu0 0.0
  %4639 = vmatpush1.msra.mxu0 0.0
  %4640 = vmatprep.subr.mxu0 0.0
  %4641 = vmatpush1.msra.mxu0 0.0
  %4642 = vmatprep.subr.mxu0 0.0
  %4643 = vmatpush1.msra.mxu0 0.0
  %4644 = vmatprep.subr.mxu0 0.0
  %4645 = vmatpush1.msra.mxu0 0.0
  %4646 = vmatprep.subr.mxu0 0.0
  %4647 = vmatpush1.msra.mxu0 0.0
  %4648 = vmatprep.subr.mxu0 0.0
  %4649 = vmatpush1.msra.mxu0 0.0
  %4650 = vmatprep.subr.mxu0 0.0
  %4651 = vmatpush1.msra.mxu0 0.0
  %4652 = vmatprep.subr.mxu0 0.0
  %4653 = vmatpush1.msra.mxu0 0.0
  %4654 = vmatprep.subr.mxu0 0.0
  %4655 = vmatpush1.msra.mxu0 0.0
  %4656 = vmatprep.subr.mxu0 0.0
  %4657 = vmatpush1.msra.mxu0 0.0
  %4658 = vmatprep.subr.mxu0 0.0
  %4659 = vmatpush1.msra.mxu0 0.0
  %4660 = vmatprep.subr.mxu0 0.0
  %4661 = vmatpush1.msra.mxu0 0.0
  %4662 = vmatprep.subr.mxu0 0.0
  %4663 = vmatpush1.msra.mxu0 0.0
  %4664 = vmatprep.subr.mxu0 0.0
  %4665 = vmatpush1.msra.mxu0 0.0
  %4666 = vmatprep.subr.mxu0 0.0
  %4667 = vmatpush1.msra.mxu0 0.0
  %4668 = vmatprep.subr.mxu0 0.0
  %4669 = vmatpush1.msra.mxu0 0.0
  %4670 = vmatprep.subr.mxu0 0.0
  %4671 = vmatpush1.msra.mxu0 0.0
  %4672 = vmatprep.subr.mxu0 0.0
  %4673 = vmatpush1.msra.mxu0 0.0
  %4674 = vmatprep.mubr.f32.mxu0 0.0
  %v4675 = vand.u32 %v4411, 4294901760
  %v4676 = vsub.f32 %v4411, %v4675
  %4677 = vmatmul.mubr.f32.gmra.mrb[0].mxu0 %v4676
  %v4678 = vpop.f32.mrb[0].mxu0
  %v4679 = vadd.f32 %v4593, %v4678
  %v4680 = vpop.f32.mrb[0].mxu0
  %4681 = vmatprep.mubr.f32.mxu0 0.0
  %v4682 = vand.u32 %v4414, 4294901760
  %v4683 = vsub.f32 %v4414, %v4682
  %4684 = vmatmul.mubr.f32.gmra.mrb[0].mxu0 %v4683
  %v4685 = vpop.f32.mrb[0].mxu0
  %v4686 = vadd.f32 %v4599, %v4685
  %v4687 = vpop.f32.mrb[0].mxu0
  %4688 = vdwg.mxu0
  %4689 = vmatprep.subr.mxu0 0.0
  %v4690 = vand.u32 %v4406, 4294901760
  %4691 = vmatpush1.msra.mxu0 %v4690
  %4692 = vmatprep.subr.mxu0 0.0
  %v4693 = vand.u32 %v4407, 4294901760
  %4694 = vmatpush1.msra.mxu0 %v4693
  %4695 = vmatprep.subr.mxu0 0.0
  %v4696 = vand.u32 %v4408, 4294901760
  %4697 = vmatpush1.msra.mxu0 %v4696
  %4698 = vmatprep.subr.mxu0 0.0
  %v4699 = vand.u32 %v4409, 4294901760
  %4700 = vmatpush1.msra.mxu0 %v4699
  %4701 = vmatprep.subr.mxu0 0.0
  %4702 = vmatpush1.msra.mxu0 0.0
  %4703 = vmatprep.subr.mxu0 0.0
  %4704 = vmatpush1.msra.mxu0 0.0
  %4705 = vmatprep.subr.mxu0 0.0
  %4706 = vmatpush1.msra.mxu0 0.0
  %4707 = vmatprep.subr.mxu0 0.0
  %4708 = vmatpush1.msra.mxu0 0.0
  %4709 = vmatprep.subr.mxu0 0.0
  %4710 = vmatpush1.msra.mxu0 0.0
  %4711 = vmatprep.subr.mxu0 0.0
  %4712 = vmatpush1.msra.mxu0 0.0
  %4713 = vmatprep.subr.mxu0 0.0
  %4714 = vmatpush1.msra.mxu0 0.0
  %4715 = vmatprep.subr.mxu0 0.0
  %4716 = vmatpush1.msra.mxu0 0.0
  %4717 = vmatprep.subr.mxu0 0.0
  %4718 = vmatpush1.msra.mxu0 0.0
  %4719 = vmatprep.subr.mxu0 0.0
  %4720 = vmatpush1.msra.mxu0 0.0
  %4721 = vmatprep.subr.mxu0 0.0
  %4722 = vmatpush1.msra.mxu0 0.0
  %4723 = vmatprep.subr.mxu0 0.0
  %4724 = vmatpush1.msra.mxu0 0.0
  %4725 = vmatprep.subr.mxu0 0.0
  %4726 = vmatpush1.msra.mxu0 0.0
  %4727 = vmatprep.subr.mxu0 0.0
  %4728 = vmatpush1.msra.mxu0 0.0
  %4729 = vmatprep.subr.mxu0 0.0
  %4730 = vmatpush1.msra.mxu0 0.0
  %4731 = vmatprep.subr.mxu0 0.0
  %4732 = vmatpush1.msra.mxu0 0.0
  %4733 = vmatprep.subr.mxu0 0.0
  %4734 = vmatpush1.msra.mxu0 0.0
  %4735 = vmatprep.subr.mxu0 0.0
  %4736 = vmatpush1.msra.mxu0 0.0
  %4737 = vmatprep.subr.mxu0 0.0
  %4738 = vmatpush1.msra.mxu0 0.0
  %4739 = vmatprep.subr.mxu0 0.0
  %4740 = vmatpush1.msra.mxu0 0.0
  %4741 = vmatprep.subr.mxu0 0.0
  %4742 = vmatpush1.msra.mxu0 0.0
  %4743 = vmatprep.subr.mxu0 0.0
  %4744 = vmatpush1.msra.mxu0 0.0
  %4745 = vmatprep.subr.mxu0 0.0
  %4746 = vmatpush1.msra.mxu0 0.0
  %4747 = vmatprep.subr.mxu0 0.0
  %4748 = vmatpush1.msra.mxu0 0.0
  %4749 = vmatprep.subr.mxu0 0.0
  %4750 = vmatpush1.msra.mxu0 0.0
  %4751 = vmatprep.subr.mxu0 0.0
  %4752 = vmatpush1.msra.mxu0 0.0
  %4753 = vmatprep.subr.mxu0 0.0
  %4754 = vmatpush1.msra.mxu0 0.0
  %4755 = vmatprep.subr.mxu0 0.0
  %4756 = vmatpush1.msra.mxu0 0.0
  %4757 = vmatprep.mubr.f32.mxu0 0.0
  %v4758 = vand.u32 %v4411, 4294901760
  %v4759 = vsub.f32 %v4411, %v4758
  %v4760 = vand.u32 %v4759, 4294901760
  %4761 = vmatmul.mubr.f32.gmra.mrb[0].mxu0 %v4760
  %v4762 = vpop.f32.mrb[0].mxu0
  %v4763 = vadd.f32 %v4679, %v4762
  %v4764 = vpop.f32.mrb[0].mxu0
  %4765 = vmatprep.mubr.f32.mxu0 0.0
  %v4766 = vand.u32 %v4414, 4294901760
  %v4767 = vsub.f32 %v4414, %v4766
  %v4768 = vand.u32 %v4767, 4294901760
  %4769 = vmatmul.mubr.f32.gmra.mrb[0].mxu0 %v4768
  %v4770 = vpop.f32.mrb[0].mxu0
  %v4771 = vadd.f32 %v4686, %v4770
  %v4772 = vpop.f32.mrb[0].mxu0
  %4773 = vdwg.mxu0
  %4774 = vmatprep.subr.mxu0 0.0
  %v4775 = vand.u32 %v4406, 4294901760
  %v4776 = vsub.f32 %v4406, %v4775
  %v4777 = vand.u32 %v4776, 4294901760
  %4778 = vmatpush1.msra.mxu0 %v4777
  %4779 = vmatprep.subr.mxu0 0.0
  %v4780 = vand.u32 %v4407, 4294901760
  %v4781 = vsub.f32 %v4407, %v4780
  %v4782 = vand.u32 %v4781, 4294901760
  %4783 = vmatpush1.msra.mxu0 %v4782
  %4784 = vmatprep.subr.mxu0 0.0
  %v4785 = vand.u32 %v4408, 4294901760
  %v4786 = vsub.f32 %v4408, %v4785
  %v4787 = vand.u32 %v4786, 4294901760
  %4788 = vmatpush1.msra.mxu0 %v4787
  %4789 = vmatprep.subr.mxu0 0.0
  %v4790 = vand.u32 %v4409, 4294901760
  %v4791 = vsub.f32 %v4409, %v4790
  %v4792 = vand.u32 %v4791, 4294901760
  %4793 = vmatpush1.msra.mxu0 %v4792
  %4794 = vmatprep.subr.mxu0 0.0
  %4795 = vmatpush1.msra.mxu0 0.0
  %4796 = vmatprep.subr.mxu0 0.0
  %4797 = vmatpush1.msra.mxu0 0.0
  %4798 = vmatprep.subr.mxu0 0.0
  %4799 = vmatpush1.msra.mxu0 0.0
  %4800 = vmatprep.subr.mxu0 0.0
  %4801 = vmatpush1.msra.mxu0 0.0
  %4802 = vmatprep.subr.mxu0 0.0
  %4803 = vmatpush1.msra.mxu0 0.0
  %4804 = vmatprep.subr.mxu0 0.0
  %4805 = vmatpush1.msra.mxu0 0.0
  %4806 = vmatprep.subr.mxu0 0.0
  %4807 = vmatpush1.msra.mxu0 0.0
  %4808 = vmatprep.subr.mxu0 0.0
  %4809 = vmatpush1.msra.mxu0 0.0
  %4810 = vmatprep.subr.mxu0 0.0
  %4811 = vmatpush1.msra.mxu0 0.0
  %4812 = vmatprep.subr.mxu0 0.0
  %4813 = vmatpush1.msra.mxu0 0.0
  %4814 = vmatprep.subr.mxu0 0.0
  %4815 = vmatpush1.msra.mxu0 0.0
  %4816 = vmatprep.subr.mxu0 0.0
  %4817 = vmatpush1.msra.mxu0 0.0
  %4818 = vmatprep.subr.mxu0 0.0
  %4819 = vmatpush1.msra.mxu0 0.0
  %4820 = vmatprep.subr.mxu0 0.0
  %4821 = vmatpush1.msra.mxu0 0.0
  %4822 = vmatprep.subr.mxu0 0.0
  %4823 = vmatpush1.msra.mxu0 0.0
  %4824 = vmatprep.subr.mxu0 0.0
  %4825 = vmatpush1.msra.mxu0 0.0
  %4826 = vmatprep.subr.mxu0 0.0
  %4827 = vmatpush1.msra.mxu0 0.0
  %4828 = vmatprep.subr.mxu0 0.0
  %4829 = vmatpush1.msra.mxu0 0.0
  %4830 = vmatprep.subr.mxu0 0.0
  %4831 = vmatpush1.msra.mxu0 0.0
  %4832 = vmatprep.subr.mxu0 0.0
  %4833 = vmatpush1.msra.mxu0 0.0
  %4834 = vmatprep.subr.mxu0 0.0
  %4835 = vmatpush1.msra.mxu0 0.0
  %4836 = vmatprep.subr.mxu0 0.0
  %4837 = vmatpush1.msra.mxu0 0.0
  %4838 = vmatprep.subr.mxu0 0.0
  %4839 = vmatpush1.msra.mxu0 0.0
  %4840 = vmatprep.subr.mxu0 0.0
  %4841 = vmatpush1.msra.mxu0 0.0
  %4842 = vmatprep.subr.mxu0 0.0
  %4843 = vmatpush1.msra.mxu0 0.0
  %4844 = vmatprep.subr.mxu0 0.0
  %4845 = vmatpush1.msra.mxu0 0.0
  %4846 = vmatprep.subr.mxu0 0.0
  %4847 = vmatpush1.msra.mxu0 0.0
  %4848 = vmatprep.subr.mxu0 0.0
  %4849 = vmatpush1.msra.mxu0 0.0
  %4850 = vmatprep.mubr.f32.mxu0 0.0
  %v4851 = vand.u32 %v4411, 4294901760
  %4852 = vmatmul.mubr.f32.gmra.mrb[0].mxu0 %v4851
  %v4853 = vpop.f32.mrb[0].mxu0
  %v4854 = vadd.f32 %v4763, %v4853
  %v4855 = vpop.f32.mrb[0].mxu0
  %4856 = vmatprep.mubr.f32.mxu0 0.0
  %v4857 = vand.u32 %v4414, 4294901760
  %4858 = vmatmul.mubr.f32.gmra.mrb[0].mxu0 %v4857
  %v4859 = vpop.f32.mrb[0].mxu0
  %v4860 = vadd.f32 %v4771, %v4859
  %v4861 = vpop.f32.mrb[0].mxu0
  %4862 = vdwg.mxu0
  %4863 = vmatprep.subr.mxu0 0.0
  %v4864 = vand.u32 %v4406, 4294901760
  %4865 = vmatpush1.msra.mxu0 %v4864
  %4866 = vmatprep.subr.mxu0 0.0
  %v4867 = vand.u32 %v4407, 4294901760
  %4868 = vmatpush1.msra.mxu0 %v4867
  %4869 = vmatprep.subr.mxu0 0.0
  %v4870 = vand.u32 %v4408, 4294901760
  %4871 = vmatpush1.msra.mxu0 %v4870
  %4872 = vmatprep.subr.mxu0 0.0
  %v4873 = vand.u32 %v4409, 4294901760
  %4874 = vmatpush1.msra.mxu0 %v4873
  %4875 = vmatprep.subr.mxu0 0.0
  %4876 = vmatpush1.msra.mxu0 0.0
  %4877 = vmatprep.subr.mxu0 0.0
  %4878 = vmatpush1.msra.mxu0 0.0
  %4879 = vmatprep.subr.mxu0 0.0
  %4880 = vmatpush1.msra.mxu0 0.0
  %4881 = vmatprep.subr.mxu0 0.0
  %4882 = vmatpush1.msra.mxu0 0.0
  %4883 = vmatprep.subr.mxu0 0.0
  %4884 = vmatpush1.msra.mxu0 0.0
  %4885 = vmatprep.subr.mxu0 0.0
  %4886 = vmatpush1.msra.mxu0 0.0
  %4887 = vmatprep.subr.mxu0 0.0
  %4888 = vmatpush1.msra.mxu0 0.0
  %4889 = vmatprep.subr.mxu0 0.0
  %4890 = vmatpush1.msra.mxu0 0.0
  %4891 = vmatprep.subr.mxu0 0.0
  %4892 = vmatpush1.msra.mxu0 0.0
  %4893 = vmatprep.subr.mxu0 0.0
  %4894 = vmatpush1.msra.mxu0 0.0
  %4895 = vmatprep.subr.mxu0 0.0
  %4896 = vmatpush1.msra.mxu0 0.0
  %4897 = vmatprep.subr.mxu0 0.0
  %4898 = vmatpush1.msra.mxu0 0.0
  %4899 = vmatprep.subr.mxu0 0.0
  %4900 = vmatpush1.msra.mxu0 0.0
  %4901 = vmatprep.subr.mxu0 0.0
  %4902 = vmatpush1.msra.mxu0 0.0
  %4903 = vmatprep.subr.mxu0 0.0
  %4904 = vmatpush1.msra.mxu0 0.0
  %4905 = vmatprep.subr.mxu0 0.0
  %4906 = vmatpush1.msra.mxu0 0.0
  %4907 = vmatprep.subr.mxu0 0.0
  %4908 = vmatpush1.msra.mxu0 0.0
  %4909 = vmatprep.subr.mxu0 0.0
  %4910 = vmatpush1.msra.mxu0 0.0
  %4911 = vmatprep.subr.mxu0 0.0
  %4912 = vmatpush1.msra.mxu0 0.0
  %4913 = vmatprep.subr.mxu0 0.0
  %4914 = vmatpush1.msra.mxu0 0.0
  %4915 = vmatprep.subr.mxu0 0.0
  %4916 = vmatpush1.msra.mxu0 0.0
  %4917 = vmatprep.subr.mxu0 0.0
  %4918 = vmatpush1.msra.mxu0 0.0
  %4919 = vmatprep.subr.mxu0 0.0
  %4920 = vmatpush1.msra.mxu0 0.0
  %4921 = vmatprep.subr.mxu0 0.0
  %4922 = vmatpush1.msra.mxu0 0.0
  %4923 = vmatprep.subr.mxu0 0.0
  %4924 = vmatpush1.msra.mxu0 0.0
  %4925 = vmatprep.subr.mxu0 0.0
  %4926 = vmatpush1.msra.mxu0 0.0
  %4927 = vmatprep.subr.mxu0 0.0
  %4928 = vmatpush1.msra.mxu0 0.0
  %4929 = vmatprep.subr.mxu0 0.0
  %4930 = vmatpush1.msra.mxu0 0.0
  %4931 = vmatprep.mubr.f32.mxu0 0.0
  %v4932 = vand.u32 %v4411, 4294901760
  %4933 = vmatmul.mubr.f32.gmra.mrb[0].mxu0 %v4932
  %v4934 = vpop.f32.mrb[0].mxu0
  %v4935 = vadd.f32 %v4854, %v4934
  %v4936 = vpop.f32.mrb[0].mxu0
  %4937 = vmatprep.mubr.f32.mxu0 0.0
  %v4938 = vand.u32 %v4414, 4294901760
  %4939 = vmatmul.mubr.f32.gmra.mrb[0].mxu0 %v4938
  %v4940 = vpop.f32.mrb[0].mxu0
  %v4941 = vadd.f32 %v4860, %v4940
  %v4942 = vpop.f32.mrb[0].mxu0
  %4943 = vdwg.mxu0
  %v4945 = vrot.slane %v4935, 3
  %v4947 = vsub.f32 %v1672, %v4945
  %v4948 = vrot.slane %v4935, 6
  %v4950 = vsub.f32 %v3358, %v4948
  %v4951 = vmul.f32 %v4947, %v4950
  %v4952 = vrot.slane %v4935, 4
  %v4954 = vsub.f32 %v3358, %v4952
  %v4955 = vrot.slane %v4935, 5
  %v4957 = vsub.f32 %v1672, %v4955
  %v4958 = vmul.f32 %v4954, %v4957
  %v4959 = vsub.f32 %v4951, %v4958
  %v4960 = vand.u32 2147483647, %v4959
  %v4961 = vmul.f32 %v4960, 0.5
  %v4962 = vrot.slane %v4935, 1
  %v4964 = vsub.f32 %v1672, %v4962
  %v4965 = vmul.f32 %v4964, %v4950
  %v4966 = vrot.slane %v4935, 2
  %v4968 = vsub.f32 %v3358, %v4966
  %v4969 = vmul.f32 %v4968, %v4957
  %v4970 = vsub.f32 %v4965, %v4969
  %v4971 = vand.u32 2147483647, %v4970
  %v4972 = vmul.f32 %v4971, 0.5
  %v4973 = vmul.f32 %v4964, %v4954
  %v4974 = vmul.f32 %v4968, %v4947
  %v4975 = vsub.f32 %v4973, %v4974
  %v4976 = vand.u32 2147483647, %v4975
  %v4977 = vmul.f32 %v4976, 0.5
  %v4978 = vadd.f32 %v4961, %v4972
  %v4979 = vadd.f32 %v4978, %v4977
  %v4980 = vrcp.pop %v4979
  %v4982 = vrot.slane %v4961, 1
  %v4984 = vmul.f32 %v4935, %v4982
  %v4986 = vrot.slane %v4972, 7
  %v4988 = vmul.f32 %v4941, %v4986
  %v4990 = vrot.slane %v4988, 2
  %v4992 = vadd.f32 %v4984, %v4990
  %v4994 = vrot.slane %v4977, 5
  %v4996 = vmul.f32 %v4941, %v4994
  %v4998 = vrot.slane %v4996, 4
  %v5000 = vadd.f32 %v4992, %v4998
  %v5002 = vrot.slane %v4980, 1
  %v5004 = vmul.f32 %v5000, %v5002
  %v5005 = vmul.f32 %v4935, %v4961
  %v5006 = vrot.slane %v4972, 6
  %v5008 = vmul.f32 %v4941, %v5006
  %v5010 = vrot.slane %v5008, 2
  %v5012 = vadd.f32 %v5005, %v5010
  %v5013 = vrot.slane %v4977, 4
  %v5015 = vmul.f32 %v4941, %v5013
  %v5017 = vrot.slane %v5015, 4
  %v5019 = vadd.f32 %v5012, %v5017
  %v5020 = vmul.f32 %v5019, %v4980
  %v5021 = vsub.f32 %v4935, %v4948
  %v5022 = vsub.f32 %v4935, %v4952
  %v5023 = vsub.f32 %v4941, %v4948
  %v5024 = vsub.f32 %v4941, %v4952
  %v5026 = vrot.slane %v5022, 3
  %v5028 = vmul.f32 %v5021, %v5026
  %v5030 = vrot.slane %v5021, 7
  %v5032 = vmul.f32 %v5022, %v5030
  %v5034 = vrot.slane %v5032, 2
  %v5036 = vsub.f32 %v5028, %v5034
  %v5037 = vrcp.pop %v5036
  %v5039 = vrot.slane %v5037, 5
  %v5041 = vmul.f32 %v5022, %v5039
  %v5042 = vsub.f32 0.0, %v5022
  %v5043 = vrot.slane %v5037, 6
  %v5045 = vmul.f32 %v5042, %v5043
  %v5046 = vsub.f32 0.0, %v5021
  %v5047 = vrot.slane %v5037, 7
  %v5049 = vmul.f32 %v5046, %v5047
  %v5050 = vmul.f32 %v5021, %v5037
  %v5052 = vrot.slane %v5041, 5
  %v5054 = vmul.f32 %v5023, %v5052
  %v5056 = vrot.slane %v5049, 1
  %v5058 = vmul.f32 %v5024, %v5056
  %v5060 = vrot.slane %v5058, 2
  %v5062 = vadd.f32 %v5054, %v5060
  %v5064 = vrot.slane %v5045, 4
  %v5066 = vmul.f32 %v5023, %v5064
  %v5067 = vmul.f32 %v5024, %v5050
  %v5069 = vrot.slane %v5067, 2
  %v5071 = vadd.f32 %v5066, %v5069
  %v5072 = vrot.slane %v5041, 4
  %v5074 = vmul.f32 %v5023, %v5072
  %v5075 = vmul.f32 %v5024, %v5049
  %v5077 = vrot.slane %v5075, 2
  %v5079 = vadd.f32 %v5074, %v5077
  %v5080 = vrot.slane %v5045, 3
  %v5082 = vmul.f32 %v5023, %v5080
  %v5084 = vrot.slane %v5050, 7
  %v5086 = vmul.f32 %v5024, %v5084
  %v5088 = vrot.slane %v5086, 2
  %v5090 = vadd.f32 %v5082, %v5088
  %v5091 = vmul.f32 %v3400, %v1716
  %v5092 = vmul.f32 %v3400, %v1725
  %v5094 = vrot.slane %v1733, 1
  %v5096 = vmul.f32 %v5062, %v5094
  %v5098 = vrot.slane %v3417, 1
  %v5100 = vmul.f32 %v5071, %v5098
  %v5101 = vmul.f32 %v5100, %v1716
  %v5102 = vadd.f32 %v5096, %v5101
  %v5104 = vrot.slane %v1744, 1
  %v5106 = vmul.f32 %v5062, %v5104
  %v5107 = vmul.f32 %v5100, %v1725
  %v5108 = vadd.f32 %v5106, %v5107
  %v5110 = vrot.slane %v3428, 1
  %v5112 = vmul.f32 %v5071, %v5110
  %v5113 = vmul.f32 %v5079, %v1733
  %v5114 = vmul.f32 %v5090, %v3417
  %v5116 = vrot.slane %v1716, 7
  %v5118 = vmul.f32 %v5114, %v5116
  %v5119 = vadd.f32 %v5113, %v5118
  %v5120 = vmul.f32 %v5079, %v1744
  %v5122 = vrot.slane %v1725, 7
  %v5124 = vmul.f32 %v5114, %v5122
  %v5125 = vadd.f32 %v5120, %v5124
  %v5126 = vmul.f32 %v5090, %v3428
  %v5127 = vrot.slane %v1672, 6
  %v5130 = vrot.slane %v3336, 4
  %v5132 = vrot.slane %v3358, 4
  %v5135 = vrot.slane %v5004, 2
  %v5138 = vrot.slane %v5020, 2
  %v5140 = vrot.slane %v1716, 2
  %v5142 = vrot.slane %v1725, 1
  %v5145 = vrot.slane %v3400, 6
  %v5148 = vrot.slane %v3409, 5
  %v5150 = vrot.slane %v3417, 5
  %v5152 = vrot.slane %v3428, 4
  %v5155 = vrot.slane %v5062, 2
  %v5158 = vrot.slane %v5071, 1
  %v5160 = vsel %vm1751, %v1746, %v5127
  %v5161 = vsel %vm38, %v5160, %v5130
  %v5162 = vsel %vm40, %v5161, %v5132
  %vm5163 = vcmask 1043456
  %v5164 = vsel %vm5163, %v5162, %v5135
  %vm5165 = vcmask 1044480
  %v5166 = vsel %vm5165, %v5164, %v5138
  %vm5167 = vcmask 1045504
  %v5168 = vsel %vm5167, %v5166, %v5140
  %vm5169 = vcmask 1046528
  %v5170 = vsel %vm5169, %v5168, %v5142
  %v5171 = vsel %vm1751, %v5094, %v1744
  %v5172 = vsel %vm38, %v5171, %v5145
  %v5173 = vsel %vm40, %v5172, %v5148
  %v5174 = vsel %vm5163, %v5173, %v5150
  %v5175 = vsel %vm5165, %v5174, %v5152
  %v5176 = vsel %vm5167, %v5175, %v5155
  %v5177 = vsel %vm5169, %v5176, %v5158
  %v5179 = vrot.slane %v5079, 1
  %v5182 = vrot.slane %v5091, 6
  %v5185 = vrot.slane %v5092, 5
  %v5187 = vrot.slane %v3409, 4
  %v5190 = vrot.slane %v5102, 3
  %v5193 = vrot.slane %v5108, 2
  %v5196 = vrot.slane %v5112, 1
  %v5199 = vrot.slane %v5119, 1
  %v5202 = vrot.slane %v5126, 7
  %v5204 = vsel %vm1751, %v5179, %v5090
  %v5205 = vsel %vm38, %v5204, %v5182
  %v5206 = vsel %vm40, %v5205, %v5185
  %v5207 = vsel %vm5163, %v5206, %v5187
  %v5208 = vsel %vm5165, %v5207, %v5190
  %v5209 = vsel %vm5167, %v5208, %v5193
  %v5210 = vsel %vm5169, %v5209, %v5196
  %v5211 = vsel %vm1751, %v5199, %v5125
  %v5212 = vsel %vm38, %v5211, %v5202
  %v5213 = vsel %vm40, %v5212, 0.0
  %5214 = vst [vmem:[%s3] sm:$0xff] %v5170
  %5215 = vst [vmem:[%s3 + $0x8] sm:$0xff] %v5177
  %5216 = vst [vmem:[%s3 + $0x10] sm:$0xff] %v5210
  %5217 = vst [vmem:[%s3 + $0x18] sm:$0xff] %v5213
  // Predicated region
  $region14: #{_lambda_.1} parent=0 // pred_check
    _
  $region15: #{_lambda_.1} parent=0 // pred_check_branch
    %5219 = sbr.rel (0) target = $region17
  $region16: #{_lambda_.1} parent=0 // pred_region
    _
  $region17: #{_lambda_.1} parent=0 // pred_fallthru
    _
  // Predicated region
  $region18: #{_lambda_.1} parent=0 // pred_check
    _
  $region19: #{_lambda_.1} parent=0 // pred_check_branch
    %5221 = sbr.rel (0) target = $region21
  $region20: #{_lambda_.1} parent=0 // pred_region
    _
  $region21: #{_lambda_.1} parent=0 // pred_fallthru
    _

</llo_original>
